<compile_context>
chip_gen: v6e
topology: v6e:2x2x1
jax: 0.10.0
libtpu: 0.0.40
codegen_flags: <defaults>
</compile_context>

<pallas_src>
import jax
import jax.numpy as jnp
from jax import lax
from jax.experimental import pallas as pl
from jax.experimental.pallas import tpu as pltpu


def _round_up(v, m):
    return (v + m - 1) // m * m


def _make_kernel(H, W, Cp, TH, Wx, Wt1p):
    """Builds the per-(batch, row-tile) kernel.

    Refs seen by the kernel:
      x_hbm : (N, H+4, Wx, Cp) bf16 HBM (pl.ANY) -- spatially pre-padded input
      w1/w2 : (3, Cp, 3*Cp)    bf16  BN-folded weights, kw taps grouped on lanes
      b1/b2 : (1, Cp)          f32   folded BN shift
      o_ref : (1, TH, W, Cp)   f32   output row tile
      xwin  : (2, TH+4, Wx, Cp) bf16 double-buffered x halo window
      t1buf : (TH+2, Wt1p, Cp) bf16  conv2 activation (t1 with 1-px halo)
      acc1  : (TH+2, W+2, Cp)  f32   conv1 accumulator
      acc2  : (TH, W, Cp)      f32   conv2 accumulator
      sem   : DMA semaphores (2,)
    """

    def kernel(x_hbm, w1_ref, b1_ref, w2_ref, b2_ref, o_ref,
               xwin, t1buf, acc1, acc2, sem):
        n = pl.program_id(0)
        r = pl.program_id(1)
        nr = pl.num_programs(1)
        slot = r % 2

        def fetch(nn, rr, ss):
            pltpu.make_async_copy(
                x_hbm.at[nn, pl.ds(rr * TH, TH + 4), :, :],
                xwin.at[ss], sem.at[ss]).start()

        # Prime the double buffer at the first row tile of every batch element
        # (safe under megacore batch sharding: every core sees r == 0).
        @pl.when(r == 0)
        def _():
            fetch(n, r, slot)

        # Wait for the current tile's window (started last step or just above).
        pltpu.make_async_copy(
            x_hbm.at[n, pl.ds(r * TH, TH + 4), :, :],
            xwin.at[slot], sem.at[slot]).wait()

        # Prefetch the next row tile's window while computing this one.
        @pl.when(r + 1 < nr)
        def _():
            fetch(n, r + 1, 1 - slot)

        # ---------- conv1 + folded BN1 + ReLU  (matmul-then-shift) ----------
        # t1_ext[a, b] corresponds to conv1 centered at xwin[a+1, b+1]
        # (real row r*TH - 1 + a, real col b - 1): a 1-px halo for conv2.
        acc1[...] = jnp.zeros_like(acc1)
        for kh in range(3):
            lhs = xwin[slot][kh:kh + TH + 2, :, :].reshape((TH + 2) * Wx, Cp)
            y = jnp.dot(lhs, w1_ref[kh], preferred_element_type=jnp.float32)
            y = y.reshape(TH + 2, Wx, 3 * Cp)
            for kw in range(3):
                acc1[...] += y[:, kw:kw + W + 2, kw * Cp:(kw + 1) * Cp]

        t1 = jnp.maximum(acc1[...] + b1_ref[...], 0.0)
        # Zero t1 wherever it falls outside the real image (this realizes
        # conv2's zero padding and the first/last row-tile boundaries).
        rows = (r * TH - 1) + lax.broadcasted_iota(jnp.int32, (TH + 2, W + 2, Cp), 0)
        cols = lax.broadcasted_iota(jnp.int32, (TH + 2, W + 2, Cp), 1) - 1
        valid = (rows >= 0) & (rows < H) & (cols >= 0) & (cols < W)
        t1 = jnp.where(valid, t1, 0.0)
        t1buf[:, 0:W + 2, :] = t1.astype(jnp.bfloat16)
        if Wt1p > W + 2:
            # Keep the alignment-pad columns defined; their matmul results are
            # never read, but avoid feeding uninitialized VMEM into the MXU.
            t1buf[:, W + 2:, :] = jnp.zeros((TH + 2, Wt1p - (W + 2), Cp),
                                            jnp.bfloat16)

        # ---------- conv2 + folded BN2 + residual + ReLU ----------
        acc2[...] = jnp.zeros_like(acc2)
        for kh in range(3):
            lhs = t1buf[kh:kh + TH, :, :].reshape(TH * Wt1p, Cp)
            y = jnp.dot(lhs, w2_ref[kh], preferred_element_type=jnp.float32)
            y = y.reshape(TH, Wt1p, 3 * Cp)
            for kw in range(3):
                acc2[...] += y[:, kw:kw + W, kw * Cp:(kw + 1) * Cp]

        # Residual re-read from the resident window at the epilogue.
        xres = xwin[slot][2:2 + TH, 2:2 + W, :].astype(jnp.float32)
        out = jnp.maximum(acc2[...] + b2_ref[...] + xres, 0.0)
        o_ref[...] = out.reshape(o_ref.shape)

    return kernel


def basic_block(x_nchw, params, *, tile_h=8):
    """x_nchw: (N, C, H, W) f32.  Returns (N, C, H, W) f32."""
    N, C, H, W = x_nchw.shape
    planes = params['w1'].shape[3]
    assert C == planes and params['w1'].shape[2] == C, \
        "identity-shortcut BasicBlock requires inplanes == planes"

    Cp = max(_round_up(C, 128), 128)          # lane-dense channel width
    TH = max(1, min(tile_h, H))               # row-tile height (divides H)
    while H % TH != 0:
        TH -= 1
    R = H // TH
    Wx = _round_up(W + 4, 8)                  # x-window width (sublane aligned)
    Wt1p = _round_up(W + 2, 8)                # t1-buffer width (sublane aligned)

    # Fold BN scales into the conv weights; pad channels to Cp; group the 3 kw
    # taps along the output-channel (lane) axis: one (Cp, 3*Cp) matmul per kh.
    def prep_w(w, s):
        w = w * s.reshape(1, 1, 1, -1)
        w = jnp.pad(w, ((0, 0), (0, 0), (0, Cp - w.shape[2]), (0, Cp - w.shape[3])))
        w = jnp.transpose(w, (0, 2, 1, 3)).reshape(3, Cp, 3 * Cp)
        return w.astype(jnp.bfloat16)

    def prep_b(b):
        return jnp.pad(b, (0, Cp - b.shape[0])).reshape(1, Cp).astype(jnp.float32)

    w1g = prep_w(params['w1'], params['s1'])
    w2g = prep_w(params['w2'], params['s2'])
    b1p, b2p = prep_b(params['b1']), prep_b(params['b2'])

    # bf16 input in HBM, spatially pre-padded with the 2-px halo the two
    # stacked 3x3 convs need, width rounded up for sublane alignment.
    x_nhwc = jnp.transpose(x_nchw, (0, 2, 3, 1)).astype(jnp.bfloat16)
    x_pad = jnp.pad(x_nhwc, ((0, 0), (2, 2), (2, Wx - W - 2), (0, Cp - C)))

    # Generation-aware scoped VMEM limit (~75% of physical per-TC VMEM).
    try:
        cap = int(pltpu.get_tpu_info().vmem_capacity_bytes)
        vmem_limit = min(cap * 3 // 4, 100 * 1024 * 1024)
    except Exception:
        vmem_limit = 48 * 1024 * 1024

    m1 = (TH + 2) * Wx
    m2 = TH * Wt1p
    flops = N * R * 3 * 2 * (m1 + m2) * Cp * (3 * Cp)
    bytes_accessed = (x_pad.size * 2 * (TH + 4) // TH          # halo re-reads
                      + N * H * W * Cp * 4
                      + (w1g.size + w2g.size) * 2 + (b1p.size + b2p.size) * 4)
    cost = pl.CostEstimate(flops=int(flops), transcendentals=0,
                           bytes_accessed=int(bytes_accessed))

    kernel = _make_kernel(H, W, Cp, TH, Wx, Wt1p)

    def const(a):
        return pl.BlockSpec(a.shape, lambda n, r: (0,) * a.ndim)

    out_nhwc = pl.pallas_call(
        kernel,
        out_shape=jax.ShapeDtypeStruct((N, H, W, Cp), jnp.float32),
        grid=(N, R),
        in_specs=[
            pl.BlockSpec(memory_space=pl.ANY),       # x stays in HBM; manual DMA
            const(w1g), const(b1p), const(w2g), const(b2p),
        ],
        out_specs=pl.BlockSpec((1, TH, W, Cp), lambda n, r: (n, r, 0, 0)),
        scratch_shapes=[
            pltpu.VMEM((2, TH + 4, Wx, Cp), jnp.bfloat16),   # x halo window (x2)
            pltpu.VMEM((TH + 2, Wt1p, Cp), jnp.bfloat16),    # t1 (conv2 act)
            pltpu.VMEM((TH + 2, W + 2, Cp), jnp.float32),    # conv1 accumulator
            pltpu.VMEM((TH, W, Cp), jnp.float32),            # conv2 accumulator
            pltpu.SemaphoreType.DMA((2,)),
        ],
        compiler_params=pltpu.CompilerParams(
            dimension_semantics=("parallel", "arbitrary"),
            vmem_limit_bytes=vmem_limit),
        cost_estimate=cost,
    )(x_pad, w1g, b1p, w2g, b2p)

    return jnp.transpose(out_nhwc[..., :C], (0, 3, 1, 2))


# -------------------- pure-JAX reference for validation --------------------
def ref_forward(x_nchw, params):
    """Reference BasicBlock forward (BN folded).  Conv operands and the
    residual use bf16-rounded x exactly like the kernel, so the comparison
    isolates semantics."""
    dn = ('NHWC', 'HWIO', 'NHWC')

    def bf16r(a):
        return a.astype(jnp.bfloat16).astype(jnp.float32)

    def conv(a, w):
        return lax.conv_general_dilated(a, w, (1, 1), ((1, 1), (1, 1)),
                                        dimension_numbers=dn,
                                        precision=lax.Precision.HIGHEST)

    x = bf16r(jnp.transpose(x_nchw, (0, 2, 3, 1)))
    w1f = bf16r(params['w1'] * params['s1'].reshape(1, 1, 1, -1))
    w2f = bf16r(params['w2'] * params['s2'].reshape(1, 1, 1, -1))
    t = jax.nn.relu(conv(x, w1f) + params['b1'].reshape(1, 1, 1, -1))
    t = conv(bf16r(t), w2f) + params['b2'].reshape(1, 1, 1, -1)
    out = jax.nn.relu(t + x)
    return jnp.transpose(out, (0, 3, 1, 2))


def make_params(key, planes):
    eps = 1e-5
    ks = jax.random.split(key, 4)

    def bn_fold(k, c):
        k1, k2, k3, k4 = jax.random.split(k, 4)
        gamma = 1.0 + 0.1 * jax.random.normal(k1, (c,), jnp.float32)
        beta = 0.1 * jax.random.normal(k2, (c,), jnp.float32)
        mean = 0.1 * jax.random.normal(k3, (c,), jnp.float32)
        var = jnp.abs(jax.random.normal(k4, (c,), jnp.float32)) + 0.5
        scale = gamma / jnp.sqrt(var + eps)
        shift = beta - mean * scale
        return scale, shift

    s1, b1 = bn_fold(ks[0], planes)
    s2, b2 = bn_fold(ks[1], planes)
    return {
        # 3x3 conv weights stored HWIO.
        'w1': 0.2 * jax.random.normal(ks[2], (3, 3, planes, planes), jnp.float32),
        'w2': 0.2 * jax.random.normal(ks[3], (3, 3, planes, planes), jnp.float32),
        's1': s1, 'b1': b1, 's2': s2, 'b2': b2,
    }


if __name__ == "__main__":
    key = jax.random.PRNGKey(0)
    k_x, k_p = jax.random.split(key)

    N, planes, H, W = 2, 4, 16, 16
    x = jax.random.normal(k_x, (N, planes, H, W), jnp.float32)
    params = make_params(k_p, planes)

    out = jax.block_until_ready(basic_block(x, params, tile_h=8))
    ref = ref_forward(x, params)

    assert out.shape == (N, planes, H, W)
    max_err = jnp.max(jnp.abs(out - ref))
    assert jnp.allclose(out, ref, atol=2e-3, rtol=2e-3), f"max abs err {max_err}"
    print("KERNEL_OK")
</pallas_src>

<mosaic_0001>
module attributes {stable_mosaic.version = 11 : i64} {
  func.func @kernel(%arg0: i32, %arg1: i32, %arg2: memref<2x20x24x128xbf16, #tpu.memory_space<any>>, %arg3: memref<3x128x384xbf16, #tpu.memory_space<vmem>>, %arg4: memref<1x128xf32, #tpu.memory_space<vmem>>, %arg5: memref<3x128x384xbf16, #tpu.memory_space<vmem>>, %arg6: memref<1x128xf32, #tpu.memory_space<vmem>>, %arg7: memref<1x8x16x128xf32, #tpu.memory_space<vmem>>, %arg8: memref<2x12x24x128xbf16, #tpu.memory_space<vmem>>, %arg9: memref<10x24x128xbf16, #tpu.memory_space<vmem>>, %arg10: memref<10x18x128xf32, #tpu.memory_space<vmem>>, %arg11: memref<8x16x128xf32, #tpu.memory_space<vmem>>, %arg12: memref<2x!tpu.dma_semaphore, #tpu.memory_space<semaphore_mem>>) attributes {dimension_semantics = [#tpu.dimension_semantics<parallel>, #tpu.dimension_semantics<arbitrary>], iteration_bounds = array<i64: 2, 2>, scalar_prefetch = 0 : i64, scratch_operands = 5 : i64, tpu.core_type = #tpu.core_type<tc>, window_params = [{}, {pipeline_mode = #tpu.pipeline_mode<synchronous>, transform_indices = @transform_1, window_bounds = array<i64: 3, 128, 384>}, {pipeline_mode = #tpu.pipeline_mode<synchronous>, transform_indices = @transform_2, window_bounds = array<i64: 1, 128>}, {pipeline_mode = #tpu.pipeline_mode<synchronous>, transform_indices = @transform_3, window_bounds = array<i64: 3, 128, 384>}, {pipeline_mode = #tpu.pipeline_mode<synchronous>, transform_indices = @transform_4, window_bounds = array<i64: 1, 128>}, {transform_indices = @transform_5, window_bounds = array<i64: 1, 8, 16, 128>}]} {
    %c2_i32 = arith.constant 2 : i32
    %c0_i32 = arith.constant 0 : i32
    %0 = arith.cmpi eq, %c2_i32, %c0_i32 : i32
    %c1_i32 = arith.constant 1 : i32
    %1 = arith.select %0, %c1_i32, %c2_i32 : i32
    %2 = arith.remsi %arg1, %1 : i32
    %c0_i32_0 = arith.constant 0 : i32
    %3 = arith.cmpi ne, %2, %c0_i32_0 : i32
    %c0_i32_1 = arith.constant 0 : i32
    %4 = arith.cmpi slt, %2, %c0_i32_1 : i32
    %c0_i32_2 = arith.constant 0 : i32
    %5 = arith.cmpi slt, %1, %c0_i32_2 : i32
    %6 = arith.xori %4, %5 : i1
    %7 = arith.andi %6, %3 : i1
    %8 = arith.addi %2, %1 : i32
    %9 = arith.select %7, %8, %2 : i32
    %c0_i32_3 = arith.constant 0 : i32
    %10 = arith.cmpi eq, %arg1, %c0_i32_3 : i32
    %11 = arith.extui %10 : i1 to i32
    %c0_i32_4 = arith.constant 0 : i32
    %12 = arith.cmpi ne, %11, %c0_i32_4 : i32
    scf.if %12 {
      %c8_i32_199 = arith.constant 8 : i32
      %192 = arith.muli %arg1, %c8_i32_199 : i32
      %c0_i32_200 = arith.constant 0 : i32
      %c0_i32_201 = arith.constant 0 : i32
      %193 = tpu.memref_slice %arg2[%arg0, %192, %c0_i32_200, %c0_i32_201] : memref<2x20x24x128xbf16, #tpu.memory_space<any>> -> memref<1x12x24x128xbf16, #tpu.memory_space<any>>
      %194 = tpu.memref_squeeze %193 : memref<1x12x24x128xbf16, #tpu.memory_space<any>> -> memref<12x24x128xbf16, #tpu.memory_space<any>>
      %c0_i32_202 = arith.constant 0 : i32
      %c0_i32_203 = arith.constant 0 : i32
      %c0_i32_204 = arith.constant 0 : i32
      %195 = tpu.memref_slice %arg8[%9, %c0_i32_202, %c0_i32_203, %c0_i32_204] : memref<2x12x24x128xbf16, #tpu.memory_space<vmem>> -> memref<1x12x24x128xbf16, #tpu.memory_space<vmem>>
      %196 = tpu.memref_squeeze %195 : memref<1x12x24x128xbf16, #tpu.memory_space<vmem>> -> memref<12x24x128xbf16, #tpu.memory_space<vmem>>
      %197 = tpu.memref_slice %arg12[%9] : memref<2x!tpu.dma_semaphore, #tpu.memory_space<semaphore_mem>> -> memref<1x!tpu.dma_semaphore, #tpu.memory_space<semaphore_mem>>
      %198 = tpu.memref_squeeze %197 : memref<1x!tpu.dma_semaphore, #tpu.memory_space<semaphore_mem>> -> memref<!tpu.dma_semaphore, #tpu.memory_space<semaphore_mem>>
      tpu.enqueue_dma source(%194 : memref<12x24x128xbf16, #tpu.memory_space<any>>) target(%196 : memref<12x24x128xbf16, #tpu.memory_space<vmem>>) target_semaphore(%198 : memref<!tpu.dma_semaphore, #tpu.memory_space<semaphore_mem>>)
    } else {
    }
    %c8_i32 = arith.constant 8 : i32
    %13 = arith.muli %arg1, %c8_i32 : i32
    %c0_i32_5 = arith.constant 0 : i32
    %c0_i32_6 = arith.constant 0 : i32
    %14 = tpu.memref_slice %arg2[%arg0, %13, %c0_i32_5, %c0_i32_6] : memref<2x20x24x128xbf16, #tpu.memory_space<any>> -> memref<1x12x24x128xbf16, #tpu.memory_space<any>>
    %15 = tpu.memref_squeeze %14 : memref<1x12x24x128xbf16, #tpu.memory_space<any>> -> memref<12x24x128xbf16, #tpu.memory_space<any>>
    %c0_i32_7 = arith.constant 0 : i32
    %c0_i32_8 = arith.constant 0 : i32
    %c0_i32_9 = arith.constant 0 : i32
    %16 = tpu.memref_slice %arg8[%9, %c0_i32_7, %c0_i32_8, %c0_i32_9] : memref<2x12x24x128xbf16, #tpu.memory_space<vmem>> -> memref<1x12x24x128xbf16, #tpu.memory_space<vmem>>
    %17 = tpu.memref_squeeze %16 : memref<1x12x24x128xbf16, #tpu.memory_space<vmem>> -> memref<12x24x128xbf16, #tpu.memory_space<vmem>>
    %18 = tpu.memref_slice %arg12[%9] : memref<2x!tpu.dma_semaphore, #tpu.memory_space<semaphore_mem>> -> memref<1x!tpu.dma_semaphore, #tpu.memory_space<semaphore_mem>>
    %19 = tpu.memref_squeeze %18 : memref<1x!tpu.dma_semaphore, #tpu.memory_space<semaphore_mem>> -> memref<!tpu.dma_semaphore, #tpu.memory_space<semaphore_mem>>
    tpu.wait_dma2 semaphore(%19 : memref<!tpu.dma_semaphore, #tpu.memory_space<semaphore_mem>>) src(%15 : memref<12x24x128xbf16, #tpu.memory_space<any>>) dst(%17 : memref<12x24x128xbf16, #tpu.memory_space<vmem>>)
    %c1_i32_10 = arith.constant 1 : i32
    %20 = arith.addi %arg1, %c1_i32_10 : i32
    %c2_i32_11 = arith.constant 2 : i32
    %21 = arith.cmpi slt, %20, %c2_i32_11 : i32
    %22 = arith.extui %21 : i1 to i32
    %c0_i32_12 = arith.constant 0 : i32
    %23 = arith.cmpi ne, %22, %c0_i32_12 : i32
    scf.if %23 {
      %c1_i32_199 = arith.constant 1 : i32
      %192 = arith.addi %arg1, %c1_i32_199 : i32
      %c1_i32_200 = arith.constant 1 : i32
      %193 = arith.subi %c1_i32_200, %9 : i32
      %c8_i32_201 = arith.constant 8 : i32
      %194 = arith.muli %192, %c8_i32_201 : i32
      %c0_i32_202 = arith.constant 0 : i32
      %c0_i32_203 = arith.constant 0 : i32
      %195 = tpu.memref_slice %arg2[%arg0, %194, %c0_i32_202, %c0_i32_203] : memref<2x20x24x128xbf16, #tpu.memory_space<any>> -> memref<1x12x24x128xbf16, #tpu.memory_space<any>>
      %196 = tpu.memref_squeeze %195 : memref<1x12x24x128xbf16, #tpu.memory_space<any>> -> memref<12x24x128xbf16, #tpu.memory_space<any>>
      %c0_i32_204 = arith.constant 0 : i32
      %c0_i32_205 = arith.constant 0 : i32
      %c0_i32_206 = arith.constant 0 : i32
      %197 = tpu.memref_slice %arg8[%193, %c0_i32_204, %c0_i32_205, %c0_i32_206] : memref<2x12x24x128xbf16, #tpu.memory_space<vmem>> -> memref<1x12x24x128xbf16, #tpu.memory_space<vmem>>
      %198 = tpu.memref_squeeze %197 : memref<1x12x24x128xbf16, #tpu.memory_space<vmem>> -> memref<12x24x128xbf16, #tpu.memory_space<vmem>>
      %199 = tpu.memref_slice %arg12[%193] : memref<2x!tpu.dma_semaphore, #tpu.memory_space<semaphore_mem>> -> memref<1x!tpu.dma_semaphore, #tpu.memory_space<semaphore_mem>>
      %200 = tpu.memref_squeeze %199 : memref<1x!tpu.dma_semaphore, #tpu.memory_space<semaphore_mem>> -> memref<!tpu.dma_semaphore, #tpu.memory_space<semaphore_mem>>
      tpu.enqueue_dma source(%196 : memref<12x24x128xbf16, #tpu.memory_space<any>>) target(%198 : memref<12x24x128xbf16, #tpu.memory_space<vmem>>) target_semaphore(%200 : memref<!tpu.dma_semaphore, #tpu.memory_space<semaphore_mem>>)
    } else {
    }
    %cst = arith.constant 0.000000e+00 : f32
    %24 = vector.broadcast %cst : f32 to vector<10x18x128xf32>
    %c0 = arith.constant 0 : index
    %c0_13 = arith.constant 0 : index
    %c0_14 = arith.constant 0 : index
    %25 = vector.load %arg10[%c0, %c0_13, %c0_14] : memref<10x18x128xf32, #tpu.memory_space<vmem>>, vector<10x18x128xf32>
    tpu.vector_store %arg10[%c0, %c0_13, %c0_14], %24 {strides = array<i32>} : memref<10x18x128xf32, #tpu.memory_space<vmem>>, vector<10x18x128xf32>,
    %26 = arith.index_cast %9 : i32 to index
    %c0_15 = arith.constant 0 : index
    %c0_16 = arith.constant 0 : index
    %c0_17 = arith.constant 0 : index
    %27 = vector.load %arg8[%26, %c0_15, %c0_16, %c0_17] : memref<2x12x24x128xbf16, #tpu.memory_space<vmem>>, vector<1x12x24x128xbf16>
    %28 = vector.shape_cast %27 : vector<1x12x24x128xbf16> to vector<12x24x128xbf16>
    %29 = vector.extract_strided_slice %28 {offsets = [0, 0, 0], sizes = [10, 24, 128], strides = [1, 1, 1]} : vector<12x24x128xbf16> to vector<10x24x128xbf16>
    %30 = vector.shape_cast %29 : vector<10x24x128xbf16> to vector<240x128xbf16>
    %c0_18 = arith.constant 0 : index
    %c0_19 = arith.constant 0 : index
    %c0_20 = arith.constant 0 : index
    %31 = vector.load %arg3[%c0_18, %c0_19, %c0_20] : memref<3x128x384xbf16, #tpu.memory_space<vmem>>, vector<1x128x384xbf16>
    %32 = vector.shape_cast %31 : vector<1x128x384xbf16> to vector<128x384xbf16>
    %cst_21 = arith.constant dense<0.000000e+00> : vector<240x384xf32>
    %33 = tpu.matmul %30, %32, %cst_21 {dimension_numbers = #tpu.dot_dimension_numbers<[1], [0], [0], [1], [0, 0, 1, 1], [], []>} : vector<240x128xbf16>, vector<128x384xbf16>, vector<240x384xf32> -> vector<240x384xf32>
    %34 = vector.shape_cast %33 : vector<240x384xf32> to vector<10x24x384xf32>
    %c0_22 = arith.constant 0 : index
    %c0_23 = arith.constant 0 : index
    %c0_24 = arith.constant 0 : index
    %35 = vector.load %arg10[%c0_22, %c0_23, %c0_24] : memref<10x18x128xf32, #tpu.memory_space<vmem>>, vector<10x18x128xf32>
    %36 = vector.extract_strided_slice %34 {offsets = [0, 0, 0], sizes = [10, 18, 128], strides = [1, 1, 1]} : vector<10x24x384xf32> to vector<10x18x128xf32>
    %37 = arith.addf %35, %36 : vector<10x18x128xf32>
    %c0_25 = arith.constant 0 : index
    %c0_26 = arith.constant 0 : index
    %c0_27 = arith.constant 0 : index
    %38 = vector.load %arg10[%c0_25, %c0_26, %c0_27] : memref<10x18x128xf32, #tpu.memory_space<vmem>>, vector<10x18x128xf32>
    tpu.vector_store %arg10[%c0_25, %c0_26, %c0_27], %37 {strides = array<i32>} : memref<10x18x128xf32, #tpu.memory_space<vmem>>, vector<10x18x128xf32>,
    %c0_28 = arith.constant 0 : index
    %c0_29 = arith.constant 0 : index
    %c0_30 = arith.constant 0 : index
    %39 = vector.load %arg10[%c0_28, %c0_29, %c0_30] : memref<10x18x128xf32, #tpu.memory_space<vmem>>, vector<10x18x128xf32>
    %40 = vector.extract_strided_slice %34 {offsets = [0, 1, 128], sizes = [10, 18, 128], strides = [1, 1, 1]} : vector<10x24x384xf32> to vector<10x18x128xf32>
    %41 = arith.addf %39, %40 : vector<10x18x128xf32>
    %c0_31 = arith.constant 0 : index
    %c0_32 = arith.constant 0 : index
    %c0_33 = arith.constant 0 : index
    %42 = vector.load %arg10[%c0_31, %c0_32, %c0_33] : memref<10x18x128xf32, #tpu.memory_space<vmem>>, vector<10x18x128xf32>
    tpu.vector_store %arg10[%c0_31, %c0_32, %c0_33], %41 {strides = array<i32>} : memref<10x18x128xf32, #tpu.memory_space<vmem>>, vector<10x18x128xf32>,
    %c0_34 = arith.constant 0 : index
    %c0_35 = arith.constant 0 : index
    %c0_36 = arith.constant 0 : index
    %43 = vector.load %arg10[%c0_34, %c0_35, %c0_36] : memref<10x18x128xf32, #tpu.memory_space<vmem>>, vector<10x18x128xf32>
    %44 = vector.extract_strided_slice %34 {offsets = [0, 2, 256], sizes = [10, 18, 128], strides = [1, 1, 1]} : vector<10x24x384xf32> to vector<10x18x128xf32>
    %45 = arith.addf %43, %44 : vector<10x18x128xf32>
    %c0_37 = arith.constant 0 : index
    %c0_38 = arith.constant 0 : index
    %c0_39 = arith.constant 0 : index
    %46 = vector.load %arg10[%c0_37, %c0_38, %c0_39] : memref<10x18x128xf32, #tpu.memory_space<vmem>>, vector<10x18x128xf32>
    tpu.vector_store %arg10[%c0_37, %c0_38, %c0_39], %45 {strides = array<i32>} : memref<10x18x128xf32, #tpu.memory_space<vmem>>, vector<10x18x128xf32>,
    %47 = arith.index_cast %9 : i32 to index
    %c0_40 = arith.constant 0 : index
    %c0_41 = arith.constant 0 : index
    %c0_42 = arith.constant 0 : index
    %48 = vector.load %arg8[%47, %c0_40, %c0_41, %c0_42] : memref<2x12x24x128xbf16, #tpu.memory_space<vmem>>, vector<1x12x24x128xbf16>
    %49 = vector.shape_cast %48 : vector<1x12x24x128xbf16> to vector<12x24x128xbf16>
    %50 = vector.extract_strided_slice %49 {offsets = [1, 0, 0], sizes = [10, 24, 128], strides = [1, 1, 1]} : vector<12x24x128xbf16> to vector<10x24x128xbf16>
    %51 = vector.shape_cast %50 : vector<10x24x128xbf16> to vector<240x128xbf16>
    %c1 = arith.constant 1 : index
    %c0_43 = arith.constant 0 : index
    %c0_44 = arith.constant 0 : index
    %52 = vector.load %arg3[%c1, %c0_43, %c0_44] : memref<3x128x384xbf16, #tpu.memory_space<vmem>>, vector<1x128x384xbf16>
    %53 = vector.shape_cast %52 : vector<1x128x384xbf16> to vector<128x384xbf16>
    %cst_45 = arith.constant dense<0.000000e+00> : vector<240x384xf32>
    %54 = tpu.matmul %51, %53, %cst_45 {dimension_numbers = #tpu.dot_dimension_numbers<[1], [0], [0], [1], [0, 0, 1, 1], [], []>} : vector<240x128xbf16>, vector<128x384xbf16>, vector<240x384xf32> -> vector<240x384xf32>
    %55 = vector.shape_cast %54 : vector<240x384xf32> to vector<10x24x384xf32>
    %c0_46 = arith.constant 0 : index
    %c0_47 = arith.constant 0 : index
    %c0_48 = arith.constant 0 : index
    %56 = vector.load %arg10[%c0_46, %c0_47, %c0_48] : memref<10x18x128xf32, #tpu.memory_space<vmem>>, vector<10x18x128xf32>
    %57 = vector.extract_strided_slice %55 {offsets = [0, 0, 0], sizes = [10, 18, 128], strides = [1, 1, 1]} : vector<10x24x384xf32> to vector<10x18x128xf32>
    %58 = arith.addf %56, %57 : vector<10x18x128xf32>
    %c0_49 = arith.constant 0 : index
    %c0_50 = arith.constant 0 : index
    %c0_51 = arith.constant 0 : index
    %59 = vector.load %arg10[%c0_49, %c0_50, %c0_51] : memref<10x18x128xf32, #tpu.memory_space<vmem>>, vector<10x18x128xf32>
    tpu.vector_store %arg10[%c0_49, %c0_50, %c0_51], %58 {strides = array<i32>} : memref<10x18x128xf32, #tpu.memory_space<vmem>>, vector<10x18x128xf32>,
    %c0_52 = arith.constant 0 : index
    %c0_53 = arith.constant 0 : index
    %c0_54 = arith.constant 0 : index
    %60 = vector.load %arg10[%c0_52, %c0_53, %c0_54] : memref<10x18x128xf32, #tpu.memory_space<vmem>>, vector<10x18x128xf32>
    %61 = vector.extract_strided_slice %55 {offsets = [0, 1, 128], sizes = [10, 18, 128], strides = [1, 1, 1]} : vector<10x24x384xf32> to vector<10x18x128xf32>
    %62 = arith.addf %60, %61 : vector<10x18x128xf32>
    %c0_55 = arith.constant 0 : index
    %c0_56 = arith.constant 0 : index
    %c0_57 = arith.constant 0 : index
    %63 = vector.load %arg10[%c0_55, %c0_56, %c0_57] : memref<10x18x128xf32, #tpu.memory_space<vmem>>, vector<10x18x128xf32>
    tpu.vector_store %arg10[%c0_55, %c0_56, %c0_57], %62 {strides = array<i32>} : memref<10x18x128xf32, #tpu.memory_space<vmem>>, vector<10x18x128xf32>,
    %c0_58 = arith.constant 0 : index
    %c0_59 = arith.constant 0 : index
    %c0_60 = arith.constant 0 : index
    %64 = vector.load %arg10[%c0_58, %c0_59, %c0_60] : memref<10x18x128xf32, #tpu.memory_space<vmem>>, vector<10x18x128xf32>
    %65 = vector.extract_strided_slice %55 {offsets = [0, 2, 256], sizes = [10, 18, 128], strides = [1, 1, 1]} : vector<10x24x384xf32> to vector<10x18x128xf32>
    %66 = arith.addf %64, %65 : vector<10x18x128xf32>
    %c0_61 = arith.constant 0 : index
    %c0_62 = arith.constant 0 : index
    %c0_63 = arith.constant 0 : index
    %67 = vector.load %arg10[%c0_61, %c0_62, %c0_63] : memref<10x18x128xf32, #tpu.memory_space<vmem>>, vector<10x18x128xf32>
    tpu.vector_store %arg10[%c0_61, %c0_62, %c0_63], %66 {strides = array<i32>} : memref<10x18x128xf32, #tpu.memory_space<vmem>>, vector<10x18x128xf32>,
    %68 = arith.index_cast %9 : i32 to index
    %c0_64 = arith.constant 0 : index
    %c0_65 = arith.constant 0 : index
    %c0_66 = arith.constant 0 : index
    %69 = vector.load %arg8[%68, %c0_64, %c0_65, %c0_66] : memref<2x12x24x128xbf16, #tpu.memory_space<vmem>>, vector<1x12x24x128xbf16>
    %70 = vector.shape_cast %69 : vector<1x12x24x128xbf16> to vector<12x24x128xbf16>
    %71 = vector.extract_strided_slice %70 {offsets = [2, 0, 0], sizes = [10, 24, 128], strides = [1, 1, 1]} : vector<12x24x128xbf16> to vector<10x24x128xbf16>
    %72 = vector.shape_cast %71 : vector<10x24x128xbf16> to vector<240x128xbf16>
    %c2 = arith.constant 2 : index
    %c0_67 = arith.constant 0 : index
    %c0_68 = arith.constant 0 : index
    %73 = vector.load %arg3[%c2, %c0_67, %c0_68] : memref<3x128x384xbf16, #tpu.memory_space<vmem>>, vector<1x128x384xbf16>
    %74 = vector.shape_cast %73 : vector<1x128x384xbf16> to vector<128x384xbf16>
    %cst_69 = arith.constant dense<0.000000e+00> : vector<240x384xf32>
    %75 = tpu.matmul %72, %74, %cst_69 {dimension_numbers = #tpu.dot_dimension_numbers<[1], [0], [0], [1], [0, 0, 1, 1], [], []>} : vector<240x128xbf16>, vector<128x384xbf16>, vector<240x384xf32> -> vector<240x384xf32>
    %76 = vector.shape_cast %75 : vector<240x384xf32> to vector<10x24x384xf32>
    %c0_70 = arith.constant 0 : index
    %c0_71 = arith.constant 0 : index
    %c0_72 = arith.constant 0 : index
    %77 = vector.load %arg10[%c0_70, %c0_71, %c0_72] : memref<10x18x128xf32, #tpu.memory_space<vmem>>, vector<10x18x128xf32>
    %78 = vector.extract_strided_slice %76 {offsets = [0, 0, 0], sizes = [10, 18, 128], strides = [1, 1, 1]} : vector<10x24x384xf32> to vector<10x18x128xf32>
    %79 = arith.addf %77, %78 : vector<10x18x128xf32>
    %c0_73 = arith.constant 0 : index
    %c0_74 = arith.constant 0 : index
    %c0_75 = arith.constant 0 : index
    %80 = vector.load %arg10[%c0_73, %c0_74, %c0_75] : memref<10x18x128xf32, #tpu.memory_space<vmem>>, vector<10x18x128xf32>
    tpu.vector_store %arg10[%c0_73, %c0_74, %c0_75], %79 {strides = array<i32>} : memref<10x18x128xf32, #tpu.memory_space<vmem>>, vector<10x18x128xf32>,
    %c0_76 = arith.constant 0 : index
    %c0_77 = arith.constant 0 : index
    %c0_78 = arith.constant 0 : index
    %81 = vector.load %arg10[%c0_76, %c0_77, %c0_78] : memref<10x18x128xf32, #tpu.memory_space<vmem>>, vector<10x18x128xf32>
    %82 = vector.extract_strided_slice %76 {offsets = [0, 1, 128], sizes = [10, 18, 128], strides = [1, 1, 1]} : vector<10x24x384xf32> to vector<10x18x128xf32>
    %83 = arith.addf %81, %82 : vector<10x18x128xf32>
    %c0_79 = arith.constant 0 : index
    %c0_80 = arith.constant 0 : index
    %c0_81 = arith.constant 0 : index
    %84 = vector.load %arg10[%c0_79, %c0_80, %c0_81] : memref<10x18x128xf32, #tpu.memory_space<vmem>>, vector<10x18x128xf32>
    tpu.vector_store %arg10[%c0_79, %c0_80, %c0_81], %83 {strides = array<i32>} : memref<10x18x128xf32, #tpu.memory_space<vmem>>, vector<10x18x128xf32>,
    %c0_82 = arith.constant 0 : index
    %c0_83 = arith.constant 0 : index
    %c0_84 = arith.constant 0 : index
    %85 = vector.load %arg10[%c0_82, %c0_83, %c0_84] : memref<10x18x128xf32, #tpu.memory_space<vmem>>, vector<10x18x128xf32>
    %86 = vector.extract_strided_slice %76 {offsets = [0, 2, 256], sizes = [10, 18, 128], strides = [1, 1, 1]} : vector<10x24x384xf32> to vector<10x18x128xf32>
    %87 = arith.addf %85, %86 : vector<10x18x128xf32>
    %c0_85 = arith.constant 0 : index
    %c0_86 = arith.constant 0 : index
    %c0_87 = arith.constant 0 : index
    %88 = vector.load %arg10[%c0_85, %c0_86, %c0_87] : memref<10x18x128xf32, #tpu.memory_space<vmem>>, vector<10x18x128xf32>
    tpu.vector_store %arg10[%c0_85, %c0_86, %c0_87], %87 {strides = array<i32>} : memref<10x18x128xf32, #tpu.memory_space<vmem>>, vector<10x18x128xf32>,
    %c0_88 = arith.constant 0 : index
    %c0_89 = arith.constant 0 : index
    %c0_90 = arith.constant 0 : index
    %89 = vector.load %arg10[%c0_88, %c0_89, %c0_90] : memref<10x18x128xf32, #tpu.memory_space<vmem>>, vector<10x18x128xf32>
    %c0_91 = arith.constant 0 : index
    %c0_92 = arith.constant 0 : index
    %90 = vector.load %arg4[%c0_91, %c0_92] : memref<1x128xf32, #tpu.memory_space<vmem>>, vector<1x128xf32>
    %91 = vector.shape_cast %90 : vector<1x128xf32> to vector<1x1x128xf32>
    %92 = vector.broadcast %91 : vector<1x1x128xf32> to vector<10x18x128xf32>
    %93 = arith.addf %89, %92 : vector<10x18x128xf32>
    %cst_93 = arith.constant 0.000000e+00 : f32
    %94 = vector.broadcast %cst_93 : f32 to vector<10x18x128xf32>
    %95 = arith.maximumf %93, %94 : vector<10x18x128xf32>
    %c8_i32_94 = arith.constant 8 : i32
    %96 = arith.muli %arg1, %c8_i32_94 : i32
    %c1_i32_95 = arith.constant 1 : i32
    %97 = arith.subi %96, %c1_i32_95 : i32
    %98 = tpu.iota {dimensions = array<i32: 0>} : vector<10x18x128xi32>
    %99 = vector.broadcast %97 : i32 to vector<10x18x128xi32>
    %100 = arith.addi %99, %98 : vector<10x18x128xi32>
    %101 = tpu.iota {dimensions = array<i32: 1>} : vector<10x18x128xi32>
    %c1_i32_96 = arith.constant 1 : i32
    %102 = vector.broadcast %c1_i32_96 : i32 to vector<10x18x128xi32>
    %103 = arith.subi %101, %102 : vector<10x18x128xi32>
    %c0_i32_97 = arith.constant 0 : i32
    %104 = vector.broadcast %c0_i32_97 : i32 to vector<10x18x128xi32>
    %105 = arith.cmpi sge, %100, %104 : vector<10x18x128xi32>
    %c16_i32 = arith.constant 16 : i32
    %106 = vector.broadcast %c16_i32 : i32 to vector<10x18x128xi32>
    %107 = arith.cmpi slt, %100, %106 : vector<10x18x128xi32>
    %108 = arith.andi %105, %107 : vector<10x18x128xi1>
    %c0_i32_98 = arith.constant 0 : i32
    %109 = vector.broadcast %c0_i32_98 : i32 to vector<10x18x128xi32>
    %110 = arith.cmpi sge, %103, %109 : vector<10x18x128xi32>
    %111 = arith.andi %108, %110 : vector<10x18x128xi1>
    %c16_i32_99 = arith.constant 16 : i32
    %112 = vector.broadcast %c16_i32_99 : i32 to vector<10x18x128xi32>
    %113 = arith.cmpi slt, %103, %112 : vector<10x18x128xi32>
    %114 = arith.andi %111, %113 : vector<10x18x128xi1>
    %cst_100 = arith.constant 0.000000e+00 : f32
    %115 = vector.broadcast %cst_100 : f32 to vector<10x18x128xf32>
    %116 = arith.select %114, %95, %115 : vector<10x18x128xi1>, vector<10x18x128xf32>
    %117 = arith.truncf %116 : vector<10x18x128xf32> to vector<10x18x128xbf16>
    %c0_101 = arith.constant 0 : index
    %c0_102 = arith.constant 0 : index
    %c0_103 = arith.constant 0 : index
    %118 = vector.load %arg9[%c0_101, %c0_102, %c0_103] : memref<10x24x128xbf16, #tpu.memory_space<vmem>>, vector<10x18x128xbf16>
    tpu.vector_store %arg9[%c0_101, %c0_102, %c0_103], %117 {strides = array<i32>} : memref<10x24x128xbf16, #tpu.memory_space<vmem>>, vector<10x18x128xbf16>,
    %cst_104 = arith.constant 0.000000e+00 : bf16
    %119 = vector.broadcast %cst_104 : bf16 to vector<10x6x128xbf16>
    %c0_105 = arith.constant 0 : index
    %c18 = arith.constant 18 : index
    %c0_106 = arith.constant 0 : index
    %120 = vector.load %arg9[%c0_105, %c18, %c0_106] : memref<10x24x128xbf16, #tpu.memory_space<vmem>>, vector<10x6x128xbf16>
    tpu.vector_store %arg9[%c0_105, %c18, %c0_106], %119 {strides = array<i32>} : memref<10x24x128xbf16, #tpu.memory_space<vmem>>, vector<10x6x128xbf16>,
    %cst_107 = arith.constant 0.000000e+00 : f32
    %121 = vector.broadcast %cst_107 : f32 to vector<8x16x128xf32>
    %c0_108 = arith.constant 0 : index
    %c0_109 = arith.constant 0 : index
    %c0_110 = arith.constant 0 : index
    %122 = vector.load %arg11[%c0_108, %c0_109, %c0_110] : memref<8x16x128xf32, #tpu.memory_space<vmem>>, vector<8x16x128xf32>
    tpu.vector_store %arg11[%c0_108, %c0_109, %c0_110], %121 {strides = array<i32>} : memref<8x16x128xf32, #tpu.memory_space<vmem>>, vector<8x16x128xf32>,
    %c0_111 = arith.constant 0 : index
    %c0_112 = arith.constant 0 : index
    %c0_113 = arith.constant 0 : index
    %123 = vector.load %arg9[%c0_111, %c0_112, %c0_113] : memref<10x24x128xbf16, #tpu.memory_space<vmem>>, vector<8x24x128xbf16>
    %124 = vector.shape_cast %123 : vector<8x24x128xbf16> to vector<192x128xbf16>
    %c0_114 = arith.constant 0 : index
    %c0_115 = arith.constant 0 : index
    %c0_116 = arith.constant 0 : index
    %125 = vector.load %arg5[%c0_114, %c0_115, %c0_116] : memref<3x128x384xbf16, #tpu.memory_space<vmem>>, vector<1x128x384xbf16>
    %126 = vector.shape_cast %125 : vector<1x128x384xbf16> to vector<128x384xbf16>
    %cst_117 = arith.constant dense<0.000000e+00> : vector<192x384xf32>
    %127 = tpu.matmul %124, %126, %cst_117 {dimension_numbers = #tpu.dot_dimension_numbers<[1], [0], [0], [1], [0, 0, 1, 1], [], []>} : vector<192x128xbf16>, vector<128x384xbf16>, vector<192x384xf32> -> vector<192x384xf32>
    %128 = vector.shape_cast %127 : vector<192x384xf32> to vector<8x24x384xf32>
    %c0_118 = arith.constant 0 : index
    %c0_119 = arith.constant 0 : index
    %c0_120 = arith.constant 0 : index
    %129 = vector.load %arg11[%c0_118, %c0_119, %c0_120] : memref<8x16x128xf32, #tpu.memory_space<vmem>>, vector<8x16x128xf32>
    %130 = vector.extract_strided_slice %128 {offsets = [0, 0, 0], sizes = [8, 16, 128], strides = [1, 1, 1]} : vector<8x24x384xf32> to vector<8x16x128xf32>
    %131 = arith.addf %129, %130 : vector<8x16x128xf32>
    %c0_121 = arith.constant 0 : index
    %c0_122 = arith.constant 0 : index
    %c0_123 = arith.constant 0 : index
    %132 = vector.load %arg11[%c0_121, %c0_122, %c0_123] : memref<8x16x128xf32, #tpu.memory_space<vmem>>, vector<8x16x128xf32>
    tpu.vector_store %arg11[%c0_121, %c0_122, %c0_123], %131 {strides = array<i32>} : memref<8x16x128xf32, #tpu.memory_space<vmem>>, vector<8x16x128xf32>,
    %c0_124 = arith.constant 0 : index
    %c0_125 = arith.constant 0 : index
    %c0_126 = arith.constant 0 : index
    %133 = vector.load %arg11[%c0_124, %c0_125, %c0_126] : memref<8x16x128xf32, #tpu.memory_space<vmem>>, vector<8x16x128xf32>
    %134 = vector.extract_strided_slice %128 {offsets = [0, 1, 128], sizes = [8, 16, 128], strides = [1, 1, 1]} : vector<8x24x384xf32> to vector<8x16x128xf32>
    %135 = arith.addf %133, %134 : vector<8x16x128xf32>
    %c0_127 = arith.constant 0 : index
    %c0_128 = arith.constant 0 : index
    %c0_129 = arith.constant 0 : index
    %136 = vector.load %arg11[%c0_127, %c0_128, %c0_129] : memref<8x16x128xf32, #tpu.memory_space<vmem>>, vector<8x16x128xf32>
    tpu.vector_store %arg11[%c0_127, %c0_128, %c0_129], %135 {strides = array<i32>} : memref<8x16x128xf32, #tpu.memory_space<vmem>>, vector<8x16x128xf32>,
    %c0_130 = arith.constant 0 : index
    %c0_131 = arith.constant 0 : index
    %c0_132 = arith.constant 0 : index
    %137 = vector.load %arg11[%c0_130, %c0_131, %c0_132] : memref<8x16x128xf32, #tpu.memory_space<vmem>>, vector<8x16x128xf32>
    %138 = vector.extract_strided_slice %128 {offsets = [0, 2, 256], sizes = [8, 16, 128], strides = [1, 1, 1]} : vector<8x24x384xf32> to vector<8x16x128xf32>
    %139 = arith.addf %137, %138 : vector<8x16x128xf32>
    %c0_133 = arith.constant 0 : index
    %c0_134 = arith.constant 0 : index
    %c0_135 = arith.constant 0 : index
    %140 = vector.load %arg11[%c0_133, %c0_134, %c0_135] : memref<8x16x128xf32, #tpu.memory_space<vmem>>, vector<8x16x128xf32>
    tpu.vector_store %arg11[%c0_133, %c0_134, %c0_135], %139 {strides = array<i32>} : memref<8x16x128xf32, #tpu.memory_space<vmem>>, vector<8x16x128xf32>,
    %c1_136 = arith.constant 1 : index
    %c0_137 = arith.constant 0 : index
    %c0_138 = arith.constant 0 : index
    %141 = vector.load %arg9[%c1_136, %c0_137, %c0_138] : memref<10x24x128xbf16, #tpu.memory_space<vmem>>, vector<8x24x128xbf16>
    %142 = vector.shape_cast %141 : vector<8x24x128xbf16> to vector<192x128xbf16>
    %c1_139 = arith.constant 1 : index
    %c0_140 = arith.constant 0 : index
    %c0_141 = arith.constant 0 : index
    %143 = vector.load %arg5[%c1_139, %c0_140, %c0_141] : memref<3x128x384xbf16, #tpu.memory_space<vmem>>, vector<1x128x384xbf16>
    %144 = vector.shape_cast %143 : vector<1x128x384xbf16> to vector<128x384xbf16>
    %cst_142 = arith.constant dense<0.000000e+00> : vector<192x384xf32>
    %145 = tpu.matmul %142, %144, %cst_142 {dimension_numbers = #tpu.dot_dimension_numbers<[1], [0], [0], [1], [0, 0, 1, 1], [], []>} : vector<192x128xbf16>, vector<128x384xbf16>, vector<192x384xf32> -> vector<192x384xf32>
    %146 = vector.shape_cast %145 : vector<192x384xf32> to vector<8x24x384xf32>
    %c0_143 = arith.constant 0 : index
    %c0_144 = arith.constant 0 : index
    %c0_145 = arith.constant 0 : index
    %147 = vector.load %arg11[%c0_143, %c0_144, %c0_145] : memref<8x16x128xf32, #tpu.memory_space<vmem>>, vector<8x16x128xf32>
    %148 = vector.extract_strided_slice %146 {offsets = [0, 0, 0], sizes = [8, 16, 128], strides = [1, 1, 1]} : vector<8x24x384xf32> to vector<8x16x128xf32>
    %149 = arith.addf %147, %148 : vector<8x16x128xf32>
    %c0_146 = arith.constant 0 : index
    %c0_147 = arith.constant 0 : index
    %c0_148 = arith.constant 0 : index
    %150 = vector.load %arg11[%c0_146, %c0_147, %c0_148] : memref<8x16x128xf32, #tpu.memory_space<vmem>>, vector<8x16x128xf32>
    tpu.vector_store %arg11[%c0_146, %c0_147, %c0_148], %149 {strides = array<i32>} : memref<8x16x128xf32, #tpu.memory_space<vmem>>, vector<8x16x128xf32>,
    %c0_149 = arith.constant 0 : index
    %c0_150 = arith.constant 0 : index
    %c0_151 = arith.constant 0 : index
    %151 = vector.load %arg11[%c0_149, %c0_150, %c0_151] : memref<8x16x128xf32, #tpu.memory_space<vmem>>, vector<8x16x128xf32>
    %152 = vector.extract_strided_slice %146 {offsets = [0, 1, 128], sizes = [8, 16, 128], strides = [1, 1, 1]} : vector<8x24x384xf32> to vector<8x16x128xf32>
    %153 = arith.addf %151, %152 : vector<8x16x128xf32>
    %c0_152 = arith.constant 0 : index
    %c0_153 = arith.constant 0 : index
    %c0_154 = arith.constant 0 : index
    %154 = vector.load %arg11[%c0_152, %c0_153, %c0_154] : memref<8x16x128xf32, #tpu.memory_space<vmem>>, vector<8x16x128xf32>
    tpu.vector_store %arg11[%c0_152, %c0_153, %c0_154], %153 {strides = array<i32>} : memref<8x16x128xf32, #tpu.memory_space<vmem>>, vector<8x16x128xf32>,
    %c0_155 = arith.constant 0 : index
    %c0_156 = arith.constant 0 : index
    %c0_157 = arith.constant 0 : index
    %155 = vector.load %arg11[%c0_155, %c0_156, %c0_157] : memref<8x16x128xf32, #tpu.memory_space<vmem>>, vector<8x16x128xf32>
    %156 = vector.extract_strided_slice %146 {offsets = [0, 2, 256], sizes = [8, 16, 128], strides = [1, 1, 1]} : vector<8x24x384xf32> to vector<8x16x128xf32>
    %157 = arith.addf %155, %156 : vector<8x16x128xf32>
    %c0_158 = arith.constant 0 : index
    %c0_159 = arith.constant 0 : index
    %c0_160 = arith.constant 0 : index
    %158 = vector.load %arg11[%c0_158, %c0_159, %c0_160] : memref<8x16x128xf32, #tpu.memory_space<vmem>>, vector<8x16x128xf32>
    tpu.vector_store %arg11[%c0_158, %c0_159, %c0_160], %157 {strides = array<i32>} : memref<8x16x128xf32, #tpu.memory_space<vmem>>, vector<8x16x128xf32>,
    %c2_161 = arith.constant 2 : index
    %c0_162 = arith.constant 0 : index
    %c0_163 = arith.constant 0 : index
    %159 = vector.load %arg9[%c2_161, %c0_162, %c0_163] : memref<10x24x128xbf16, #tpu.memory_space<vmem>>, vector<8x24x128xbf16>
    %160 = vector.shape_cast %159 : vector<8x24x128xbf16> to vector<192x128xbf16>
    %c2_164 = arith.constant 2 : index
    %c0_165 = arith.constant 0 : index
    %c0_166 = arith.constant 0 : index
    %161 = vector.load %arg5[%c2_164, %c0_165, %c0_166] : memref<3x128x384xbf16, #tpu.memory_space<vmem>>, vector<1x128x384xbf16>
    %162 = vector.shape_cast %161 : vector<1x128x384xbf16> to vector<128x384xbf16>
    %cst_167 = arith.constant dense<0.000000e+00> : vector<192x384xf32>
    %163 = tpu.matmul %160, %162, %cst_167 {dimension_numbers = #tpu.dot_dimension_numbers<[1], [0], [0], [1], [0, 0, 1, 1], [], []>} : vector<192x128xbf16>, vector<128x384xbf16>, vector<192x384xf32> -> vector<192x384xf32>
    %164 = vector.shape_cast %163 : vector<192x384xf32> to vector<8x24x384xf32>
    %c0_168 = arith.constant 0 : index
    %c0_169 = arith.constant 0 : index
    %c0_170 = arith.constant 0 : index
    %165 = vector.load %arg11[%c0_168, %c0_169, %c0_170] : memref<8x16x128xf32, #tpu.memory_space<vmem>>, vector<8x16x128xf32>
    %166 = vector.extract_strided_slice %164 {offsets = [0, 0, 0], sizes = [8, 16, 128], strides = [1, 1, 1]} : vector<8x24x384xf32> to vector<8x16x128xf32>
    %167 = arith.addf %165, %166 : vector<8x16x128xf32>
    %c0_171 = arith.constant 0 : index
    %c0_172 = arith.constant 0 : index
    %c0_173 = arith.constant 0 : index
    %168 = vector.load %arg11[%c0_171, %c0_172, %c0_173] : memref<8x16x128xf32, #tpu.memory_space<vmem>>, vector<8x16x128xf32>
    tpu.vector_store %arg11[%c0_171, %c0_172, %c0_173], %167 {strides = array<i32>} : memref<8x16x128xf32, #tpu.memory_space<vmem>>, vector<8x16x128xf32>,
    %c0_174 = arith.constant 0 : index
    %c0_175 = arith.constant 0 : index
    %c0_176 = arith.constant 0 : index
    %169 = vector.load %arg11[%c0_174, %c0_175, %c0_176] : memref<8x16x128xf32, #tpu.memory_space<vmem>>, vector<8x16x128xf32>
    %170 = vector.extract_strided_slice %164 {offsets = [0, 1, 128], sizes = [8, 16, 128], strides = [1, 1, 1]} : vector<8x24x384xf32> to vector<8x16x128xf32>
    %171 = arith.addf %169, %170 : vector<8x16x128xf32>
    %c0_177 = arith.constant 0 : index
    %c0_178 = arith.constant 0 : index
    %c0_179 = arith.constant 0 : index
    %172 = vector.load %arg11[%c0_177, %c0_178, %c0_179] : memref<8x16x128xf32, #tpu.memory_space<vmem>>, vector<8x16x128xf32>
    tpu.vector_store %arg11[%c0_177, %c0_178, %c0_179], %171 {strides = array<i32>} : memref<8x16x128xf32, #tpu.memory_space<vmem>>, vector<8x16x128xf32>,
    %c0_180 = arith.constant 0 : index
    %c0_181 = arith.constant 0 : index
    %c0_182 = arith.constant 0 : index
    %173 = vector.load %arg11[%c0_180, %c0_181, %c0_182] : memref<8x16x128xf32, #tpu.memory_space<vmem>>, vector<8x16x128xf32>
    %174 = vector.extract_strided_slice %164 {offsets = [0, 2, 256], sizes = [8, 16, 128], strides = [1, 1, 1]} : vector<8x24x384xf32> to vector<8x16x128xf32>
    %175 = arith.addf %173, %174 : vector<8x16x128xf32>
    %c0_183 = arith.constant 0 : index
    %c0_184 = arith.constant 0 : index
    %c0_185 = arith.constant 0 : index
    %176 = vector.load %arg11[%c0_183, %c0_184, %c0_185] : memref<8x16x128xf32, #tpu.memory_space<vmem>>, vector<8x16x128xf32>
    tpu.vector_store %arg11[%c0_183, %c0_184, %c0_185], %175 {strides = array<i32>} : memref<8x16x128xf32, #tpu.memory_space<vmem>>, vector<8x16x128xf32>,
    %177 = arith.index_cast %9 : i32 to index
    %c0_186 = arith.constant 0 : index
    %c0_187 = arith.constant 0 : index
    %c0_188 = arith.constant 0 : index
    %178 = vector.load %arg8[%177, %c0_186, %c0_187, %c0_188] : memref<2x12x24x128xbf16, #tpu.memory_space<vmem>>, vector<1x12x24x128xbf16>
    %179 = vector.shape_cast %178 : vector<1x12x24x128xbf16> to vector<12x24x128xbf16>
    %180 = vector.extract_strided_slice %179 {offsets = [2, 2, 0], sizes = [8, 16, 128], strides = [1, 1, 1]} : vector<12x24x128xbf16> to vector<8x16x128xbf16>
    %181 = arith.extf %180 : vector<8x16x128xbf16> to vector<8x16x128xf32>
    %c0_189 = arith.constant 0 : index
    %c0_190 = arith.constant 0 : index
    %c0_191 = arith.constant 0 : index
    %182 = vector.load %arg11[%c0_189, %c0_190, %c0_191] : memref<8x16x128xf32, #tpu.memory_space<vmem>>, vector<8x16x128xf32>
    %c0_192 = arith.constant 0 : index
    %c0_193 = arith.constant 0 : index
    %183 = vector.load %arg6[%c0_192, %c0_193] : memref<1x128xf32, #tpu.memory_space<vmem>>, vector<1x128xf32>
    %184 = vector.shape_cast %183 : vector<1x128xf32> to vector<1x1x128xf32>
    %185 = vector.broadcast %184 : vector<1x1x128xf32> to vector<8x16x128xf32>
    %186 = arith.addf %182, %185 : vector<8x16x128xf32>
    %187 = arith.addf %186, %181 : vector<8x16x128xf32>
    %cst_194 = arith.constant 0.000000e+00 : f32
    %188 = vector.broadcast %cst_194 : f32 to vector<8x16x128xf32>
    %189 = arith.maximumf %187, %188 : vector<8x16x128xf32>
    %190 = vector.shape_cast %189 : vector<8x16x128xf32> to vector<1x8x16x128xf32>
    %c0_195 = arith.constant 0 : index
    %c0_196 = arith.constant 0 : index
    %c0_197 = arith.constant 0 : index
    %c0_198 = arith.constant 0 : index
    %191 = vector.load %arg7[%c0_195, %c0_196, %c0_197, %c0_198] : memref<1x8x16x128xf32, #tpu.memory_space<vmem>>, vector<1x8x16x128xf32>
    tpu.vector_store %arg7[%c0_195, %c0_196, %c0_197, %c0_198], %190 {strides = array<i32>} : memref<1x8x16x128xf32, #tpu.memory_space<vmem>>, vector<1x8x16x128xf32>,
    return
  }
  func.func @transform_1(%arg0: i32, %arg1: i32) -> (i32, i32, i32) {
    %c0_i32 = arith.constant 0 : i32
    %c0_i32_0 = arith.constant 0 : i32
    %c0_i32_1 = arith.constant 0 : i32
    %c0_i32_2 = arith.constant 0 : i32
    return %c0_i32, %c0_i32_0, %c0_i32_1 : i32, i32, i32
  }
  func.func @transform_2(%arg0: i32, %arg1: i32) -> (i32, i32) {
    %c0_i32 = arith.constant 0 : i32
    %c0_i32_0 = arith.constant 0 : i32
    %c0_i32_1 = arith.constant 0 : i32
    return %c0_i32, %c0_i32_0 : i32, i32
  }
  func.func @transform_3(%arg0: i32, %arg1: i32) -> (i32, i32, i32) {
    %c0_i32 = arith.constant 0 : i32
    %c0_i32_0 = arith.constant 0 : i32
    %c0_i32_1 = arith.constant 0 : i32
    %c0_i32_2 = arith.constant 0 : i32
    return %c0_i32, %c0_i32_0, %c0_i32_1 : i32, i32, i32
  }
  func.func @transform_4(%arg0: i32, %arg1: i32) -> (i32, i32) {
    %c0_i32 = arith.constant 0 : i32
    %c0_i32_0 = arith.constant 0 : i32
    %c0_i32_1 = arith.constant 0 : i32
    return %c0_i32, %c0_i32_0 : i32, i32
  }
  func.func @transform_5(%arg0: i32, %arg1: i32) -> (i32, i32, i32, i32) {
    %c0_i32 = arith.constant 0 : i32
    %c0_i32_0 = arith.constant 0 : i32
    %c0_i32_1 = arith.constant 0 : i32
    return %arg0, %arg1, %c0_i32, %c0_i32_0 : i32, i32, i32, i32
  }
}

</mosaic_0001>

<llo_original>
// kernel: tpu_custom_call.1
$region0: #{tpu_custom_call.1}
  #allocation0 [shape = 'u32[]', space=smem, size = 0x4, offset = 0x4, fixed_abs, tag = 'smem constant byte address 0x4 - core index']
  #allocation1 [shape = 'u32[144,128]{1,0:T(1,128)}', space=vmem, size = 0x12000, scoped, tag = 'internal scratch']
  #allocation2 [shape = 'bf16[2,12,24,128]{3,2,1,0:T(8,128)(2,1)}', space=vmem, size = 0x24000, scoped, tag = 'scratch operand']
  #allocation3 [shape = 'bf16[10,24,128]{2,1,0:T(8,128)(2,1)}', space=vmem, size = 0xf000, scoped, tag = 'scratch operand']
  #allocation4 [shape = 'f32[10,18,128]{2,1,0:T(8,128)}', space=vmem, size = 0x1e000, scoped, tag = 'scratch operand']
  #allocation5 [shape = 'f32[8,16,128]{2,1,0:T(8,128)}', space=vmem, size = 0x10000, scoped, tag = 'scratch operand']
  #allocation6 [shape = 's32[2]{0}', space=sflag, size = 0x8, scoped, tag = 'scratch operand']
  #allocation13 [shape = 's32[]', space=sflag, size = 0x4, offset = 0, fixed_abs, tag = 'sflag constant byte address 0x0 - dummy sync flag']
  #allocation14 [shape = 's32[]', space=sflag, size = 0x4, offset = 0, fixed_abs, tag = 'sflag constant byte address 0x0 - dummy sync flag']
  #allocation15 [shape = 'u32[]', space=smem, size = 0x4, offset = 0x44, fixed_abs, tag = 'smem constant byte address 0x44 - assertion arg 0']
  #allocation16 [shape = 'u32[]', space=smem, size = 0x4, offset = 0x48, fixed_abs, tag = 'smem constant byte address 0x48 - assertion arg 1']
  #allocation17 [shape = 's32[]', space=sflag, size = 0x4, offset = 0, fixed_abs, tag = 'sflag constant byte address 0x0 - dummy sync flag']
  #allocation18 [shape = 's32[]', space=sflag, size = 0x4, offset = 0, fixed_abs, tag = 'sflag constant byte address 0x0 - dummy sync flag']
  %s0 = inlined_call_operand.hbm [shape: bf16[2,20,24,128], index: 0, kind: input, shape index: {}]
  %s1 = inlined_call_operand.hbm [shape: bf16[3,128,384], index: 1, kind: input, shape index: {}]
  %s2 = inlined_call_operand.vmem [shape: f32[1,128], index: 2, kind: input, shape index: {}]
  %s3 = inlined_call_operand.hbm [shape: bf16[3,128,384], index: 3, kind: input, shape index: {}]
  %s4 = inlined_call_operand.vmem [shape: f32[1,128], index: 4, kind: input, shape index: {}]
  %s5 = inlined_call_operand.hbm [shape: f32[2,16,16,128], index: 5, kind: output, shape index: {}]
  %s6 = sld [smem:[#allocation0]]
  $region73: #{tpu_custom_call.1} parent=0
    _
  %s8 = ssub.s32 1, %s6
  %s9 = scalar_select 0, %s8, %s6
  $region1: #{tpu_custom_call.1} parent=0
    #allocation7 [shape = 'u8[294912]{0}', space=vmem, size = 0x48000, scoped, tag = 'input window, operand 1, single buffered']
    #allocation8 [shape = 's32[2]{0}', space=sflag, size = 0x8, scoped, tag = 'scoped memory for tpu_custom_call.1']
    #allocation9 [shape = 's32[2]{0}', space=sflag, size = 0x8, scoped, tag = 'scoped memory for tpu_custom_call.1']
    #allocation10 [shape = 'u8[294912]{0}', space=vmem, size = 0x48000, scoped, tag = 'input window, operand 3, single buffered']
    #allocation11 [shape = 's32[1]{0}', space=sflag, size = 0x4, scoped, tag = 'scoped memory for tpu_custom_call.1']
    #allocation12 [shape = 'u8[131072]{0}', space=vmem, size = 0x20000, scoped, tag = 'output window, operand 0']
    %10 = vsyncpa [#allocation8], 0
    %11 = vsyncpa [#allocation11], 0
    %12 = vsyncpa [#allocation9], 0
    %s13 = scalar_lea.sflag [#allocation9], 1
    %14 = vsyncpa %s13, 0
    loop: start=0, step=1, limit=6
    $region2: #{tpu_custom_call.1} parent=1 // loop_pre_header
      _
    $region3: #{tpu_custom_call.1} parent=1 // loop_header
      %s16 = sphi 0, %s20
      %p17 = scmp.ge.s32.totalorder %s16, 6
      %s23 = sphi 0, %s35
      %s24 = sphi 0, %s31
      %s25 = sphi 0, %s23
      %s26 = sphi 0, %s24
      %s27 = sphi 0, %s25
      %s28 = sphi 0, %s26
      %s36 = sphi 0, %s36
      %s38 = sphi 0, %s36
      %s39 = sphi 0, %s38
      %s53 = sphi 0, %s39
      %s57 = sphi 0, %s57
      %s59 = sphi 0, %s57
      %s60 = sphi 0, %s59
      %s74 = sphi 0, %s60
      %s78 = sphi 0, %s78
      %s80 = sphi 0, %s78
      %s81 = sphi 0, %s80
      %s95 = sphi 0, %s81
      %s99 = sphi 0, %s99
      %s101 = sphi 0, %s99
      %s102 = sphi 0, %s101
      %s116 = sphi 0, %s102
      %s124 = sphi 0, %s126
      %s127 = sphi 0, %s124
      %s128 = sphi 0, %s127
      %s144 = sphi 0, %s128
    $region4: #{tpu_custom_call.1} parent=1 // loop_header_branch
      %19 = sbr.rel (%p17) target = $region8
    $region5: #{tpu_custom_call.1} parent=1 // loop_body
      %s21 = ssub.s32 %s16, 1
      %s22 = ssub.s32 %s16, 2
      %s29 = sadd.s32 1, %s24
      %p30 = scmp.ge.s32.totalorder %s29, 2
      %s31 = scalar_select %p30, 0, %s29
      %s32 = sadd.s32 1, %s23
      %s33 = scalar_select %p30, %s32, %s23
      %p34 = scmp.ge.s32.totalorder %s33, 2
      %s35 = scalar_select %p34, 0, %s33
      %s37 = sadd.s32 %s36, 1
      %p40 = scmp.eq.s32.totalorder %s16, 3
      %p41 = scmp.ne.s32.totalorder %s36, %s38
      %p42 = scmp.eq.s32.totalorder %s16, 0
      %p43 = por %p41, %p42
      %p44 = scmp.ne.s32.totalorder %s36, %s38
      %p45 = scmp.eq.s32.totalorder %s21, 3
      %p46 = por %p44, %p45
      %p47 = scmp.ne.s32.totalorder %s38, %s39
      %p48 = scmp.eq.s32.totalorder %s21, 0
      %p49 = por %p47, %p48
      %p50 = scmp.ne.s32.totalorder %s38, %s39
      %p51 = scmp.eq.s32.totalorder %s22, 3
      %p52 = por %p50, %p51
      %p54 = scmp.ne.s32.totalorder %s39, %s53
      %p55 = scmp.eq.s32.totalorder %s22, 0
      %p56 = por %p54, %p55
      %s58 = sadd.s32 %s57, 1
      %p61 = scmp.eq.s32.totalorder %s16, 3
      %p62 = scmp.ne.s32.totalorder %s57, %s59
      %p63 = scmp.eq.s32.totalorder %s16, 0
      %p64 = por %p62, %p63
      %p65 = scmp.ne.s32.totalorder %s57, %s59
      %p66 = scmp.eq.s32.totalorder %s21, 3
      %p67 = por %p65, %p66
      %p68 = scmp.ne.s32.totalorder %s59, %s60
      %p69 = scmp.eq.s32.totalorder %s21, 0
      %p70 = por %p68, %p69
      %p71 = scmp.ne.s32.totalorder %s59, %s60
      %p72 = scmp.eq.s32.totalorder %s22, 3
      %p73 = por %p71, %p72
      %p75 = scmp.ne.s32.totalorder %s60, %s74
      %p76 = scmp.eq.s32.totalorder %s22, 0
      %p77 = por %p75, %p76
      %s79 = sadd.s32 %s78, 1
      %p82 = scmp.eq.s32.totalorder %s16, 3
      %p83 = scmp.ne.s32.totalorder %s78, %s80
      %p84 = scmp.eq.s32.totalorder %s16, 0
      %p85 = por %p83, %p84
      %p86 = scmp.ne.s32.totalorder %s78, %s80
      %p87 = scmp.eq.s32.totalorder %s21, 3
      %p88 = por %p86, %p87
      %p89 = scmp.ne.s32.totalorder %s80, %s81
      %p90 = scmp.eq.s32.totalorder %s21, 0
      %p91 = por %p89, %p90
      %p92 = scmp.ne.s32.totalorder %s80, %s81
      %p93 = scmp.eq.s32.totalorder %s22, 3
      %p94 = por %p92, %p93
      %p96 = scmp.ne.s32.totalorder %s81, %s95
      %p97 = scmp.eq.s32.totalorder %s22, 0
      %p98 = por %p96, %p97
      %s100 = sadd.s32 %s99, 1
      %p103 = scmp.eq.s32.totalorder %s16, 3
      %p104 = scmp.ne.s32.totalorder %s99, %s101
      %p105 = scmp.eq.s32.totalorder %s16, 0
      %p106 = por %p104, %p105
      %p107 = scmp.ne.s32.totalorder %s99, %s101
      %p108 = scmp.eq.s32.totalorder %s21, 3
      %p109 = por %p107, %p108
      %p110 = scmp.ne.s32.totalorder %s101, %s102
      %p111 = scmp.eq.s32.totalorder %s21, 0
      %p112 = por %p110, %p111
      %p113 = scmp.ne.s32.totalorder %s101, %s102
      %p114 = scmp.eq.s32.totalorder %s22, 3
      %p115 = por %p113, %p114
      %p117 = scmp.ne.s32.totalorder %s102, %s116
      %p118 = scmp.eq.s32.totalorder %s22, 0
      %p119 = por %p117, %p118
      %s120 = ssub.s32 %s23, %s35
      %s121 = ssub.s32 %s24, %s31
      %s122 = sor.u32 %s120, %s121
      %p123 = scmp.eq.s32.totalorder %s122, 0
      %s125 = sadd.s32 %s124, 1
      %s126 = scalar_select %p123, %s124, %s125
      %p129 = pneg %p123
      %p130 = scmp.eq.s32.totalorder %s16, 3
      %p131 = por %p129, %p130
      %p132 = scmp.ne.s32.totalorder %s124, %s127
      %p133 = scmp.eq.s32.totalorder %s16, 0
      %p134 = por %p132, %p133
      %p135 = scmp.ne.s32.totalorder %s124, %s127
      %p136 = scmp.eq.s32.totalorder %s21, 3
      %p137 = por %p135, %p136
      %p138 = scmp.ne.s32.totalorder %s127, %s128
      %p139 = scmp.eq.s32.totalorder %s21, 0
      %p140 = por %p138, %p139
      %p141 = scmp.ne.s32.totalorder %s127, %s128
      %p142 = scmp.eq.s32.totalorder %s22, 3
      %p143 = por %p141, %p142
      %p145 = scmp.ne.s32.totalorder %s128, %s144
      %p146 = scmp.eq.s32.totalorder %s22, 0
      %p147 = por %p145, %p146
      %p148 = scmp.le.s32.totalorder 1, %s16
      %p149 = scmp.lt.s32.totalorder %s16, 5
      %p150 = pnand %p148, %p149
      %p151 = pneg %p150
      // Predicated region
      $region9: #{tpu_custom_call.1} parent=5 // pred_check
        _
      $region10: #{tpu_custom_call.1} parent=5 // pred_check_branch
        %153 = sbr.rel (%p150) target = $region12
      $region11: #{tpu_custom_call.1} parent=5 // pred_region
        %s154 = ssub.s32 %s16, 1
        // Predicated region
        $region13: #{tpu_custom_call.1} parent=11 // pred_check
          %p155 = pneg %p49
        $region14: #{tpu_custom_call.1} parent=11 // pred_check_branch
          %157 = sbr.rel (%p155) target = $region16
        $region15: #{tpu_custom_call.1} parent=11 // pred_region
          %s159 = ssub.s32 9216, 9216
          %160 = vsyncadd [#allocation8], %s159
          %s161 = sshll.u32 [#allocation7], 4
          %s162 = int_to_ptr.vmem [resolvable:$true] %s161
          %167 = dma.hbm_to_vmem [thread:$0]  %s1, 9216, %s162, [#allocation8], 192, 192, 12
        $region16: #{tpu_custom_call.1} parent=11 // pred_fallthru
          _
        // Predicated region
        $region17: #{tpu_custom_call.1} parent=11 // pred_check
          %p168 = pneg %p70
        $region18: #{tpu_custom_call.1} parent=11 // pred_check_branch
          %170 = sbr.rel (%p168) target = $region20
        $region19: #{tpu_custom_call.1} parent=11 // pred_region
          _
        $region20: #{tpu_custom_call.1} parent=11 // pred_fallthru
          _
        // Predicated region
        $region21: #{tpu_custom_call.1} parent=11 // pred_check
          %p171 = pneg %p91
        $region22: #{tpu_custom_call.1} parent=11 // pred_check_branch
          %173 = sbr.rel (%p171) target = $region24
        $region23: #{tpu_custom_call.1} parent=11 // pred_region
          %s175 = ssub.s32 9216, 9216
          %176 = vsyncadd [#allocation11], %s175
          %s177 = sshll.u32 [#allocation10], 4
          %s178 = int_to_ptr.vmem [resolvable:$true] %s177
          %183 = dma.hbm_to_vmem [thread:$0]  %s3, 9216, %s178, [#allocation11], 192, 192, 12
        $region24: #{tpu_custom_call.1} parent=11 // pred_fallthru
          _
        // Predicated region
        $region25: #{tpu_custom_call.1} parent=11 // pred_check
          %p184 = pneg %p112
        $region26: #{tpu_custom_call.1} parent=11 // pred_check_branch
          %186 = sbr.rel (%p184) target = $region28
        $region27: #{tpu_custom_call.1} parent=11 // pred_region
          _
        $region28: #{tpu_custom_call.1} parent=11 // pred_fallthru
          _
      $region12: #{tpu_custom_call.1} parent=5 // pred_fallthru
        _
      %p187 = scmp.lt.s32.totalorder %s16, 4
      // Predicated region
      $region29: #{tpu_custom_call.1} parent=5 // pred_check
        %p188 = pneg %p187
      $region30: #{tpu_custom_call.1} parent=5 // pred_check_branch
        %190 = sbr.rel (%p188) target = $region32
      $region31: #{tpu_custom_call.1} parent=5 // pred_region
        _
      $region32: #{tpu_custom_call.1} parent=5 // pred_fallthru
        _
      %p191 = scmp.le.s32.totalorder 1, %s16
      %p192 = scmp.lt.s32.totalorder %s16, 5
      %p193 = pnand %p191, %p192
      %p194 = pneg %p193
      // Predicated region
      $region33: #{tpu_custom_call.1} parent=5 // pred_check
        _
      $region34: #{tpu_custom_call.1} parent=5 // pred_check_branch
        %196 = sbr.rel (%p193) target = $region36
      $region35: #{tpu_custom_call.1} parent=5 // pred_region
        %s197 = ssub.s32 %s16, 1
        // Predicated region
        $region37: #{tpu_custom_call.1} parent=35 // pred_check
          %p198 = pneg %p49
        $region38: #{tpu_custom_call.1} parent=35 // pred_check_branch
          %200 = sbr.rel (%p198) target = $region40
        $region39: #{tpu_custom_call.1} parent=35 // pred_region
          %201 = dma.done [#allocation8], 9216
        $region40: #{tpu_custom_call.1} parent=35 // pred_fallthru
          _
        // Predicated region
        $region41: #{tpu_custom_call.1} parent=35 // pred_check
          %p202 = pneg %p91
        $region42: #{tpu_custom_call.1} parent=35 // pred_check_branch
          %204 = sbr.rel (%p202) target = $region44
        $region43: #{tpu_custom_call.1} parent=35 // pred_region
          %205 = dma.done [#allocation11], 9216
        $region44: #{tpu_custom_call.1} parent=35 // pred_fallthru
          _
        %p206 = pneg %p49
        %p207 = pneg %p46
        %p208 = pneg %p70
        %p209 = pneg %p67
        %p210 = pneg %p91
        %p211 = pneg %p88
        %p212 = pneg %p112
        %p213 = pneg %p109
        %p214 = pneg %p140
        %p215 = pneg %p137
        %s216 = sand.u32 %s127, 1
        %s217 = scalar_lea.sflag [#allocation9], %s216
        %s218 = sand.u32 %s127, 1
        %s219 = smul.addr %s218, 128
        %s220 = scalar_lea.vmem [#allocation12], %s219
        %s221 = smul.u32 8, %s26
        %p223 = scmp.lt.s32.totalorder %s26, 0
        %s224 = ssub.s32 0, %s26
        %s225 = scalar_select %p223, %s224, %s26
        %s226 = sand.u32 %s225, 1
        %s227 = ssub.s32 0, %s226
        %s228 = scalar_select %p223, %s227, %s226
        %p229 = scmp.ne.s32.totalorder %s228, 0
        %p230 = scmp.lt.s32.totalorder %s228, 0
        %p231 = pnand %p230, %p229
        %p232 = pneg %p231
        %s233 = sadd.s32 %s228, 2
        %s234 = scalar_select %p232, %s233, %s228
        %p235 = scmp.eq.s32.totalorder %s26, 0
        // Predicated region
        $region45: #{tpu_custom_call.1} parent=35 // pred_check
          %p236 = pneg %p235
        $region46: #{tpu_custom_call.1} parent=35 // pred_check_branch
          %238 = sbr.rel (%p236) target = $region48
        $region47: #{tpu_custom_call.1} parent=35 // pred_region
          %s239 = smul.u32 %s26, 8
          %s240 = smul.u32 %s239, 3
          %s241 = smul.u32 %s25, 60
          %s242 = sadd.s32 %s240, %s241
          %s243 = smul.addr %s242, 64
          %s244 = scalar_lea.hbm %s0, %s243
          %s245 = smul.u32 %s234, 36
          %s246 = smul.addr %s245, 4
          %s247 = scalar_lea.vmem [#allocation2], %s246
          %s248 = scalar_lea.sflag [#allocation6], %s234
          // Predicated region
          $region49: #{tpu_custom_call.1} parent=47 // pred_check
            _
          $region50: #{tpu_custom_call.1} parent=47 // pred_check_branch
            %250 = sbr.rel target = $region52
          $region51: #{tpu_custom_call.1} parent=47 // pred_region
            %251 = sst [smem:[#allocation15]] [#allocation14]
            %252 = sst [smem:[#allocation16]] [#allocation13]
          $region52: #{tpu_custom_call.1} parent=47 // pred_fallthru
            _
          %254 = shalt.err (0)
          %s256 = sshll.u32 %s247, 4
          %s257 = int_to_ptr.vmem [resolvable:$true] %s256
          %259 = dma.hbm_to_vmem [thread:$0]  %s244, 2304, %s257, %s248
        $region48: #{tpu_custom_call.1} parent=35 // pred_fallthru
          _
        %s260 = smul.u32 %s26, 8
        %s261 = smul.u32 %s234, 36
        %s262 = smul.addr %s261, 4
        %s263 = scalar_lea.vmem [#allocation2], %s262
        %s264 = scalar_lea.sflag [#allocation6], %s234
        %s265 = smul.u32 4, 12
        %s266 = smul.u32 %s265, 3
        %s267 = smul.u32 %s266, 1
        %s268 = sshll.u32 %s267, 4
        %269 = dma.done %s264, %s268
        %s270 = sadd.s32 %s26, 1
        %p271 = scmp.lt.s32.totalorder %s270, 2
        // Predicated region
        $region53: #{tpu_custom_call.1} parent=35 // pred_check
          %p272 = pneg %p271
        $region54: #{tpu_custom_call.1} parent=35 // pred_check_branch
          %274 = sbr.rel (%p272) target = $region56
        $region55: #{tpu_custom_call.1} parent=35 // pred_region
          %s275 = ssub.s32 1, %s234
          %s276 = smul.u32 %s270, 8
          %s277 = smul.u32 %s276, 3
          %s278 = smul.u32 %s25, 60
          %s279 = sadd.s32 %s277, %s278
          %s280 = smul.addr %s279, 64
          %s281 = scalar_lea.hbm %s0, %s280
          %s282 = smul.u32 %s275, 36
          %s283 = smul.addr %s282, 4
          %s284 = scalar_lea.vmem [#allocation2], %s283
          %s285 = scalar_lea.sflag [#allocation6], %s275
          // Predicated region
          $region57: #{tpu_custom_call.1} parent=55 // pred_check
            _
          $region58: #{tpu_custom_call.1} parent=55 // pred_check_branch
            %287 = sbr.rel target = $region60
          $region59: #{tpu_custom_call.1} parent=55 // pred_region
            %288 = sst [smem:[#allocation15]] [#allocation18]
            %289 = sst [smem:[#allocation16]] [#allocation17]
          $region60: #{tpu_custom_call.1} parent=55 // pred_fallthru
            _
          %291 = shalt.err (0)
          %s293 = sshll.u32 %s284, 4
          %s294 = int_to_ptr.vmem [resolvable:$true] %s293
          %296 = dma.hbm_to_vmem [thread:$0]  %s281, 2304, %s294, %s285
        $region56: #{tpu_custom_call.1} parent=35 // pred_fallthru
          _
        %297 = vst [vmem:[#allocation4] sm:$0xff] 0.0
        %298 = vst [vmem:[#allocation4 + $0x8] sm:$0xff] 0.0
        %299 = vst [vmem:[#allocation4 + $0x10] sm:$0x3] 0.0
        %300 = vst [vmem:[#allocation4 + $0x18] sm:$0xff] 0.0
        %301 = vst [vmem:[#allocation4 + $0x20] sm:$0xff] 0.0
        %302 = vst [vmem:[#allocation4 + $0x28] sm:$0x3] 0.0
        %303 = vst [vmem:[#allocation4 + $0x30] sm:$0xff] 0.0
        %304 = vst [vmem:[#allocation4 + $0x38] sm:$0xff] 0.0
        %305 = vst [vmem:[#allocation4 + $0x40] sm:$0x3] 0.0
        %306 = vst [vmem:[#allocation4 + $0x48] sm:$0xff] 0.0
        %307 = vst [vmem:[#allocation4 + $0x50] sm:$0xff] 0.0
        %308 = vst [vmem:[#allocation4 + $0x58] sm:$0x3] 0.0
        %309 = vst [vmem:[#allocation4 + $0x60] sm:$0xff] 0.0
        %310 = vst [vmem:[#allocation4 + $0x68] sm:$0xff] 0.0
        %311 = vst [vmem:[#allocation4 + $0x70] sm:$0x3] 0.0
        %312 = vst [vmem:[#allocation4 + $0x78] sm:$0xff] 0.0
        %313 = vst [vmem:[#allocation4 + $0x80] sm:$0xff] 0.0
        %314 = vst [vmem:[#allocation4 + $0x88] sm:$0x3] 0.0
        %315 = vst [vmem:[#allocation4 + $0x90] sm:$0xff] 0.0
        %316 = vst [vmem:[#allocation4 + $0x98] sm:$0xff] 0.0
        %317 = vst [vmem:[#allocation4 + $0xa0] sm:$0x3] 0.0
        %318 = vst [vmem:[#allocation4 + $0xa8] sm:$0xff] 0.0
        %319 = vst [vmem:[#allocation4 + $0xb0] sm:$0xff] 0.0
        %320 = vst [vmem:[#allocation4 + $0xb8] sm:$0x3] 0.0
        %321 = vst [vmem:[#allocation4 + $0xc0] sm:$0xff] 0.0
        %322 = vst [vmem:[#allocation4 + $0xc8] sm:$0xff] 0.0
        %323 = vst [vmem:[#allocation4 + $0xd0] sm:$0x3] 0.0
        %324 = vst [vmem:[#allocation4 + $0xd8] sm:$0xff] 0.0
        %325 = vst [vmem:[#allocation4 + $0xe0] sm:$0xff] 0.0
        %326 = vst [vmem:[#allocation4 + $0xe8] sm:$0x3] 0.0
        %v327 = vld [vmem:[%s263] sm:$0xf]
        %v328 = vld [vmem:[%s263 + $0x4] sm:$0xf]
        %v329 = vld [vmem:[%s263 + $0x8] sm:$0xf]
        %v330 = vld [vmem:[%s263 + $0xc] sm:$0xf]
        %v331 = vld [vmem:[%s263 + $0x10] sm:$0xf]
        %v332 = vld [vmem:[%s263 + $0x14] sm:$0xf]
        %v333 = vld [vmem:[%s263 + $0x18] sm:$0xf]
        %v334 = vld [vmem:[%s263 + $0x1c] sm:$0xf]
        %v335 = vld [vmem:[%s263 + $0x20] sm:$0xf]
        %v336 = vld [vmem:[%s263 + $0x24] sm:$0xf]
        %v337 = vld [vmem:[%s263 + $0x28] sm:$0xf]
        %v338 = vld [vmem:[%s263 + $0x2c] sm:$0xf]
        %v339 = vld [vmem:[%s263 + $0x30] sm:$0xf]
        %v340 = vld [vmem:[%s263 + $0x34] sm:$0xf]
        %v341 = vld [vmem:[%s263 + $0x38] sm:$0xf]
        %v342 = vld [vmem:[%s263 + $0x3c] sm:$0xf]
        %v343 = vld [vmem:[%s263 + $0x40] sm:$0xf]
        %v344 = vld [vmem:[%s263 + $0x44] sm:$0xf]
        %v345 = vld [vmem:[%s263 + $0x48] sm:$0xf]
        %v346 = vld [vmem:[%s263 + $0x4c] sm:$0xf]
        %v347 = vld [vmem:[%s263 + $0x50] sm:$0xf]
        %v348 = vld [vmem:[%s263 + $0x54] sm:$0xf]
        %v349 = vld [vmem:[%s263 + $0x58] sm:$0xf]
        %v350 = vld [vmem:[%s263 + $0x5c] sm:$0xf]
        %v351 = vld [vmem:[%s263 + $0x60] sm:$0xf]
        %v352 = vld [vmem:[%s263 + $0x64] sm:$0xf]
        %v353 = vld [vmem:[%s263 + $0x68] sm:$0xf]
        %v354 = vld [vmem:[%s263 + $0x6c] sm:$0xf]
        %v355 = vld [vmem:[%s263 + $0x70] sm:$0xf]
        %v356 = vld [vmem:[%s263 + $0x74] sm:$0xf]
        %v357 = vld [vmem:[#allocation7] sm:$0xff]
        %v358 = vld [vmem:[#allocation7 + $0x8] sm:$0xf]
        %v359 = vld [vmem:[#allocation7 + $0xc] sm:$0xff]
        %v360 = vld [vmem:[#allocation7 + $0x14] sm:$0xf]
        %v361 = vld [vmem:[#allocation7 + $0x18] sm:$0xff]
        %v362 = vld [vmem:[#allocation7 + $0x20] sm:$0xf]
        %v363 = vld [vmem:[#allocation7 + $0x24] sm:$0xff]
        %v364 = vld [vmem:[#allocation7 + $0x2c] sm:$0xf]
        %v365 = vld [vmem:[#allocation7 + $0x30] sm:$0xff]
        %v366 = vld [vmem:[#allocation7 + $0x38] sm:$0xf]
        %v367 = vld [vmem:[#allocation7 + $0x3c] sm:$0xff]
        %v368 = vld [vmem:[#allocation7 + $0x44] sm:$0xf]
        %v369 = vld [vmem:[#allocation7 + $0x48] sm:$0xff]
        %v370 = vld [vmem:[#allocation7 + $0x50] sm:$0xf]
        %v371 = vld [vmem:[#allocation7 + $0x54] sm:$0xff]
        %v372 = vld [vmem:[#allocation7 + $0x5c] sm:$0xf]
        %v373 = vld [vmem:[#allocation7 + $0x60] sm:$0xff]
        %v374 = vld [vmem:[#allocation7 + $0x68] sm:$0xf]
        %v375 = vld [vmem:[#allocation7 + $0x6c] sm:$0xff]
        %v376 = vld [vmem:[#allocation7 + $0x74] sm:$0xf]
        %v377 = vld [vmem:[#allocation7 + $0x78] sm:$0xff]
        %v378 = vld [vmem:[#allocation7 + $0x80] sm:$0xf]
        %v379 = vld [vmem:[#allocation7 + $0x84] sm:$0xff]
        %v380 = vld [vmem:[#allocation7 + $0x8c] sm:$0xf]
        %v381 = vld [vmem:[#allocation7 + $0x90] sm:$0xff]
        %v382 = vld [vmem:[#allocation7 + $0x98] sm:$0xf]
        %v383 = vld [vmem:[#allocation7 + $0x9c] sm:$0xff]
        %v384 = vld [vmem:[#allocation7 + $0xa4] sm:$0xf]
        %v385 = vld [vmem:[#allocation7 + $0xa8] sm:$0xff]
        %v386 = vld [vmem:[#allocation7 + $0xb0] sm:$0xf]
        %v387 = vld [vmem:[#allocation7 + $0xb4] sm:$0xff]
        %v388 = vld [vmem:[#allocation7 + $0xbc] sm:$0xf]
        %v419 = vunpack.c.l.b16 %v327
        %v420 = vunpack.c.l.b16 %v328
        %v421 = vunpack.c.l.b16 %v329
        %v422 = vunpack.c.l.b16 %v330
        %v423 = vunpack.c.l.b16 %v331
        %v424 = vunpack.c.l.b16 %v332
        %v425 = vunpack.c.l.b16 %v333
        %v426 = vunpack.c.l.b16 %v334
        %v427 = vunpack.c.l.b16 %v335
        %v428 = vunpack.c.l.b16 %v336
        %v429 = vunpack.c.l.b16 %v337
        %v430 = vunpack.c.l.b16 %v338
        %v431 = vunpack.c.l.b16 %v339
        %v432 = vunpack.c.l.b16 %v340
        %v433 = vunpack.c.l.b16 %v341
        %v434 = vunpack.c.l.b16 %v342
        %v435 = vunpack.c.l.b16 %v343
        %v436 = vunpack.c.l.b16 %v344
        %v437 = vunpack.c.l.b16 %v345
        %v438 = vunpack.c.l.b16 %v346
        %v439 = vunpack.c.l.b16 %v347
        %v440 = vunpack.c.l.b16 %v348
        %v441 = vunpack.c.l.b16 %v349
        %v442 = vunpack.c.l.b16 %v350
        %v443 = vunpack.c.l.b16 %v351
        %v444 = vunpack.c.l.b16 %v352
        %v445 = vunpack.c.l.b16 %v353
        %v446 = vunpack.c.l.b16 %v354
        %v447 = vunpack.c.l.b16 %v355
        %v448 = vunpack.c.l.b16 %v356
        %v449 = vpack.c.b16 %v420, %v419
        %v450 = vpack.c.b16 %v422, %v421
        %v451 = vpack.c.b16 %v424, %v423
        %v452 = vpack.c.b16 %v426, %v425
        %v453 = vpack.c.b16 %v428, %v427
        %v454 = vpack.c.b16 %v430, %v429
        %v455 = vpack.c.b16 %v432, %v431
        %v456 = vpack.c.b16 %v434, %v433
        %v457 = vpack.c.b16 %v436, %v435
        %v458 = vpack.c.b16 %v438, %v437
        %v459 = vpack.c.b16 %v440, %v439
        %v460 = vpack.c.b16 %v442, %v441
        %v461 = vpack.c.b16 %v444, %v443
        %v462 = vpack.c.b16 %v446, %v445
        %v463 = vpack.c.b16 %v448, %v447
        %v511 = vunpack.c.l.b16 %v357
        %v512 = vunpack.c.h.b16 %v357
        %v513 = vunpack.c.l.b16 %v358
        %v514 = vunpack.c.l.b16 %v359
        %v515 = vunpack.c.h.b16 %v359
        %v516 = vunpack.c.l.b16 %v360
        %v517 = vunpack.c.l.b16 %v361
        %v518 = vunpack.c.h.b16 %v361
        %v519 = vunpack.c.l.b16 %v362
        %v520 = vunpack.c.l.b16 %v363
        %v521 = vunpack.c.h.b16 %v363
        %v522 = vunpack.c.l.b16 %v364
        %v523 = vunpack.c.l.b16 %v365
        %v524 = vunpack.c.h.b16 %v365
        %v525 = vunpack.c.l.b16 %v366
        %v526 = vunpack.c.l.b16 %v367
        %v527 = vunpack.c.h.b16 %v367
        %v528 = vunpack.c.l.b16 %v368
        %v529 = vunpack.c.l.b16 %v369
        %v530 = vunpack.c.h.b16 %v369
        %v531 = vunpack.c.l.b16 %v370
        %v532 = vunpack.c.l.b16 %v371
        %v533 = vunpack.c.h.b16 %v371
        %v534 = vunpack.c.l.b16 %v372
        %v535 = vunpack.c.l.b16 %v373
        %v536 = vunpack.c.h.b16 %v373
        %v537 = vunpack.c.l.b16 %v374
        %v538 = vunpack.c.l.b16 %v375
        %v539 = vunpack.c.h.b16 %v375
        %v540 = vunpack.c.l.b16 %v376
        %v541 = vunpack.c.l.b16 %v377
        %v542 = vunpack.c.h.b16 %v377
        %v543 = vunpack.c.l.b16 %v378
        %v544 = vunpack.c.l.b16 %v379
        %v545 = vunpack.c.h.b16 %v379
        %v546 = vunpack.c.l.b16 %v380
        %v547 = vunpack.c.l.b16 %v381
        %v548 = vunpack.c.h.b16 %v381
        %v549 = vunpack.c.l.b16 %v382
        %v550 = vunpack.c.l.b16 %v383
        %v551 = vunpack.c.h.b16 %v383
        %v552 = vunpack.c.l.b16 %v384
        %v553 = vunpack.c.l.b16 %v385
        %v554 = vunpack.c.h.b16 %v385
        %v555 = vunpack.c.l.b16 %v386
        %v556 = vunpack.c.l.b16 %v387
        %v557 = vunpack.c.h.b16 %v387
        %v558 = vunpack.c.l.b16 %v388
        %v559 = vpack.c.b16 %v514, %v511
        %v560 = vpack.c.b16 %v515, %v512
        %v561 = vpack.c.b16 %v516, %v513
        %v562 = vpack.c.b16 %v520, %v517
        %v563 = vpack.c.b16 %v521, %v518
        %v564 = vpack.c.b16 %v522, %v519
        %v565 = vpack.c.b16 %v526, %v523
        %v566 = vpack.c.b16 %v527, %v524
        %v567 = vpack.c.b16 %v528, %v525
        %v568 = vpack.c.b16 %v532, %v529
        %v569 = vpack.c.b16 %v533, %v530
        %v570 = vpack.c.b16 %v534, %v531
        %v571 = vpack.c.b16 %v538, %v535
        %v572 = vpack.c.b16 %v539, %v536
        %v573 = vpack.c.b16 %v540, %v537
        %v574 = vpack.c.b16 %v544, %v541
        %v575 = vpack.c.b16 %v545, %v542
        %v576 = vpack.c.b16 %v546, %v543
        %v577 = vpack.c.b16 %v550, %v547
        %v578 = vpack.c.b16 %v551, %v548
        %v579 = vpack.c.b16 %v552, %v549
        %v580 = vpack.c.b16 %v556, %v553
        %v581 = vpack.c.b16 %v557, %v554
        %v582 = vpack.c.b16 %v558, %v555
        %607 = vmatprep.subr.bf16.mxu0 %v581
        %608 = vmatpush1.bf16.msra.mxu0 %v580
        %609 = vmatprep.subr.bf16.mxu0 %v578
        %610 = vmatpush1.bf16.msra.mxu0 %v577
        %611 = vmatprep.subr.bf16.mxu0 %v575
        %612 = vmatpush1.bf16.msra.mxu0 %v574
        %613 = vmatprep.subr.bf16.mxu0 %v572
        %614 = vmatpush1.bf16.msra.mxu0 %v571
        %615 = vmatprep.subr.bf16.mxu0 %v569
        %616 = vmatpush1.bf16.msra.mxu0 %v568
        %617 = vmatprep.subr.bf16.mxu0 %v566
        %618 = vmatpush1.bf16.msra.mxu0 %v565
        %619 = vmatprep.subr.bf16.mxu0 %v563
        %620 = vmatpush1.bf16.msra.mxu0 %v562
        %621 = vmatprep.subr.bf16.mxu0 %v560
        %622 = vmatpush1.bf16.msra.mxu0 %v559
        %623 = vmatprep.subr.bf16.mxu0 0
        %624 = vmatpush2.bf16.msra.mxu0 0
        %625 = vmatprep.subr.bf16.mxu0 0
        %626 = vmatpush2.bf16.msra.mxu0 0
        %627 = vmatprep.subr.bf16.mxu0 0
        %628 = vmatpush2.bf16.msra.mxu0 0
        %629 = vmatprep.subr.bf16.mxu0 0
        %630 = vmatpush2.bf16.msra.mxu0 0
        %631 = vmatprep.subr.bf16.mxu0 0
        %632 = vmatpush2.bf16.msra.mxu0 0
        %633 = vmatprep.subr.bf16.mxu0 0
        %634 = vmatpush2.bf16.msra.mxu0 0
        %635 = vmatprep.subr.bf16.mxu0 0
        %636 = vmatpush2.bf16.msra.mxu0 0
        %637 = vmatprep.subr.bf16.mxu0 0
        %638 = vmatpush2.bf16.msra.mxu0 0
        %639 = vmatprep.mubr.bf16.mxu0 0
        %640 = vmatmul.mubr.bf16.gmra.mxu0 %v449
        %v641 = vpop.f32.mrf.mxu0
        %v642 = vadd.f32 0.0, %v641
        %v643 = vpop.f32.mrf.mxu0
        %v644 = vadd.f32 0.0, %v643
        %v645 = vpop.f32.mrf.mxu0
        %v646 = vadd.f32 0.0, %v645
        %v647 = vpop.f32.mrf.mxu0
        %v648 = vadd.f32 0.0, %v647
        %649 = vmatprep.mubr.bf16.mxu0 0
        %650 = vmatmul.mubr.bf16.gmra.mxu0 %v450
        %v651 = vpop.f32.mrf.mxu0
        %v652 = vadd.f32 0.0, %v651
        %v653 = vpop.f32.mrf.mxu0
        %v654 = vadd.f32 0.0, %v653
        %v655 = vpop.f32.mrf.mxu0
        %v656 = vadd.f32 0.0, %v655
        %v657 = vpop.f32.mrf.mxu0
        %v658 = vadd.f32 0.0, %v657
        %659 = vmatprep.mubr.bf16.mxu0 0
        %660 = vmatmul.mubr.bf16.gmra.mxu0 %v451
        %v661 = vpop.f32.mrf.mxu0
        %v662 = vadd.f32 0.0, %v661
        %v663 = vpop.f32.mrf.mxu0
        %v664 = vadd.f32 0.0, %v663
        %v665 = vpop.f32.mrf.mxu0
        %v666 = vadd.f32 0.0, %v665
        %v667 = vpop.f32.mrf.mxu0
        %v668 = vadd.f32 0.0, %v667
        %669 = vmatprep.mubr.bf16.mxu0 0
        %670 = vmatmul.mubr.bf16.gmra.mxu0 %v452
        %v671 = vpop.f32.mrf.mxu0
        %v672 = vadd.f32 0.0, %v671
        %v673 = vpop.f32.mrf.mxu0
        %v674 = vadd.f32 0.0, %v673
        %v675 = vpop.f32.mrf.mxu0
        %v676 = vadd.f32 0.0, %v675
        %v677 = vpop.f32.mrf.mxu0
        %v678 = vadd.f32 0.0, %v677
        %679 = vmatprep.mubr.bf16.mxu0 0
        %680 = vmatmul.mubr.bf16.gmra.mxu0 %v453
        %v681 = vpop.f32.mrf.mxu0
        %v682 = vadd.f32 0.0, %v681
        %v683 = vpop.f32.mrf.mxu0
        %v684 = vadd.f32 0.0, %v683
        %v685 = vpop.f32.mrf.mxu0
        %v686 = vadd.f32 0.0, %v685
        %v687 = vpop.f32.mrf.mxu0
        %v688 = vadd.f32 0.0, %v687
        %689 = vmatprep.mubr.bf16.mxu0 0
        %690 = vmatmul.mubr.bf16.gmra.mxu0 %v454
        %v691 = vpop.f32.mrf.mxu0
        %v692 = vadd.f32 0.0, %v691
        %v693 = vpop.f32.mrf.mxu0
        %v694 = vadd.f32 0.0, %v693
        %v695 = vpop.f32.mrf.mxu0
        %v696 = vadd.f32 0.0, %v695
        %v697 = vpop.f32.mrf.mxu0
        %v698 = vadd.f32 0.0, %v697
        %699 = vmatprep.mubr.bf16.mxu0 0
        %700 = vmatmul.mubr.bf16.gmra.mxu0 %v455
        %v701 = vpop.f32.mrf.mxu0
        %v702 = vadd.f32 0.0, %v701
        %v703 = vpop.f32.mrf.mxu0
        %v704 = vadd.f32 0.0, %v703
        %v705 = vpop.f32.mrf.mxu0
        %v706 = vadd.f32 0.0, %v705
        %v707 = vpop.f32.mrf.mxu0
        %v708 = vadd.f32 0.0, %v707
        %709 = vmatprep.mubr.bf16.mxu0 0
        %710 = vmatmul.mubr.bf16.gmra.mxu0 %v456
        %v711 = vpop.f32.mrf.mxu0
        %v712 = vadd.f32 0.0, %v711
        %v713 = vpop.f32.mrf.mxu0
        %v714 = vadd.f32 0.0, %v713
        %v715 = vpop.f32.mrf.mxu0
        %v716 = vadd.f32 0.0, %v715
        %v717 = vpop.f32.mrf.mxu0
        %v718 = vadd.f32 0.0, %v717
        %719 = vmatprep.mubr.bf16.mxu0 0
        %720 = vmatmul.mubr.bf16.gmra.mxu0 %v457
        %v721 = vpop.f32.mrf.mxu0
        %v722 = vadd.f32 0.0, %v721
        %v723 = vpop.f32.mrf.mxu0
        %v724 = vadd.f32 0.0, %v723
        %v725 = vpop.f32.mrf.mxu0
        %v726 = vadd.f32 0.0, %v725
        %v727 = vpop.f32.mrf.mxu0
        %v728 = vadd.f32 0.0, %v727
        %729 = vmatprep.mubr.bf16.mxu0 0
        %730 = vmatmul.mubr.bf16.gmra.mxu0 %v458
        %v731 = vpop.f32.mrf.mxu0
        %v732 = vadd.f32 0.0, %v731
        %v733 = vpop.f32.mrf.mxu0
        %v734 = vadd.f32 0.0, %v733
        %v735 = vpop.f32.mrf.mxu0
        %v736 = vadd.f32 0.0, %v735
        %v737 = vpop.f32.mrf.mxu0
        %v738 = vadd.f32 0.0, %v737
        %739 = vmatprep.mubr.bf16.mxu0 0
        %740 = vmatmul.mubr.bf16.gmra.mxu0 %v459
        %v741 = vpop.f32.mrf.mxu0
        %v742 = vadd.f32 0.0, %v741
        %v743 = vpop.f32.mrf.mxu0
        %v744 = vadd.f32 0.0, %v743
        %v745 = vpop.f32.mrf.mxu0
        %v746 = vadd.f32 0.0, %v745
        %v747 = vpop.f32.mrf.mxu0
        %v748 = vadd.f32 0.0, %v747
        %749 = vmatprep.mubr.bf16.mxu0 0
        %750 = vmatmul.mubr.bf16.gmra.mxu0 %v460
        %v751 = vpop.f32.mrf.mxu0
        %v752 = vadd.f32 0.0, %v751
        %v753 = vpop.f32.mrf.mxu0
        %v754 = vadd.f32 0.0, %v753
        %v755 = vpop.f32.mrf.mxu0
        %v756 = vadd.f32 0.0, %v755
        %v757 = vpop.f32.mrf.mxu0
        %v758 = vadd.f32 0.0, %v757
        %759 = vmatprep.mubr.bf16.mxu0 0
        %760 = vmatmul.mubr.bf16.gmra.mxu0 %v461
        %v761 = vpop.f32.mrf.mxu0
        %v762 = vadd.f32 0.0, %v761
        %v763 = vpop.f32.mrf.mxu0
        %v764 = vadd.f32 0.0, %v763
        %v765 = vpop.f32.mrf.mxu0
        %v766 = vadd.f32 0.0, %v765
        %v767 = vpop.f32.mrf.mxu0
        %v768 = vadd.f32 0.0, %v767
        %769 = vmatprep.mubr.bf16.mxu0 0
        %770 = vmatmul.mubr.bf16.gmra.mxu0 %v462
        %v771 = vpop.f32.mrf.mxu0
        %v772 = vadd.f32 0.0, %v771
        %v773 = vpop.f32.mrf.mxu0
        %v774 = vadd.f32 0.0, %v773
        %v775 = vpop.f32.mrf.mxu0
        %v776 = vadd.f32 0.0, %v775
        %v777 = vpop.f32.mrf.mxu0
        %v778 = vadd.f32 0.0, %v777
        %779 = vmatprep.mubr.bf16.mxu0 0
        %780 = vmatmul.mubr.bf16.gmra.mxu0 %v463
        %v781 = vpop.f32.mrf.mxu0
        %v782 = vadd.f32 0.0, %v781
        %v783 = vpop.f32.mrf.mxu0
        %v784 = vadd.f32 0.0, %v783
        %v785 = vpop.f32.mrf.mxu0
        %v786 = vadd.f32 0.0, %v785
        %v787 = vpop.f32.mrf.mxu0
        %v788 = vadd.f32 0.0, %v787
        %789 = vdwg.mxu0
        %790 = vmatprep.subr.bf16.mxu0 0
        %791 = vmatpush1.bf16.msra.mxu0 %v582
        %792 = vmatprep.subr.bf16.mxu0 0
        %793 = vmatpush1.bf16.msra.mxu0 %v579
        %794 = vmatprep.subr.bf16.mxu0 0
        %795 = vmatpush1.bf16.msra.mxu0 %v576
        %796 = vmatprep.subr.bf16.mxu0 0
        %797 = vmatpush1.bf16.msra.mxu0 %v573
        %798 = vmatprep.subr.bf16.mxu0 0
        %799 = vmatpush1.bf16.msra.mxu0 %v570
        %800 = vmatprep.subr.bf16.mxu0 0
        %801 = vmatpush1.bf16.msra.mxu0 %v567
        %802 = vmatprep.subr.bf16.mxu0 0
        %803 = vmatpush1.bf16.msra.mxu0 %v564
        %804 = vmatprep.subr.bf16.mxu0 0
        %805 = vmatpush1.bf16.msra.mxu0 %v561
        %806 = vmatprep.subr.bf16.mxu0 0
        %807 = vmatpush2.bf16.msra.mxu0 0
        %808 = vmatprep.subr.bf16.mxu0 0
        %809 = vmatpush2.bf16.msra.mxu0 0
        %810 = vmatprep.subr.bf16.mxu0 0
        %811 = vmatpush2.bf16.msra.mxu0 0
        %812 = vmatprep.subr.bf16.mxu0 0
        %813 = vmatpush2.bf16.msra.mxu0 0
        %814 = vmatprep.subr.bf16.mxu0 0
        %815 = vmatpush2.bf16.msra.mxu0 0
        %816 = vmatprep.subr.bf16.mxu0 0
        %817 = vmatpush2.bf16.msra.mxu0 0
        %818 = vmatprep.subr.bf16.mxu0 0
        %819 = vmatpush2.bf16.msra.mxu0 0
        %820 = vmatprep.subr.bf16.mxu0 0
        %821 = vmatpush2.bf16.msra.mxu0 0
        %822 = vmatprep.mubr.bf16.mxu0 0
        %823 = vmatmul.mubr.bf16.gmra.mxu0 %v449
        %v824 = vpop.f32.mrf.mxu0
        %v825 = vadd.f32 0.0, %v824
        %v826 = vpop.f32.mrf.mxu0
        %v827 = vpop.f32.mrf.mxu0
        %v828 = vadd.f32 0.0, %v827
        %v829 = vpop.f32.mrf.mxu0
        %830 = vmatprep.mubr.bf16.mxu0 0
        %831 = vmatmul.mubr.bf16.gmra.mxu0 %v450
        %v832 = vpop.f32.mrf.mxu0
        %v833 = vadd.f32 0.0, %v832
        %v834 = vpop.f32.mrf.mxu0
        %v835 = vpop.f32.mrf.mxu0
        %v836 = vadd.f32 0.0, %v835
        %v837 = vpop.f32.mrf.mxu0
        %838 = vmatprep.mubr.bf16.mxu0 0
        %839 = vmatmul.mubr.bf16.gmra.mxu0 %v451
        %v840 = vpop.f32.mrf.mxu0
        %v841 = vadd.f32 0.0, %v840
        %v842 = vpop.f32.mrf.mxu0
        %v843 = vpop.f32.mrf.mxu0
        %v844 = vadd.f32 0.0, %v843
        %v845 = vpop.f32.mrf.mxu0
        %846 = vmatprep.mubr.bf16.mxu0 0
        %847 = vmatmul.mubr.bf16.gmra.mxu0 %v452
        %v848 = vpop.f32.mrf.mxu0
        %v849 = vadd.f32 0.0, %v848
        %v850 = vpop.f32.mrf.mxu0
        %v851 = vpop.f32.mrf.mxu0
        %v852 = vadd.f32 0.0, %v851
        %v853 = vpop.f32.mrf.mxu0
        %854 = vmatprep.mubr.bf16.mxu0 0
        %855 = vmatmul.mubr.bf16.gmra.mxu0 %v453
        %v856 = vpop.f32.mrf.mxu0
        %v857 = vadd.f32 0.0, %v856
        %v858 = vpop.f32.mrf.mxu0
        %v859 = vpop.f32.mrf.mxu0
        %v860 = vadd.f32 0.0, %v859
        %v861 = vpop.f32.mrf.mxu0
        %862 = vmatprep.mubr.bf16.mxu0 0
        %863 = vmatmul.mubr.bf16.gmra.mxu0 %v454
        %v864 = vpop.f32.mrf.mxu0
        %v865 = vadd.f32 0.0, %v864
        %v866 = vpop.f32.mrf.mxu0
        %v867 = vpop.f32.mrf.mxu0
        %v868 = vadd.f32 0.0, %v867
        %v869 = vpop.f32.mrf.mxu0
        %870 = vmatprep.mubr.bf16.mxu0 0
        %871 = vmatmul.mubr.bf16.gmra.mxu0 %v455
        %v872 = vpop.f32.mrf.mxu0
        %v873 = vadd.f32 0.0, %v872
        %v874 = vpop.f32.mrf.mxu0
        %v875 = vpop.f32.mrf.mxu0
        %v876 = vadd.f32 0.0, %v875
        %v877 = vpop.f32.mrf.mxu0
        %878 = vmatprep.mubr.bf16.mxu0 0
        %879 = vmatmul.mubr.bf16.gmra.mxu0 %v456
        %v880 = vpop.f32.mrf.mxu0
        %v881 = vadd.f32 0.0, %v880
        %v882 = vpop.f32.mrf.mxu0
        %v883 = vpop.f32.mrf.mxu0
        %v884 = vadd.f32 0.0, %v883
        %v885 = vpop.f32.mrf.mxu0
        %886 = vmatprep.mubr.bf16.mxu0 0
        %887 = vmatmul.mubr.bf16.gmra.mxu0 %v457
        %v888 = vpop.f32.mrf.mxu0
        %v889 = vadd.f32 0.0, %v888
        %v890 = vpop.f32.mrf.mxu0
        %v891 = vpop.f32.mrf.mxu0
        %v892 = vadd.f32 0.0, %v891
        %v893 = vpop.f32.mrf.mxu0
        %894 = vmatprep.mubr.bf16.mxu0 0
        %895 = vmatmul.mubr.bf16.gmra.mxu0 %v458
        %v896 = vpop.f32.mrf.mxu0
        %v897 = vadd.f32 0.0, %v896
        %v898 = vpop.f32.mrf.mxu0
        %v899 = vpop.f32.mrf.mxu0
        %v900 = vadd.f32 0.0, %v899
        %v901 = vpop.f32.mrf.mxu0
        %902 = vmatprep.mubr.bf16.mxu0 0
        %903 = vmatmul.mubr.bf16.gmra.mxu0 %v459
        %v904 = vpop.f32.mrf.mxu0
        %v905 = vadd.f32 0.0, %v904
        %v906 = vpop.f32.mrf.mxu0
        %v907 = vpop.f32.mrf.mxu0
        %v908 = vadd.f32 0.0, %v907
        %v909 = vpop.f32.mrf.mxu0
        %910 = vmatprep.mubr.bf16.mxu0 0
        %911 = vmatmul.mubr.bf16.gmra.mxu0 %v460
        %v912 = vpop.f32.mrf.mxu0
        %v913 = vadd.f32 0.0, %v912
        %v914 = vpop.f32.mrf.mxu0
        %v915 = vpop.f32.mrf.mxu0
        %v916 = vadd.f32 0.0, %v915
        %v917 = vpop.f32.mrf.mxu0
        %918 = vmatprep.mubr.bf16.mxu0 0
        %919 = vmatmul.mubr.bf16.gmra.mxu0 %v461
        %v920 = vpop.f32.mrf.mxu0
        %v921 = vadd.f32 0.0, %v920
        %v922 = vpop.f32.mrf.mxu0
        %v923 = vpop.f32.mrf.mxu0
        %v924 = vadd.f32 0.0, %v923
        %v925 = vpop.f32.mrf.mxu0
        %926 = vmatprep.mubr.bf16.mxu0 0
        %927 = vmatmul.mubr.bf16.gmra.mxu0 %v462
        %v928 = vpop.f32.mrf.mxu0
        %v929 = vadd.f32 0.0, %v928
        %v930 = vpop.f32.mrf.mxu0
        %v931 = vpop.f32.mrf.mxu0
        %v932 = vadd.f32 0.0, %v931
        %v933 = vpop.f32.mrf.mxu0
        %934 = vmatprep.mubr.bf16.mxu0 0
        %935 = vmatmul.mubr.bf16.gmra.mxu0 %v463
        %v936 = vpop.f32.mrf.mxu0
        %v937 = vadd.f32 0.0, %v936
        %v938 = vpop.f32.mrf.mxu0
        %v939 = vpop.f32.mrf.mxu0
        %v940 = vadd.f32 0.0, %v939
        %v941 = vpop.f32.mrf.mxu0
        %942 = vdwg.mxu0
        %v943 = vld [vmem:[#allocation4] sm:$0xff]
        %v944 = vld [vmem:[#allocation4 + $0x8] sm:$0xff]
        %v945 = vld [vmem:[#allocation4 + $0x10] sm:$0x3]
        %v946 = vld [vmem:[#allocation4 + $0x18] sm:$0xff]
        %v947 = vld [vmem:[#allocation4 + $0x20] sm:$0xff]
        %v948 = vld [vmem:[#allocation4 + $0x28] sm:$0x3]
        %v949 = vld [vmem:[#allocation4 + $0x30] sm:$0xff]
        %v950 = vld [vmem:[#allocation4 + $0x38] sm:$0xff]
        %v951 = vld [vmem:[#allocation4 + $0x40] sm:$0x3]
        %v952 = vld [vmem:[#allocation4 + $0x48] sm:$0xff]
        %v953 = vld [vmem:[#allocation4 + $0x50] sm:$0xff]
        %v954 = vld [vmem:[#allocation4 + $0x58] sm:$0x3]
        %v955 = vld [vmem:[#allocation4 + $0x60] sm:$0xff]
        %v956 = vld [vmem:[#allocation4 + $0x68] sm:$0xff]
        %v957 = vld [vmem:[#allocation4 + $0x70] sm:$0x3]
        %v958 = vld [vmem:[#allocation4 + $0x78] sm:$0xff]
        %v959 = vld [vmem:[#allocation4 + $0x80] sm:$0xff]
        %v960 = vld [vmem:[#allocation4 + $0x88] sm:$0x3]
        %v961 = vld [vmem:[#allocation4 + $0x90] sm:$0xff]
        %v962 = vld [vmem:[#allocation4 + $0x98] sm:$0xff]
        %v963 = vld [vmem:[#allocation4 + $0xa0] sm:$0x3]
        %v964 = vld [vmem:[#allocation4 + $0xa8] sm:$0xff]
        %v965 = vld [vmem:[#allocation4 + $0xb0] sm:$0xff]
        %v966 = vld [vmem:[#allocation4 + $0xb8] sm:$0x3]
        %v967 = vld [vmem:[#allocation4 + $0xc0] sm:$0xff]
        %v968 = vld [vmem:[#allocation4 + $0xc8] sm:$0xff]
        %v969 = vld [vmem:[#allocation4 + $0xd0] sm:$0x3]
        %v970 = vld [vmem:[#allocation4 + $0xd8] sm:$0xff]
        %v971 = vld [vmem:[#allocation4 + $0xe0] sm:$0xff]
        %v972 = vld [vmem:[#allocation4 + $0xe8] sm:$0x3]
        %v973 = vadd.f32 %v943, %v642
        %v974 = vadd.f32 %v944, %v646
        %v975 = vadd.f32 %v945, %v652
        %v976 = vadd.f32 %v946, %v656
        %v977 = vadd.f32 %v947, %v662
        %v978 = vadd.f32 %v948, %v666
        %v979 = vadd.f32 %v949, %v672
        %v980 = vadd.f32 %v950, %v676
        %v981 = vadd.f32 %v951, %v682
        %v982 = vadd.f32 %v952, %v686
        %v983 = vadd.f32 %v953, %v692
        %v984 = vadd.f32 %v954, %v696
        %v985 = vadd.f32 %v955, %v702
        %v986 = vadd.f32 %v956, %v706
        %v987 = vadd.f32 %v957, %v712
        %v988 = vadd.f32 %v958, %v716
        %v989 = vadd.f32 %v959, %v722
        %v990 = vadd.f32 %v960, %v726
        %v991 = vadd.f32 %v961, %v732
        %v992 = vadd.f32 %v962, %v736
        %v993 = vadd.f32 %v963, %v742
        %v994 = vadd.f32 %v964, %v746
        %v995 = vadd.f32 %v965, %v752
        %v996 = vadd.f32 %v966, %v756
        %v997 = vadd.f32 %v967, %v762
        %v998 = vadd.f32 %v968, %v766
        %v999 = vadd.f32 %v969, %v772
        %v1000 = vadd.f32 %v970, %v776
        %v1001 = vadd.f32 %v971, %v782
        %v1002 = vadd.f32 %v972, %v786
        %1003 = vst [vmem:[#allocation4] sm:$0xff] %v973
        %1004 = vst [vmem:[#allocation4 + $0x8] sm:$0xff] %v974
        %1005 = vst [vmem:[#allocation4 + $0x10] sm:$0x3] %v975
        %1006 = vst [vmem:[#allocation4 + $0x18] sm:$0xff] %v976
        %1007 = vst [vmem:[#allocation4 + $0x20] sm:$0xff] %v977
        %1008 = vst [vmem:[#allocation4 + $0x28] sm:$0x3] %v978
        %1009 = vst [vmem:[#allocation4 + $0x30] sm:$0xff] %v979
        %1010 = vst [vmem:[#allocation4 + $0x38] sm:$0xff] %v980
        %1011 = vst [vmem:[#allocation4 + $0x40] sm:$0x3] %v981
        %1012 = vst [vmem:[#allocation4 + $0x48] sm:$0xff] %v982
        %1013 = vst [vmem:[#allocation4 + $0x50] sm:$0xff] %v983
        %1014 = vst [vmem:[#allocation4 + $0x58] sm:$0x3] %v984
        %1015 = vst [vmem:[#allocation4 + $0x60] sm:$0xff] %v985
        %1016 = vst [vmem:[#allocation4 + $0x68] sm:$0xff] %v986
        %1017 = vst [vmem:[#allocation4 + $0x70] sm:$0x3] %v987
        %1018 = vst [vmem:[#allocation4 + $0x78] sm:$0xff] %v988
        %1019 = vst [vmem:[#allocation4 + $0x80] sm:$0xff] %v989
        %1020 = vst [vmem:[#allocation4 + $0x88] sm:$0x3] %v990
        %1021 = vst [vmem:[#allocation4 + $0x90] sm:$0xff] %v991
        %1022 = vst [vmem:[#allocation4 + $0x98] sm:$0xff] %v992
        %1023 = vst [vmem:[#allocation4 + $0xa0] sm:$0x3] %v993
        %1024 = vst [vmem:[#allocation4 + $0xa8] sm:$0xff] %v994
        %1025 = vst [vmem:[#allocation4 + $0xb0] sm:$0xff] %v995
        %1026 = vst [vmem:[#allocation4 + $0xb8] sm:$0x3] %v996
        %1027 = vst [vmem:[#allocation4 + $0xc0] sm:$0xff] %v997
        %1028 = vst [vmem:[#allocation4 + $0xc8] sm:$0xff] %v998
        %1029 = vst [vmem:[#allocation4 + $0xd0] sm:$0x3] %v999
        %1030 = vst [vmem:[#allocation4 + $0xd8] sm:$0xff] %v1000
        %1031 = vst [vmem:[#allocation4 + $0xe0] sm:$0xff] %v1001
        %1032 = vst [vmem:[#allocation4 + $0xe8] sm:$0x3] %v1002
        %v1033 = vld [vmem:[#allocation4] sm:$0xff]
        %v1034 = vld [vmem:[#allocation4 + $0x8] sm:$0xff]
        %v1035 = vld [vmem:[#allocation4 + $0x10] sm:$0x3]
        %v1036 = vld [vmem:[#allocation4 + $0x18] sm:$0xff]
        %v1037 = vld [vmem:[#allocation4 + $0x20] sm:$0xff]
        %v1038 = vld [vmem:[#allocation4 + $0x28] sm:$0x3]
        %v1039 = vld [vmem:[#allocation4 + $0x30] sm:$0xff]
        %v1040 = vld [vmem:[#allocation4 + $0x38] sm:$0xff]
        %v1041 = vld [vmem:[#allocation4 + $0x40] sm:$0x3]
        %v1042 = vld [vmem:[#allocation4 + $0x48] sm:$0xff]
        %v1043 = vld [vmem:[#allocation4 + $0x50] sm:$0xff]
        %v1044 = vld [vmem:[#allocation4 + $0x58] sm:$0x3]
        %v1045 = vld [vmem:[#allocation4 + $0x60] sm:$0xff]
        %v1046 = vld [vmem:[#allocation4 + $0x68] sm:$0xff]
        %v1047 = vld [vmem:[#allocation4 + $0x70] sm:$0x3]
        %v1048 = vld [vmem:[#allocation4 + $0x78] sm:$0xff]
        %v1049 = vld [vmem:[#allocation4 + $0x80] sm:$0xff]
        %v1050 = vld [vmem:[#allocation4 + $0x88] sm:$0x3]
        %v1051 = vld [vmem:[#allocation4 + $0x90] sm:$0xff]
        %v1052 = vld [vmem:[#allocation4 + $0x98] sm:$0xff]
        %v1053 = vld [vmem:[#allocation4 + $0xa0] sm:$0x3]
        %v1054 = vld [vmem:[#allocation4 + $0xa8] sm:$0xff]
        %v1055 = vld [vmem:[#allocation4 + $0xb0] sm:$0xff]
        %v1056 = vld [vmem:[#allocation4 + $0xb8] sm:$0x3]
        %v1057 = vld [vmem:[#allocation4 + $0xc0] sm:$0xff]
        %v1058 = vld [vmem:[#allocation4 + $0xc8] sm:$0xff]
        %v1059 = vld [vmem:[#allocation4 + $0xd0] sm:$0x3]
        %v1060 = vld [vmem:[#allocation4 + $0xd8] sm:$0xff]
        %v1061 = vld [vmem:[#allocation4 + $0xe0] sm:$0xff]
        %v1062 = vld [vmem:[#allocation4 + $0xe8] sm:$0x3]
        %vm1093 = vcmask 1046528
        %v1094 = vrot.slane %v644, 1
        %v1095 = vrot.slane %v648, 1
        %v1096 = vsel %vm1093, %v1094, %v1095
        %v1097 = vrot.slane %v654, 1
        %v1098 = vsel %vm1093, %v1095, %v1097
        %v1099 = vrot.slane %v658, 1
        %v1100 = vrot.slane %v664, 1
        %v1101 = vsel %vm1093, %v1099, %v1100
        %v1102 = vrot.slane %v668, 1
        %v1103 = vsel %vm1093, %v1100, %v1102
        %v1104 = vrot.slane %v674, 1
        %v1105 = vrot.slane %v678, 1
        %v1106 = vsel %vm1093, %v1104, %v1105
        %v1107 = vrot.slane %v684, 1
        %v1108 = vsel %vm1093, %v1105, %v1107
        %v1109 = vrot.slane %v688, 1
        %v1110 = vrot.slane %v694, 1
        %v1111 = vsel %vm1093, %v1109, %v1110
        %v1112 = vrot.slane %v698, 1
        %v1113 = vsel %vm1093, %v1110, %v1112
        %v1114 = vrot.slane %v704, 1
        %v1115 = vrot.slane %v708, 1
        %v1116 = vsel %vm1093, %v1114, %v1115
        %v1117 = vrot.slane %v714, 1
        %v1118 = vsel %vm1093, %v1115, %v1117
        %v1119 = vrot.slane %v718, 1
        %v1120 = vrot.slane %v724, 1
        %v1121 = vsel %vm1093, %v1119, %v1120
        %v1122 = vrot.slane %v728, 1
        %v1123 = vsel %vm1093, %v1120, %v1122
        %v1124 = vrot.slane %v734, 1
        %v1125 = vrot.slane %v738, 1
        %v1126 = vsel %vm1093, %v1124, %v1125
        %v1127 = vrot.slane %v744, 1
        %v1128 = vsel %vm1093, %v1125, %v1127
        %v1129 = vrot.slane %v748, 1
        %v1130 = vrot.slane %v754, 1
        %v1131 = vsel %vm1093, %v1129, %v1130
        %v1132 = vrot.slane %v758, 1
        %v1133 = vsel %vm1093, %v1130, %v1132
        %v1134 = vrot.slane %v764, 1
        %v1135 = vrot.slane %v768, 1
        %v1136 = vsel %vm1093, %v1134, %v1135
        %v1137 = vrot.slane %v774, 1
        %v1138 = vsel %vm1093, %v1135, %v1137
        %v1139 = vrot.slane %v778, 1
        %v1140 = vrot.slane %v784, 1
        %v1141 = vsel %vm1093, %v1139, %v1140
        %v1142 = vrot.slane %v788, 1
        %v1143 = vsel %vm1093, %v1140, %v1142
        %v1174 = vadd.f32 %v1033, %v1096
        %v1175 = vadd.f32 %v1034, %v1098
        %v1176 = vadd.f32 %v1035, %v1097
        %v1177 = vadd.f32 %v1036, %v1101
        %v1178 = vadd.f32 %v1037, %v1103
        %v1179 = vadd.f32 %v1038, %v1102
        %v1180 = vadd.f32 %v1039, %v1106
        %v1181 = vadd.f32 %v1040, %v1108
        %v1182 = vadd.f32 %v1041, %v1107
        %v1183 = vadd.f32 %v1042, %v1111
        %v1184 = vadd.f32 %v1043, %v1113
        %v1185 = vadd.f32 %v1044, %v1112
        %v1186 = vadd.f32 %v1045, %v1116
        %v1187 = vadd.f32 %v1046, %v1118
        %v1188 = vadd.f32 %v1047, %v1117
        %v1189 = vadd.f32 %v1048, %v1121
        %v1190 = vadd.f32 %v1049, %v1123
        %v1191 = vadd.f32 %v1050, %v1122
        %v1192 = vadd.f32 %v1051, %v1126
        %v1193 = vadd.f32 %v1052, %v1128
        %v1194 = vadd.f32 %v1053, %v1127
        %v1195 = vadd.f32 %v1054, %v1131
        %v1196 = vadd.f32 %v1055, %v1133
        %v1197 = vadd.f32 %v1056, %v1132
        %v1198 = vadd.f32 %v1057, %v1136
        %v1199 = vadd.f32 %v1058, %v1138
        %v1200 = vadd.f32 %v1059, %v1137
        %v1201 = vadd.f32 %v1060, %v1141
        %v1202 = vadd.f32 %v1061, %v1143
        %v1203 = vadd.f32 %v1062, %v1142
        %1204 = vst [vmem:[#allocation4] sm:$0xff] %v1174
        %1205 = vst [vmem:[#allocation4 + $0x8] sm:$0xff] %v1175
        %1206 = vst [vmem:[#allocation4 + $0x10] sm:$0x3] %v1176
        %1207 = vst [vmem:[#allocation4 + $0x18] sm:$0xff] %v1177
        %1208 = vst [vmem:[#allocation4 + $0x20] sm:$0xff] %v1178
        %1209 = vst [vmem:[#allocation4 + $0x28] sm:$0x3] %v1179
        %1210 = vst [vmem:[#allocation4 + $0x30] sm:$0xff] %v1180
        %1211 = vst [vmem:[#allocation4 + $0x38] sm:$0xff] %v1181
        %1212 = vst [vmem:[#allocation4 + $0x40] sm:$0x3] %v1182
        %1213 = vst [vmem:[#allocation4 + $0x48] sm:$0xff] %v1183
        %1214 = vst [vmem:[#allocation4 + $0x50] sm:$0xff] %v1184
        %1215 = vst [vmem:[#allocation4 + $0x58] sm:$0x3] %v1185
        %1216 = vst [vmem:[#allocation4 + $0x60] sm:$0xff] %v1186
        %1217 = vst [vmem:[#allocation4 + $0x68] sm:$0xff] %v1187
        %1218 = vst [vmem:[#allocation4 + $0x70] sm:$0x3] %v1188
        %1219 = vst [vmem:[#allocation4 + $0x78] sm:$0xff] %v1189
        %1220 = vst [vmem:[#allocation4 + $0x80] sm:$0xff] %v1190
        %1221 = vst [vmem:[#allocation4 + $0x88] sm:$0x3] %v1191
        %1222 = vst [vmem:[#allocation4 + $0x90] sm:$0xff] %v1192
        %1223 = vst [vmem:[#allocation4 + $0x98] sm:$0xff] %v1193
        %1224 = vst [vmem:[#allocation4 + $0xa0] sm:$0x3] %v1194
        %1225 = vst [vmem:[#allocation4 + $0xa8] sm:$0xff] %v1195
        %1226 = vst [vmem:[#allocation4 + $0xb0] sm:$0xff] %v1196
        %1227 = vst [vmem:[#allocation4 + $0xb8] sm:$0x3] %v1197
        %1228 = vst [vmem:[#allocation4 + $0xc0] sm:$0xff] %v1198
        %1229 = vst [vmem:[#allocation4 + $0xc8] sm:$0xff] %v1199
        %1230 = vst [vmem:[#allocation4 + $0xd0] sm:$0x3] %v1200
        %1231 = vst [vmem:[#allocation4 + $0xd8] sm:$0xff] %v1201
        %1232 = vst [vmem:[#allocation4 + $0xe0] sm:$0xff] %v1202
        %1233 = vst [vmem:[#allocation4 + $0xe8] sm:$0x3] %v1203
        %v1234 = vld [vmem:[#allocation4] sm:$0xff]
        %v1235 = vld [vmem:[#allocation4 + $0x8] sm:$0xff]
        %v1236 = vld [vmem:[#allocation4 + $0x10] sm:$0x3]
        %v1237 = vld [vmem:[#allocation4 + $0x18] sm:$0xff]
        %v1238 = vld [vmem:[#allocation4 + $0x20] sm:$0xff]
        %v1239 = vld [vmem:[#allocation4 + $0x28] sm:$0x3]
        %v1240 = vld [vmem:[#allocation4 + $0x30] sm:$0xff]
        %v1241 = vld [vmem:[#allocation4 + $0x38] sm:$0xff]
        %v1242 = vld [vmem:[#allocation4 + $0x40] sm:$0x3]
        %v1243 = vld [vmem:[#allocation4 + $0x48] sm:$0xff]
        %v1244 = vld [vmem:[#allocation4 + $0x50] sm:$0xff]
        %v1245 = vld [vmem:[#allocation4 + $0x58] sm:$0x3]
        %v1246 = vld [vmem:[#allocation4 + $0x60] sm:$0xff]
        %v1247 = vld [vmem:[#allocation4 + $0x68] sm:$0xff]
        %v1248 = vld [vmem:[#allocation4 + $0x70] sm:$0x3]
        %v1249 = vld [vmem:[#allocation4 + $0x78] sm:$0xff]
        %v1250 = vld [vmem:[#allocation4 + $0x80] sm:$0xff]
        %v1251 = vld [vmem:[#allocation4 + $0x88] sm:$0x3]
        %v1252 = vld [vmem:[#allocation4 + $0x90] sm:$0xff]
        %v1253 = vld [vmem:[#allocation4 + $0x98] sm:$0xff]
        %v1254 = vld [vmem:[#allocation4 + $0xa0] sm:$0x3]
        %v1255 = vld [vmem:[#allocation4 + $0xa8] sm:$0xff]
        %v1256 = vld [vmem:[#allocation4 + $0xb0] sm:$0xff]
        %v1257 = vld [vmem:[#allocation4 + $0xb8] sm:$0x3]
        %v1258 = vld [vmem:[#allocation4 + $0xc0] sm:$0xff]
        %v1259 = vld [vmem:[#allocation4 + $0xc8] sm:$0xff]
        %v1260 = vld [vmem:[#allocation4 + $0xd0] sm:$0x3]
        %v1261 = vld [vmem:[#allocation4 + $0xd8] sm:$0xff]
        %v1262 = vld [vmem:[#allocation4 + $0xe0] sm:$0xff]
        %v1263 = vld [vmem:[#allocation4 + $0xe8] sm:$0x3]
        %vm1294 = vcmask 1045504
        %v1295 = vrot.slane %v825, 2
        %v1296 = vrot.slane %v828, 2
        %v1297 = vsel %vm1294, %v1295, %v1296
        %v1298 = vrot.slane %v833, 2
        %v1299 = vsel %vm1294, %v1296, %v1298
        %v1300 = vrot.slane %v836, 2
        %v1301 = vrot.slane %v841, 2
        %v1302 = vsel %vm1294, %v1300, %v1301
        %v1303 = vrot.slane %v844, 2
        %v1304 = vsel %vm1294, %v1301, %v1303
        %v1305 = vrot.slane %v849, 2
        %v1306 = vrot.slane %v852, 2
        %v1307 = vsel %vm1294, %v1305, %v1306
        %v1308 = vrot.slane %v857, 2
        %v1309 = vsel %vm1294, %v1306, %v1308
        %v1310 = vrot.slane %v860, 2
        %v1311 = vrot.slane %v865, 2
        %v1312 = vsel %vm1294, %v1310, %v1311
        %v1313 = vrot.slane %v868, 2
        %v1314 = vsel %vm1294, %v1311, %v1313
        %v1315 = vrot.slane %v873, 2
        %v1316 = vrot.slane %v876, 2
        %v1317 = vsel %vm1294, %v1315, %v1316
        %v1318 = vrot.slane %v881, 2
        %v1319 = vsel %vm1294, %v1316, %v1318
        %v1320 = vrot.slane %v884, 2
        %v1321 = vrot.slane %v889, 2
        %v1322 = vsel %vm1294, %v1320, %v1321
        %v1323 = vrot.slane %v892, 2
        %v1324 = vsel %vm1294, %v1321, %v1323
        %v1325 = vrot.slane %v897, 2
        %v1326 = vrot.slane %v900, 2
        %v1327 = vsel %vm1294, %v1325, %v1326
        %v1328 = vrot.slane %v905, 2
        %v1329 = vsel %vm1294, %v1326, %v1328
        %v1330 = vrot.slane %v908, 2
        %v1331 = vrot.slane %v913, 2
        %v1332 = vsel %vm1294, %v1330, %v1331
        %v1333 = vrot.slane %v916, 2
        %v1334 = vsel %vm1294, %v1331, %v1333
        %v1335 = vrot.slane %v921, 2
        %v1336 = vrot.slane %v924, 2
        %v1337 = vsel %vm1294, %v1335, %v1336
        %v1338 = vrot.slane %v929, 2
        %v1339 = vsel %vm1294, %v1336, %v1338
        %v1340 = vrot.slane %v932, 2
        %v1341 = vrot.slane %v937, 2
        %v1342 = vsel %vm1294, %v1340, %v1341
        %v1343 = vrot.slane %v940, 2
        %v1344 = vsel %vm1294, %v1341, %v1343
        %v1375 = vadd.f32 %v1234, %v1297
        %v1376 = vadd.f32 %v1235, %v1299
        %v1377 = vadd.f32 %v1236, %v1298
        %v1378 = vadd.f32 %v1237, %v1302
        %v1379 = vadd.f32 %v1238, %v1304
        %v1380 = vadd.f32 %v1239, %v1303
        %v1381 = vadd.f32 %v1240, %v1307
        %v1382 = vadd.f32 %v1241, %v1309
        %v1383 = vadd.f32 %v1242, %v1308
        %v1384 = vadd.f32 %v1243, %v1312
        %v1385 = vadd.f32 %v1244, %v1314
        %v1386 = vadd.f32 %v1245, %v1313
        %v1387 = vadd.f32 %v1246, %v1317
        %v1388 = vadd.f32 %v1247, %v1319
        %v1389 = vadd.f32 %v1248, %v1318
        %v1390 = vadd.f32 %v1249, %v1322
        %v1391 = vadd.f32 %v1250, %v1324
        %v1392 = vadd.f32 %v1251, %v1323
        %v1393 = vadd.f32 %v1252, %v1327
        %v1394 = vadd.f32 %v1253, %v1329
        %v1395 = vadd.f32 %v1254, %v1328
        %v1396 = vadd.f32 %v1255, %v1332
        %v1397 = vadd.f32 %v1256, %v1334
        %v1398 = vadd.f32 %v1257, %v1333
        %v1399 = vadd.f32 %v1258, %v1337
        %v1400 = vadd.f32 %v1259, %v1339
        %v1401 = vadd.f32 %v1260, %v1338
        %v1402 = vadd.f32 %v1261, %v1342
        %v1403 = vadd.f32 %v1262, %v1344
        %v1404 = vadd.f32 %v1263, %v1343
        %1405 = vst [vmem:[#allocation4] sm:$0xff] %v1375
        %1406 = vst [vmem:[#allocation4 + $0x8] sm:$0xff] %v1376
        %1407 = vst [vmem:[#allocation4 + $0x10] sm:$0x3] %v1377
        %1408 = vst [vmem:[#allocation4 + $0x18] sm:$0xff] %v1378
        %1409 = vst [vmem:[#allocation4 + $0x20] sm:$0xff] %v1379
        %1410 = vst [vmem:[#allocation4 + $0x28] sm:$0x3] %v1380
        %1411 = vst [vmem:[#allocation4 + $0x30] sm:$0xff] %v1381
        %1412 = vst [vmem:[#allocation4 + $0x38] sm:$0xff] %v1382
        %1413 = vst [vmem:[#allocation4 + $0x40] sm:$0x3] %v1383
        %1414 = vst [vmem:[#allocation4 + $0x48] sm:$0xff] %v1384
        %1415 = vst [vmem:[#allocation4 + $0x50] sm:$0xff] %v1385
        %1416 = vst [vmem:[#allocation4 + $0x58] sm:$0x3] %v1386
        %1417 = vst [vmem:[#allocation4 + $0x60] sm:$0xff] %v1387
        %1418 = vst [vmem:[#allocation4 + $0x68] sm:$0xff] %v1388
        %1419 = vst [vmem:[#allocation4 + $0x70] sm:$0x3] %v1389
        %1420 = vst [vmem:[#allocation4 + $0x78] sm:$0xff] %v1390
        %1421 = vst [vmem:[#allocation4 + $0x80] sm:$0xff] %v1391
        %1422 = vst [vmem:[#allocation4 + $0x88] sm:$0x3] %v1392
        %1423 = vst [vmem:[#allocation4 + $0x90] sm:$0xff] %v1393
        %1424 = vst [vmem:[#allocation4 + $0x98] sm:$0xff] %v1394
        %1425 = vst [vmem:[#allocation4 + $0xa0] sm:$0x3] %v1395
        %1426 = vst [vmem:[#allocation4 + $0xa8] sm:$0xff] %v1396
        %1427 = vst [vmem:[#allocation4 + $0xb0] sm:$0xff] %v1397
        %1428 = vst [vmem:[#allocation4 + $0xb8] sm:$0x3] %v1398
        %1429 = vst [vmem:[#allocation4 + $0xc0] sm:$0xff] %v1399
        %1430 = vst [vmem:[#allocation4 + $0xc8] sm:$0xff] %v1400
        %1431 = vst [vmem:[#allocation4 + $0xd0] sm:$0x3] %v1401
        %1432 = vst [vmem:[#allocation4 + $0xd8] sm:$0xff] %v1402
        %1433 = vst [vmem:[#allocation4 + $0xe0] sm:$0xff] %v1403
        %1434 = vst [vmem:[#allocation4 + $0xe8] sm:$0x3] %v1404
        %v1435 = vld [vmem:[%s263 + $0xc] sm:$0xf]
        %v1436 = vld [vmem:[%s263 + $0x10] sm:$0xf]
        %v1437 = vld [vmem:[%s263 + $0x14] sm:$0xf]
        %v1438 = vld [vmem:[%s263 + $0x18] sm:$0xf]
        %v1439 = vld [vmem:[%s263 + $0x1c] sm:$0xf]
        %v1440 = vld [vmem:[%s263 + $0x20] sm:$0xf]
        %v1441 = vld [vmem:[%s263 + $0x24] sm:$0xf]
        %v1442 = vld [vmem:[%s263 + $0x28] sm:$0xf]
        %v1443 = vld [vmem:[%s263 + $0x2c] sm:$0xf]
        %v1444 = vld [vmem:[%s263 + $0x30] sm:$0xf]
        %v1445 = vld [vmem:[%s263 + $0x34] sm:$0xf]
        %v1446 = vld [vmem:[%s263 + $0x38] sm:$0xf]
        %v1447 = vld [vmem:[%s263 + $0x3c] sm:$0xf]
        %v1448 = vld [vmem:[%s263 + $0x40] sm:$0xf]
        %v1449 = vld [vmem:[%s263 + $0x44] sm:$0xf]
        %v1450 = vld [vmem:[%s263 + $0x48] sm:$0xf]
        %v1451 = vld [vmem:[%s263 + $0x4c] sm:$0xf]
        %v1452 = vld [vmem:[%s263 + $0x50] sm:$0xf]
        %v1453 = vld [vmem:[%s263 + $0x54] sm:$0xf]
        %v1454 = vld [vmem:[%s263 + $0x58] sm:$0xf]
        %v1455 = vld [vmem:[%s263 + $0x5c] sm:$0xf]
        %v1456 = vld [vmem:[%s263 + $0x60] sm:$0xf]
        %v1457 = vld [vmem:[%s263 + $0x64] sm:$0xf]
        %v1458 = vld [vmem:[%s263 + $0x68] sm:$0xf]
        %v1459 = vld [vmem:[%s263 + $0x6c] sm:$0xf]
        %v1460 = vld [vmem:[%s263 + $0x70] sm:$0xf]
        %v1461 = vld [vmem:[%s263 + $0x74] sm:$0xf]
        %v1462 = vld [vmem:[%s263 + $0x78] sm:$0xf]
        %v1463 = vld [vmem:[%s263 + $0x7c] sm:$0xf]
        %v1464 = vld [vmem:[%s263 + $0x80] sm:$0xf]
        %s1465 = scalar_lea.vmem [#allocation7], 192
        %v1466 = vld [vmem:[%s1465] sm:$0xff]
        %v1467 = vld [vmem:[%s1465 + $0x8] sm:$0xf]
        %v1468 = vld [vmem:[%s1465 + $0xc] sm:$0xff]
        %v1469 = vld [vmem:[%s1465 + $0x14] sm:$0xf]
        %v1470 = vld [vmem:[%s1465 + $0x18] sm:$0xff]
        %v1471 = vld [vmem:[%s1465 + $0x20] sm:$0xf]
        %v1472 = vld [vmem:[%s1465 + $0x24] sm:$0xff]
        %v1473 = vld [vmem:[%s1465 + $0x2c] sm:$0xf]
        %v1474 = vld [vmem:[%s1465 + $0x30] sm:$0xff]
        %v1475 = vld [vmem:[%s1465 + $0x38] sm:$0xf]
        %v1476 = vld [vmem:[%s1465 + $0x3c] sm:$0xff]
        %v1477 = vld [vmem:[%s1465 + $0x44] sm:$0xf]
        %v1478 = vld [vmem:[%s1465 + $0x48] sm:$0xff]
        %v1479 = vld [vmem:[%s1465 + $0x50] sm:$0xf]
        %v1480 = vld [vmem:[%s1465 + $0x54] sm:$0xff]
        %v1481 = vld [vmem:[%s1465 + $0x5c] sm:$0xf]
        %v1482 = vld [vmem:[%s1465 + $0x60] sm:$0xff]
        %v1483 = vld [vmem:[%s1465 + $0x68] sm:$0xf]
        %v1484 = vld [vmem:[%s1465 + $0x6c] sm:$0xff]
        %v1485 = vld [vmem:[%s1465 + $0x74] sm:$0xf]
        %v1486 = vld [vmem:[%s1465 + $0x78] sm:$0xff]
        %v1487 = vld [vmem:[%s1465 + $0x80] sm:$0xf]
        %v1488 = vld [vmem:[%s1465 + $0x84] sm:$0xff]
        %v1489 = vld [vmem:[%s1465 + $0x8c] sm:$0xf]
        %v1490 = vld [vmem:[%s1465 + $0x90] sm:$0xff]
        %v1491 = vld [vmem:[%s1465 + $0x98] sm:$0xf]
        %v1492 = vld [vmem:[%s1465 + $0x9c] sm:$0xff]
        %v1493 = vld [vmem:[%s1465 + $0xa4] sm:$0xf]
        %v1494 = vld [vmem:[%s1465 + $0xa8] sm:$0xff]
        %v1495 = vld [vmem:[%s1465 + $0xb0] sm:$0xf]
        %v1496 = vld [vmem:[%s1465 + $0xb4] sm:$0xff]
        %v1497 = vld [vmem:[%s1465 + $0xbc] sm:$0xf]
        %v1528 = vunpack.c.l.b16 %v1435
        %v1529 = vunpack.c.l.b16 %v1436
        %v1530 = vunpack.c.l.b16 %v1437
        %v1531 = vunpack.c.l.b16 %v1438
        %v1532 = vunpack.c.l.b16 %v1439
        %v1533 = vunpack.c.l.b16 %v1440
        %v1534 = vunpack.c.l.b16 %v1441
        %v1535 = vunpack.c.l.b16 %v1442
        %v1536 = vunpack.c.l.b16 %v1443
        %v1537 = vunpack.c.l.b16 %v1444
        %v1538 = vunpack.c.l.b16 %v1445
        %v1539 = vunpack.c.l.b16 %v1446
        %v1540 = vunpack.c.l.b16 %v1447
        %v1541 = vunpack.c.l.b16 %v1448
        %v1542 = vunpack.c.l.b16 %v1449
        %v1543 = vunpack.c.l.b16 %v1450
        %v1544 = vunpack.c.l.b16 %v1451
        %v1545 = vunpack.c.l.b16 %v1452
        %v1546 = vunpack.c.l.b16 %v1453
        %v1547 = vunpack.c.l.b16 %v1454
        %v1548 = vunpack.c.l.b16 %v1455
        %v1549 = vunpack.c.l.b16 %v1456
        %v1550 = vunpack.c.l.b16 %v1457
        %v1551 = vunpack.c.l.b16 %v1458
        %v1552 = vunpack.c.l.b16 %v1459
        %v1553 = vunpack.c.l.b16 %v1460
        %v1554 = vunpack.c.l.b16 %v1461
        %v1555 = vunpack.c.l.b16 %v1462
        %v1556 = vunpack.c.l.b16 %v1463
        %v1557 = vunpack.c.l.b16 %v1464
        %v1558 = vpack.c.b16 %v1529, %v1528
        %v1559 = vpack.c.b16 %v1531, %v1530
        %v1560 = vpack.c.b16 %v1533, %v1532
        %v1561 = vpack.c.b16 %v1535, %v1534
        %v1562 = vpack.c.b16 %v1537, %v1536
        %v1563 = vpack.c.b16 %v1539, %v1538
        %v1564 = vpack.c.b16 %v1541, %v1540
        %v1565 = vpack.c.b16 %v1543, %v1542
        %v1566 = vpack.c.b16 %v1545, %v1544
        %v1567 = vpack.c.b16 %v1547, %v1546
        %v1568 = vpack.c.b16 %v1549, %v1548
        %v1569 = vpack.c.b16 %v1551, %v1550
        %v1570 = vpack.c.b16 %v1553, %v1552
        %v1571 = vpack.c.b16 %v1555, %v1554
        %v1572 = vpack.c.b16 %v1557, %v1556
        %v1620 = vunpack.c.l.b16 %v1466
        %v1621 = vunpack.c.h.b16 %v1466
        %v1622 = vunpack.c.l.b16 %v1467
        %v1623 = vunpack.c.l.b16 %v1468
        %v1624 = vunpack.c.h.b16 %v1468
        %v1625 = vunpack.c.l.b16 %v1469
        %v1626 = vunpack.c.l.b16 %v1470
        %v1627 = vunpack.c.h.b16 %v1470
        %v1628 = vunpack.c.l.b16 %v1471
        %v1629 = vunpack.c.l.b16 %v1472
        %v1630 = vunpack.c.h.b16 %v1472
        %v1631 = vunpack.c.l.b16 %v1473
        %v1632 = vunpack.c.l.b16 %v1474
        %v1633 = vunpack.c.h.b16 %v1474
        %v1634 = vunpack.c.l.b16 %v1475
        %v1635 = vunpack.c.l.b16 %v1476
        %v1636 = vunpack.c.h.b16 %v1476
        %v1637 = vunpack.c.l.b16 %v1477
        %v1638 = vunpack.c.l.b16 %v1478
        %v1639 = vunpack.c.h.b16 %v1478
        %v1640 = vunpack.c.l.b16 %v1479
        %v1641 = vunpack.c.l.b16 %v1480
        %v1642 = vunpack.c.h.b16 %v1480
        %v1643 = vunpack.c.l.b16 %v1481
        %v1644 = vunpack.c.l.b16 %v1482
        %v1645 = vunpack.c.h.b16 %v1482
        %v1646 = vunpack.c.l.b16 %v1483
        %v1647 = vunpack.c.l.b16 %v1484
        %v1648 = vunpack.c.h.b16 %v1484
        %v1649 = vunpack.c.l.b16 %v1485
        %v1650 = vunpack.c.l.b16 %v1486
        %v1651 = vunpack.c.h.b16 %v1486
        %v1652 = vunpack.c.l.b16 %v1487
        %v1653 = vunpack.c.l.b16 %v1488
        %v1654 = vunpack.c.h.b16 %v1488
        %v1655 = vunpack.c.l.b16 %v1489
        %v1656 = vunpack.c.l.b16 %v1490
        %v1657 = vunpack.c.h.b16 %v1490
        %v1658 = vunpack.c.l.b16 %v1491
        %v1659 = vunpack.c.l.b16 %v1492
        %v1660 = vunpack.c.h.b16 %v1492
        %v1661 = vunpack.c.l.b16 %v1493
        %v1662 = vunpack.c.l.b16 %v1494
        %v1663 = vunpack.c.h.b16 %v1494
        %v1664 = vunpack.c.l.b16 %v1495
        %v1665 = vunpack.c.l.b16 %v1496
        %v1666 = vunpack.c.h.b16 %v1496
        %v1667 = vunpack.c.l.b16 %v1497
        %v1668 = vpack.c.b16 %v1623, %v1620
        %v1669 = vpack.c.b16 %v1624, %v1621
        %v1670 = vpack.c.b16 %v1625, %v1622
        %v1671 = vpack.c.b16 %v1629, %v1626
        %v1672 = vpack.c.b16 %v1630, %v1627
        %v1673 = vpack.c.b16 %v1631, %v1628
        %v1674 = vpack.c.b16 %v1635, %v1632
        %v1675 = vpack.c.b16 %v1636, %v1633
        %v1676 = vpack.c.b16 %v1637, %v1634
        %v1677 = vpack.c.b16 %v1641, %v1638
        %v1678 = vpack.c.b16 %v1642, %v1639
        %v1679 = vpack.c.b16 %v1643, %v1640
        %v1680 = vpack.c.b16 %v1647, %v1644
        %v1681 = vpack.c.b16 %v1648, %v1645
        %v1682 = vpack.c.b16 %v1649, %v1646
        %v1683 = vpack.c.b16 %v1653, %v1650
        %v1684 = vpack.c.b16 %v1654, %v1651
        %v1685 = vpack.c.b16 %v1655, %v1652
        %v1686 = vpack.c.b16 %v1659, %v1656
        %v1687 = vpack.c.b16 %v1660, %v1657
        %v1688 = vpack.c.b16 %v1661, %v1658
        %v1689 = vpack.c.b16 %v1665, %v1662
        %v1690 = vpack.c.b16 %v1666, %v1663
        %v1691 = vpack.c.b16 %v1667, %v1664
        %1716 = vmatprep.subr.bf16.mxu0 %v1690
        %1717 = vmatpush1.bf16.msra.mxu0 %v1689
        %1718 = vmatprep.subr.bf16.mxu0 %v1687
        %1719 = vmatpush1.bf16.msra.mxu0 %v1686
        %1720 = vmatprep.subr.bf16.mxu0 %v1684
        %1721 = vmatpush1.bf16.msra.mxu0 %v1683
        %1722 = vmatprep.subr.bf16.mxu0 %v1681
        %1723 = vmatpush1.bf16.msra.mxu0 %v1680
        %1724 = vmatprep.subr.bf16.mxu0 %v1678
        %1725 = vmatpush1.bf16.msra.mxu0 %v1677
        %1726 = vmatprep.subr.bf16.mxu0 %v1675
        %1727 = vmatpush1.bf16.msra.mxu0 %v1674
        %1728 = vmatprep.subr.bf16.mxu0 %v1672
        %1729 = vmatpush1.bf16.msra.mxu0 %v1671
        %1730 = vmatprep.subr.bf16.mxu0 %v1669
        %1731 = vmatpush1.bf16.msra.mxu0 %v1668
        %1732 = vmatprep.subr.bf16.mxu0 0
        %1733 = vmatpush2.bf16.msra.mxu0 0
        %1734 = vmatprep.subr.bf16.mxu0 0
        %1735 = vmatpush2.bf16.msra.mxu0 0
        %1736 = vmatprep.subr.bf16.mxu0 0
        %1737 = vmatpush2.bf16.msra.mxu0 0
        %1738 = vmatprep.subr.bf16.mxu0 0
        %1739 = vmatpush2.bf16.msra.mxu0 0
        %1740 = vmatprep.subr.bf16.mxu0 0
        %1741 = vmatpush2.bf16.msra.mxu0 0
        %1742 = vmatprep.subr.bf16.mxu0 0
        %1743 = vmatpush2.bf16.msra.mxu0 0
        %1744 = vmatprep.subr.bf16.mxu0 0
        %1745 = vmatpush2.bf16.msra.mxu0 0
        %1746 = vmatprep.subr.bf16.mxu0 0
        %1747 = vmatpush2.bf16.msra.mxu0 0
        %1748 = vmatprep.mubr.bf16.mxu0 0
        %1749 = vmatmul.mubr.bf16.gmra.mxu0 %v1558
        %v1750 = vpop.f32.mrf.mxu0
        %v1751 = vadd.f32 0.0, %v1750
        %v1752 = vpop.f32.mrf.mxu0
        %v1753 = vadd.f32 0.0, %v1752
        %v1754 = vpop.f32.mrf.mxu0
        %v1755 = vadd.f32 0.0, %v1754
        %v1756 = vpop.f32.mrf.mxu0
        %v1757 = vadd.f32 0.0, %v1756
        %1758 = vmatprep.mubr.bf16.mxu0 0
        %1759 = vmatmul.mubr.bf16.gmra.mxu0 %v1559
        %v1760 = vpop.f32.mrf.mxu0
        %v1761 = vadd.f32 0.0, %v1760
        %v1762 = vpop.f32.mrf.mxu0
        %v1763 = vadd.f32 0.0, %v1762
        %v1764 = vpop.f32.mrf.mxu0
        %v1765 = vadd.f32 0.0, %v1764
        %v1766 = vpop.f32.mrf.mxu0
        %v1767 = vadd.f32 0.0, %v1766
        %1768 = vmatprep.mubr.bf16.mxu0 0
        %1769 = vmatmul.mubr.bf16.gmra.mxu0 %v1560
        %v1770 = vpop.f32.mrf.mxu0
        %v1771 = vadd.f32 0.0, %v1770
        %v1772 = vpop.f32.mrf.mxu0
        %v1773 = vadd.f32 0.0, %v1772
        %v1774 = vpop.f32.mrf.mxu0
        %v1775 = vadd.f32 0.0, %v1774
        %v1776 = vpop.f32.mrf.mxu0
        %v1777 = vadd.f32 0.0, %v1776
        %1778 = vmatprep.mubr.bf16.mxu0 0
        %1779 = vmatmul.mubr.bf16.gmra.mxu0 %v1561
        %v1780 = vpop.f32.mrf.mxu0
        %v1781 = vadd.f32 0.0, %v1780
        %v1782 = vpop.f32.mrf.mxu0
        %v1783 = vadd.f32 0.0, %v1782
        %v1784 = vpop.f32.mrf.mxu0
        %v1785 = vadd.f32 0.0, %v1784
        %v1786 = vpop.f32.mrf.mxu0
        %v1787 = vadd.f32 0.0, %v1786
        %1788 = vmatprep.mubr.bf16.mxu0 0
        %1789 = vmatmul.mubr.bf16.gmra.mxu0 %v1562
        %v1790 = vpop.f32.mrf.mxu0
        %v1791 = vadd.f32 0.0, %v1790
        %v1792 = vpop.f32.mrf.mxu0
        %v1793 = vadd.f32 0.0, %v1792
        %v1794 = vpop.f32.mrf.mxu0
        %v1795 = vadd.f32 0.0, %v1794
        %v1796 = vpop.f32.mrf.mxu0
        %v1797 = vadd.f32 0.0, %v1796
        %1798 = vmatprep.mubr.bf16.mxu0 0
        %1799 = vmatmul.mubr.bf16.gmra.mxu0 %v1563
        %v1800 = vpop.f32.mrf.mxu0
        %v1801 = vadd.f32 0.0, %v1800
        %v1802 = vpop.f32.mrf.mxu0
        %v1803 = vadd.f32 0.0, %v1802
        %v1804 = vpop.f32.mrf.mxu0
        %v1805 = vadd.f32 0.0, %v1804
        %v1806 = vpop.f32.mrf.mxu0
        %v1807 = vadd.f32 0.0, %v1806
        %1808 = vmatprep.mubr.bf16.mxu0 0
        %1809 = vmatmul.mubr.bf16.gmra.mxu0 %v1564
        %v1810 = vpop.f32.mrf.mxu0
        %v1811 = vadd.f32 0.0, %v1810
        %v1812 = vpop.f32.mrf.mxu0
        %v1813 = vadd.f32 0.0, %v1812
        %v1814 = vpop.f32.mrf.mxu0
        %v1815 = vadd.f32 0.0, %v1814
        %v1816 = vpop.f32.mrf.mxu0
        %v1817 = vadd.f32 0.0, %v1816
        %1818 = vmatprep.mubr.bf16.mxu0 0
        %1819 = vmatmul.mubr.bf16.gmra.mxu0 %v1565
        %v1820 = vpop.f32.mrf.mxu0
        %v1821 = vadd.f32 0.0, %v1820
        %v1822 = vpop.f32.mrf.mxu0
        %v1823 = vadd.f32 0.0, %v1822
        %v1824 = vpop.f32.mrf.mxu0
        %v1825 = vadd.f32 0.0, %v1824
        %v1826 = vpop.f32.mrf.mxu0
        %v1827 = vadd.f32 0.0, %v1826
        %1828 = vmatprep.mubr.bf16.mxu0 0
        %1829 = vmatmul.mubr.bf16.gmra.mxu0 %v1566
        %v1830 = vpop.f32.mrf.mxu0
        %v1831 = vadd.f32 0.0, %v1830
        %v1832 = vpop.f32.mrf.mxu0
        %v1833 = vadd.f32 0.0, %v1832
        %v1834 = vpop.f32.mrf.mxu0
        %v1835 = vadd.f32 0.0, %v1834
        %v1836 = vpop.f32.mrf.mxu0
        %v1837 = vadd.f32 0.0, %v1836
        %1838 = vmatprep.mubr.bf16.mxu0 0
        %1839 = vmatmul.mubr.bf16.gmra.mxu0 %v1567
        %v1840 = vpop.f32.mrf.mxu0
        %v1841 = vadd.f32 0.0, %v1840
        %v1842 = vpop.f32.mrf.mxu0
        %v1843 = vadd.f32 0.0, %v1842
        %v1844 = vpop.f32.mrf.mxu0
        %v1845 = vadd.f32 0.0, %v1844
        %v1846 = vpop.f32.mrf.mxu0
        %v1847 = vadd.f32 0.0, %v1846
        %1848 = vmatprep.mubr.bf16.mxu0 0
        %1849 = vmatmul.mubr.bf16.gmra.mxu0 %v1568
        %v1850 = vpop.f32.mrf.mxu0
        %v1851 = vadd.f32 0.0, %v1850
        %v1852 = vpop.f32.mrf.mxu0
        %v1853 = vadd.f32 0.0, %v1852
        %v1854 = vpop.f32.mrf.mxu0
        %v1855 = vadd.f32 0.0, %v1854
        %v1856 = vpop.f32.mrf.mxu0
        %v1857 = vadd.f32 0.0, %v1856
        %1858 = vmatprep.mubr.bf16.mxu0 0
        %1859 = vmatmul.mubr.bf16.gmra.mxu0 %v1569
        %v1860 = vpop.f32.mrf.mxu0
        %v1861 = vadd.f32 0.0, %v1860
        %v1862 = vpop.f32.mrf.mxu0
        %v1863 = vadd.f32 0.0, %v1862
        %v1864 = vpop.f32.mrf.mxu0
        %v1865 = vadd.f32 0.0, %v1864
        %v1866 = vpop.f32.mrf.mxu0
        %v1867 = vadd.f32 0.0, %v1866
        %1868 = vmatprep.mubr.bf16.mxu0 0
        %1869 = vmatmul.mubr.bf16.gmra.mxu0 %v1570
        %v1870 = vpop.f32.mrf.mxu0
        %v1871 = vadd.f32 0.0, %v1870
        %v1872 = vpop.f32.mrf.mxu0
        %v1873 = vadd.f32 0.0, %v1872
        %v1874 = vpop.f32.mrf.mxu0
        %v1875 = vadd.f32 0.0, %v1874
        %v1876 = vpop.f32.mrf.mxu0
        %v1877 = vadd.f32 0.0, %v1876
        %1878 = vmatprep.mubr.bf16.mxu0 0
        %1879 = vmatmul.mubr.bf16.gmra.mxu0 %v1571
        %v1880 = vpop.f32.mrf.mxu0
        %v1881 = vadd.f32 0.0, %v1880
        %v1882 = vpop.f32.mrf.mxu0
        %v1883 = vadd.f32 0.0, %v1882
        %v1884 = vpop.f32.mrf.mxu0
        %v1885 = vadd.f32 0.0, %v1884
        %v1886 = vpop.f32.mrf.mxu0
        %v1887 = vadd.f32 0.0, %v1886
        %1888 = vmatprep.mubr.bf16.mxu0 0
        %1889 = vmatmul.mubr.bf16.gmra.mxu0 %v1572
        %v1890 = vpop.f32.mrf.mxu0
        %v1891 = vadd.f32 0.0, %v1890
        %v1892 = vpop.f32.mrf.mxu0
        %v1893 = vadd.f32 0.0, %v1892
        %v1894 = vpop.f32.mrf.mxu0
        %v1895 = vadd.f32 0.0, %v1894
        %v1896 = vpop.f32.mrf.mxu0
        %v1897 = vadd.f32 0.0, %v1896
        %1898 = vdwg.mxu0
        %1899 = vmatprep.subr.bf16.mxu0 0
        %1900 = vmatpush1.bf16.msra.mxu0 %v1691
        %1901 = vmatprep.subr.bf16.mxu0 0
        %1902 = vmatpush1.bf16.msra.mxu0 %v1688
        %1903 = vmatprep.subr.bf16.mxu0 0
        %1904 = vmatpush1.bf16.msra.mxu0 %v1685
        %1905 = vmatprep.subr.bf16.mxu0 0
        %1906 = vmatpush1.bf16.msra.mxu0 %v1682
        %1907 = vmatprep.subr.bf16.mxu0 0
        %1908 = vmatpush1.bf16.msra.mxu0 %v1679
        %1909 = vmatprep.subr.bf16.mxu0 0
        %1910 = vmatpush1.bf16.msra.mxu0 %v1676
        %1911 = vmatprep.subr.bf16.mxu0 0
        %1912 = vmatpush1.bf16.msra.mxu0 %v1673
        %1913 = vmatprep.subr.bf16.mxu0 0
        %1914 = vmatpush1.bf16.msra.mxu0 %v1670
        %1915 = vmatprep.subr.bf16.mxu0 0
        %1916 = vmatpush2.bf16.msra.mxu0 0
        %1917 = vmatprep.subr.bf16.mxu0 0
        %1918 = vmatpush2.bf16.msra.mxu0 0
        %1919 = vmatprep.subr.bf16.mxu0 0
        %1920 = vmatpush2.bf16.msra.mxu0 0
        %1921 = vmatprep.subr.bf16.mxu0 0
        %1922 = vmatpush2.bf16.msra.mxu0 0
        %1923 = vmatprep.subr.bf16.mxu0 0
        %1924 = vmatpush2.bf16.msra.mxu0 0
        %1925 = vmatprep.subr.bf16.mxu0 0
        %1926 = vmatpush2.bf16.msra.mxu0 0
        %1927 = vmatprep.subr.bf16.mxu0 0
        %1928 = vmatpush2.bf16.msra.mxu0 0
        %1929 = vmatprep.subr.bf16.mxu0 0
        %1930 = vmatpush2.bf16.msra.mxu0 0
        %1931 = vmatprep.mubr.bf16.mxu0 0
        %1932 = vmatmul.mubr.bf16.gmra.mxu0 %v1558
        %v1933 = vpop.f32.mrf.mxu0
        %v1934 = vadd.f32 0.0, %v1933
        %v1935 = vpop.f32.mrf.mxu0
        %v1936 = vpop.f32.mrf.mxu0
        %v1937 = vadd.f32 0.0, %v1936
        %v1938 = vpop.f32.mrf.mxu0
        %1939 = vmatprep.mubr.bf16.mxu0 0
        %1940 = vmatmul.mubr.bf16.gmra.mxu0 %v1559
        %v1941 = vpop.f32.mrf.mxu0
        %v1942 = vadd.f32 0.0, %v1941
        %v1943 = vpop.f32.mrf.mxu0
        %v1944 = vpop.f32.mrf.mxu0
        %v1945 = vadd.f32 0.0, %v1944
        %v1946 = vpop.f32.mrf.mxu0
        %1947 = vmatprep.mubr.bf16.mxu0 0
        %1948 = vmatmul.mubr.bf16.gmra.mxu0 %v1560
        %v1949 = vpop.f32.mrf.mxu0
        %v1950 = vadd.f32 0.0, %v1949
        %v1951 = vpop.f32.mrf.mxu0
        %v1952 = vpop.f32.mrf.mxu0
        %v1953 = vadd.f32 0.0, %v1952
        %v1954 = vpop.f32.mrf.mxu0
        %1955 = vmatprep.mubr.bf16.mxu0 0
        %1956 = vmatmul.mubr.bf16.gmra.mxu0 %v1561
        %v1957 = vpop.f32.mrf.mxu0
        %v1958 = vadd.f32 0.0, %v1957
        %v1959 = vpop.f32.mrf.mxu0
        %v1960 = vpop.f32.mrf.mxu0
        %v1961 = vadd.f32 0.0, %v1960
        %v1962 = vpop.f32.mrf.mxu0
        %1963 = vmatprep.mubr.bf16.mxu0 0
        %1964 = vmatmul.mubr.bf16.gmra.mxu0 %v1562
        %v1965 = vpop.f32.mrf.mxu0
        %v1966 = vadd.f32 0.0, %v1965
        %v1967 = vpop.f32.mrf.mxu0
        %v1968 = vpop.f32.mrf.mxu0
        %v1969 = vadd.f32 0.0, %v1968
        %v1970 = vpop.f32.mrf.mxu0
        %1971 = vmatprep.mubr.bf16.mxu0 0
        %1972 = vmatmul.mubr.bf16.gmra.mxu0 %v1563
        %v1973 = vpop.f32.mrf.mxu0
        %v1974 = vadd.f32 0.0, %v1973
        %v1975 = vpop.f32.mrf.mxu0
        %v1976 = vpop.f32.mrf.mxu0
        %v1977 = vadd.f32 0.0, %v1976
        %v1978 = vpop.f32.mrf.mxu0
        %1979 = vmatprep.mubr.bf16.mxu0 0
        %1980 = vmatmul.mubr.bf16.gmra.mxu0 %v1564
        %v1981 = vpop.f32.mrf.mxu0
        %v1982 = vadd.f32 0.0, %v1981
        %v1983 = vpop.f32.mrf.mxu0
        %v1984 = vpop.f32.mrf.mxu0
        %v1985 = vadd.f32 0.0, %v1984
        %v1986 = vpop.f32.mrf.mxu0
        %1987 = vmatprep.mubr.bf16.mxu0 0
        %1988 = vmatmul.mubr.bf16.gmra.mxu0 %v1565
        %v1989 = vpop.f32.mrf.mxu0
        %v1990 = vadd.f32 0.0, %v1989
        %v1991 = vpop.f32.mrf.mxu0
        %v1992 = vpop.f32.mrf.mxu0
        %v1993 = vadd.f32 0.0, %v1992
        %v1994 = vpop.f32.mrf.mxu0
        %1995 = vmatprep.mubr.bf16.mxu0 0
        %1996 = vmatmul.mubr.bf16.gmra.mxu0 %v1566
        %v1997 = vpop.f32.mrf.mxu0
        %v1998 = vadd.f32 0.0, %v1997
        %v1999 = vpop.f32.mrf.mxu0
        %v2000 = vpop.f32.mrf.mxu0
        %v2001 = vadd.f32 0.0, %v2000
        %v2002 = vpop.f32.mrf.mxu0
        %2003 = vmatprep.mubr.bf16.mxu0 0
        %2004 = vmatmul.mubr.bf16.gmra.mxu0 %v1567
        %v2005 = vpop.f32.mrf.mxu0
        %v2006 = vadd.f32 0.0, %v2005
        %v2007 = vpop.f32.mrf.mxu0
        %v2008 = vpop.f32.mrf.mxu0
        %v2009 = vadd.f32 0.0, %v2008
        %v2010 = vpop.f32.mrf.mxu0
        %2011 = vmatprep.mubr.bf16.mxu0 0
        %2012 = vmatmul.mubr.bf16.gmra.mxu0 %v1568
        %v2013 = vpop.f32.mrf.mxu0
        %v2014 = vadd.f32 0.0, %v2013
        %v2015 = vpop.f32.mrf.mxu0
        %v2016 = vpop.f32.mrf.mxu0
        %v2017 = vadd.f32 0.0, %v2016
        %v2018 = vpop.f32.mrf.mxu0
        %2019 = vmatprep.mubr.bf16.mxu0 0
        %2020 = vmatmul.mubr.bf16.gmra.mxu0 %v1569
        %v2021 = vpop.f32.mrf.mxu0
        %v2022 = vadd.f32 0.0, %v2021
        %v2023 = vpop.f32.mrf.mxu0
        %v2024 = vpop.f32.mrf.mxu0
        %v2025 = vadd.f32 0.0, %v2024
        %v2026 = vpop.f32.mrf.mxu0
        %2027 = vmatprep.mubr.bf16.mxu0 0
        %2028 = vmatmul.mubr.bf16.gmra.mxu0 %v1570
        %v2029 = vpop.f32.mrf.mxu0
        %v2030 = vadd.f32 0.0, %v2029
        %v2031 = vpop.f32.mrf.mxu0
        %v2032 = vpop.f32.mrf.mxu0
        %v2033 = vadd.f32 0.0, %v2032
        %v2034 = vpop.f32.mrf.mxu0
        %2035 = vmatprep.mubr.bf16.mxu0 0
        %2036 = vmatmul.mubr.bf16.gmra.mxu0 %v1571
        %v2037 = vpop.f32.mrf.mxu0
        %v2038 = vadd.f32 0.0, %v2037
        %v2039 = vpop.f32.mrf.mxu0
        %v2040 = vpop.f32.mrf.mxu0
        %v2041 = vadd.f32 0.0, %v2040
        %v2042 = vpop.f32.mrf.mxu0
        %2043 = vmatprep.mubr.bf16.mxu0 0
        %2044 = vmatmul.mubr.bf16.gmra.mxu0 %v1572
        %v2045 = vpop.f32.mrf.mxu0
        %v2046 = vadd.f32 0.0, %v2045
        %v2047 = vpop.f32.mrf.mxu0
        %v2048 = vpop.f32.mrf.mxu0
        %v2049 = vadd.f32 0.0, %v2048
        %v2050 = vpop.f32.mrf.mxu0
        %2051 = vdwg.mxu0
        %v2052 = vld [vmem:[#allocation4] sm:$0xff]
        %v2053 = vld [vmem:[#allocation4 + $0x8] sm:$0xff]
        %v2054 = vld [vmem:[#allocation4 + $0x10] sm:$0x3]
        %v2055 = vld [vmem:[#allocation4 + $0x18] sm:$0xff]
        %v2056 = vld [vmem:[#allocation4 + $0x20] sm:$0xff]
        %v2057 = vld [vmem:[#allocation4 + $0x28] sm:$0x3]
        %v2058 = vld [vmem:[#allocation4 + $0x30] sm:$0xff]
        %v2059 = vld [vmem:[#allocation4 + $0x38] sm:$0xff]
        %v2060 = vld [vmem:[#allocation4 + $0x40] sm:$0x3]
        %v2061 = vld [vmem:[#allocation4 + $0x48] sm:$0xff]
        %v2062 = vld [vmem:[#allocation4 + $0x50] sm:$0xff]
        %v2063 = vld [vmem:[#allocation4 + $0x58] sm:$0x3]
        %v2064 = vld [vmem:[#allocation4 + $0x60] sm:$0xff]
        %v2065 = vld [vmem:[#allocation4 + $0x68] sm:$0xff]
        %v2066 = vld [vmem:[#allocation4 + $0x70] sm:$0x3]
        %v2067 = vld [vmem:[#allocation4 + $0x78] sm:$0xff]
        %v2068 = vld [vmem:[#allocation4 + $0x80] sm:$0xff]
        %v2069 = vld [vmem:[#allocation4 + $0x88] sm:$0x3]
        %v2070 = vld [vmem:[#allocation4 + $0x90] sm:$0xff]
        %v2071 = vld [vmem:[#allocation4 + $0x98] sm:$0xff]
        %v2072 = vld [vmem:[#allocation4 + $0xa0] sm:$0x3]
        %v2073 = vld [vmem:[#allocation4 + $0xa8] sm:$0xff]
        %v2074 = vld [vmem:[#allocation4 + $0xb0] sm:$0xff]
        %v2075 = vld [vmem:[#allocation4 + $0xb8] sm:$0x3]
        %v2076 = vld [vmem:[#allocation4 + $0xc0] sm:$0xff]
        %v2077 = vld [vmem:[#allocation4 + $0xc8] sm:$0xff]
        %v2078 = vld [vmem:[#allocation4 + $0xd0] sm:$0x3]
        %v2079 = vld [vmem:[#allocation4 + $0xd8] sm:$0xff]
        %v2080 = vld [vmem:[#allocation4 + $0xe0] sm:$0xff]
        %v2081 = vld [vmem:[#allocation4 + $0xe8] sm:$0x3]
        %v2082 = vadd.f32 %v2052, %v1751
        %v2083 = vadd.f32 %v2053, %v1755
        %v2084 = vadd.f32 %v2054, %v1761
        %v2085 = vadd.f32 %v2055, %v1765
        %v2086 = vadd.f32 %v2056, %v1771
        %v2087 = vadd.f32 %v2057, %v1775
        %v2088 = vadd.f32 %v2058, %v1781
        %v2089 = vadd.f32 %v2059, %v1785
        %v2090 = vadd.f32 %v2060, %v1791
        %v2091 = vadd.f32 %v2061, %v1795
        %v2092 = vadd.f32 %v2062, %v1801
        %v2093 = vadd.f32 %v2063, %v1805
        %v2094 = vadd.f32 %v2064, %v1811
        %v2095 = vadd.f32 %v2065, %v1815
        %v2096 = vadd.f32 %v2066, %v1821
        %v2097 = vadd.f32 %v2067, %v1825
        %v2098 = vadd.f32 %v2068, %v1831
        %v2099 = vadd.f32 %v2069, %v1835
        %v2100 = vadd.f32 %v2070, %v1841
        %v2101 = vadd.f32 %v2071, %v1845
        %v2102 = vadd.f32 %v2072, %v1851
        %v2103 = vadd.f32 %v2073, %v1855
        %v2104 = vadd.f32 %v2074, %v1861
        %v2105 = vadd.f32 %v2075, %v1865
        %v2106 = vadd.f32 %v2076, %v1871
        %v2107 = vadd.f32 %v2077, %v1875
        %v2108 = vadd.f32 %v2078, %v1881
        %v2109 = vadd.f32 %v2079, %v1885
        %v2110 = vadd.f32 %v2080, %v1891
        %v2111 = vadd.f32 %v2081, %v1895
        %2112 = vst [vmem:[#allocation4] sm:$0xff] %v2082
        %2113 = vst [vmem:[#allocation4 + $0x8] sm:$0xff] %v2083
        %2114 = vst [vmem:[#allocation4 + $0x10] sm:$0x3] %v2084
        %2115 = vst [vmem:[#allocation4 + $0x18] sm:$0xff] %v2085
        %2116 = vst [vmem:[#allocation4 + $0x20] sm:$0xff] %v2086
        %2117 = vst [vmem:[#allocation4 + $0x28] sm:$0x3] %v2087
        %2118 = vst [vmem:[#allocation4 + $0x30] sm:$0xff] %v2088
        %2119 = vst [vmem:[#allocation4 + $0x38] sm:$0xff] %v2089
        %2120 = vst [vmem:[#allocation4 + $0x40] sm:$0x3] %v2090
        %2121 = vst [vmem:[#allocation4 + $0x48] sm:$0xff] %v2091
        %2122 = vst [vmem:[#allocation4 + $0x50] sm:$0xff] %v2092
        %2123 = vst [vmem:[#allocation4 + $0x58] sm:$0x3] %v2093
        %2124 = vst [vmem:[#allocation4 + $0x60] sm:$0xff] %v2094
        %2125 = vst [vmem:[#allocation4 + $0x68] sm:$0xff] %v2095
        %2126 = vst [vmem:[#allocation4 + $0x70] sm:$0x3] %v2096
        %2127 = vst [vmem:[#allocation4 + $0x78] sm:$0xff] %v2097
        %2128 = vst [vmem:[#allocation4 + $0x80] sm:$0xff] %v2098
        %2129 = vst [vmem:[#allocation4 + $0x88] sm:$0x3] %v2099
        %2130 = vst [vmem:[#allocation4 + $0x90] sm:$0xff] %v2100
        %2131 = vst [vmem:[#allocation4 + $0x98] sm:$0xff] %v2101
        %2132 = vst [vmem:[#allocation4 + $0xa0] sm:$0x3] %v2102
        %2133 = vst [vmem:[#allocation4 + $0xa8] sm:$0xff] %v2103
        %2134 = vst [vmem:[#allocation4 + $0xb0] sm:$0xff] %v2104
        %2135 = vst [vmem:[#allocation4 + $0xb8] sm:$0x3] %v2105
        %2136 = vst [vmem:[#allocation4 + $0xc0] sm:$0xff] %v2106
        %2137 = vst [vmem:[#allocation4 + $0xc8] sm:$0xff] %v2107
        %2138 = vst [vmem:[#allocation4 + $0xd0] sm:$0x3] %v2108
        %2139 = vst [vmem:[#allocation4 + $0xd8] sm:$0xff] %v2109
        %2140 = vst [vmem:[#allocation4 + $0xe0] sm:$0xff] %v2110
        %2141 = vst [vmem:[#allocation4 + $0xe8] sm:$0x3] %v2111
        %v2142 = vld [vmem:[#allocation4] sm:$0xff]
        %v2143 = vld [vmem:[#allocation4 + $0x8] sm:$0xff]
        %v2144 = vld [vmem:[#allocation4 + $0x10] sm:$0x3]
        %v2145 = vld [vmem:[#allocation4 + $0x18] sm:$0xff]
        %v2146 = vld [vmem:[#allocation4 + $0x20] sm:$0xff]
        %v2147 = vld [vmem:[#allocation4 + $0x28] sm:$0x3]
        %v2148 = vld [vmem:[#allocation4 + $0x30] sm:$0xff]
        %v2149 = vld [vmem:[#allocation4 + $0x38] sm:$0xff]
        %v2150 = vld [vmem:[#allocation4 + $0x40] sm:$0x3]
        %v2151 = vld [vmem:[#allocation4 + $0x48] sm:$0xff]
        %v2152 = vld [vmem:[#allocation4 + $0x50] sm:$0xff]
        %v2153 = vld [vmem:[#allocation4 + $0x58] sm:$0x3]
        %v2154 = vld [vmem:[#allocation4 + $0x60] sm:$0xff]
        %v2155 = vld [vmem:[#allocation4 + $0x68] sm:$0xff]
        %v2156 = vld [vmem:[#allocation4 + $0x70] sm:$0x3]
        %v2157 = vld [vmem:[#allocation4 + $0x78] sm:$0xff]
        %v2158 = vld [vmem:[#allocation4 + $0x80] sm:$0xff]
        %v2159 = vld [vmem:[#allocation4 + $0x88] sm:$0x3]
        %v2160 = vld [vmem:[#allocation4 + $0x90] sm:$0xff]
        %v2161 = vld [vmem:[#allocation4 + $0x98] sm:$0xff]
        %v2162 = vld [vmem:[#allocation4 + $0xa0] sm:$0x3]
        %v2163 = vld [vmem:[#allocation4 + $0xa8] sm:$0xff]
        %v2164 = vld [vmem:[#allocation4 + $0xb0] sm:$0xff]
        %v2165 = vld [vmem:[#allocation4 + $0xb8] sm:$0x3]
        %v2166 = vld [vmem:[#allocation4 + $0xc0] sm:$0xff]
        %v2167 = vld [vmem:[#allocation4 + $0xc8] sm:$0xff]
        %v2168 = vld [vmem:[#allocation4 + $0xd0] sm:$0x3]
        %v2169 = vld [vmem:[#allocation4 + $0xd8] sm:$0xff]
        %v2170 = vld [vmem:[#allocation4 + $0xe0] sm:$0xff]
        %v2171 = vld [vmem:[#allocation4 + $0xe8] sm:$0x3]
        %v2202 = vrot.slane %v1753, 1
        %v2203 = vrot.slane %v1757, 1
        %v2204 = vsel %vm1093, %v2202, %v2203
        %v2205 = vrot.slane %v1763, 1
        %v2206 = vsel %vm1093, %v2203, %v2205
        %v2207 = vrot.slane %v1767, 1
        %v2208 = vrot.slane %v1773, 1
        %v2209 = vsel %vm1093, %v2207, %v2208
        %v2210 = vrot.slane %v1777, 1
        %v2211 = vsel %vm1093, %v2208, %v2210
        %v2212 = vrot.slane %v1783, 1
        %v2213 = vrot.slane %v1787, 1
        %v2214 = vsel %vm1093, %v2212, %v2213
        %v2215 = vrot.slane %v1793, 1
        %v2216 = vsel %vm1093, %v2213, %v2215
        %v2217 = vrot.slane %v1797, 1
        %v2218 = vrot.slane %v1803, 1
        %v2219 = vsel %vm1093, %v2217, %v2218
        %v2220 = vrot.slane %v1807, 1
        %v2221 = vsel %vm1093, %v2218, %v2220
        %v2222 = vrot.slane %v1813, 1
        %v2223 = vrot.slane %v1817, 1
        %v2224 = vsel %vm1093, %v2222, %v2223
        %v2225 = vrot.slane %v1823, 1
        %v2226 = vsel %vm1093, %v2223, %v2225
        %v2227 = vrot.slane %v1827, 1
        %v2228 = vrot.slane %v1833, 1
        %v2229 = vsel %vm1093, %v2227, %v2228
        %v2230 = vrot.slane %v1837, 1
        %v2231 = vsel %vm1093, %v2228, %v2230
        %v2232 = vrot.slane %v1843, 1
        %v2233 = vrot.slane %v1847, 1
        %v2234 = vsel %vm1093, %v2232, %v2233
        %v2235 = vrot.slane %v1853, 1
        %v2236 = vsel %vm1093, %v2233, %v2235
        %v2237 = vrot.slane %v1857, 1
        %v2238 = vrot.slane %v1863, 1
        %v2239 = vsel %vm1093, %v2237, %v2238
        %v2240 = vrot.slane %v1867, 1
        %v2241 = vsel %vm1093, %v2238, %v2240
        %v2242 = vrot.slane %v1873, 1
        %v2243 = vrot.slane %v1877, 1
        %v2244 = vsel %vm1093, %v2242, %v2243
        %v2245 = vrot.slane %v1883, 1
        %v2246 = vsel %vm1093, %v2243, %v2245
        %v2247 = vrot.slane %v1887, 1
        %v2248 = vrot.slane %v1893, 1
        %v2249 = vsel %vm1093, %v2247, %v2248
        %v2250 = vrot.slane %v1897, 1
        %v2251 = vsel %vm1093, %v2248, %v2250
        %v2282 = vadd.f32 %v2142, %v2204
        %v2283 = vadd.f32 %v2143, %v2206
        %v2284 = vadd.f32 %v2144, %v2205
        %v2285 = vadd.f32 %v2145, %v2209
        %v2286 = vadd.f32 %v2146, %v2211
        %v2287 = vadd.f32 %v2147, %v2210
        %v2288 = vadd.f32 %v2148, %v2214
        %v2289 = vadd.f32 %v2149, %v2216
        %v2290 = vadd.f32 %v2150, %v2215
        %v2291 = vadd.f32 %v2151, %v2219
        %v2292 = vadd.f32 %v2152, %v2221
        %v2293 = vadd.f32 %v2153, %v2220
        %v2294 = vadd.f32 %v2154, %v2224
        %v2295 = vadd.f32 %v2155, %v2226
        %v2296 = vadd.f32 %v2156, %v2225
        %v2297 = vadd.f32 %v2157, %v2229
        %v2298 = vadd.f32 %v2158, %v2231
        %v2299 = vadd.f32 %v2159, %v2230
        %v2300 = vadd.f32 %v2160, %v2234
        %v2301 = vadd.f32 %v2161, %v2236
        %v2302 = vadd.f32 %v2162, %v2235
        %v2303 = vadd.f32 %v2163, %v2239
        %v2304 = vadd.f32 %v2164, %v2241
        %v2305 = vadd.f32 %v2165, %v2240
        %v2306 = vadd.f32 %v2166, %v2244
        %v2307 = vadd.f32 %v2167, %v2246
        %v2308 = vadd.f32 %v2168, %v2245
        %v2309 = vadd.f32 %v2169, %v2249
        %v2310 = vadd.f32 %v2170, %v2251
        %v2311 = vadd.f32 %v2171, %v2250
        %2312 = vst [vmem:[#allocation4] sm:$0xff] %v2282
        %2313 = vst [vmem:[#allocation4 + $0x8] sm:$0xff] %v2283
        %2314 = vst [vmem:[#allocation4 + $0x10] sm:$0x3] %v2284
        %2315 = vst [vmem:[#allocation4 + $0x18] sm:$0xff] %v2285
        %2316 = vst [vmem:[#allocation4 + $0x20] sm:$0xff] %v2286
        %2317 = vst [vmem:[#allocation4 + $0x28] sm:$0x3] %v2287
        %2318 = vst [vmem:[#allocation4 + $0x30] sm:$0xff] %v2288
        %2319 = vst [vmem:[#allocation4 + $0x38] sm:$0xff] %v2289
        %2320 = vst [vmem:[#allocation4 + $0x40] sm:$0x3] %v2290
        %2321 = vst [vmem:[#allocation4 + $0x48] sm:$0xff] %v2291
        %2322 = vst [vmem:[#allocation4 + $0x50] sm:$0xff] %v2292
        %2323 = vst [vmem:[#allocation4 + $0x58] sm:$0x3] %v2293
        %2324 = vst [vmem:[#allocation4 + $0x60] sm:$0xff] %v2294
        %2325 = vst [vmem:[#allocation4 + $0x68] sm:$0xff] %v2295
        %2326 = vst [vmem:[#allocation4 + $0x70] sm:$0x3] %v2296
        %2327 = vst [vmem:[#allocation4 + $0x78] sm:$0xff] %v2297
        %2328 = vst [vmem:[#allocation4 + $0x80] sm:$0xff] %v2298
        %2329 = vst [vmem:[#allocation4 + $0x88] sm:$0x3] %v2299
        %2330 = vst [vmem:[#allocation4 + $0x90] sm:$0xff] %v2300
        %2331 = vst [vmem:[#allocation4 + $0x98] sm:$0xff] %v2301
        %2332 = vst [vmem:[#allocation4 + $0xa0] sm:$0x3] %v2302
        %2333 = vst [vmem:[#allocation4 + $0xa8] sm:$0xff] %v2303
        %2334 = vst [vmem:[#allocation4 + $0xb0] sm:$0xff] %v2304
        %2335 = vst [vmem:[#allocation4 + $0xb8] sm:$0x3] %v2305
        %2336 = vst [vmem:[#allocation4 + $0xc0] sm:$0xff] %v2306
        %2337 = vst [vmem:[#allocation4 + $0xc8] sm:$0xff] %v2307
        %2338 = vst [vmem:[#allocation4 + $0xd0] sm:$0x3] %v2308
        %2339 = vst [vmem:[#allocation4 + $0xd8] sm:$0xff] %v2309
        %2340 = vst [vmem:[#allocation4 + $0xe0] sm:$0xff] %v2310
        %2341 = vst [vmem:[#allocation4 + $0xe8] sm:$0x3] %v2311
        %v2342 = vld [vmem:[#allocation4] sm:$0xff]
        %v2343 = vld [vmem:[#allocation4 + $0x8] sm:$0xff]
        %v2344 = vld [vmem:[#allocation4 + $0x10] sm:$0x3]
        %v2345 = vld [vmem:[#allocation4 + $0x18] sm:$0xff]
        %v2346 = vld [vmem:[#allocation4 + $0x20] sm:$0xff]
        %v2347 = vld [vmem:[#allocation4 + $0x28] sm:$0x3]
        %v2348 = vld [vmem:[#allocation4 + $0x30] sm:$0xff]
        %v2349 = vld [vmem:[#allocation4 + $0x38] sm:$0xff]
        %v2350 = vld [vmem:[#allocation4 + $0x40] sm:$0x3]
        %v2351 = vld [vmem:[#allocation4 + $0x48] sm:$0xff]
        %v2352 = vld [vmem:[#allocation4 + $0x50] sm:$0xff]
        %v2353 = vld [vmem:[#allocation4 + $0x58] sm:$0x3]
        %v2354 = vld [vmem:[#allocation4 + $0x60] sm:$0xff]
        %v2355 = vld [vmem:[#allocation4 + $0x68] sm:$0xff]
        %v2356 = vld [vmem:[#allocation4 + $0x70] sm:$0x3]
        %v2357 = vld [vmem:[#allocation4 + $0x78] sm:$0xff]
        %v2358 = vld [vmem:[#allocation4 + $0x80] sm:$0xff]
        %v2359 = vld [vmem:[#allocation4 + $0x88] sm:$0x3]
        %v2360 = vld [vmem:[#allocation4 + $0x90] sm:$0xff]
        %v2361 = vld [vmem:[#allocation4 + $0x98] sm:$0xff]
        %v2362 = vld [vmem:[#allocation4 + $0xa0] sm:$0x3]
        %v2363 = vld [vmem:[#allocation4 + $0xa8] sm:$0xff]
        %v2364 = vld [vmem:[#allocation4 + $0xb0] sm:$0xff]
        %v2365 = vld [vmem:[#allocation4 + $0xb8] sm:$0x3]
        %v2366 = vld [vmem:[#allocation4 + $0xc0] sm:$0xff]
        %v2367 = vld [vmem:[#allocation4 + $0xc8] sm:$0xff]
        %v2368 = vld [vmem:[#allocation4 + $0xd0] sm:$0x3]
        %v2369 = vld [vmem:[#allocation4 + $0xd8] sm:$0xff]
        %v2370 = vld [vmem:[#allocation4 + $0xe0] sm:$0xff]
        %v2371 = vld [vmem:[#allocation4 + $0xe8] sm:$0x3]
        %v2402 = vrot.slane %v1934, 2
        %v2403 = vrot.slane %v1937, 2
        %v2404 = vsel %vm1294, %v2402, %v2403
        %v2405 = vrot.slane %v1942, 2
        %v2406 = vsel %vm1294, %v2403, %v2405
        %v2407 = vrot.slane %v1945, 2
        %v2408 = vrot.slane %v1950, 2
        %v2409 = vsel %vm1294, %v2407, %v2408
        %v2410 = vrot.slane %v1953, 2
        %v2411 = vsel %vm1294, %v2408, %v2410
        %v2412 = vrot.slane %v1958, 2
        %v2413 = vrot.slane %v1961, 2
        %v2414 = vsel %vm1294, %v2412, %v2413
        %v2415 = vrot.slane %v1966, 2
        %v2416 = vsel %vm1294, %v2413, %v2415
        %v2417 = vrot.slane %v1969, 2
        %v2418 = vrot.slane %v1974, 2
        %v2419 = vsel %vm1294, %v2417, %v2418
        %v2420 = vrot.slane %v1977, 2
        %v2421 = vsel %vm1294, %v2418, %v2420
        %v2422 = vrot.slane %v1982, 2
        %v2423 = vrot.slane %v1985, 2
        %v2424 = vsel %vm1294, %v2422, %v2423
        %v2425 = vrot.slane %v1990, 2
        %v2426 = vsel %vm1294, %v2423, %v2425
        %v2427 = vrot.slane %v1993, 2
        %v2428 = vrot.slane %v1998, 2
        %v2429 = vsel %vm1294, %v2427, %v2428
        %v2430 = vrot.slane %v2001, 2
        %v2431 = vsel %vm1294, %v2428, %v2430
        %v2432 = vrot.slane %v2006, 2
        %v2433 = vrot.slane %v2009, 2
        %v2434 = vsel %vm1294, %v2432, %v2433
        %v2435 = vrot.slane %v2014, 2
        %v2436 = vsel %vm1294, %v2433, %v2435
        %v2437 = vrot.slane %v2017, 2
        %v2438 = vrot.slane %v2022, 2
        %v2439 = vsel %vm1294, %v2437, %v2438
        %v2440 = vrot.slane %v2025, 2
        %v2441 = vsel %vm1294, %v2438, %v2440
        %v2442 = vrot.slane %v2030, 2
        %v2443 = vrot.slane %v2033, 2
        %v2444 = vsel %vm1294, %v2442, %v2443
        %v2445 = vrot.slane %v2038, 2
        %v2446 = vsel %vm1294, %v2443, %v2445
        %v2447 = vrot.slane %v2041, 2
        %v2448 = vrot.slane %v2046, 2
        %v2449 = vsel %vm1294, %v2447, %v2448
        %v2450 = vrot.slane %v2049, 2
        %v2451 = vsel %vm1294, %v2448, %v2450
        %v2482 = vadd.f32 %v2342, %v2404
        %v2483 = vadd.f32 %v2343, %v2406
        %v2484 = vadd.f32 %v2344, %v2405
        %v2485 = vadd.f32 %v2345, %v2409
        %v2486 = vadd.f32 %v2346, %v2411
        %v2487 = vadd.f32 %v2347, %v2410
        %v2488 = vadd.f32 %v2348, %v2414
        %v2489 = vadd.f32 %v2349, %v2416
        %v2490 = vadd.f32 %v2350, %v2415
        %v2491 = vadd.f32 %v2351, %v2419
        %v2492 = vadd.f32 %v2352, %v2421
        %v2493 = vadd.f32 %v2353, %v2420
        %v2494 = vadd.f32 %v2354, %v2424
        %v2495 = vadd.f32 %v2355, %v2426
        %v2496 = vadd.f32 %v2356, %v2425
        %v2497 = vadd.f32 %v2357, %v2429
        %v2498 = vadd.f32 %v2358, %v2431
        %v2499 = vadd.f32 %v2359, %v2430
        %v2500 = vadd.f32 %v2360, %v2434
        %v2501 = vadd.f32 %v2361, %v2436
        %v2502 = vadd.f32 %v2362, %v2435
        %v2503 = vadd.f32 %v2363, %v2439
        %v2504 = vadd.f32 %v2364, %v2441
        %v2505 = vadd.f32 %v2365, %v2440
        %v2506 = vadd.f32 %v2366, %v2444
        %v2507 = vadd.f32 %v2367, %v2446
        %v2508 = vadd.f32 %v2368, %v2445
        %v2509 = vadd.f32 %v2369, %v2449
        %v2510 = vadd.f32 %v2370, %v2451
        %v2511 = vadd.f32 %v2371, %v2450
        %2512 = vst [vmem:[#allocation4] sm:$0xff] %v2482
        %2513 = vst [vmem:[#allocation4 + $0x8] sm:$0xff] %v2483
        %2514 = vst [vmem:[#allocation4 + $0x10] sm:$0x3] %v2484
        %2515 = vst [vmem:[#allocation4 + $0x18] sm:$0xff] %v2485
        %2516 = vst [vmem:[#allocation4 + $0x20] sm:$0xff] %v2486
        %2517 = vst [vmem:[#allocation4 + $0x28] sm:$0x3] %v2487
        %2518 = vst [vmem:[#allocation4 + $0x30] sm:$0xff] %v2488
        %2519 = vst [vmem:[#allocation4 + $0x38] sm:$0xff] %v2489
        %2520 = vst [vmem:[#allocation4 + $0x40] sm:$0x3] %v2490
        %2521 = vst [vmem:[#allocation4 + $0x48] sm:$0xff] %v2491
        %2522 = vst [vmem:[#allocation4 + $0x50] sm:$0xff] %v2492
        %2523 = vst [vmem:[#allocation4 + $0x58] sm:$0x3] %v2493
        %2524 = vst [vmem:[#allocation4 + $0x60] sm:$0xff] %v2494
        %2525 = vst [vmem:[#allocation4 + $0x68] sm:$0xff] %v2495
        %2526 = vst [vmem:[#allocation4 + $0x70] sm:$0x3] %v2496
        %2527 = vst [vmem:[#allocation4 + $0x78] sm:$0xff] %v2497
        %2528 = vst [vmem:[#allocation4 + $0x80] sm:$0xff] %v2498
        %2529 = vst [vmem:[#allocation4 + $0x88] sm:$0x3] %v2499
        %2530 = vst [vmem:[#allocation4 + $0x90] sm:$0xff] %v2500
        %2531 = vst [vmem:[#allocation4 + $0x98] sm:$0xff] %v2501
        %2532 = vst [vmem:[#allocation4 + $0xa0] sm:$0x3] %v2502
        %2533 = vst [vmem:[#allocation4 + $0xa8] sm:$0xff] %v2503
        %2534 = vst [vmem:[#allocation4 + $0xb0] sm:$0xff] %v2504
        %2535 = vst [vmem:[#allocation4 + $0xb8] sm:$0x3] %v2505
        %2536 = vst [vmem:[#allocation4 + $0xc0] sm:$0xff] %v2506
        %2537 = vst [vmem:[#allocation4 + $0xc8] sm:$0xff] %v2507
        %2538 = vst [vmem:[#allocation4 + $0xd0] sm:$0x3] %v2508
        %2539 = vst [vmem:[#allocation4 + $0xd8] sm:$0xff] %v2509
        %2540 = vst [vmem:[#allocation4 + $0xe0] sm:$0xff] %v2510
        %2541 = vst [vmem:[#allocation4 + $0xe8] sm:$0x3] %v2511
        %v2542 = vld [vmem:[%s263 + $0x18] sm:$0xf]
        %v2543 = vld [vmem:[%s263 + $0x1c] sm:$0xf]
        %v2544 = vld [vmem:[%s263 + $0x20] sm:$0xf]
        %v2545 = vld [vmem:[%s263 + $0x24] sm:$0xf]
        %v2546 = vld [vmem:[%s263 + $0x28] sm:$0xf]
        %v2547 = vld [vmem:[%s263 + $0x2c] sm:$0xf]
        %v2548 = vld [vmem:[%s263 + $0x30] sm:$0xf]
        %v2549 = vld [vmem:[%s263 + $0x34] sm:$0xf]
        %v2550 = vld [vmem:[%s263 + $0x38] sm:$0xf]
        %v2551 = vld [vmem:[%s263 + $0x3c] sm:$0xf]
        %v2552 = vld [vmem:[%s263 + $0x40] sm:$0xf]
        %v2553 = vld [vmem:[%s263 + $0x44] sm:$0xf]
        %v2554 = vld [vmem:[%s263 + $0x48] sm:$0xf]
        %v2555 = vld [vmem:[%s263 + $0x4c] sm:$0xf]
        %v2556 = vld [vmem:[%s263 + $0x50] sm:$0xf]
        %v2557 = vld [vmem:[%s263 + $0x54] sm:$0xf]
        %v2558 = vld [vmem:[%s263 + $0x58] sm:$0xf]
        %v2559 = vld [vmem:[%s263 + $0x5c] sm:$0xf]
        %v2560 = vld [vmem:[%s263 + $0x60] sm:$0xf]
        %v2561 = vld [vmem:[%s263 + $0x64] sm:$0xf]
        %v2562 = vld [vmem:[%s263 + $0x68] sm:$0xf]
        %v2563 = vld [vmem:[%s263 + $0x6c] sm:$0xf]
        %v2564 = vld [vmem:[%s263 + $0x70] sm:$0xf]
        %v2565 = vld [vmem:[%s263 + $0x74] sm:$0xf]
        %v2566 = vld [vmem:[%s263 + $0x78] sm:$0xf]
        %v2567 = vld [vmem:[%s263 + $0x7c] sm:$0xf]
        %v2568 = vld [vmem:[%s263 + $0x80] sm:$0xf]
        %v2569 = vld [vmem:[%s263 + $0x84] sm:$0xf]
        %v2570 = vld [vmem:[%s263 + $0x88] sm:$0xf]
        %v2571 = vld [vmem:[%s263 + $0x8c] sm:$0xf]
        %s2572 = scalar_lea.vmem [#allocation7], 384
        %v2573 = vld [vmem:[%s2572] sm:$0xff]
        %v2574 = vld [vmem:[%s2572 + $0x8] sm:$0xf]
        %v2575 = vld [vmem:[%s2572 + $0xc] sm:$0xff]
        %v2576 = vld [vmem:[%s2572 + $0x14] sm:$0xf]
        %v2577 = vld [vmem:[%s2572 + $0x18] sm:$0xff]
        %v2578 = vld [vmem:[%s2572 + $0x20] sm:$0xf]
        %v2579 = vld [vmem:[%s2572 + $0x24] sm:$0xff]
        %v2580 = vld [vmem:[%s2572 + $0x2c] sm:$0xf]
        %v2581 = vld [vmem:[%s2572 + $0x30] sm:$0xff]
        %v2582 = vld [vmem:[%s2572 + $0x38] sm:$0xf]
        %v2583 = vld [vmem:[%s2572 + $0x3c] sm:$0xff]
        %v2584 = vld [vmem:[%s2572 + $0x44] sm:$0xf]
        %v2585 = vld [vmem:[%s2572 + $0x48] sm:$0xff]
        %v2586 = vld [vmem:[%s2572 + $0x50] sm:$0xf]
        %v2587 = vld [vmem:[%s2572 + $0x54] sm:$0xff]
        %v2588 = vld [vmem:[%s2572 + $0x5c] sm:$0xf]
        %v2589 = vld [vmem:[%s2572 + $0x60] sm:$0xff]
        %v2590 = vld [vmem:[%s2572 + $0x68] sm:$0xf]
        %v2591 = vld [vmem:[%s2572 + $0x6c] sm:$0xff]
        %v2592 = vld [vmem:[%s2572 + $0x74] sm:$0xf]
        %v2593 = vld [vmem:[%s2572 + $0x78] sm:$0xff]
        %v2594 = vld [vmem:[%s2572 + $0x80] sm:$0xf]
        %v2595 = vld [vmem:[%s2572 + $0x84] sm:$0xff]
        %v2596 = vld [vmem:[%s2572 + $0x8c] sm:$0xf]
        %v2597 = vld [vmem:[%s2572 + $0x90] sm:$0xff]
        %v2598 = vld [vmem:[%s2572 + $0x98] sm:$0xf]
        %v2599 = vld [vmem:[%s2572 + $0x9c] sm:$0xff]
        %v2600 = vld [vmem:[%s2572 + $0xa4] sm:$0xf]
        %v2601 = vld [vmem:[%s2572 + $0xa8] sm:$0xff]
        %v2602 = vld [vmem:[%s2572 + $0xb0] sm:$0xf]
        %v2603 = vld [vmem:[%s2572 + $0xb4] sm:$0xff]
        %v2604 = vld [vmem:[%s2572 + $0xbc] sm:$0xf]
        %v2635 = vunpack.c.l.b16 %v2542
        %v2636 = vunpack.c.l.b16 %v2543
        %v2637 = vunpack.c.l.b16 %v2544
        %v2638 = vunpack.c.l.b16 %v2545
        %v2639 = vunpack.c.l.b16 %v2546
        %v2640 = vunpack.c.l.b16 %v2547
        %v2641 = vunpack.c.l.b16 %v2548
        %v2642 = vunpack.c.l.b16 %v2549
        %v2643 = vunpack.c.l.b16 %v2550
        %v2644 = vunpack.c.l.b16 %v2551
        %v2645 = vunpack.c.l.b16 %v2552
        %v2646 = vunpack.c.l.b16 %v2553
        %v2647 = vunpack.c.l.b16 %v2554
        %v2648 = vunpack.c.l.b16 %v2555
        %v2649 = vunpack.c.l.b16 %v2556
        %v2650 = vunpack.c.l.b16 %v2557
        %v2651 = vunpack.c.l.b16 %v2558
        %v2652 = vunpack.c.l.b16 %v2559
        %v2653 = vunpack.c.l.b16 %v2560
        %v2654 = vunpack.c.l.b16 %v2561
        %v2655 = vunpack.c.l.b16 %v2562
        %v2656 = vunpack.c.l.b16 %v2563
        %v2657 = vunpack.c.l.b16 %v2564
        %v2658 = vunpack.c.l.b16 %v2565
        %v2659 = vunpack.c.l.b16 %v2566
        %v2660 = vunpack.c.l.b16 %v2567
        %v2661 = vunpack.c.l.b16 %v2568
        %v2662 = vunpack.c.l.b16 %v2569
        %v2663 = vunpack.c.l.b16 %v2570
        %v2664 = vunpack.c.l.b16 %v2571
        %v2665 = vpack.c.b16 %v2636, %v2635
        %v2666 = vpack.c.b16 %v2638, %v2637
        %v2667 = vpack.c.b16 %v2640, %v2639
        %v2668 = vpack.c.b16 %v2642, %v2641
        %v2669 = vpack.c.b16 %v2644, %v2643
        %v2670 = vpack.c.b16 %v2646, %v2645
        %v2671 = vpack.c.b16 %v2648, %v2647
        %v2672 = vpack.c.b16 %v2650, %v2649
        %v2673 = vpack.c.b16 %v2652, %v2651
        %v2674 = vpack.c.b16 %v2654, %v2653
        %v2675 = vpack.c.b16 %v2656, %v2655
        %v2676 = vpack.c.b16 %v2658, %v2657
        %v2677 = vpack.c.b16 %v2660, %v2659
        %v2678 = vpack.c.b16 %v2662, %v2661
        %v2679 = vpack.c.b16 %v2664, %v2663
        %v2727 = vunpack.c.l.b16 %v2573
        %v2728 = vunpack.c.h.b16 %v2573
        %v2729 = vunpack.c.l.b16 %v2574
        %v2730 = vunpack.c.l.b16 %v2575
        %v2731 = vunpack.c.h.b16 %v2575
        %v2732 = vunpack.c.l.b16 %v2576
        %v2733 = vunpack.c.l.b16 %v2577
        %v2734 = vunpack.c.h.b16 %v2577
        %v2735 = vunpack.c.l.b16 %v2578
        %v2736 = vunpack.c.l.b16 %v2579
        %v2737 = vunpack.c.h.b16 %v2579
        %v2738 = vunpack.c.l.b16 %v2580
        %v2739 = vunpack.c.l.b16 %v2581
        %v2740 = vunpack.c.h.b16 %v2581
        %v2741 = vunpack.c.l.b16 %v2582
        %v2742 = vunpack.c.l.b16 %v2583
        %v2743 = vunpack.c.h.b16 %v2583
        %v2744 = vunpack.c.l.b16 %v2584
        %v2745 = vunpack.c.l.b16 %v2585
        %v2746 = vunpack.c.h.b16 %v2585
        %v2747 = vunpack.c.l.b16 %v2586
        %v2748 = vunpack.c.l.b16 %v2587
        %v2749 = vunpack.c.h.b16 %v2587
        %v2750 = vunpack.c.l.b16 %v2588
        %v2751 = vunpack.c.l.b16 %v2589
        %v2752 = vunpack.c.h.b16 %v2589
        %v2753 = vunpack.c.l.b16 %v2590
        %v2754 = vunpack.c.l.b16 %v2591
        %v2755 = vunpack.c.h.b16 %v2591
        %v2756 = vunpack.c.l.b16 %v2592
        %v2757 = vunpack.c.l.b16 %v2593
        %v2758 = vunpack.c.h.b16 %v2593
        %v2759 = vunpack.c.l.b16 %v2594
        %v2760 = vunpack.c.l.b16 %v2595
        %v2761 = vunpack.c.h.b16 %v2595
        %v2762 = vunpack.c.l.b16 %v2596
        %v2763 = vunpack.c.l.b16 %v2597
        %v2764 = vunpack.c.h.b16 %v2597
        %v2765 = vunpack.c.l.b16 %v2598
        %v2766 = vunpack.c.l.b16 %v2599
        %v2767 = vunpack.c.h.b16 %v2599
        %v2768 = vunpack.c.l.b16 %v2600
        %v2769 = vunpack.c.l.b16 %v2601
        %v2770 = vunpack.c.h.b16 %v2601
        %v2771 = vunpack.c.l.b16 %v2602
        %v2772 = vunpack.c.l.b16 %v2603
        %v2773 = vunpack.c.h.b16 %v2603
        %v2774 = vunpack.c.l.b16 %v2604
        %v2775 = vpack.c.b16 %v2730, %v2727
        %v2776 = vpack.c.b16 %v2731, %v2728
        %v2777 = vpack.c.b16 %v2732, %v2729
        %v2778 = vpack.c.b16 %v2736, %v2733
        %v2779 = vpack.c.b16 %v2737, %v2734
        %v2780 = vpack.c.b16 %v2738, %v2735
        %v2781 = vpack.c.b16 %v2742, %v2739
        %v2782 = vpack.c.b16 %v2743, %v2740
        %v2783 = vpack.c.b16 %v2744, %v2741
        %v2784 = vpack.c.b16 %v2748, %v2745
        %v2785 = vpack.c.b16 %v2749, %v2746
        %v2786 = vpack.c.b16 %v2750, %v2747
        %v2787 = vpack.c.b16 %v2754, %v2751
        %v2788 = vpack.c.b16 %v2755, %v2752
        %v2789 = vpack.c.b16 %v2756, %v2753
        %v2790 = vpack.c.b16 %v2760, %v2757
        %v2791 = vpack.c.b16 %v2761, %v2758
        %v2792 = vpack.c.b16 %v2762, %v2759
        %v2793 = vpack.c.b16 %v2766, %v2763
        %v2794 = vpack.c.b16 %v2767, %v2764
        %v2795 = vpack.c.b16 %v2768, %v2765
        %v2796 = vpack.c.b16 %v2772, %v2769
        %v2797 = vpack.c.b16 %v2773, %v2770
        %v2798 = vpack.c.b16 %v2774, %v2771
        %2823 = vmatprep.subr.bf16.mxu0 %v2797
        %2824 = vmatpush1.bf16.msra.mxu0 %v2796
        %2825 = vmatprep.subr.bf16.mxu0 %v2794
        %2826 = vmatpush1.bf16.msra.mxu0 %v2793
        %2827 = vmatprep.subr.bf16.mxu0 %v2791
        %2828 = vmatpush1.bf16.msra.mxu0 %v2790
        %2829 = vmatprep.subr.bf16.mxu0 %v2788
        %2830 = vmatpush1.bf16.msra.mxu0 %v2787
        %2831 = vmatprep.subr.bf16.mxu0 %v2785
        %2832 = vmatpush1.bf16.msra.mxu0 %v2784
        %2833 = vmatprep.subr.bf16.mxu0 %v2782
        %2834 = vmatpush1.bf16.msra.mxu0 %v2781
        %2835 = vmatprep.subr.bf16.mxu0 %v2779
        %2836 = vmatpush1.bf16.msra.mxu0 %v2778
        %2837 = vmatprep.subr.bf16.mxu0 %v2776
        %2838 = vmatpush1.bf16.msra.mxu0 %v2775
        %2839 = vmatprep.subr.bf16.mxu0 0
        %2840 = vmatpush2.bf16.msra.mxu0 0
        %2841 = vmatprep.subr.bf16.mxu0 0
        %2842 = vmatpush2.bf16.msra.mxu0 0
        %2843 = vmatprep.subr.bf16.mxu0 0
        %2844 = vmatpush2.bf16.msra.mxu0 0
        %2845 = vmatprep.subr.bf16.mxu0 0
        %2846 = vmatpush2.bf16.msra.mxu0 0
        %2847 = vmatprep.subr.bf16.mxu0 0
        %2848 = vmatpush2.bf16.msra.mxu0 0
        %2849 = vmatprep.subr.bf16.mxu0 0
        %2850 = vmatpush2.bf16.msra.mxu0 0
        %2851 = vmatprep.subr.bf16.mxu0 0
        %2852 = vmatpush2.bf16.msra.mxu0 0
        %2853 = vmatprep.subr.bf16.mxu0 0
        %2854 = vmatpush2.bf16.msra.mxu0 0
        %2855 = vmatprep.mubr.bf16.mxu0 0
        %2856 = vmatmul.mubr.bf16.gmra.mxu0 %v2665
        %v2857 = vpop.f32.mrf.mxu0
        %v2858 = vadd.f32 0.0, %v2857
        %v2859 = vpop.f32.mrf.mxu0
        %v2860 = vadd.f32 0.0, %v2859
        %v2861 = vpop.f32.mrf.mxu0
        %v2862 = vadd.f32 0.0, %v2861
        %v2863 = vpop.f32.mrf.mxu0
        %v2864 = vadd.f32 0.0, %v2863
        %2865 = vmatprep.mubr.bf16.mxu0 0
        %2866 = vmatmul.mubr.bf16.gmra.mxu0 %v2666
        %v2867 = vpop.f32.mrf.mxu0
        %v2868 = vadd.f32 0.0, %v2867
        %v2869 = vpop.f32.mrf.mxu0
        %v2870 = vadd.f32 0.0, %v2869
        %v2871 = vpop.f32.mrf.mxu0
        %v2872 = vadd.f32 0.0, %v2871
        %v2873 = vpop.f32.mrf.mxu0
        %v2874 = vadd.f32 0.0, %v2873
        %2875 = vmatprep.mubr.bf16.mxu0 0
        %2876 = vmatmul.mubr.bf16.gmra.mxu0 %v2667
        %v2877 = vpop.f32.mrf.mxu0
        %v2878 = vadd.f32 0.0, %v2877
        %v2879 = vpop.f32.mrf.mxu0
        %v2880 = vadd.f32 0.0, %v2879
        %v2881 = vpop.f32.mrf.mxu0
        %v2882 = vadd.f32 0.0, %v2881
        %v2883 = vpop.f32.mrf.mxu0
        %v2884 = vadd.f32 0.0, %v2883
        %2885 = vmatprep.mubr.bf16.mxu0 0
        %2886 = vmatmul.mubr.bf16.gmra.mxu0 %v2668
        %v2887 = vpop.f32.mrf.mxu0
        %v2888 = vadd.f32 0.0, %v2887
        %v2889 = vpop.f32.mrf.mxu0
        %v2890 = vadd.f32 0.0, %v2889
        %v2891 = vpop.f32.mrf.mxu0
        %v2892 = vadd.f32 0.0, %v2891
        %v2893 = vpop.f32.mrf.mxu0
        %v2894 = vadd.f32 0.0, %v2893
        %2895 = vmatprep.mubr.bf16.mxu0 0
        %2896 = vmatmul.mubr.bf16.gmra.mxu0 %v2669
        %v2897 = vpop.f32.mrf.mxu0
        %v2898 = vadd.f32 0.0, %v2897
        %v2899 = vpop.f32.mrf.mxu0
        %v2900 = vadd.f32 0.0, %v2899
        %v2901 = vpop.f32.mrf.mxu0
        %v2902 = vadd.f32 0.0, %v2901
        %v2903 = vpop.f32.mrf.mxu0
        %v2904 = vadd.f32 0.0, %v2903
        %2905 = vmatprep.mubr.bf16.mxu0 0
        %2906 = vmatmul.mubr.bf16.gmra.mxu0 %v2670
        %v2907 = vpop.f32.mrf.mxu0
        %v2908 = vadd.f32 0.0, %v2907
        %v2909 = vpop.f32.mrf.mxu0
        %v2910 = vadd.f32 0.0, %v2909
        %v2911 = vpop.f32.mrf.mxu0
        %v2912 = vadd.f32 0.0, %v2911
        %v2913 = vpop.f32.mrf.mxu0
        %v2914 = vadd.f32 0.0, %v2913
        %2915 = vmatprep.mubr.bf16.mxu0 0
        %2916 = vmatmul.mubr.bf16.gmra.mxu0 %v2671
        %v2917 = vpop.f32.mrf.mxu0
        %v2918 = vadd.f32 0.0, %v2917
        %v2919 = vpop.f32.mrf.mxu0
        %v2920 = vadd.f32 0.0, %v2919
        %v2921 = vpop.f32.mrf.mxu0
        %v2922 = vadd.f32 0.0, %v2921
        %v2923 = vpop.f32.mrf.mxu0
        %v2924 = vadd.f32 0.0, %v2923
        %2925 = vmatprep.mubr.bf16.mxu0 0
        %2926 = vmatmul.mubr.bf16.gmra.mxu0 %v2672
        %v2927 = vpop.f32.mrf.mxu0
        %v2928 = vadd.f32 0.0, %v2927
        %v2929 = vpop.f32.mrf.mxu0
        %v2930 = vadd.f32 0.0, %v2929
        %v2931 = vpop.f32.mrf.mxu0
        %v2932 = vadd.f32 0.0, %v2931
        %v2933 = vpop.f32.mrf.mxu0
        %v2934 = vadd.f32 0.0, %v2933
        %2935 = vmatprep.mubr.bf16.mxu0 0
        %2936 = vmatmul.mubr.bf16.gmra.mxu0 %v2673
        %v2937 = vpop.f32.mrf.mxu0
        %v2938 = vadd.f32 0.0, %v2937
        %v2939 = vpop.f32.mrf.mxu0
        %v2940 = vadd.f32 0.0, %v2939
        %v2941 = vpop.f32.mrf.mxu0
        %v2942 = vadd.f32 0.0, %v2941
        %v2943 = vpop.f32.mrf.mxu0
        %v2944 = vadd.f32 0.0, %v2943
        %2945 = vmatprep.mubr.bf16.mxu0 0
        %2946 = vmatmul.mubr.bf16.gmra.mxu0 %v2674
        %v2947 = vpop.f32.mrf.mxu0
        %v2948 = vadd.f32 0.0, %v2947
        %v2949 = vpop.f32.mrf.mxu0
        %v2950 = vadd.f32 0.0, %v2949
        %v2951 = vpop.f32.mrf.mxu0
        %v2952 = vadd.f32 0.0, %v2951
        %v2953 = vpop.f32.mrf.mxu0
        %v2954 = vadd.f32 0.0, %v2953
        %2955 = vmatprep.mubr.bf16.mxu0 0
        %2956 = vmatmul.mubr.bf16.gmra.mxu0 %v2675
        %v2957 = vpop.f32.mrf.mxu0
        %v2958 = vadd.f32 0.0, %v2957
        %v2959 = vpop.f32.mrf.mxu0
        %v2960 = vadd.f32 0.0, %v2959
        %v2961 = vpop.f32.mrf.mxu0
        %v2962 = vadd.f32 0.0, %v2961
        %v2963 = vpop.f32.mrf.mxu0
        %v2964 = vadd.f32 0.0, %v2963
        %2965 = vmatprep.mubr.bf16.mxu0 0
        %2966 = vmatmul.mubr.bf16.gmra.mxu0 %v2676
        %v2967 = vpop.f32.mrf.mxu0
        %v2968 = vadd.f32 0.0, %v2967
        %v2969 = vpop.f32.mrf.mxu0
        %v2970 = vadd.f32 0.0, %v2969
        %v2971 = vpop.f32.mrf.mxu0
        %v2972 = vadd.f32 0.0, %v2971
        %v2973 = vpop.f32.mrf.mxu0
        %v2974 = vadd.f32 0.0, %v2973
        %2975 = vmatprep.mubr.bf16.mxu0 0
        %2976 = vmatmul.mubr.bf16.gmra.mxu0 %v2677
        %v2977 = vpop.f32.mrf.mxu0
        %v2978 = vadd.f32 0.0, %v2977
        %v2979 = vpop.f32.mrf.mxu0
        %v2980 = vadd.f32 0.0, %v2979
        %v2981 = vpop.f32.mrf.mxu0
        %v2982 = vadd.f32 0.0, %v2981
        %v2983 = vpop.f32.mrf.mxu0
        %v2984 = vadd.f32 0.0, %v2983
        %2985 = vmatprep.mubr.bf16.mxu0 0
        %2986 = vmatmul.mubr.bf16.gmra.mxu0 %v2678
        %v2987 = vpop.f32.mrf.mxu0
        %v2988 = vadd.f32 0.0, %v2987
        %v2989 = vpop.f32.mrf.mxu0
        %v2990 = vadd.f32 0.0, %v2989
        %v2991 = vpop.f32.mrf.mxu0
        %v2992 = vadd.f32 0.0, %v2991
        %v2993 = vpop.f32.mrf.mxu0
        %v2994 = vadd.f32 0.0, %v2993
        %2995 = vmatprep.mubr.bf16.mxu0 0
        %2996 = vmatmul.mubr.bf16.gmra.mxu0 %v2679
        %v2997 = vpop.f32.mrf.mxu0
        %v2998 = vadd.f32 0.0, %v2997
        %v2999 = vpop.f32.mrf.mxu0
        %v3000 = vadd.f32 0.0, %v2999
        %v3001 = vpop.f32.mrf.mxu0
        %v3002 = vadd.f32 0.0, %v3001
        %v3003 = vpop.f32.mrf.mxu0
        %v3004 = vadd.f32 0.0, %v3003
        %3005 = vdwg.mxu0
        %3006 = vmatprep.subr.bf16.mxu0 0
        %3007 = vmatpush1.bf16.msra.mxu0 %v2798
        %3008 = vmatprep.subr.bf16.mxu0 0
        %3009 = vmatpush1.bf16.msra.mxu0 %v2795
        %3010 = vmatprep.subr.bf16.mxu0 0
        %3011 = vmatpush1.bf16.msra.mxu0 %v2792
        %3012 = vmatprep.subr.bf16.mxu0 0
        %3013 = vmatpush1.bf16.msra.mxu0 %v2789
        %3014 = vmatprep.subr.bf16.mxu0 0
        %3015 = vmatpush1.bf16.msra.mxu0 %v2786
        %3016 = vmatprep.subr.bf16.mxu0 0
        %3017 = vmatpush1.bf16.msra.mxu0 %v2783
        %3018 = vmatprep.subr.bf16.mxu0 0
        %3019 = vmatpush1.bf16.msra.mxu0 %v2780
        %3020 = vmatprep.subr.bf16.mxu0 0
        %3021 = vmatpush1.bf16.msra.mxu0 %v2777
        %3022 = vmatprep.subr.bf16.mxu0 0
        %3023 = vmatpush2.bf16.msra.mxu0 0
        %3024 = vmatprep.subr.bf16.mxu0 0
        %3025 = vmatpush2.bf16.msra.mxu0 0
        %3026 = vmatprep.subr.bf16.mxu0 0
        %3027 = vmatpush2.bf16.msra.mxu0 0
        %3028 = vmatprep.subr.bf16.mxu0 0
        %3029 = vmatpush2.bf16.msra.mxu0 0
        %3030 = vmatprep.subr.bf16.mxu0 0
        %3031 = vmatpush2.bf16.msra.mxu0 0
        %3032 = vmatprep.subr.bf16.mxu0 0
        %3033 = vmatpush2.bf16.msra.mxu0 0
        %3034 = vmatprep.subr.bf16.mxu0 0
        %3035 = vmatpush2.bf16.msra.mxu0 0
        %3036 = vmatprep.subr.bf16.mxu0 0
        %3037 = vmatpush2.bf16.msra.mxu0 0
        %3038 = vmatprep.mubr.bf16.mxu0 0
        %3039 = vmatmul.mubr.bf16.gmra.mxu0 %v2665
        %v3040 = vpop.f32.mrf.mxu0
        %v3041 = vadd.f32 0.0, %v3040
        %v3042 = vpop.f32.mrf.mxu0
        %v3043 = vpop.f32.mrf.mxu0
        %v3044 = vadd.f32 0.0, %v3043
        %v3045 = vpop.f32.mrf.mxu0
        %3046 = vmatprep.mubr.bf16.mxu0 0
        %3047 = vmatmul.mubr.bf16.gmra.mxu0 %v2666
        %v3048 = vpop.f32.mrf.mxu0
        %v3049 = vadd.f32 0.0, %v3048
        %v3050 = vpop.f32.mrf.mxu0
        %v3051 = vpop.f32.mrf.mxu0
        %v3052 = vadd.f32 0.0, %v3051
        %v3053 = vpop.f32.mrf.mxu0
        %3054 = vmatprep.mubr.bf16.mxu0 0
        %3055 = vmatmul.mubr.bf16.gmra.mxu0 %v2667
        %v3056 = vpop.f32.mrf.mxu0
        %v3057 = vadd.f32 0.0, %v3056
        %v3058 = vpop.f32.mrf.mxu0
        %v3059 = vpop.f32.mrf.mxu0
        %v3060 = vadd.f32 0.0, %v3059
        %v3061 = vpop.f32.mrf.mxu0
        %3062 = vmatprep.mubr.bf16.mxu0 0
        %3063 = vmatmul.mubr.bf16.gmra.mxu0 %v2668
        %v3064 = vpop.f32.mrf.mxu0
        %v3065 = vadd.f32 0.0, %v3064
        %v3066 = vpop.f32.mrf.mxu0
        %v3067 = vpop.f32.mrf.mxu0
        %v3068 = vadd.f32 0.0, %v3067
        %v3069 = vpop.f32.mrf.mxu0
        %3070 = vmatprep.mubr.bf16.mxu0 0
        %3071 = vmatmul.mubr.bf16.gmra.mxu0 %v2669
        %v3072 = vpop.f32.mrf.mxu0
        %v3073 = vadd.f32 0.0, %v3072
        %v3074 = vpop.f32.mrf.mxu0
        %v3075 = vpop.f32.mrf.mxu0
        %v3076 = vadd.f32 0.0, %v3075
        %v3077 = vpop.f32.mrf.mxu0
        %3078 = vmatprep.mubr.bf16.mxu0 0
        %3079 = vmatmul.mubr.bf16.gmra.mxu0 %v2670
        %v3080 = vpop.f32.mrf.mxu0
        %v3081 = vadd.f32 0.0, %v3080
        %v3082 = vpop.f32.mrf.mxu0
        %v3083 = vpop.f32.mrf.mxu0
        %v3084 = vadd.f32 0.0, %v3083
        %v3085 = vpop.f32.mrf.mxu0
        %3086 = vmatprep.mubr.bf16.mxu0 0
        %3087 = vmatmul.mubr.bf16.gmra.mxu0 %v2671
        %v3088 = vpop.f32.mrf.mxu0
        %v3089 = vadd.f32 0.0, %v3088
        %v3090 = vpop.f32.mrf.mxu0
        %v3091 = vpop.f32.mrf.mxu0
        %v3092 = vadd.f32 0.0, %v3091
        %v3093 = vpop.f32.mrf.mxu0
        %3094 = vmatprep.mubr.bf16.mxu0 0
        %3095 = vmatmul.mubr.bf16.gmra.mxu0 %v2672
        %v3096 = vpop.f32.mrf.mxu0
        %v3097 = vadd.f32 0.0, %v3096
        %v3098 = vpop.f32.mrf.mxu0
        %v3099 = vpop.f32.mrf.mxu0
        %v3100 = vadd.f32 0.0, %v3099
        %v3101 = vpop.f32.mrf.mxu0
        %3102 = vmatprep.mubr.bf16.mxu0 0
        %3103 = vmatmul.mubr.bf16.gmra.mxu0 %v2673
        %v3104 = vpop.f32.mrf.mxu0
        %v3105 = vadd.f32 0.0, %v3104
        %v3106 = vpop.f32.mrf.mxu0
        %v3107 = vpop.f32.mrf.mxu0
        %v3108 = vadd.f32 0.0, %v3107
        %v3109 = vpop.f32.mrf.mxu0
        %3110 = vmatprep.mubr.bf16.mxu0 0
        %3111 = vmatmul.mubr.bf16.gmra.mxu0 %v2674
        %v3112 = vpop.f32.mrf.mxu0
        %v3113 = vadd.f32 0.0, %v3112
        %v3114 = vpop.f32.mrf.mxu0
        %v3115 = vpop.f32.mrf.mxu0
        %v3116 = vadd.f32 0.0, %v3115
        %v3117 = vpop.f32.mrf.mxu0
        %3118 = vmatprep.mubr.bf16.mxu0 0
        %3119 = vmatmul.mubr.bf16.gmra.mxu0 %v2675
        %v3120 = vpop.f32.mrf.mxu0
        %v3121 = vadd.f32 0.0, %v3120
        %v3122 = vpop.f32.mrf.mxu0
        %v3123 = vpop.f32.mrf.mxu0
        %v3124 = vadd.f32 0.0, %v3123
        %v3125 = vpop.f32.mrf.mxu0
        %3126 = vmatprep.mubr.bf16.mxu0 0
        %3127 = vmatmul.mubr.bf16.gmra.mxu0 %v2676
        %v3128 = vpop.f32.mrf.mxu0
        %v3129 = vadd.f32 0.0, %v3128
        %v3130 = vpop.f32.mrf.mxu0
        %v3131 = vpop.f32.mrf.mxu0
        %v3132 = vadd.f32 0.0, %v3131
        %v3133 = vpop.f32.mrf.mxu0
        %3134 = vmatprep.mubr.bf16.mxu0 0
        %3135 = vmatmul.mubr.bf16.gmra.mxu0 %v2677
        %v3136 = vpop.f32.mrf.mxu0
        %v3137 = vadd.f32 0.0, %v3136
        %v3138 = vpop.f32.mrf.mxu0
        %v3139 = vpop.f32.mrf.mxu0
        %v3140 = vadd.f32 0.0, %v3139
        %v3141 = vpop.f32.mrf.mxu0
        %3142 = vmatprep.mubr.bf16.mxu0 0
        %3143 = vmatmul.mubr.bf16.gmra.mxu0 %v2678
        %v3144 = vpop.f32.mrf.mxu0
        %v3145 = vadd.f32 0.0, %v3144
        %v3146 = vpop.f32.mrf.mxu0
        %v3147 = vpop.f32.mrf.mxu0
        %v3148 = vadd.f32 0.0, %v3147
        %v3149 = vpop.f32.mrf.mxu0
        %3150 = vmatprep.mubr.bf16.mxu0 0
        %3151 = vmatmul.mubr.bf16.gmra.mxu0 %v2679
        %v3152 = vpop.f32.mrf.mxu0
        %v3153 = vadd.f32 0.0, %v3152
        %v3154 = vpop.f32.mrf.mxu0
        %v3155 = vpop.f32.mrf.mxu0
        %v3156 = vadd.f32 0.0, %v3155
        %v3157 = vpop.f32.mrf.mxu0
        %3158 = vdwg.mxu0
        %v3159 = vld [vmem:[#allocation4] sm:$0xff]
        %v3160 = vld [vmem:[#allocation4 + $0x8] sm:$0xff]
        %v3161 = vld [vmem:[#allocation4 + $0x10] sm:$0x3]
        %v3162 = vld [vmem:[#allocation4 + $0x18] sm:$0xff]
        %v3163 = vld [vmem:[#allocation4 + $0x20] sm:$0xff]
        %v3164 = vld [vmem:[#allocation4 + $0x28] sm:$0x3]
        %v3165 = vld [vmem:[#allocation4 + $0x30] sm:$0xff]
        %v3166 = vld [vmem:[#allocation4 + $0x38] sm:$0xff]
        %v3167 = vld [vmem:[#allocation4 + $0x40] sm:$0x3]
        %v3168 = vld [vmem:[#allocation4 + $0x48] sm:$0xff]
        %v3169 = vld [vmem:[#allocation4 + $0x50] sm:$0xff]
        %v3170 = vld [vmem:[#allocation4 + $0x58] sm:$0x3]
        %v3171 = vld [vmem:[#allocation4 + $0x60] sm:$0xff]
        %v3172 = vld [vmem:[#allocation4 + $0x68] sm:$0xff]
        %v3173 = vld [vmem:[#allocation4 + $0x70] sm:$0x3]
        %v3174 = vld [vmem:[#allocation4 + $0x78] sm:$0xff]
        %v3175 = vld [vmem:[#allocation4 + $0x80] sm:$0xff]
        %v3176 = vld [vmem:[#allocation4 + $0x88] sm:$0x3]
        %v3177 = vld [vmem:[#allocation4 + $0x90] sm:$0xff]
        %v3178 = vld [vmem:[#allocation4 + $0x98] sm:$0xff]
        %v3179 = vld [vmem:[#allocation4 + $0xa0] sm:$0x3]
        %v3180 = vld [vmem:[#allocation4 + $0xa8] sm:$0xff]
        %v3181 = vld [vmem:[#allocation4 + $0xb0] sm:$0xff]
        %v3182 = vld [vmem:[#allocation4 + $0xb8] sm:$0x3]
        %v3183 = vld [vmem:[#allocation4 + $0xc0] sm:$0xff]
        %v3184 = vld [vmem:[#allocation4 + $0xc8] sm:$0xff]
        %v3185 = vld [vmem:[#allocation4 + $0xd0] sm:$0x3]
        %v3186 = vld [vmem:[#allocation4 + $0xd8] sm:$0xff]
        %v3187 = vld [vmem:[#allocation4 + $0xe0] sm:$0xff]
        %v3188 = vld [vmem:[#allocation4 + $0xe8] sm:$0x3]
        %v3189 = vadd.f32 %v3159, %v2858
        %v3190 = vadd.f32 %v3160, %v2862
        %v3191 = vadd.f32 %v3161, %v2868
        %v3192 = vadd.f32 %v3162, %v2872
        %v3193 = vadd.f32 %v3163, %v2878
        %v3194 = vadd.f32 %v3164, %v2882
        %v3195 = vadd.f32 %v3165, %v2888
        %v3196 = vadd.f32 %v3166, %v2892
        %v3197 = vadd.f32 %v3167, %v2898
        %v3198 = vadd.f32 %v3168, %v2902
        %v3199 = vadd.f32 %v3169, %v2908
        %v3200 = vadd.f32 %v3170, %v2912
        %v3201 = vadd.f32 %v3171, %v2918
        %v3202 = vadd.f32 %v3172, %v2922
        %v3203 = vadd.f32 %v3173, %v2928
        %v3204 = vadd.f32 %v3174, %v2932
        %v3205 = vadd.f32 %v3175, %v2938
        %v3206 = vadd.f32 %v3176, %v2942
        %v3207 = vadd.f32 %v3177, %v2948
        %v3208 = vadd.f32 %v3178, %v2952
        %v3209 = vadd.f32 %v3179, %v2958
        %v3210 = vadd.f32 %v3180, %v2962
        %v3211 = vadd.f32 %v3181, %v2968
        %v3212 = vadd.f32 %v3182, %v2972
        %v3213 = vadd.f32 %v3183, %v2978
        %v3214 = vadd.f32 %v3184, %v2982
        %v3215 = vadd.f32 %v3185, %v2988
        %v3216 = vadd.f32 %v3186, %v2992
        %v3217 = vadd.f32 %v3187, %v2998
        %v3218 = vadd.f32 %v3188, %v3002
        %3219 = vst [vmem:[#allocation4] sm:$0xff] %v3189
        %3220 = vst [vmem:[#allocation4 + $0x8] sm:$0xff] %v3190
        %3221 = vst [vmem:[#allocation4 + $0x10] sm:$0x3] %v3191
        %3222 = vst [vmem:[#allocation4 + $0x18] sm:$0xff] %v3192
        %3223 = vst [vmem:[#allocation4 + $0x20] sm:$0xff] %v3193
        %3224 = vst [vmem:[#allocation4 + $0x28] sm:$0x3] %v3194
        %3225 = vst [vmem:[#allocation4 + $0x30] sm:$0xff] %v3195
        %3226 = vst [vmem:[#allocation4 + $0x38] sm:$0xff] %v3196
        %3227 = vst [vmem:[#allocation4 + $0x40] sm:$0x3] %v3197
        %3228 = vst [vmem:[#allocation4 + $0x48] sm:$0xff] %v3198
        %3229 = vst [vmem:[#allocation4 + $0x50] sm:$0xff] %v3199
        %3230 = vst [vmem:[#allocation4 + $0x58] sm:$0x3] %v3200
        %3231 = vst [vmem:[#allocation4 + $0x60] sm:$0xff] %v3201
        %3232 = vst [vmem:[#allocation4 + $0x68] sm:$0xff] %v3202
        %3233 = vst [vmem:[#allocation4 + $0x70] sm:$0x3] %v3203
        %3234 = vst [vmem:[#allocation4 + $0x78] sm:$0xff] %v3204
        %3235 = vst [vmem:[#allocation4 + $0x80] sm:$0xff] %v3205
        %3236 = vst [vmem:[#allocation4 + $0x88] sm:$0x3] %v3206
        %3237 = vst [vmem:[#allocation4 + $0x90] sm:$0xff] %v3207
        %3238 = vst [vmem:[#allocation4 + $0x98] sm:$0xff] %v3208
        %3239 = vst [vmem:[#allocation4 + $0xa0] sm:$0x3] %v3209
        %3240 = vst [vmem:[#allocation4 + $0xa8] sm:$0xff] %v3210
        %3241 = vst [vmem:[#allocation4 + $0xb0] sm:$0xff] %v3211
        %3242 = vst [vmem:[#allocation4 + $0xb8] sm:$0x3] %v3212
        %3243 = vst [vmem:[#allocation4 + $0xc0] sm:$0xff] %v3213
        %3244 = vst [vmem:[#allocation4 + $0xc8] sm:$0xff] %v3214
        %3245 = vst [vmem:[#allocation4 + $0xd0] sm:$0x3] %v3215
        %3246 = vst [vmem:[#allocation4 + $0xd8] sm:$0xff] %v3216
        %3247 = vst [vmem:[#allocation4 + $0xe0] sm:$0xff] %v3217
        %3248 = vst [vmem:[#allocation4 + $0xe8] sm:$0x3] %v3218
        %v3249 = vld [vmem:[#allocation4] sm:$0xff]
        %v3250 = vld [vmem:[#allocation4 + $0x8] sm:$0xff]
        %v3251 = vld [vmem:[#allocation4 + $0x10] sm:$0x3]
        %v3252 = vld [vmem:[#allocation4 + $0x18] sm:$0xff]
        %v3253 = vld [vmem:[#allocation4 + $0x20] sm:$0xff]
        %v3254 = vld [vmem:[#allocation4 + $0x28] sm:$0x3]
        %v3255 = vld [vmem:[#allocation4 + $0x30] sm:$0xff]
        %v3256 = vld [vmem:[#allocation4 + $0x38] sm:$0xff]
        %v3257 = vld [vmem:[#allocation4 + $0x40] sm:$0x3]
        %v3258 = vld [vmem:[#allocation4 + $0x48] sm:$0xff]
        %v3259 = vld [vmem:[#allocation4 + $0x50] sm:$0xff]
        %v3260 = vld [vmem:[#allocation4 + $0x58] sm:$0x3]
        %v3261 = vld [vmem:[#allocation4 + $0x60] sm:$0xff]
        %v3262 = vld [vmem:[#allocation4 + $0x68] sm:$0xff]
        %v3263 = vld [vmem:[#allocation4 + $0x70] sm:$0x3]
        %v3264 = vld [vmem:[#allocation4 + $0x78] sm:$0xff]
        %v3265 = vld [vmem:[#allocation4 + $0x80] sm:$0xff]
        %v3266 = vld [vmem:[#allocation4 + $0x88] sm:$0x3]
        %v3267 = vld [vmem:[#allocation4 + $0x90] sm:$0xff]
        %v3268 = vld [vmem:[#allocation4 + $0x98] sm:$0xff]
        %v3269 = vld [vmem:[#allocation4 + $0xa0] sm:$0x3]
        %v3270 = vld [vmem:[#allocation4 + $0xa8] sm:$0xff]
        %v3271 = vld [vmem:[#allocation4 + $0xb0] sm:$0xff]
        %v3272 = vld [vmem:[#allocation4 + $0xb8] sm:$0x3]
        %v3273 = vld [vmem:[#allocation4 + $0xc0] sm:$0xff]
        %v3274 = vld [vmem:[#allocation4 + $0xc8] sm:$0xff]
        %v3275 = vld [vmem:[#allocation4 + $0xd0] sm:$0x3]
        %v3276 = vld [vmem:[#allocation4 + $0xd8] sm:$0xff]
        %v3277 = vld [vmem:[#allocation4 + $0xe0] sm:$0xff]
        %v3278 = vld [vmem:[#allocation4 + $0xe8] sm:$0x3]
        %v3309 = vrot.slane %v2860, 1
        %v3310 = vrot.slane %v2864, 1
        %v3311 = vsel %vm1093, %v3309, %v3310
        %v3312 = vrot.slane %v2870, 1
        %v3313 = vsel %vm1093, %v3310, %v3312
        %v3314 = vrot.slane %v2874, 1
        %v3315 = vrot.slane %v2880, 1
        %v3316 = vsel %vm1093, %v3314, %v3315
        %v3317 = vrot.slane %v2884, 1
        %v3318 = vsel %vm1093, %v3315, %v3317
        %v3319 = vrot.slane %v2890, 1
        %v3320 = vrot.slane %v2894, 1
        %v3321 = vsel %vm1093, %v3319, %v3320
        %v3322 = vrot.slane %v2900, 1
        %v3323 = vsel %vm1093, %v3320, %v3322
        %v3324 = vrot.slane %v2904, 1
        %v3325 = vrot.slane %v2910, 1
        %v3326 = vsel %vm1093, %v3324, %v3325
        %v3327 = vrot.slane %v2914, 1
        %v3328 = vsel %vm1093, %v3325, %v3327
        %v3329 = vrot.slane %v2920, 1
        %v3330 = vrot.slane %v2924, 1
        %v3331 = vsel %vm1093, %v3329, %v3330
        %v3332 = vrot.slane %v2930, 1
        %v3333 = vsel %vm1093, %v3330, %v3332
        %v3334 = vrot.slane %v2934, 1
        %v3335 = vrot.slane %v2940, 1
        %v3336 = vsel %vm1093, %v3334, %v3335
        %v3337 = vrot.slane %v2944, 1
        %v3338 = vsel %vm1093, %v3335, %v3337
        %v3339 = vrot.slane %v2950, 1
        %v3340 = vrot.slane %v2954, 1
        %v3341 = vsel %vm1093, %v3339, %v3340
        %v3342 = vrot.slane %v2960, 1
        %v3343 = vsel %vm1093, %v3340, %v3342
        %v3344 = vrot.slane %v2964, 1
        %v3345 = vrot.slane %v2970, 1
        %v3346 = vsel %vm1093, %v3344, %v3345
        %v3347 = vrot.slane %v2974, 1
        %v3348 = vsel %vm1093, %v3345, %v3347
        %v3349 = vrot.slane %v2980, 1
        %v3350 = vrot.slane %v2984, 1
        %v3351 = vsel %vm1093, %v3349, %v3350
        %v3352 = vrot.slane %v2990, 1
        %v3353 = vsel %vm1093, %v3350, %v3352
        %v3354 = vrot.slane %v2994, 1
        %v3355 = vrot.slane %v3000, 1
        %v3356 = vsel %vm1093, %v3354, %v3355
        %v3357 = vrot.slane %v3004, 1
        %v3358 = vsel %vm1093, %v3355, %v3357
        %v3389 = vadd.f32 %v3249, %v3311
        %v3390 = vadd.f32 %v3250, %v3313
        %v3391 = vadd.f32 %v3251, %v3312
        %v3392 = vadd.f32 %v3252, %v3316
        %v3393 = vadd.f32 %v3253, %v3318
        %v3394 = vadd.f32 %v3254, %v3317
        %v3395 = vadd.f32 %v3255, %v3321
        %v3396 = vadd.f32 %v3256, %v3323
        %v3397 = vadd.f32 %v3257, %v3322
        %v3398 = vadd.f32 %v3258, %v3326
        %v3399 = vadd.f32 %v3259, %v3328
        %v3400 = vadd.f32 %v3260, %v3327
        %v3401 = vadd.f32 %v3261, %v3331
        %v3402 = vadd.f32 %v3262, %v3333
        %v3403 = vadd.f32 %v3263, %v3332
        %v3404 = vadd.f32 %v3264, %v3336
        %v3405 = vadd.f32 %v3265, %v3338
        %v3406 = vadd.f32 %v3266, %v3337
        %v3407 = vadd.f32 %v3267, %v3341
        %v3408 = vadd.f32 %v3268, %v3343
        %v3409 = vadd.f32 %v3269, %v3342
        %v3410 = vadd.f32 %v3270, %v3346
        %v3411 = vadd.f32 %v3271, %v3348
        %v3412 = vadd.f32 %v3272, %v3347
        %v3413 = vadd.f32 %v3273, %v3351
        %v3414 = vadd.f32 %v3274, %v3353
        %v3415 = vadd.f32 %v3275, %v3352
        %v3416 = vadd.f32 %v3276, %v3356
        %v3417 = vadd.f32 %v3277, %v3358
        %v3418 = vadd.f32 %v3278, %v3357
        %3419 = vst [vmem:[#allocation4] sm:$0xff] %v3389
        %3420 = vst [vmem:[#allocation4 + $0x8] sm:$0xff] %v3390
        %3421 = vst [vmem:[#allocation4 + $0x10] sm:$0x3] %v3391
        %3422 = vst [vmem:[#allocation4 + $0x18] sm:$0xff] %v3392
        %3423 = vst [vmem:[#allocation4 + $0x20] sm:$0xff] %v3393
        %3424 = vst [vmem:[#allocation4 + $0x28] sm:$0x3] %v3394
        %3425 = vst [vmem:[#allocation4 + $0x30] sm:$0xff] %v3395
        %3426 = vst [vmem:[#allocation4 + $0x38] sm:$0xff] %v3396
        %3427 = vst [vmem:[#allocation4 + $0x40] sm:$0x3] %v3397
        %3428 = vst [vmem:[#allocation4 + $0x48] sm:$0xff] %v3398
        %3429 = vst [vmem:[#allocation4 + $0x50] sm:$0xff] %v3399
        %3430 = vst [vmem:[#allocation4 + $0x58] sm:$0x3] %v3400
        %3431 = vst [vmem:[#allocation4 + $0x60] sm:$0xff] %v3401
        %3432 = vst [vmem:[#allocation4 + $0x68] sm:$0xff] %v3402
        %3433 = vst [vmem:[#allocation4 + $0x70] sm:$0x3] %v3403
        %3434 = vst [vmem:[#allocation4 + $0x78] sm:$0xff] %v3404
        %3435 = vst [vmem:[#allocation4 + $0x80] sm:$0xff] %v3405
        %3436 = vst [vmem:[#allocation4 + $0x88] sm:$0x3] %v3406
        %3437 = vst [vmem:[#allocation4 + $0x90] sm:$0xff] %v3407
        %3438 = vst [vmem:[#allocation4 + $0x98] sm:$0xff] %v3408
        %3439 = vst [vmem:[#allocation4 + $0xa0] sm:$0x3] %v3409
        %3440 = vst [vmem:[#allocation4 + $0xa8] sm:$0xff] %v3410
        %3441 = vst [vmem:[#allocation4 + $0xb0] sm:$0xff] %v3411
        %3442 = vst [vmem:[#allocation4 + $0xb8] sm:$0x3] %v3412
        %3443 = vst [vmem:[#allocation4 + $0xc0] sm:$0xff] %v3413
        %3444 = vst [vmem:[#allocation4 + $0xc8] sm:$0xff] %v3414
        %3445 = vst [vmem:[#allocation4 + $0xd0] sm:$0x3] %v3415
        %3446 = vst [vmem:[#allocation4 + $0xd8] sm:$0xff] %v3416
        %3447 = vst [vmem:[#allocation4 + $0xe0] sm:$0xff] %v3417
        %3448 = vst [vmem:[#allocation4 + $0xe8] sm:$0x3] %v3418
        %v3449 = vld [vmem:[#allocation4] sm:$0xff]
        %v3450 = vld [vmem:[#allocation4 + $0x8] sm:$0xff]
        %v3451 = vld [vmem:[#allocation4 + $0x10] sm:$0x3]
        %v3452 = vld [vmem:[#allocation4 + $0x18] sm:$0xff]
        %v3453 = vld [vmem:[#allocation4 + $0x20] sm:$0xff]
        %v3454 = vld [vmem:[#allocation4 + $0x28] sm:$0x3]
        %v3455 = vld [vmem:[#allocation4 + $0x30] sm:$0xff]
        %v3456 = vld [vmem:[#allocation4 + $0x38] sm:$0xff]
        %v3457 = vld [vmem:[#allocation4 + $0x40] sm:$0x3]
        %v3458 = vld [vmem:[#allocation4 + $0x48] sm:$0xff]
        %v3459 = vld [vmem:[#allocation4 + $0x50] sm:$0xff]
        %v3460 = vld [vmem:[#allocation4 + $0x58] sm:$0x3]
        %v3461 = vld [vmem:[#allocation4 + $0x60] sm:$0xff]
        %v3462 = vld [vmem:[#allocation4 + $0x68] sm:$0xff]
        %v3463 = vld [vmem:[#allocation4 + $0x70] sm:$0x3]
        %v3464 = vld [vmem:[#allocation4 + $0x78] sm:$0xff]
        %v3465 = vld [vmem:[#allocation4 + $0x80] sm:$0xff]
        %v3466 = vld [vmem:[#allocation4 + $0x88] sm:$0x3]
        %v3467 = vld [vmem:[#allocation4 + $0x90] sm:$0xff]
        %v3468 = vld [vmem:[#allocation4 + $0x98] sm:$0xff]
        %v3469 = vld [vmem:[#allocation4 + $0xa0] sm:$0x3]
        %v3470 = vld [vmem:[#allocation4 + $0xa8] sm:$0xff]
        %v3471 = vld [vmem:[#allocation4 + $0xb0] sm:$0xff]
        %v3472 = vld [vmem:[#allocation4 + $0xb8] sm:$0x3]
        %v3473 = vld [vmem:[#allocation4 + $0xc0] sm:$0xff]
        %v3474 = vld [vmem:[#allocation4 + $0xc8] sm:$0xff]
        %v3475 = vld [vmem:[#allocation4 + $0xd0] sm:$0x3]
        %v3476 = vld [vmem:[#allocation4 + $0xd8] sm:$0xff]
        %v3477 = vld [vmem:[#allocation4 + $0xe0] sm:$0xff]
        %v3478 = vld [vmem:[#allocation4 + $0xe8] sm:$0x3]
        %v3509 = vrot.slane %v3041, 2
        %v3510 = vrot.slane %v3044, 2
        %v3511 = vsel %vm1294, %v3509, %v3510
        %v3512 = vrot.slane %v3049, 2
        %v3513 = vsel %vm1294, %v3510, %v3512
        %v3514 = vrot.slane %v3052, 2
        %v3515 = vrot.slane %v3057, 2
        %v3516 = vsel %vm1294, %v3514, %v3515
        %v3517 = vrot.slane %v3060, 2
        %v3518 = vsel %vm1294, %v3515, %v3517
        %v3519 = vrot.slane %v3065, 2
        %v3520 = vrot.slane %v3068, 2
        %v3521 = vsel %vm1294, %v3519, %v3520
        %v3522 = vrot.slane %v3073, 2
        %v3523 = vsel %vm1294, %v3520, %v3522
        %v3524 = vrot.slane %v3076, 2
        %v3525 = vrot.slane %v3081, 2
        %v3526 = vsel %vm1294, %v3524, %v3525
        %v3527 = vrot.slane %v3084, 2
        %v3528 = vsel %vm1294, %v3525, %v3527
        %v3529 = vrot.slane %v3089, 2
        %v3530 = vrot.slane %v3092, 2
        %v3531 = vsel %vm1294, %v3529, %v3530
        %v3532 = vrot.slane %v3097, 2
        %v3533 = vsel %vm1294, %v3530, %v3532
        %v3534 = vrot.slane %v3100, 2
        %v3535 = vrot.slane %v3105, 2
        %v3536 = vsel %vm1294, %v3534, %v3535
        %v3537 = vrot.slane %v3108, 2
        %v3538 = vsel %vm1294, %v3535, %v3537
        %v3539 = vrot.slane %v3113, 2
        %v3540 = vrot.slane %v3116, 2
        %v3541 = vsel %vm1294, %v3539, %v3540
        %v3542 = vrot.slane %v3121, 2
        %v3543 = vsel %vm1294, %v3540, %v3542
        %v3544 = vrot.slane %v3124, 2
        %v3545 = vrot.slane %v3129, 2
        %v3546 = vsel %vm1294, %v3544, %v3545
        %v3547 = vrot.slane %v3132, 2
        %v3548 = vsel %vm1294, %v3545, %v3547
        %v3549 = vrot.slane %v3137, 2
        %v3550 = vrot.slane %v3140, 2
        %v3551 = vsel %vm1294, %v3549, %v3550
        %v3552 = vrot.slane %v3145, 2
        %v3553 = vsel %vm1294, %v3550, %v3552
        %v3554 = vrot.slane %v3148, 2
        %v3555 = vrot.slane %v3153, 2
        %v3556 = vsel %vm1294, %v3554, %v3555
        %v3557 = vrot.slane %v3156, 2
        %v3558 = vsel %vm1294, %v3555, %v3557
        %v3589 = vadd.f32 %v3449, %v3511
        %v3590 = vadd.f32 %v3450, %v3513
        %v3591 = vadd.f32 %v3451, %v3512
        %v3592 = vadd.f32 %v3452, %v3516
        %v3593 = vadd.f32 %v3453, %v3518
        %v3594 = vadd.f32 %v3454, %v3517
        %v3595 = vadd.f32 %v3455, %v3521
        %v3596 = vadd.f32 %v3456, %v3523
        %v3597 = vadd.f32 %v3457, %v3522
        %v3598 = vadd.f32 %v3458, %v3526
        %v3599 = vadd.f32 %v3459, %v3528
        %v3600 = vadd.f32 %v3460, %v3527
        %v3601 = vadd.f32 %v3461, %v3531
        %v3602 = vadd.f32 %v3462, %v3533
        %v3603 = vadd.f32 %v3463, %v3532
        %v3604 = vadd.f32 %v3464, %v3536
        %v3605 = vadd.f32 %v3465, %v3538
        %v3606 = vadd.f32 %v3466, %v3537
        %v3607 = vadd.f32 %v3467, %v3541
        %v3608 = vadd.f32 %v3468, %v3543
        %v3609 = vadd.f32 %v3469, %v3542
        %v3610 = vadd.f32 %v3470, %v3546
        %v3611 = vadd.f32 %v3471, %v3548
        %v3612 = vadd.f32 %v3472, %v3547
        %v3613 = vadd.f32 %v3473, %v3551
        %v3614 = vadd.f32 %v3474, %v3553
        %v3615 = vadd.f32 %v3475, %v3552
        %v3616 = vadd.f32 %v3476, %v3556
        %v3617 = vadd.f32 %v3477, %v3558
        %v3618 = vadd.f32 %v3478, %v3557
        %3619 = vst [vmem:[#allocation4] sm:$0xff] %v3589
        %3620 = vst [vmem:[#allocation4 + $0x8] sm:$0xff] %v3590
        %3621 = vst [vmem:[#allocation4 + $0x10] sm:$0x3] %v3591
        %3622 = vst [vmem:[#allocation4 + $0x18] sm:$0xff] %v3592
        %3623 = vst [vmem:[#allocation4 + $0x20] sm:$0xff] %v3593
        %3624 = vst [vmem:[#allocation4 + $0x28] sm:$0x3] %v3594
        %3625 = vst [vmem:[#allocation4 + $0x30] sm:$0xff] %v3595
        %3626 = vst [vmem:[#allocation4 + $0x38] sm:$0xff] %v3596
        %3627 = vst [vmem:[#allocation4 + $0x40] sm:$0x3] %v3597
        %3628 = vst [vmem:[#allocation4 + $0x48] sm:$0xff] %v3598
        %3629 = vst [vmem:[#allocation4 + $0x50] sm:$0xff] %v3599
        %3630 = vst [vmem:[#allocation4 + $0x58] sm:$0x3] %v3600
        %3631 = vst [vmem:[#allocation4 + $0x60] sm:$0xff] %v3601
        %3632 = vst [vmem:[#allocation4 + $0x68] sm:$0xff] %v3602
        %3633 = vst [vmem:[#allocation4 + $0x70] sm:$0x3] %v3603
        %3634 = vst [vmem:[#allocation4 + $0x78] sm:$0xff] %v3604
        %3635 = vst [vmem:[#allocation4 + $0x80] sm:$0xff] %v3605
        %3636 = vst [vmem:[#allocation4 + $0x88] sm:$0x3] %v3606
        %3637 = vst [vmem:[#allocation4 + $0x90] sm:$0xff] %v3607
        %3638 = vst [vmem:[#allocation4 + $0x98] sm:$0xff] %v3608
        %3639 = vst [vmem:[#allocation4 + $0xa0] sm:$0x3] %v3609
        %3640 = vst [vmem:[#allocation4 + $0xa8] sm:$0xff] %v3610
        %3641 = vst [vmem:[#allocation4 + $0xb0] sm:$0xff] %v3611
        %3642 = vst [vmem:[#allocation4 + $0xb8] sm:$0x3] %v3612
        %3643 = vst [vmem:[#allocation4 + $0xc0] sm:$0xff] %v3613
        %3644 = vst [vmem:[#allocation4 + $0xc8] sm:$0xff] %v3614
        %3645 = vst [vmem:[#allocation4 + $0xd0] sm:$0x3] %v3615
        %3646 = vst [vmem:[#allocation4 + $0xd8] sm:$0xff] %v3616
        %3647 = vst [vmem:[#allocation4 + $0xe0] sm:$0xff] %v3617
        %3648 = vst [vmem:[#allocation4 + $0xe8] sm:$0x3] %v3618
        %v3649 = vld [vmem:[#allocation4] sm:$0xff]
        %v3650 = vld [vmem:[#allocation4 + $0x8] sm:$0xff]
        %v3651 = vld [vmem:[#allocation4 + $0x10] sm:$0x3]
        %v3652 = vld [vmem:[#allocation4 + $0x18] sm:$0xff]
        %v3653 = vld [vmem:[#allocation4 + $0x20] sm:$0xff]
        %v3654 = vld [vmem:[#allocation4 + $0x28] sm:$0x3]
        %v3655 = vld [vmem:[#allocation4 + $0x30] sm:$0xff]
        %v3656 = vld [vmem:[#allocation4 + $0x38] sm:$0xff]
        %v3657 = vld [vmem:[#allocation4 + $0x40] sm:$0x3]
        %v3658 = vld [vmem:[#allocation4 + $0x48] sm:$0xff]
        %v3659 = vld [vmem:[#allocation4 + $0x50] sm:$0xff]
        %v3660 = vld [vmem:[#allocation4 + $0x58] sm:$0x3]
        %v3661 = vld [vmem:[#allocation4 + $0x60] sm:$0xff]
        %v3662 = vld [vmem:[#allocation4 + $0x68] sm:$0xff]
        %v3663 = vld [vmem:[#allocation4 + $0x70] sm:$0x3]
        %v3664 = vld [vmem:[#allocation4 + $0x78] sm:$0xff]
        %v3665 = vld [vmem:[#allocation4 + $0x80] sm:$0xff]
        %v3666 = vld [vmem:[#allocation4 + $0x88] sm:$0x3]
        %v3667 = vld [vmem:[#allocation4 + $0x90] sm:$0xff]
        %v3668 = vld [vmem:[#allocation4 + $0x98] sm:$0xff]
        %v3669 = vld [vmem:[#allocation4 + $0xa0] sm:$0x3]
        %v3670 = vld [vmem:[#allocation4 + $0xa8] sm:$0xff]
        %v3671 = vld [vmem:[#allocation4 + $0xb0] sm:$0xff]
        %v3672 = vld [vmem:[#allocation4 + $0xb8] sm:$0x3]
        %v3673 = vld [vmem:[#allocation4 + $0xc0] sm:$0xff]
        %v3674 = vld [vmem:[#allocation4 + $0xc8] sm:$0xff]
        %v3675 = vld [vmem:[#allocation4 + $0xd0] sm:$0x3]
        %v3676 = vld [vmem:[#allocation4 + $0xd8] sm:$0xff]
        %v3677 = vld [vmem:[#allocation4 + $0xe0] sm:$0xff]
        %v3678 = vld [vmem:[#allocation4 + $0xe8] sm:$0x3]
        %v3679 = vld [vmem:[%s2] sm:$0x1]
        %v3681 = vlaneseq
        %v3682 = vshrl.u32 %v3681, 7
        %v3683 = vsub.s32 0, %v3682
        %v3684 = vrot.slane %v3679, %v3683
        %v3686 = vadd.f32 %v3649, %v3684
        %v3687 = vadd.f32 %v3650, %v3684
        %v3688 = vadd.f32 %v3651, %v3684
        %v3689 = vadd.f32 %v3652, %v3684
        %v3690 = vadd.f32 %v3653, %v3684
        %v3691 = vadd.f32 %v3654, %v3684
        %v3692 = vadd.f32 %v3655, %v3684
        %v3693 = vadd.f32 %v3656, %v3684
        %v3694 = vadd.f32 %v3657, %v3684
        %v3695 = vadd.f32 %v3658, %v3684
        %v3696 = vadd.f32 %v3659, %v3684
        %v3697 = vadd.f32 %v3660, %v3684
        %v3698 = vadd.f32 %v3661, %v3684
        %v3699 = vadd.f32 %v3662, %v3684
        %v3700 = vadd.f32 %v3663, %v3684
        %v3701 = vadd.f32 %v3664, %v3684
        %v3702 = vadd.f32 %v3665, %v3684
        %v3703 = vadd.f32 %v3666, %v3684
        %v3704 = vadd.f32 %v3667, %v3684
        %v3705 = vadd.f32 %v3668, %v3684
        %v3706 = vadd.f32 %v3669, %v3684
        %v3707 = vadd.f32 %v3670, %v3684
        %v3708 = vadd.f32 %v3671, %v3684
        %v3709 = vadd.f32 %v3672, %v3684
        %v3710 = vadd.f32 %v3673, %v3684
        %v3711 = vadd.f32 %v3674, %v3684
        %v3712 = vadd.f32 %v3675, %v3684
        %v3713 = vadd.f32 %v3676, %v3684
        %v3714 = vadd.f32 %v3677, %v3684
        %v3715 = vadd.f32 %v3678, %v3684
        %v3716 = vmax.f32 %v3686, 0.0
        %v3717 = vmax.f32 %v3687, 0.0
        %v3718 = vmax.f32 %v3688, 0.0
        %v3719 = vmax.f32 %v3689, 0.0
        %v3720 = vmax.f32 %v3690, 0.0
        %v3721 = vmax.f32 %v3691, 0.0
        %v3722 = vmax.f32 %v3692, 0.0
        %v3723 = vmax.f32 %v3693, 0.0
        %v3724 = vmax.f32 %v3694, 0.0
        %v3725 = vmax.f32 %v3695, 0.0
        %v3726 = vmax.f32 %v3696, 0.0
        %v3727 = vmax.f32 %v3697, 0.0
        %v3728 = vmax.f32 %v3698, 0.0
        %v3729 = vmax.f32 %v3699, 0.0
        %v3730 = vmax.f32 %v3700, 0.0
        %v3731 = vmax.f32 %v3701, 0.0
        %v3732 = vmax.f32 %v3702, 0.0
        %v3733 = vmax.f32 %v3703, 0.0
        %v3734 = vmax.f32 %v3704, 0.0
        %v3735 = vmax.f32 %v3705, 0.0
        %v3736 = vmax.f32 %v3706, 0.0
        %v3737 = vmax.f32 %v3707, 0.0
        %v3738 = vmax.f32 %v3708, 0.0
        %v3739 = vmax.f32 %v3709, 0.0
        %v3740 = vmax.f32 %v3710, 0.0
        %v3741 = vmax.f32 %v3711, 0.0
        %v3742 = vmax.f32 %v3712, 0.0
        %v3743 = vmax.f32 %v3713, 0.0
        %v3744 = vmax.f32 %v3714, 0.0
        %v3745 = vmax.f32 %v3715, 0.0
        %s3746 = ssub.s32 %s260, 1
        %v3747 = vstv %s3746
        %v3748 = vadd.s32 %v3747, 1
        %v3749 = vadd.s32 %v3747, 2
        %v3750 = vadd.s32 %v3747, 3
        %v3751 = vadd.s32 %v3747, 4
        %v3752 = vadd.s32 %v3747, 5
        %v3753 = vadd.s32 %v3747, 6
        %v3754 = vadd.s32 %v3747, 7
        %v3755 = vadd.s32 %v3747, 8
        %v3756 = vadd.s32 %v3747, 9
        %v3757 = vlaneseq
        %v3758 = vshrl.u32 %v3757, 7
        %v3759 = vadd.s32 %v3758, 8
        %v3760 = vadd.s32 %v3758, 16
        %v3761 = vsub.s32 %v3758, 1
        %v3762 = vsub.s32 %v3759, 1
        %v3763 = vsub.s32 %v3760, 1
        %vm3764 = vcmp.ge.s32.totalorder %v3747, 0
        %vm3765 = vcmp.ge.s32.totalorder %v3748, 0
        %vm3766 = vcmp.ge.s32.totalorder %v3749, 0
        %vm3767 = vcmp.ge.s32.totalorder %v3750, 0
        %vm3768 = vcmp.ge.s32.totalorder %v3751, 0
        %vm3769 = vcmp.ge.s32.totalorder %v3752, 0
        %vm3770 = vcmp.ge.s32.totalorder %v3753, 0
        %vm3771 = vcmp.ge.s32.totalorder %v3754, 0
        %vm3772 = vcmp.ge.s32.totalorder %v3755, 0
        %vm3773 = vcmp.ge.s32.totalorder %v3756, 0
        %vm3774 = vcmp.lt.s32.totalorder %v3747, 16
        %vm3775 = vcmp.lt.s32.totalorder %v3748, 16
        %vm3776 = vcmp.lt.s32.totalorder %v3749, 16
        %vm3777 = vcmp.lt.s32.totalorder %v3750, 16
        %vm3778 = vcmp.lt.s32.totalorder %v3751, 16
        %vm3779 = vcmp.lt.s32.totalorder %v3752, 16
        %vm3780 = vcmp.lt.s32.totalorder %v3753, 16
        %vm3781 = vcmp.lt.s32.totalorder %v3754, 16
        %vm3782 = vcmp.lt.s32.totalorder %v3755, 16
        %vm3783 = vcmp.lt.s32.totalorder %v3756, 16
        %vm3784 = vmand %vm3764, %vm3774
        %vm3785 = vmand %vm3765, %vm3775
        %vm3786 = vmand %vm3766, %vm3776
        %vm3787 = vmand %vm3767, %vm3777
        %vm3788 = vmand %vm3768, %vm3778
        %vm3789 = vmand %vm3769, %vm3779
        %vm3790 = vmand %vm3770, %vm3780
        %vm3791 = vmand %vm3771, %vm3781
        %vm3792 = vmand %vm3772, %vm3782
        %vm3793 = vmand %vm3773, %vm3783
        %vm3794 = vcmp.ge.s32.totalorder %v3761, 0
        %vm3795 = vcmp.ge.s32.totalorder %v3762, 0
        %vm3796 = vcmp.ge.s32.totalorder %v3763, 0
        %vm3797 = vmand %vm3784, %vm3794
        %vm3798 = vmand %vm3784, %vm3795
        %vm3799 = vmand %vm3784, %vm3796
        %vm3800 = vmand %vm3785, %vm3794
        %vm3801 = vmand %vm3785, %vm3795
        %vm3802 = vmand %vm3785, %vm3796
        %vm3803 = vmand %vm3786, %vm3794
        %vm3804 = vmand %vm3786, %vm3795
        %vm3805 = vmand %vm3786, %vm3796
        %vm3806 = vmand %vm3787, %vm3794
        %vm3807 = vmand %vm3787, %vm3795
        %vm3808 = vmand %vm3787, %vm3796
        %vm3809 = vmand %vm3788, %vm3794
        %vm3810 = vmand %vm3788, %vm3795
        %vm3811 = vmand %vm3788, %vm3796
        %vm3812 = vmand %vm3789, %vm3794
        %vm3813 = vmand %vm3789, %vm3795
        %vm3814 = vmand %vm3789, %vm3796
        %vm3815 = vmand %vm3790, %vm3794
        %vm3816 = vmand %vm3790, %vm3795
        %vm3817 = vmand %vm3790, %vm3796
        %vm3818 = vmand %vm3791, %vm3794
        %vm3819 = vmand %vm3791, %vm3795
        %vm3820 = vmand %vm3791, %vm3796
        %vm3821 = vmand %vm3792, %vm3794
        %vm3822 = vmand %vm3792, %vm3795
        %vm3823 = vmand %vm3792, %vm3796
        %vm3824 = vmand %vm3793, %vm3794
        %vm3825 = vmand %vm3793, %vm3795
        %vm3826 = vmand %vm3793, %vm3796
        %vm3827 = vcmp.lt.s32.totalorder %v3761, 16
        %vm3828 = vcmp.lt.s32.totalorder %v3762, 16
        %vm3829 = vcmp.lt.s32.totalorder %v3763, 16
        %vm3830 = vmand %vm3797, %vm3827
        %vm3831 = vmand %vm3798, %vm3828
        %vm3832 = vmand %vm3799, %vm3829
        %vm3833 = vmand %vm3800, %vm3827
        %vm3834 = vmand %vm3801, %vm3828
        %vm3835 = vmand %vm3802, %vm3829
        %vm3836 = vmand %vm3803, %vm3827
        %vm3837 = vmand %vm3804, %vm3828
        %vm3838 = vmand %vm3805, %vm3829
        %vm3839 = vmand %vm3806, %vm3827
        %vm3840 = vmand %vm3807, %vm3828
        %vm3841 = vmand %vm3808, %vm3829
        %vm3842 = vmand %vm3809, %vm3827
        %vm3843 = vmand %vm3810, %vm3828
        %vm3844 = vmand %vm3811, %vm3829
        %vm3845 = vmand %vm3812, %vm3827
        %vm3846 = vmand %vm3813, %vm3828
        %vm3847 = vmand %vm3814, %vm3829
        %vm3848 = vmand %vm3815, %vm3827
        %vm3849 = vmand %vm3816, %vm3828
        %vm3850 = vmand %vm3817, %vm3829
        %vm3851 = vmand %vm3818, %vm3827
        %vm3852 = vmand %vm3819, %vm3828
        %vm3853 = vmand %vm3820, %vm3829
        %vm3854 = vmand %vm3821, %vm3827
        %vm3855 = vmand %vm3822, %vm3828
        %vm3856 = vmand %vm3823, %vm3829
        %vm3857 = vmand %vm3824, %vm3827
        %vm3858 = vmand %vm3825, %vm3828
        %vm3859 = vmand %vm3826, %vm3829
        %v3860 = vsel %vm3830, %v3716, 0.0
        %v3861 = vsel %vm3831, %v3717, 0.0
        %v3862 = vsel %vm3832, %v3718, 0.0
        %v3863 = vsel %vm3833, %v3719, 0.0
        %v3864 = vsel %vm3834, %v3720, 0.0
        %v3865 = vsel %vm3835, %v3721, 0.0
        %v3866 = vsel %vm3836, %v3722, 0.0
        %v3867 = vsel %vm3837, %v3723, 0.0
        %v3868 = vsel %vm3838, %v3724, 0.0
        %v3869 = vsel %vm3839, %v3725, 0.0
        %v3870 = vsel %vm3840, %v3726, 0.0
        %v3871 = vsel %vm3841, %v3727, 0.0
        %v3872 = vsel %vm3842, %v3728, 0.0
        %v3873 = vsel %vm3843, %v3729, 0.0
        %v3874 = vsel %vm3844, %v3730, 0.0
        %v3875 = vsel %vm3845, %v3731, 0.0
        %v3876 = vsel %vm3846, %v3732, 0.0
        %v3877 = vsel %vm3847, %v3733, 0.0
        %v3878 = vsel %vm3848, %v3734, 0.0
        %v3879 = vsel %vm3849, %v3735, 0.0
        %v3880 = vsel %vm3850, %v3736, 0.0
        %v3881 = vsel %vm3851, %v3737, 0.0
        %v3882 = vsel %vm3852, %v3738, 0.0
        %v3883 = vsel %vm3853, %v3739, 0.0
        %v3884 = vsel %vm3854, %v3740, 0.0
        %v3885 = vsel %vm3855, %v3741, 0.0
        %v3886 = vsel %vm3856, %v3742, 0.0
        %v3887 = vsel %vm3857, %v3743, 0.0
        %v3888 = vsel %vm3858, %v3744, 0.0
        %v3889 = vsel %vm3859, %v3745, 0.0
        %v3890 = vpack.c.bf16 %v3861, %v3860
        %v3891 = vpack.c.bf16 %v3862, %v3862
        %v3892 = vpack.c.bf16 %v3864, %v3863
        %v3893 = vpack.c.bf16 %v3865, %v3865
        %v3894 = vpack.c.bf16 %v3867, %v3866
        %v3895 = vpack.c.bf16 %v3868, %v3868
        %v3896 = vpack.c.bf16 %v3870, %v3869
        %v3897 = vpack.c.bf16 %v3871, %v3871
        %v3898 = vpack.c.bf16 %v3873, %v3872
        %v3899 = vpack.c.bf16 %v3874, %v3874
        %v3900 = vpack.c.bf16 %v3876, %v3875
        %v3901 = vpack.c.bf16 %v3877, %v3877
        %v3902 = vpack.c.bf16 %v3879, %v3878
        %v3903 = vpack.c.bf16 %v3880, %v3880
        %v3904 = vpack.c.bf16 %v3882, %v3881
        %v3905 = vpack.c.bf16 %v3883, %v3883
        %v3906 = vpack.c.bf16 %v3885, %v3884
        %v3907 = vpack.c.bf16 %v3886, %v3886
        %v3908 = vpack.c.bf16 %v3888, %v3887
        %v3909 = vpack.c.bf16 %v3889, %v3889
        %v3930 = vunpack.c.l.b16 %v3890
        %v3931 = vunpack.c.h.b16 %v3890
        %v3932 = vunpack.c.l.b16 %v3891
        %v3933 = vunpack.c.l.b16 %v3892
        %v3934 = vunpack.c.h.b16 %v3892
        %v3935 = vunpack.c.l.b16 %v3893
        %v3936 = vunpack.c.l.b16 %v3894
        %v3937 = vunpack.c.h.b16 %v3894
        %v3938 = vunpack.c.l.b16 %v3895
        %v3939 = vunpack.c.l.b16 %v3896
        %v3940 = vunpack.c.h.b16 %v3896
        %v3941 = vunpack.c.l.b16 %v3897
        %v3942 = vunpack.c.l.b16 %v3898
        %v3943 = vunpack.c.h.b16 %v3898
        %v3944 = vunpack.c.l.b16 %v3899
        %v3945 = vunpack.c.l.b16 %v3900
        %v3946 = vunpack.c.h.b16 %v3900
        %v3947 = vunpack.c.l.b16 %v3901
        %v3948 = vunpack.c.l.b16 %v3902
        %v3949 = vunpack.c.h.b16 %v3902
        %v3950 = vunpack.c.l.b16 %v3903
        %v3951 = vunpack.c.l.b16 %v3904
        %v3952 = vunpack.c.h.b16 %v3904
        %v3953 = vunpack.c.l.b16 %v3905
        %v3954 = vunpack.c.l.b16 %v3906
        %v3955 = vunpack.c.h.b16 %v3906
        %v3956 = vunpack.c.l.b16 %v3907
        %v3957 = vunpack.c.l.b16 %v3908
        %v3958 = vunpack.c.h.b16 %v3908
        %v3959 = vunpack.c.l.b16 %v3909
        %v3960 = vpack.c.b16 %v3930, %v3930
        %v3961 = vpack.c.b16 %v3931, %v3931
        %v3962 = vpack.c.b16 %v3932, %v3932
        %v3963 = vpack.c.b16 %v3933, %v3933
        %v3964 = vpack.c.b16 %v3934, %v3934
        %v3965 = vpack.c.b16 %v3935, %v3935
        %v3966 = vpack.c.b16 %v3936, %v3936
        %v3967 = vpack.c.b16 %v3937, %v3937
        %v3968 = vpack.c.b16 %v3938, %v3938
        %v3969 = vpack.c.b16 %v3939, %v3939
        %v3970 = vpack.c.b16 %v3940, %v3940
        %v3971 = vpack.c.b16 %v3941, %v3941
        %v3972 = vpack.c.b16 %v3942, %v3942
        %v3973 = vpack.c.b16 %v3943, %v3943
        %v3974 = vpack.c.b16 %v3944, %v3944
        %v3975 = vpack.c.b16 %v3945, %v3945
        %v3976 = vpack.c.b16 %v3946, %v3946
        %v3977 = vpack.c.b16 %v3947, %v3947
        %v3978 = vpack.c.b16 %v3948, %v3948
        %v3979 = vpack.c.b16 %v3949, %v3949
        %v3980 = vpack.c.b16 %v3950, %v3950
        %v3981 = vpack.c.b16 %v3951, %v3951
        %v3982 = vpack.c.b16 %v3952, %v3952
        %v3983 = vpack.c.b16 %v3953, %v3953
        %v3984 = vpack.c.b16 %v3954, %v3954
        %v3985 = vpack.c.b16 %v3955, %v3955
        %v3986 = vpack.c.b16 %v3956, %v3956
        %v3987 = vpack.c.b16 %v3957, %v3957
        %v3988 = vpack.c.b16 %v3958, %v3958
        %v3989 = vpack.c.b16 %v3959, %v3959
        %4020 = vst [vmem:[#allocation3] sm:$0xf] %v3960
        %4021 = vst [vmem:[#allocation3 + $0x4] sm:$0xf] %v3961
        %4022 = vst [vmem:[#allocation3 + $0x8] sm:$0x1] %v3962
        %4023 = vst [vmem:[#allocation3 + $0xc] sm:$0xf] %v3963
        %4024 = vst [vmem:[#allocation3 + $0x10] sm:$0xf] %v3964
        %4025 = vst [vmem:[#allocation3 + $0x14] sm:$0x1] %v3965
        %4026 = vst [vmem:[#allocation3 + $0x18] sm:$0xf] %v3966
        %4027 = vst [vmem:[#allocation3 + $0x1c] sm:$0xf] %v3967
        %4028 = vst [vmem:[#allocation3 + $0x20] sm:$0x1] %v3968
        %4029 = vst [vmem:[#allocation3 + $0x24] sm:$0xf] %v3969
        %4030 = vst [vmem:[#allocation3 + $0x28] sm:$0xf] %v3970
        %4031 = vst [vmem:[#allocation3 + $0x2c] sm:$0x1] %v3971
        %4032 = vst [vmem:[#allocation3 + $0x30] sm:$0xf] %v3972
        %4033 = vst [vmem:[#allocation3 + $0x34] sm:$0xf] %v3973
        %4034 = vst [vmem:[#allocation3 + $0x38] sm:$0x1] %v3974
        %4035 = vst [vmem:[#allocation3 + $0x3c] sm:$0xf] %v3975
        %4036 = vst [vmem:[#allocation3 + $0x40] sm:$0xf] %v3976
        %4037 = vst [vmem:[#allocation3 + $0x44] sm:$0x1] %v3977
        %4038 = vst [vmem:[#allocation3 + $0x48] sm:$0xf] %v3978
        %4039 = vst [vmem:[#allocation3 + $0x4c] sm:$0xf] %v3979
        %4040 = vst [vmem:[#allocation3 + $0x50] sm:$0x1] %v3980
        %4041 = vst [vmem:[#allocation3 + $0x54] sm:$0xf] %v3981
        %4042 = vst [vmem:[#allocation3 + $0x58] sm:$0xf] %v3982
        %4043 = vst [vmem:[#allocation3 + $0x5c] sm:$0x1] %v3983
        %4044 = vst [vmem:[#allocation3 + $0x60] sm:$0xf] %v3984
        %4045 = vst [vmem:[#allocation3 + $0x64] sm:$0xf] %v3985
        %4046 = vst [vmem:[#allocation3 + $0x68] sm:$0x1] %v3986
        %4047 = vst [vmem:[#allocation3 + $0x6c] sm:$0xf] %v3987
        %4048 = vst [vmem:[#allocation3 + $0x70] sm:$0xf] %v3988
        %4049 = vst [vmem:[#allocation3 + $0x74] sm:$0x1] %v3989
        %4050 = vst [vmem:[#allocation3 + $0x8] sm:$0xe] 0
        %4051 = vst [vmem:[#allocation3 + $0x14] sm:$0xe] 0
        %4052 = vst [vmem:[#allocation3 + $0x20] sm:$0xe] 0
        %4053 = vst [vmem:[#allocation3 + $0x2c] sm:$0xe] 0
        %4054 = vst [vmem:[#allocation3 + $0x38] sm:$0xe] 0
        %4055 = vst [vmem:[#allocation3 + $0x44] sm:$0xe] 0
        %4056 = vst [vmem:[#allocation3 + $0x50] sm:$0xe] 0
        %4057 = vst [vmem:[#allocation3 + $0x5c] sm:$0xe] 0
        %4058 = vst [vmem:[#allocation3 + $0x68] sm:$0xe] 0
        %4059 = vst [vmem:[#allocation3 + $0x74] sm:$0xe] 0
        %4060 = vst [vmem:[#allocation5] sm:$0xff] 0.0
        %4061 = vst [vmem:[#allocation5 + $0x8] sm:$0xff] 0.0
        %4062 = vst [vmem:[#allocation5 + $0x10] sm:$0xff] 0.0
        %4063 = vst [vmem:[#allocation5 + $0x18] sm:$0xff] 0.0
        %4064 = vst [vmem:[#allocation5 + $0x20] sm:$0xff] 0.0
        %4065 = vst [vmem:[#allocation5 + $0x28] sm:$0xff] 0.0
        %4066 = vst [vmem:[#allocation5 + $0x30] sm:$0xff] 0.0
        %4067 = vst [vmem:[#allocation5 + $0x38] sm:$0xff] 0.0
        %4068 = vst [vmem:[#allocation5 + $0x40] sm:$0xff] 0.0
        %4069 = vst [vmem:[#allocation5 + $0x48] sm:$0xff] 0.0
        %4070 = vst [vmem:[#allocation5 + $0x50] sm:$0xff] 0.0
        %4071 = vst [vmem:[#allocation5 + $0x58] sm:$0xff] 0.0
        %4072 = vst [vmem:[#allocation5 + $0x60] sm:$0xff] 0.0
        %4073 = vst [vmem:[#allocation5 + $0x68] sm:$0xff] 0.0
        %4074 = vst [vmem:[#allocation5 + $0x70] sm:$0xff] 0.0
        %4075 = vst [vmem:[#allocation5 + $0x78] sm:$0xff] 0.0
        %v4076 = vld [vmem:[#allocation3] sm:$0xf]
        %v4077 = vld [vmem:[#allocation3 + $0x4] sm:$0xf]
        %v4078 = vld [vmem:[#allocation3 + $0x8] sm:$0xf]
        %v4079 = vld [vmem:[#allocation3 + $0xc] sm:$0xf]
        %v4080 = vld [vmem:[#allocation3 + $0x10] sm:$0xf]
        %v4081 = vld [vmem:[#allocation3 + $0x14] sm:$0xf]
        %v4082 = vld [vmem:[#allocation3 + $0x18] sm:$0xf]
        %v4083 = vld [vmem:[#allocation3 + $0x1c] sm:$0xf]
        %v4084 = vld [vmem:[#allocation3 + $0x20] sm:$0xf]
        %v4085 = vld [vmem:[#allocation3 + $0x24] sm:$0xf]
        %v4086 = vld [vmem:[#allocation3 + $0x28] sm:$0xf]
        %v4087 = vld [vmem:[#allocation3 + $0x2c] sm:$0xf]
        %v4088 = vld [vmem:[#allocation3 + $0x30] sm:$0xf]
        %v4089 = vld [vmem:[#allocation3 + $0x34] sm:$0xf]
        %v4090 = vld [vmem:[#allocation3 + $0x38] sm:$0xf]
        %v4091 = vld [vmem:[#allocation3 + $0x3c] sm:$0xf]
        %v4092 = vld [vmem:[#allocation3 + $0x40] sm:$0xf]
        %v4093 = vld [vmem:[#allocation3 + $0x44] sm:$0xf]
        %v4094 = vld [vmem:[#allocation3 + $0x48] sm:$0xf]
        %v4095 = vld [vmem:[#allocation3 + $0x4c] sm:$0xf]
        %v4096 = vld [vmem:[#allocation3 + $0x50] sm:$0xf]
        %v4097 = vld [vmem:[#allocation3 + $0x54] sm:$0xf]
        %v4098 = vld [vmem:[#allocation3 + $0x58] sm:$0xf]
        %v4099 = vld [vmem:[#allocation3 + $0x5c] sm:$0xf]
        %v4100 = vld [vmem:[#allocation10] sm:$0xff]
        %v4101 = vld [vmem:[#allocation10 + $0x8] sm:$0xf]
        %v4102 = vld [vmem:[#allocation10 + $0xc] sm:$0xff]
        %v4103 = vld [vmem:[#allocation10 + $0x14] sm:$0xf]
        %v4104 = vld [vmem:[#allocation10 + $0x18] sm:$0xff]
        %v4105 = vld [vmem:[#allocation10 + $0x20] sm:$0xf]
        %v4106 = vld [vmem:[#allocation10 + $0x24] sm:$0xff]
        %v4107 = vld [vmem:[#allocation10 + $0x2c] sm:$0xf]
        %v4108 = vld [vmem:[#allocation10 + $0x30] sm:$0xff]
        %v4109 = vld [vmem:[#allocation10 + $0x38] sm:$0xf]
        %v4110 = vld [vmem:[#allocation10 + $0x3c] sm:$0xff]
        %v4111 = vld [vmem:[#allocation10 + $0x44] sm:$0xf]
        %v4112 = vld [vmem:[#allocation10 + $0x48] sm:$0xff]
        %v4113 = vld [vmem:[#allocation10 + $0x50] sm:$0xf]
        %v4114 = vld [vmem:[#allocation10 + $0x54] sm:$0xff]
        %v4115 = vld [vmem:[#allocation10 + $0x5c] sm:$0xf]
        %v4116 = vld [vmem:[#allocation10 + $0x60] sm:$0xff]
        %v4117 = vld [vmem:[#allocation10 + $0x68] sm:$0xf]
        %v4118 = vld [vmem:[#allocation10 + $0x6c] sm:$0xff]
        %v4119 = vld [vmem:[#allocation10 + $0x74] sm:$0xf]
        %v4120 = vld [vmem:[#allocation10 + $0x78] sm:$0xff]
        %v4121 = vld [vmem:[#allocation10 + $0x80] sm:$0xf]
        %v4122 = vld [vmem:[#allocation10 + $0x84] sm:$0xff]
        %v4123 = vld [vmem:[#allocation10 + $0x8c] sm:$0xf]
        %v4124 = vld [vmem:[#allocation10 + $0x90] sm:$0xff]
        %v4125 = vld [vmem:[#allocation10 + $0x98] sm:$0xf]
        %v4126 = vld [vmem:[#allocation10 + $0x9c] sm:$0xff]
        %v4127 = vld [vmem:[#allocation10 + $0xa4] sm:$0xf]
        %v4128 = vld [vmem:[#allocation10 + $0xa8] sm:$0xff]
        %v4129 = vld [vmem:[#allocation10 + $0xb0] sm:$0xf]
        %v4130 = vld [vmem:[#allocation10 + $0xb4] sm:$0xff]
        %v4131 = vld [vmem:[#allocation10 + $0xbc] sm:$0xf]
        %v4156 = vunpack.c.l.b16 %v4076
        %v4157 = vunpack.c.l.b16 %v4077
        %v4158 = vunpack.c.l.b16 %v4078
        %v4159 = vunpack.c.l.b16 %v4079
        %v4160 = vunpack.c.l.b16 %v4080
        %v4161 = vunpack.c.l.b16 %v4081
        %v4162 = vunpack.c.l.b16 %v4082
        %v4163 = vunpack.c.l.b16 %v4083
        %v4164 = vunpack.c.l.b16 %v4084
        %v4165 = vunpack.c.l.b16 %v4085
        %v4166 = vunpack.c.l.b16 %v4086
        %v4167 = vunpack.c.l.b16 %v4087
        %v4168 = vunpack.c.l.b16 %v4088
        %v4169 = vunpack.c.l.b16 %v4089
        %v4170 = vunpack.c.l.b16 %v4090
        %v4171 = vunpack.c.l.b16 %v4091
        %v4172 = vunpack.c.l.b16 %v4092
        %v4173 = vunpack.c.l.b16 %v4093
        %v4174 = vunpack.c.l.b16 %v4094
        %v4175 = vunpack.c.l.b16 %v4095
        %v4176 = vunpack.c.l.b16 %v4096
        %v4177 = vunpack.c.l.b16 %v4097
        %v4178 = vunpack.c.l.b16 %v4098
        %v4179 = vunpack.c.l.b16 %v4099
        %v4180 = vpack.c.b16 %v4157, %v4156
        %v4181 = vpack.c.b16 %v4159, %v4158
        %v4182 = vpack.c.b16 %v4161, %v4160
        %v4183 = vpack.c.b16 %v4163, %v4162
        %v4184 = vpack.c.b16 %v4165, %v4164
        %v4185 = vpack.c.b16 %v4167, %v4166
        %v4186 = vpack.c.b16 %v4169, %v4168
        %v4187 = vpack.c.b16 %v4171, %v4170
        %v4188 = vpack.c.b16 %v4173, %v4172
        %v4189 = vpack.c.b16 %v4175, %v4174
        %v4190 = vpack.c.b16 %v4177, %v4176
        %v4191 = vpack.c.b16 %v4179, %v4178
        %v4236 = vunpack.c.l.b16 %v4100
        %v4237 = vunpack.c.h.b16 %v4100
        %v4238 = vunpack.c.l.b16 %v4101
        %v4239 = vunpack.c.l.b16 %v4102
        %v4240 = vunpack.c.h.b16 %v4102
        %v4241 = vunpack.c.l.b16 %v4103
        %v4242 = vunpack.c.l.b16 %v4104
        %v4243 = vunpack.c.h.b16 %v4104
        %v4244 = vunpack.c.l.b16 %v4105
        %v4245 = vunpack.c.l.b16 %v4106
        %v4246 = vunpack.c.h.b16 %v4106
        %v4247 = vunpack.c.l.b16 %v4107
        %v4248 = vunpack.c.l.b16 %v4108
        %v4249 = vunpack.c.h.b16 %v4108
        %v4250 = vunpack.c.l.b16 %v4109
        %v4251 = vunpack.c.l.b16 %v4110
        %v4252 = vunpack.c.h.b16 %v4110
        %v4253 = vunpack.c.l.b16 %v4111
        %v4254 = vunpack.c.l.b16 %v4112
        %v4255 = vunpack.c.h.b16 %v4112
        %v4256 = vunpack.c.l.b16 %v4113
        %v4257 = vunpack.c.l.b16 %v4114
        %v4258 = vunpack.c.h.b16 %v4114
        %v4259 = vunpack.c.l.b16 %v4115
        %v4260 = vunpack.c.l.b16 %v4116
        %v4261 = vunpack.c.h.b16 %v4116
        %v4262 = vunpack.c.l.b16 %v4117
        %v4263 = vunpack.c.l.b16 %v4118
        %v4264 = vunpack.c.h.b16 %v4118
        %v4265 = vunpack.c.l.b16 %v4119
        %v4266 = vunpack.c.l.b16 %v4120
        %v4267 = vunpack.c.h.b16 %v4120
        %v4268 = vunpack.c.l.b16 %v4121
        %v4269 = vunpack.c.l.b16 %v4122
        %v4270 = vunpack.c.h.b16 %v4122
        %v4271 = vunpack.c.l.b16 %v4123
        %v4272 = vunpack.c.l.b16 %v4124
        %v4273 = vunpack.c.h.b16 %v4124
        %v4274 = vunpack.c.l.b16 %v4125
        %v4275 = vunpack.c.l.b16 %v4126
        %v4276 = vunpack.c.h.b16 %v4126
        %v4277 = vunpack.c.l.b16 %v4127
        %v4278 = vunpack.c.l.b16 %v4128
        %v4279 = vunpack.c.h.b16 %v4128
        %v4280 = vunpack.c.l.b16 %v4129
        %v4281 = vunpack.c.l.b16 %v4130
        %v4282 = vunpack.c.h.b16 %v4130
        %v4283 = vunpack.c.l.b16 %v4131
        %v4284 = vpack.c.b16 %v4239, %v4236
        %v4285 = vpack.c.b16 %v4240, %v4237
        %v4286 = vpack.c.b16 %v4241, %v4238
        %v4287 = vpack.c.b16 %v4245, %v4242
        %v4288 = vpack.c.b16 %v4246, %v4243
        %v4289 = vpack.c.b16 %v4247, %v4244
        %v4290 = vpack.c.b16 %v4251, %v4248
        %v4291 = vpack.c.b16 %v4252, %v4249
        %v4292 = vpack.c.b16 %v4253, %v4250
        %v4293 = vpack.c.b16 %v4257, %v4254
        %v4294 = vpack.c.b16 %v4258, %v4255
        %v4295 = vpack.c.b16 %v4259, %v4256
        %v4296 = vpack.c.b16 %v4263, %v4260
        %v4297 = vpack.c.b16 %v4264, %v4261
        %v4298 = vpack.c.b16 %v4265, %v4262
        %v4299 = vpack.c.b16 %v4269, %v4266
        %v4300 = vpack.c.b16 %v4270, %v4267
        %v4301 = vpack.c.b16 %v4271, %v4268
        %v4302 = vpack.c.b16 %v4275, %v4272
        %v4303 = vpack.c.b16 %v4276, %v4273
        %v4304 = vpack.c.b16 %v4277, %v4274
        %v4305 = vpack.c.b16 %v4281, %v4278
        %v4306 = vpack.c.b16 %v4282, %v4279
        %v4307 = vpack.c.b16 %v4283, %v4280
        %4332 = vmatprep.subr.bf16.mxu0 %v4306
        %4333 = vmatpush1.bf16.msra.mxu0 %v4305
        %4334 = vmatprep.subr.bf16.mxu0 %v4303
        %4335 = vmatpush1.bf16.msra.mxu0 %v4302
        %4336 = vmatprep.subr.bf16.mxu0 %v4300
        %4337 = vmatpush1.bf16.msra.mxu0 %v4299
        %4338 = vmatprep.subr.bf16.mxu0 %v4297
        %4339 = vmatpush1.bf16.msra.mxu0 %v4296
        %4340 = vmatprep.subr.bf16.mxu0 %v4294
        %4341 = vmatpush1.bf16.msra.mxu0 %v4293
        %4342 = vmatprep.subr.bf16.mxu0 %v4291
        %4343 = vmatpush1.bf16.msra.mxu0 %v4290
        %4344 = vmatprep.subr.bf16.mxu0 %v4288
        %4345 = vmatpush1.bf16.msra.mxu0 %v4287
        %4346 = vmatprep.subr.bf16.mxu0 %v4285
        %4347 = vmatpush1.bf16.msra.mxu0 %v4284
        %4348 = vmatprep.subr.bf16.mxu0 0
        %4349 = vmatpush2.bf16.msra.mxu0 0
        %4350 = vmatprep.subr.bf16.mxu0 0
        %4351 = vmatpush2.bf16.msra.mxu0 0
        %4352 = vmatprep.subr.bf16.mxu0 0
        %4353 = vmatpush2.bf16.msra.mxu0 0
        %4354 = vmatprep.subr.bf16.mxu0 0
        %4355 = vmatpush2.bf16.msra.mxu0 0
        %4356 = vmatprep.subr.bf16.mxu0 0
        %4357 = vmatpush2.bf16.msra.mxu0 0
        %4358 = vmatprep.subr.bf16.mxu0 0
        %4359 = vmatpush2.bf16.msra.mxu0 0
        %4360 = vmatprep.subr.bf16.mxu0 0
        %4361 = vmatpush2.bf16.msra.mxu0 0
        %4362 = vmatprep.subr.bf16.mxu0 0
        %4363 = vmatpush2.bf16.msra.mxu0 0
        %4364 = vmatprep.mubr.bf16.mxu0 0
        %4365 = vmatmul.mubr.bf16.gmra.mxu0 %v4180
        %v4366 = vpop.f32.mrf.mxu0
        %v4367 = vadd.f32 0.0, %v4366
        %v4368 = vpop.f32.mrf.mxu0
        %v4369 = vadd.f32 0.0, %v4368
        %v4370 = vpop.f32.mrf.mxu0
        %v4371 = vadd.f32 0.0, %v4370
        %v4372 = vpop.f32.mrf.mxu0
        %v4373 = vadd.f32 0.0, %v4372
        %4374 = vmatprep.mubr.bf16.mxu0 0
        %4375 = vmatmul.mubr.bf16.gmra.mxu0 %v4181
        %v4376 = vpop.f32.mrf.mxu0
        %v4377 = vpop.f32.mrf.mxu0
        %v4378 = vadd.f32 0.0, %v4377
        %v4379 = vpop.f32.mrf.mxu0
        %v4380 = vadd.f32 0.0, %v4379
        %v4381 = vpop.f32.mrf.mxu0
        %v4382 = vadd.f32 0.0, %v4381
        %4383 = vmatprep.mubr.bf16.mxu0 0
        %4384 = vmatmul.mubr.bf16.gmra.mxu0 %v4182
        %v4385 = vpop.f32.mrf.mxu0
        %v4386 = vadd.f32 0.0, %v4385
        %v4387 = vpop.f32.mrf.mxu0
        %v4388 = vadd.f32 0.0, %v4387
        %v4389 = vpop.f32.mrf.mxu0
        %v4390 = vpop.f32.mrf.mxu0
        %v4391 = vadd.f32 0.0, %v4390
        %4392 = vmatprep.mubr.bf16.mxu0 0
        %4393 = vmatmul.mubr.bf16.gmra.mxu0 %v4183
        %v4394 = vpop.f32.mrf.mxu0
        %v4395 = vadd.f32 0.0, %v4394
        %v4396 = vpop.f32.mrf.mxu0
        %v4397 = vadd.f32 0.0, %v4396
        %v4398 = vpop.f32.mrf.mxu0
        %v4399 = vadd.f32 0.0, %v4398
        %v4400 = vpop.f32.mrf.mxu0
        %v4401 = vadd.f32 0.0, %v4400
        %4402 = vmatprep.mubr.bf16.mxu0 0
        %4403 = vmatmul.mubr.bf16.gmra.mxu0 %v4184
        %v4404 = vpop.f32.mrf.mxu0
        %v4405 = vpop.f32.mrf.mxu0
        %v4406 = vadd.f32 0.0, %v4405
        %v4407 = vpop.f32.mrf.mxu0
        %v4408 = vadd.f32 0.0, %v4407
        %v4409 = vpop.f32.mrf.mxu0
        %v4410 = vadd.f32 0.0, %v4409
        %4411 = vmatprep.mubr.bf16.mxu0 0
        %4412 = vmatmul.mubr.bf16.gmra.mxu0 %v4185
        %v4413 = vpop.f32.mrf.mxu0
        %v4414 = vadd.f32 0.0, %v4413
        %v4415 = vpop.f32.mrf.mxu0
        %v4416 = vadd.f32 0.0, %v4415
        %v4417 = vpop.f32.mrf.mxu0
        %v4418 = vpop.f32.mrf.mxu0
        %v4419 = vadd.f32 0.0, %v4418
        %4420 = vmatprep.mubr.bf16.mxu0 0
        %4421 = vmatmul.mubr.bf16.gmra.mxu0 %v4186
        %v4422 = vpop.f32.mrf.mxu0
        %v4423 = vadd.f32 0.0, %v4422
        %v4424 = vpop.f32.mrf.mxu0
        %v4425 = vadd.f32 0.0, %v4424
        %v4426 = vpop.f32.mrf.mxu0
        %v4427 = vadd.f32 0.0, %v4426
        %v4428 = vpop.f32.mrf.mxu0
        %v4429 = vadd.f32 0.0, %v4428
        %4430 = vmatprep.mubr.bf16.mxu0 0
        %4431 = vmatmul.mubr.bf16.gmra.mxu0 %v4187
        %v4432 = vpop.f32.mrf.mxu0
        %v4433 = vpop.f32.mrf.mxu0
        %v4434 = vadd.f32 0.0, %v4433
        %v4435 = vpop.f32.mrf.mxu0
        %v4436 = vadd.f32 0.0, %v4435
        %v4437 = vpop.f32.mrf.mxu0
        %v4438 = vadd.f32 0.0, %v4437
        %4439 = vmatprep.mubr.bf16.mxu0 0
        %4440 = vmatmul.mubr.bf16.gmra.mxu0 %v4188
        %v4441 = vpop.f32.mrf.mxu0
        %v4442 = vadd.f32 0.0, %v4441
        %v4443 = vpop.f32.mrf.mxu0
        %v4444 = vadd.f32 0.0, %v4443
        %v4445 = vpop.f32.mrf.mxu0
        %v4446 = vpop.f32.mrf.mxu0
        %v4447 = vadd.f32 0.0, %v4446
        %4448 = vmatprep.mubr.bf16.mxu0 0
        %4449 = vmatmul.mubr.bf16.gmra.mxu0 %v4189
        %v4450 = vpop.f32.mrf.mxu0
        %v4451 = vadd.f32 0.0, %v4450
        %v4452 = vpop.f32.mrf.mxu0
        %v4453 = vadd.f32 0.0, %v4452
        %v4454 = vpop.f32.mrf.mxu0
        %v4455 = vadd.f32 0.0, %v4454
        %v4456 = vpop.f32.mrf.mxu0
        %v4457 = vadd.f32 0.0, %v4456
        %4458 = vmatprep.mubr.bf16.mxu0 0
        %4459 = vmatmul.mubr.bf16.gmra.mxu0 %v4190
        %v4460 = vpop.f32.mrf.mxu0
        %v4461 = vpop.f32.mrf.mxu0
        %v4462 = vadd.f32 0.0, %v4461
        %v4463 = vpop.f32.mrf.mxu0
        %v4464 = vadd.f32 0.0, %v4463
        %v4465 = vpop.f32.mrf.mxu0
        %v4466 = vadd.f32 0.0, %v4465
        %4467 = vmatprep.mubr.bf16.mxu0 0
        %4468 = vmatmul.mubr.bf16.gmra.mxu0 %v4191
        %v4469 = vpop.f32.mrf.mxu0
        %v4470 = vadd.f32 0.0, %v4469
        %v4471 = vpop.f32.mrf.mxu0
        %v4472 = vadd.f32 0.0, %v4471
        %v4473 = vpop.f32.mrf.mxu0
        %v4474 = vpop.f32.mrf.mxu0
        %v4475 = vadd.f32 0.0, %v4474
        %4476 = vdwg.mxu0
        %4477 = vmatprep.subr.bf16.mxu0 0
        %4478 = vmatpush1.bf16.msra.mxu0 %v4307
        %4479 = vmatprep.subr.bf16.mxu0 0
        %4480 = vmatpush1.bf16.msra.mxu0 %v4304
        %4481 = vmatprep.subr.bf16.mxu0 0
        %4482 = vmatpush1.bf16.msra.mxu0 %v4301
        %4483 = vmatprep.subr.bf16.mxu0 0
        %4484 = vmatpush1.bf16.msra.mxu0 %v4298
        %4485 = vmatprep.subr.bf16.mxu0 0
        %4486 = vmatpush1.bf16.msra.mxu0 %v4295
        %4487 = vmatprep.subr.bf16.mxu0 0
        %4488 = vmatpush1.bf16.msra.mxu0 %v4292
        %4489 = vmatprep.subr.bf16.mxu0 0
        %4490 = vmatpush1.bf16.msra.mxu0 %v4289
        %4491 = vmatprep.subr.bf16.mxu0 0
        %4492 = vmatpush1.bf16.msra.mxu0 %v4286
        %4493 = vmatprep.subr.bf16.mxu0 0
        %4494 = vmatpush2.bf16.msra.mxu0 0
        %4495 = vmatprep.subr.bf16.mxu0 0
        %4496 = vmatpush2.bf16.msra.mxu0 0
        %4497 = vmatprep.subr.bf16.mxu0 0
        %4498 = vmatpush2.bf16.msra.mxu0 0
        %4499 = vmatprep.subr.bf16.mxu0 0
        %4500 = vmatpush2.bf16.msra.mxu0 0
        %4501 = vmatprep.subr.bf16.mxu0 0
        %4502 = vmatpush2.bf16.msra.mxu0 0
        %4503 = vmatprep.subr.bf16.mxu0 0
        %4504 = vmatpush2.bf16.msra.mxu0 0
        %4505 = vmatprep.subr.bf16.mxu0 0
        %4506 = vmatpush2.bf16.msra.mxu0 0
        %4507 = vmatprep.subr.bf16.mxu0 0
        %4508 = vmatpush2.bf16.msra.mxu0 0
        %4509 = vmatprep.mubr.bf16.mxu0 0
        %4510 = vmatmul.mubr.bf16.gmra.mxu0 %v4180
        %v4511 = vpop.f32.mrf.mxu0
        %v4512 = vadd.f32 0.0, %v4511
        %v4513 = vpop.f32.mrf.mxu0
        %v4514 = vpop.f32.mrf.mxu0
        %v4515 = vadd.f32 0.0, %v4514
        %v4516 = vpop.f32.mrf.mxu0
        %4517 = vmatprep.mubr.bf16.mxu0 0
        %4518 = vmatmul.mubr.bf16.gmra.mxu0 %v4181
        %v4519 = vpop.f32.mrf.mxu0
        %v4520 = vadd.f32 0.0, %v4519
        %v4521 = vpop.f32.mrf.mxu0
        %v4522 = vpop.f32.mrf.mxu0
        %v4523 = vadd.f32 0.0, %v4522
        %v4524 = vpop.f32.mrf.mxu0
        %4525 = vmatprep.mubr.bf16.mxu0 0
        %4526 = vmatmul.mubr.bf16.gmra.mxu0 %v4182
        %v4527 = vpop.f32.mrf.mxu0
        %v4528 = vadd.f32 0.0, %v4527
        %v4529 = vpop.f32.mrf.mxu0
        %v4530 = vpop.f32.mrf.mxu0
        %v4531 = vadd.f32 0.0, %v4530
        %v4532 = vpop.f32.mrf.mxu0
        %4533 = vmatprep.mubr.bf16.mxu0 0
        %4534 = vmatmul.mubr.bf16.gmra.mxu0 %v4183
        %v4535 = vpop.f32.mrf.mxu0
        %v4536 = vadd.f32 0.0, %v4535
        %v4537 = vpop.f32.mrf.mxu0
        %v4538 = vpop.f32.mrf.mxu0
        %v4539 = vadd.f32 0.0, %v4538
        %v4540 = vpop.f32.mrf.mxu0
        %4541 = vmatprep.mubr.bf16.mxu0 0
        %4542 = vmatmul.mubr.bf16.gmra.mxu0 %v4184
        %v4543 = vpop.f32.mrf.mxu0
        %v4544 = vadd.f32 0.0, %v4543
        %v4545 = vpop.f32.mrf.mxu0
        %v4546 = vpop.f32.mrf.mxu0
        %v4547 = vadd.f32 0.0, %v4546
        %v4548 = vpop.f32.mrf.mxu0
        %4549 = vmatprep.mubr.bf16.mxu0 0
        %4550 = vmatmul.mubr.bf16.gmra.mxu0 %v4185
        %v4551 = vpop.f32.mrf.mxu0
        %v4552 = vadd.f32 0.0, %v4551
        %v4553 = vpop.f32.mrf.mxu0
        %v4554 = vpop.f32.mrf.mxu0
        %v4555 = vadd.f32 0.0, %v4554
        %v4556 = vpop.f32.mrf.mxu0
        %4557 = vmatprep.mubr.bf16.mxu0 0
        %4558 = vmatmul.mubr.bf16.gmra.mxu0 %v4186
        %v4559 = vpop.f32.mrf.mxu0
        %v4560 = vadd.f32 0.0, %v4559
        %v4561 = vpop.f32.mrf.mxu0
        %v4562 = vpop.f32.mrf.mxu0
        %v4563 = vadd.f32 0.0, %v4562
        %v4564 = vpop.f32.mrf.mxu0
        %4565 = vmatprep.mubr.bf16.mxu0 0
        %4566 = vmatmul.mubr.bf16.gmra.mxu0 %v4187
        %v4567 = vpop.f32.mrf.mxu0
        %v4568 = vadd.f32 0.0, %v4567
        %v4569 = vpop.f32.mrf.mxu0
        %v4570 = vpop.f32.mrf.mxu0
        %v4571 = vadd.f32 0.0, %v4570
        %v4572 = vpop.f32.mrf.mxu0
        %4573 = vmatprep.mubr.bf16.mxu0 0
        %4574 = vmatmul.mubr.bf16.gmra.mxu0 %v4188
        %v4575 = vpop.f32.mrf.mxu0
        %v4576 = vadd.f32 0.0, %v4575
        %v4577 = vpop.f32.mrf.mxu0
        %v4578 = vpop.f32.mrf.mxu0
        %v4579 = vadd.f32 0.0, %v4578
        %v4580 = vpop.f32.mrf.mxu0
        %4581 = vmatprep.mubr.bf16.mxu0 0
        %4582 = vmatmul.mubr.bf16.gmra.mxu0 %v4189
        %v4583 = vpop.f32.mrf.mxu0
        %v4584 = vadd.f32 0.0, %v4583
        %v4585 = vpop.f32.mrf.mxu0
        %v4586 = vpop.f32.mrf.mxu0
        %v4587 = vadd.f32 0.0, %v4586
        %v4588 = vpop.f32.mrf.mxu0
        %4589 = vmatprep.mubr.bf16.mxu0 0
        %4590 = vmatmul.mubr.bf16.gmra.mxu0 %v4190
        %v4591 = vpop.f32.mrf.mxu0
        %v4592 = vadd.f32 0.0, %v4591
        %v4593 = vpop.f32.mrf.mxu0
        %v4594 = vpop.f32.mrf.mxu0
        %v4595 = vadd.f32 0.0, %v4594
        %v4596 = vpop.f32.mrf.mxu0
        %4597 = vmatprep.mubr.bf16.mxu0 0
        %4598 = vmatmul.mubr.bf16.gmra.mxu0 %v4191
        %v4599 = vpop.f32.mrf.mxu0
        %v4600 = vadd.f32 0.0, %v4599
        %v4601 = vpop.f32.mrf.mxu0
        %v4602 = vpop.f32.mrf.mxu0
        %v4603 = vadd.f32 0.0, %v4602
        %v4604 = vpop.f32.mrf.mxu0
        %4605 = vdwg.mxu0
        %v4606 = vld [vmem:[#allocation5] sm:$0xff]
        %v4607 = vld [vmem:[#allocation5 + $0x8] sm:$0xff]
        %v4608 = vld [vmem:[#allocation5 + $0x10] sm:$0xff]
        %v4609 = vld [vmem:[#allocation5 + $0x18] sm:$0xff]
        %v4610 = vld [vmem:[#allocation5 + $0x20] sm:$0xff]
        %v4611 = vld [vmem:[#allocation5 + $0x28] sm:$0xff]
        %v4612 = vld [vmem:[#allocation5 + $0x30] sm:$0xff]
        %v4613 = vld [vmem:[#allocation5 + $0x38] sm:$0xff]
        %v4614 = vld [vmem:[#allocation5 + $0x40] sm:$0xff]
        %v4615 = vld [vmem:[#allocation5 + $0x48] sm:$0xff]
        %v4616 = vld [vmem:[#allocation5 + $0x50] sm:$0xff]
        %v4617 = vld [vmem:[#allocation5 + $0x58] sm:$0xff]
        %v4618 = vld [vmem:[#allocation5 + $0x60] sm:$0xff]
        %v4619 = vld [vmem:[#allocation5 + $0x68] sm:$0xff]
        %v4620 = vld [vmem:[#allocation5 + $0x70] sm:$0xff]
        %v4621 = vld [vmem:[#allocation5 + $0x78] sm:$0xff]
        %v4622 = vadd.f32 %v4606, %v4367
        %v4623 = vadd.f32 %v4607, %v4371
        %v4624 = vadd.f32 %v4608, %v4380
        %v4625 = vadd.f32 %v4609, %v4386
        %v4626 = vadd.f32 %v4610, %v4395
        %v4627 = vadd.f32 %v4611, %v4399
        %v4628 = vadd.f32 %v4612, %v4408
        %v4629 = vadd.f32 %v4613, %v4414
        %v4630 = vadd.f32 %v4614, %v4423
        %v4631 = vadd.f32 %v4615, %v4427
        %v4632 = vadd.f32 %v4616, %v4436
        %v4633 = vadd.f32 %v4617, %v4442
        %v4634 = vadd.f32 %v4618, %v4451
        %v4635 = vadd.f32 %v4619, %v4455
        %v4636 = vadd.f32 %v4620, %v4464
        %v4637 = vadd.f32 %v4621, %v4470
        %4638 = vst [vmem:[#allocation5] sm:$0xff] %v4622
        %4639 = vst [vmem:[#allocation5 + $0x8] sm:$0xff] %v4623
        %4640 = vst [vmem:[#allocation5 + $0x10] sm:$0xff] %v4624
        %4641 = vst [vmem:[#allocation5 + $0x18] sm:$0xff] %v4625
        %4642 = vst [vmem:[#allocation5 + $0x20] sm:$0xff] %v4626
        %4643 = vst [vmem:[#allocation5 + $0x28] sm:$0xff] %v4627
        %4644 = vst [vmem:[#allocation5 + $0x30] sm:$0xff] %v4628
        %4645 = vst [vmem:[#allocation5 + $0x38] sm:$0xff] %v4629
        %4646 = vst [vmem:[#allocation5 + $0x40] sm:$0xff] %v4630
        %4647 = vst [vmem:[#allocation5 + $0x48] sm:$0xff] %v4631
        %4648 = vst [vmem:[#allocation5 + $0x50] sm:$0xff] %v4632
        %4649 = vst [vmem:[#allocation5 + $0x58] sm:$0xff] %v4633
        %4650 = vst [vmem:[#allocation5 + $0x60] sm:$0xff] %v4634
        %4651 = vst [vmem:[#allocation5 + $0x68] sm:$0xff] %v4635
        %4652 = vst [vmem:[#allocation5 + $0x70] sm:$0xff] %v4636
        %4653 = vst [vmem:[#allocation5 + $0x78] sm:$0xff] %v4637
        %v4654 = vld [vmem:[#allocation5] sm:$0xff]
        %v4655 = vld [vmem:[#allocation5 + $0x8] sm:$0xff]
        %v4656 = vld [vmem:[#allocation5 + $0x10] sm:$0xff]
        %v4657 = vld [vmem:[#allocation5 + $0x18] sm:$0xff]
        %v4658 = vld [vmem:[#allocation5 + $0x20] sm:$0xff]
        %v4659 = vld [vmem:[#allocation5 + $0x28] sm:$0xff]
        %v4660 = vld [vmem:[#allocation5 + $0x30] sm:$0xff]
        %v4661 = vld [vmem:[#allocation5 + $0x38] sm:$0xff]
        %v4662 = vld [vmem:[#allocation5 + $0x40] sm:$0xff]
        %v4663 = vld [vmem:[#allocation5 + $0x48] sm:$0xff]
        %v4664 = vld [vmem:[#allocation5 + $0x50] sm:$0xff]
        %v4665 = vld [vmem:[#allocation5 + $0x58] sm:$0xff]
        %v4666 = vld [vmem:[#allocation5 + $0x60] sm:$0xff]
        %v4667 = vld [vmem:[#allocation5 + $0x68] sm:$0xff]
        %v4668 = vld [vmem:[#allocation5 + $0x70] sm:$0xff]
        %v4669 = vld [vmem:[#allocation5 + $0x78] sm:$0xff]
        %v4694 = vrot.slane %v4369, 1
        %v4695 = vrot.slane %v4373, 1
        %v4696 = vsel %vm1093, %v4694, %v4695
        %v4697 = vrot.slane %v4378, 1
        %v4698 = vsel %vm1093, %v4695, %v4697
        %v4699 = vrot.slane %v4382, 1
        %v4700 = vrot.slane %v4388, 1
        %v4701 = vsel %vm1093, %v4699, %v4700
        %v4702 = vrot.slane %v4391, 1
        %v4703 = vsel %vm1093, %v4700, %v4702
        %v4704 = vrot.slane %v4397, 1
        %v4705 = vrot.slane %v4401, 1
        %v4706 = vsel %vm1093, %v4704, %v4705
        %v4707 = vrot.slane %v4406, 1
        %v4708 = vsel %vm1093, %v4705, %v4707
        %v4709 = vrot.slane %v4410, 1
        %v4710 = vrot.slane %v4416, 1
        %v4711 = vsel %vm1093, %v4709, %v4710
        %v4712 = vrot.slane %v4419, 1
        %v4713 = vsel %vm1093, %v4710, %v4712
        %v4714 = vrot.slane %v4425, 1
        %v4715 = vrot.slane %v4429, 1
        %v4716 = vsel %vm1093, %v4714, %v4715
        %v4717 = vrot.slane %v4434, 1
        %v4718 = vsel %vm1093, %v4715, %v4717
        %v4719 = vrot.slane %v4438, 1
        %v4720 = vrot.slane %v4444, 1
        %v4721 = vsel %vm1093, %v4719, %v4720
        %v4722 = vrot.slane %v4447, 1
        %v4723 = vsel %vm1093, %v4720, %v4722
        %v4724 = vrot.slane %v4453, 1
        %v4725 = vrot.slane %v4457, 1
        %v4726 = vsel %vm1093, %v4724, %v4725
        %v4727 = vrot.slane %v4462, 1
        %v4728 = vsel %vm1093, %v4725, %v4727
        %v4729 = vrot.slane %v4466, 1
        %v4730 = vrot.slane %v4472, 1
        %v4731 = vsel %vm1093, %v4729, %v4730
        %v4732 = vrot.slane %v4475, 1
        %v4733 = vsel %vm1093, %v4730, %v4732
        %v4750 = vadd.f32 %v4654, %v4696
        %v4751 = vadd.f32 %v4655, %v4698
        %v4752 = vadd.f32 %v4656, %v4701
        %v4753 = vadd.f32 %v4657, %v4703
        %v4754 = vadd.f32 %v4658, %v4706
        %v4755 = vadd.f32 %v4659, %v4708
        %v4756 = vadd.f32 %v4660, %v4711
        %v4757 = vadd.f32 %v4661, %v4713
        %v4758 = vadd.f32 %v4662, %v4716
        %v4759 = vadd.f32 %v4663, %v4718
        %v4760 = vadd.f32 %v4664, %v4721
        %v4761 = vadd.f32 %v4665, %v4723
        %v4762 = vadd.f32 %v4666, %v4726
        %v4763 = vadd.f32 %v4667, %v4728
        %v4764 = vadd.f32 %v4668, %v4731
        %v4765 = vadd.f32 %v4669, %v4733
        %4766 = vst [vmem:[#allocation5] sm:$0xff] %v4750
        %4767 = vst [vmem:[#allocation5 + $0x8] sm:$0xff] %v4751
        %4768 = vst [vmem:[#allocation5 + $0x10] sm:$0xff] %v4752
        %4769 = vst [vmem:[#allocation5 + $0x18] sm:$0xff] %v4753
        %4770 = vst [vmem:[#allocation5 + $0x20] sm:$0xff] %v4754
        %4771 = vst [vmem:[#allocation5 + $0x28] sm:$0xff] %v4755
        %4772 = vst [vmem:[#allocation5 + $0x30] sm:$0xff] %v4756
        %4773 = vst [vmem:[#allocation5 + $0x38] sm:$0xff] %v4757
        %4774 = vst [vmem:[#allocation5 + $0x40] sm:$0xff] %v4758
        %4775 = vst [vmem:[#allocation5 + $0x48] sm:$0xff] %v4759
        %4776 = vst [vmem:[#allocation5 + $0x50] sm:$0xff] %v4760
        %4777 = vst [vmem:[#allocation5 + $0x58] sm:$0xff] %v4761
        %4778 = vst [vmem:[#allocation5 + $0x60] sm:$0xff] %v4762
        %4779 = vst [vmem:[#allocation5 + $0x68] sm:$0xff] %v4763
        %4780 = vst [vmem:[#allocation5 + $0x70] sm:$0xff] %v4764
        %4781 = vst [vmem:[#allocation5 + $0x78] sm:$0xff] %v4765
        %v4782 = vld [vmem:[#allocation5] sm:$0xff]
        %v4783 = vld [vmem:[#allocation5 + $0x8] sm:$0xff]
        %v4784 = vld [vmem:[#allocation5 + $0x10] sm:$0xff]
        %v4785 = vld [vmem:[#allocation5 + $0x18] sm:$0xff]
        %v4786 = vld [vmem:[#allocation5 + $0x20] sm:$0xff]
        %v4787 = vld [vmem:[#allocation5 + $0x28] sm:$0xff]
        %v4788 = vld [vmem:[#allocation5 + $0x30] sm:$0xff]
        %v4789 = vld [vmem:[#allocation5 + $0x38] sm:$0xff]
        %v4790 = vld [vmem:[#allocation5 + $0x40] sm:$0xff]
        %v4791 = vld [vmem:[#allocation5 + $0x48] sm:$0xff]
        %v4792 = vld [vmem:[#allocation5 + $0x50] sm:$0xff]
        %v4793 = vld [vmem:[#allocation5 + $0x58] sm:$0xff]
        %v4794 = vld [vmem:[#allocation5 + $0x60] sm:$0xff]
        %v4795 = vld [vmem:[#allocation5 + $0x68] sm:$0xff]
        %v4796 = vld [vmem:[#allocation5 + $0x70] sm:$0xff]
        %v4797 = vld [vmem:[#allocation5 + $0x78] sm:$0xff]
        %v4822 = vrot.slane %v4512, 2
        %v4823 = vrot.slane %v4515, 2
        %v4824 = vsel %vm1294, %v4822, %v4823
        %v4825 = vrot.slane %v4520, 2
        %v4826 = vsel %vm1294, %v4823, %v4825
        %v4827 = vrot.slane %v4523, 2
        %v4828 = vrot.slane %v4528, 2
        %v4829 = vsel %vm1294, %v4827, %v4828
        %v4830 = vrot.slane %v4531, 2
        %v4831 = vsel %vm1294, %v4828, %v4830
        %v4832 = vrot.slane %v4536, 2
        %v4833 = vrot.slane %v4539, 2
        %v4834 = vsel %vm1294, %v4832, %v4833
        %v4835 = vrot.slane %v4544, 2
        %v4836 = vsel %vm1294, %v4833, %v4835
        %v4837 = vrot.slane %v4547, 2
        %v4838 = vrot.slane %v4552, 2
        %v4839 = vsel %vm1294, %v4837, %v4838
        %v4840 = vrot.slane %v4555, 2
        %v4841 = vsel %vm1294, %v4838, %v4840
        %v4842 = vrot.slane %v4560, 2
        %v4843 = vrot.slane %v4563, 2
        %v4844 = vsel %vm1294, %v4842, %v4843
        %v4845 = vrot.slane %v4568, 2
        %v4846 = vsel %vm1294, %v4843, %v4845
        %v4847 = vrot.slane %v4571, 2
        %v4848 = vrot.slane %v4576, 2
        %v4849 = vsel %vm1294, %v4847, %v4848
        %v4850 = vrot.slane %v4579, 2
        %v4851 = vsel %vm1294, %v4848, %v4850
        %v4852 = vrot.slane %v4584, 2
        %v4853 = vrot.slane %v4587, 2
        %v4854 = vsel %vm1294, %v4852, %v4853
        %v4855 = vrot.slane %v4592, 2
        %v4856 = vsel %vm1294, %v4853, %v4855
        %v4857 = vrot.slane %v4595, 2
        %v4858 = vrot.slane %v4600, 2
        %v4859 = vsel %vm1294, %v4857, %v4858
        %v4860 = vrot.slane %v4603, 2
        %v4861 = vsel %vm1294, %v4858, %v4860
        %v4878 = vadd.f32 %v4782, %v4824
        %v4879 = vadd.f32 %v4783, %v4826
        %v4880 = vadd.f32 %v4784, %v4829
        %v4881 = vadd.f32 %v4785, %v4831
        %v4882 = vadd.f32 %v4786, %v4834
        %v4883 = vadd.f32 %v4787, %v4836
        %v4884 = vadd.f32 %v4788, %v4839
        %v4885 = vadd.f32 %v4789, %v4841
        %v4886 = vadd.f32 %v4790, %v4844
        %v4887 = vadd.f32 %v4791, %v4846
        %v4888 = vadd.f32 %v4792, %v4849
        %v4889 = vadd.f32 %v4793, %v4851
        %v4890 = vadd.f32 %v4794, %v4854
        %v4891 = vadd.f32 %v4795, %v4856
        %v4892 = vadd.f32 %v4796, %v4859
        %v4893 = vadd.f32 %v4797, %v4861
        %4894 = vst [vmem:[#allocation5] sm:$0xff] %v4878
        %4895 = vst [vmem:[#allocation5 + $0x8] sm:$0xff] %v4879
        %4896 = vst [vmem:[#allocation5 + $0x10] sm:$0xff] %v4880
        %4897 = vst [vmem:[#allocation5 + $0x18] sm:$0xff] %v4881
        %4898 = vst [vmem:[#allocation5 + $0x20] sm:$0xff] %v4882
        %4899 = vst [vmem:[#allocation5 + $0x28] sm:$0xff] %v4883
        %4900 = vst [vmem:[#allocation5 + $0x30] sm:$0xff] %v4884
        %4901 = vst [vmem:[#allocation5 + $0x38] sm:$0xff] %v4885
        %4902 = vst [vmem:[#allocation5 + $0x40] sm:$0xff] %v4886
        %4903 = vst [vmem:[#allocation5 + $0x48] sm:$0xff] %v4887
        %4904 = vst [vmem:[#allocation5 + $0x50] sm:$0xff] %v4888
        %4905 = vst [vmem:[#allocation5 + $0x58] sm:$0xff] %v4889
        %4906 = vst [vmem:[#allocation5 + $0x60] sm:$0xff] %v4890
        %4907 = vst [vmem:[#allocation5 + $0x68] sm:$0xff] %v4891
        %4908 = vst [vmem:[#allocation5 + $0x70] sm:$0xff] %v4892
        %4909 = vst [vmem:[#allocation5 + $0x78] sm:$0xff] %v4893
        %s4910 = scalar_lea.vmem [#allocation3], 12
        %v4911 = vld [vmem:[%s4910] sm:$0xf]
        %v4912 = vld [vmem:[%s4910 + $0x4] sm:$0xf]
        %v4913 = vld [vmem:[%s4910 + $0x8] sm:$0xf]
        %v4914 = vld [vmem:[%s4910 + $0xc] sm:$0xf]
        %v4915 = vld [vmem:[%s4910 + $0x10] sm:$0xf]
        %v4916 = vld [vmem:[%s4910 + $0x14] sm:$0xf]
        %v4917 = vld [vmem:[%s4910 + $0x18] sm:$0xf]
        %v4918 = vld [vmem:[%s4910 + $0x1c] sm:$0xf]
        %v4919 = vld [vmem:[%s4910 + $0x20] sm:$0xf]
        %v4920 = vld [vmem:[%s4910 + $0x24] sm:$0xf]
        %v4921 = vld [vmem:[%s4910 + $0x28] sm:$0xf]
        %v4922 = vld [vmem:[%s4910 + $0x2c] sm:$0xf]
        %v4923 = vld [vmem:[%s4910 + $0x30] sm:$0xf]
        %v4924 = vld [vmem:[%s4910 + $0x34] sm:$0xf]
        %v4925 = vld [vmem:[%s4910 + $0x38] sm:$0xf]
        %v4926 = vld [vmem:[%s4910 + $0x3c] sm:$0xf]
        %v4927 = vld [vmem:[%s4910 + $0x40] sm:$0xf]
        %v4928 = vld [vmem:[%s4910 + $0x44] sm:$0xf]
        %v4929 = vld [vmem:[%s4910 + $0x48] sm:$0xf]
        %v4930 = vld [vmem:[%s4910 + $0x4c] sm:$0xf]
        %v4931 = vld [vmem:[%s4910 + $0x50] sm:$0xf]
        %v4932 = vld [vmem:[%s4910 + $0x54] sm:$0xf]
        %v4933 = vld [vmem:[%s4910 + $0x58] sm:$0xf]
        %v4934 = vld [vmem:[%s4910 + $0x5c] sm:$0xf]
        %s4935 = scalar_lea.vmem [#allocation10], 192
        %v4936 = vld [vmem:[%s4935] sm:$0xff]
        %v4937 = vld [vmem:[%s4935 + $0x8] sm:$0xf]
        %v4938 = vld [vmem:[%s4935 + $0xc] sm:$0xff]
        %v4939 = vld [vmem:[%s4935 + $0x14] sm:$0xf]
        %v4940 = vld [vmem:[%s4935 + $0x18] sm:$0xff]
        %v4941 = vld [vmem:[%s4935 + $0x20] sm:$0xf]
        %v4942 = vld [vmem:[%s4935 + $0x24] sm:$0xff]
        %v4943 = vld [vmem:[%s4935 + $0x2c] sm:$0xf]
        %v4944 = vld [vmem:[%s4935 + $0x30] sm:$0xff]
        %v4945 = vld [vmem:[%s4935 + $0x38] sm:$0xf]
        %v4946 = vld [vmem:[%s4935 + $0x3c] sm:$0xff]
        %v4947 = vld [vmem:[%s4935 + $0x44] sm:$0xf]
        %v4948 = vld [vmem:[%s4935 + $0x48] sm:$0xff]
        %v4949 = vld [vmem:[%s4935 + $0x50] sm:$0xf]
        %v4950 = vld [vmem:[%s4935 + $0x54] sm:$0xff]
        %v4951 = vld [vmem:[%s4935 + $0x5c] sm:$0xf]
        %v4952 = vld [vmem:[%s4935 + $0x60] sm:$0xff]
        %v4953 = vld [vmem:[%s4935 + $0x68] sm:$0xf]
        %v4954 = vld [vmem:[%s4935 + $0x6c] sm:$0xff]
        %v4955 = vld [vmem:[%s4935 + $0x74] sm:$0xf]
        %v4956 = vld [vmem:[%s4935 + $0x78] sm:$0xff]
        %v4957 = vld [vmem:[%s4935 + $0x80] sm:$0xf]
        %v4958 = vld [vmem:[%s4935 + $0x84] sm:$0xff]
        %v4959 = vld [vmem:[%s4935 + $0x8c] sm:$0xf]
        %v4960 = vld [vmem:[%s4935 + $0x90] sm:$0xff]
        %v4961 = vld [vmem:[%s4935 + $0x98] sm:$0xf]
        %v4962 = vld [vmem:[%s4935 + $0x9c] sm:$0xff]
        %v4963 = vld [vmem:[%s4935 + $0xa4] sm:$0xf]
        %v4964 = vld [vmem:[%s4935 + $0xa8] sm:$0xff]
        %v4965 = vld [vmem:[%s4935 + $0xb0] sm:$0xf]
        %v4966 = vld [vmem:[%s4935 + $0xb4] sm:$0xff]
        %v4967 = vld [vmem:[%s4935 + $0xbc] sm:$0xf]
        %v4992 = vunpack.c.l.b16 %v4911
        %v4993 = vunpack.c.l.b16 %v4912
        %v4994 = vunpack.c.l.b16 %v4913
        %v4995 = vunpack.c.l.b16 %v4914
        %v4996 = vunpack.c.l.b16 %v4915
        %v4997 = vunpack.c.l.b16 %v4916
        %v4998 = vunpack.c.l.b16 %v4917
        %v4999 = vunpack.c.l.b16 %v4918
        %v5000 = vunpack.c.l.b16 %v4919
        %v5001 = vunpack.c.l.b16 %v4920
        %v5002 = vunpack.c.l.b16 %v4921
        %v5003 = vunpack.c.l.b16 %v4922
        %v5004 = vunpack.c.l.b16 %v4923
        %v5005 = vunpack.c.l.b16 %v4924
        %v5006 = vunpack.c.l.b16 %v4925
        %v5007 = vunpack.c.l.b16 %v4926
        %v5008 = vunpack.c.l.b16 %v4927
        %v5009 = vunpack.c.l.b16 %v4928
        %v5010 = vunpack.c.l.b16 %v4929
        %v5011 = vunpack.c.l.b16 %v4930
        %v5012 = vunpack.c.l.b16 %v4931
        %v5013 = vunpack.c.l.b16 %v4932
        %v5014 = vunpack.c.l.b16 %v4933
        %v5015 = vunpack.c.l.b16 %v4934
        %v5016 = vpack.c.b16 %v4993, %v4992
        %v5017 = vpack.c.b16 %v4995, %v4994
        %v5018 = vpack.c.b16 %v4997, %v4996
        %v5019 = vpack.c.b16 %v4999, %v4998
        %v5020 = vpack.c.b16 %v5001, %v5000
        %v5021 = vpack.c.b16 %v5003, %v5002
        %v5022 = vpack.c.b16 %v5005, %v5004
        %v5023 = vpack.c.b16 %v5007, %v5006
        %v5024 = vpack.c.b16 %v5009, %v5008
        %v5025 = vpack.c.b16 %v5011, %v5010
        %v5026 = vpack.c.b16 %v5013, %v5012
        %v5027 = vpack.c.b16 %v5015, %v5014
        %v5072 = vunpack.c.l.b16 %v4936
        %v5073 = vunpack.c.h.b16 %v4936
        %v5074 = vunpack.c.l.b16 %v4937
        %v5075 = vunpack.c.l.b16 %v4938
        %v5076 = vunpack.c.h.b16 %v4938
        %v5077 = vunpack.c.l.b16 %v4939
        %v5078 = vunpack.c.l.b16 %v4940
        %v5079 = vunpack.c.h.b16 %v4940
        %v5080 = vunpack.c.l.b16 %v4941
        %v5081 = vunpack.c.l.b16 %v4942
        %v5082 = vunpack.c.h.b16 %v4942
        %v5083 = vunpack.c.l.b16 %v4943
        %v5084 = vunpack.c.l.b16 %v4944
        %v5085 = vunpack.c.h.b16 %v4944
        %v5086 = vunpack.c.l.b16 %v4945
        %v5087 = vunpack.c.l.b16 %v4946
        %v5088 = vunpack.c.h.b16 %v4946
        %v5089 = vunpack.c.l.b16 %v4947
        %v5090 = vunpack.c.l.b16 %v4948
        %v5091 = vunpack.c.h.b16 %v4948
        %v5092 = vunpack.c.l.b16 %v4949
        %v5093 = vunpack.c.l.b16 %v4950
        %v5094 = vunpack.c.h.b16 %v4950
        %v5095 = vunpack.c.l.b16 %v4951
        %v5096 = vunpack.c.l.b16 %v4952
        %v5097 = vunpack.c.h.b16 %v4952
        %v5098 = vunpack.c.l.b16 %v4953
        %v5099 = vunpack.c.l.b16 %v4954
        %v5100 = vunpack.c.h.b16 %v4954
        %v5101 = vunpack.c.l.b16 %v4955
        %v5102 = vunpack.c.l.b16 %v4956
        %v5103 = vunpack.c.h.b16 %v4956
        %v5104 = vunpack.c.l.b16 %v4957
        %v5105 = vunpack.c.l.b16 %v4958
        %v5106 = vunpack.c.h.b16 %v4958
        %v5107 = vunpack.c.l.b16 %v4959
        %v5108 = vunpack.c.l.b16 %v4960
        %v5109 = vunpack.c.h.b16 %v4960
        %v5110 = vunpack.c.l.b16 %v4961
        %v5111 = vunpack.c.l.b16 %v4962
        %v5112 = vunpack.c.h.b16 %v4962
        %v5113 = vunpack.c.l.b16 %v4963
        %v5114 = vunpack.c.l.b16 %v4964
        %v5115 = vunpack.c.h.b16 %v4964
        %v5116 = vunpack.c.l.b16 %v4965
        %v5117 = vunpack.c.l.b16 %v4966
        %v5118 = vunpack.c.h.b16 %v4966
        %v5119 = vunpack.c.l.b16 %v4967
        %v5120 = vpack.c.b16 %v5075, %v5072
        %v5121 = vpack.c.b16 %v5076, %v5073
        %v5122 = vpack.c.b16 %v5077, %v5074
        %v5123 = vpack.c.b16 %v5081, %v5078
        %v5124 = vpack.c.b16 %v5082, %v5079
        %v5125 = vpack.c.b16 %v5083, %v5080
        %v5126 = vpack.c.b16 %v5087, %v5084
        %v5127 = vpack.c.b16 %v5088, %v5085
        %v5128 = vpack.c.b16 %v5089, %v5086
        %v5129 = vpack.c.b16 %v5093, %v5090
        %v5130 = vpack.c.b16 %v5094, %v5091
        %v5131 = vpack.c.b16 %v5095, %v5092
        %v5132 = vpack.c.b16 %v5099, %v5096
        %v5133 = vpack.c.b16 %v5100, %v5097
        %v5134 = vpack.c.b16 %v5101, %v5098
        %v5135 = vpack.c.b16 %v5105, %v5102
        %v5136 = vpack.c.b16 %v5106, %v5103
        %v5137 = vpack.c.b16 %v5107, %v5104
        %v5138 = vpack.c.b16 %v5111, %v5108
        %v5139 = vpack.c.b16 %v5112, %v5109
        %v5140 = vpack.c.b16 %v5113, %v5110
        %v5141 = vpack.c.b16 %v5117, %v5114
        %v5142 = vpack.c.b16 %v5118, %v5115
        %v5143 = vpack.c.b16 %v5119, %v5116
        %5168 = vmatprep.subr.bf16.mxu0 %v5142
        %5169 = vmatpush1.bf16.msra.mxu0 %v5141
        %5170 = vmatprep.subr.bf16.mxu0 %v5139
        %5171 = vmatpush1.bf16.msra.mxu0 %v5138
        %5172 = vmatprep.subr.bf16.mxu0 %v5136
        %5173 = vmatpush1.bf16.msra.mxu0 %v5135
        %5174 = vmatprep.subr.bf16.mxu0 %v5133
        %5175 = vmatpush1.bf16.msra.mxu0 %v5132
        %5176 = vmatprep.subr.bf16.mxu0 %v5130
        %5177 = vmatpush1.bf16.msra.mxu0 %v5129
        %5178 = vmatprep.subr.bf16.mxu0 %v5127
        %5179 = vmatpush1.bf16.msra.mxu0 %v5126
        %5180 = vmatprep.subr.bf16.mxu0 %v5124
        %5181 = vmatpush1.bf16.msra.mxu0 %v5123
        %5182 = vmatprep.subr.bf16.mxu0 %v5121
        %5183 = vmatpush1.bf16.msra.mxu0 %v5120
        %5184 = vmatprep.subr.bf16.mxu0 0
        %5185 = vmatpush2.bf16.msra.mxu0 0
        %5186 = vmatprep.subr.bf16.mxu0 0
        %5187 = vmatpush2.bf16.msra.mxu0 0
        %5188 = vmatprep.subr.bf16.mxu0 0
        %5189 = vmatpush2.bf16.msra.mxu0 0
        %5190 = vmatprep.subr.bf16.mxu0 0
        %5191 = vmatpush2.bf16.msra.mxu0 0
        %5192 = vmatprep.subr.bf16.mxu0 0
        %5193 = vmatpush2.bf16.msra.mxu0 0
        %5194 = vmatprep.subr.bf16.mxu0 0
        %5195 = vmatpush2.bf16.msra.mxu0 0
        %5196 = vmatprep.subr.bf16.mxu0 0
        %5197 = vmatpush2.bf16.msra.mxu0 0
        %5198 = vmatprep.subr.bf16.mxu0 0
        %5199 = vmatpush2.bf16.msra.mxu0 0
        %5200 = vmatprep.mubr.bf16.mxu0 0
        %5201 = vmatmul.mubr.bf16.gmra.mxu0 %v5016
        %v5202 = vpop.f32.mrf.mxu0
        %v5203 = vadd.f32 0.0, %v5202
        %v5204 = vpop.f32.mrf.mxu0
        %v5205 = vadd.f32 0.0, %v5204
        %v5206 = vpop.f32.mrf.mxu0
        %v5207 = vadd.f32 0.0, %v5206
        %v5208 = vpop.f32.mrf.mxu0
        %v5209 = vadd.f32 0.0, %v5208
        %5210 = vmatprep.mubr.bf16.mxu0 0
        %5211 = vmatmul.mubr.bf16.gmra.mxu0 %v5017
        %v5212 = vpop.f32.mrf.mxu0
        %v5213 = vpop.f32.mrf.mxu0
        %v5214 = vadd.f32 0.0, %v5213
        %v5215 = vpop.f32.mrf.mxu0
        %v5216 = vadd.f32 0.0, %v5215
        %v5217 = vpop.f32.mrf.mxu0
        %v5218 = vadd.f32 0.0, %v5217
        %5219 = vmatprep.mubr.bf16.mxu0 0
        %5220 = vmatmul.mubr.bf16.gmra.mxu0 %v5018
        %v5221 = vpop.f32.mrf.mxu0
        %v5222 = vadd.f32 0.0, %v5221
        %v5223 = vpop.f32.mrf.mxu0
        %v5224 = vadd.f32 0.0, %v5223
        %v5225 = vpop.f32.mrf.mxu0
        %v5226 = vpop.f32.mrf.mxu0
        %v5227 = vadd.f32 0.0, %v5226
        %5228 = vmatprep.mubr.bf16.mxu0 0
        %5229 = vmatmul.mubr.bf16.gmra.mxu0 %v5019
        %v5230 = vpop.f32.mrf.mxu0
        %v5231 = vadd.f32 0.0, %v5230
        %v5232 = vpop.f32.mrf.mxu0
        %v5233 = vadd.f32 0.0, %v5232
        %v5234 = vpop.f32.mrf.mxu0
        %v5235 = vadd.f32 0.0, %v5234
        %v5236 = vpop.f32.mrf.mxu0
        %v5237 = vadd.f32 0.0, %v5236
        %5238 = vmatprep.mubr.bf16.mxu0 0
        %5239 = vmatmul.mubr.bf16.gmra.mxu0 %v5020
        %v5240 = vpop.f32.mrf.mxu0
        %v5241 = vpop.f32.mrf.mxu0
        %v5242 = vadd.f32 0.0, %v5241
        %v5243 = vpop.f32.mrf.mxu0
        %v5244 = vadd.f32 0.0, %v5243
        %v5245 = vpop.f32.mrf.mxu0
        %v5246 = vadd.f32 0.0, %v5245
        %5247 = vmatprep.mubr.bf16.mxu0 0
        %5248 = vmatmul.mubr.bf16.gmra.mxu0 %v5021
        %v5249 = vpop.f32.mrf.mxu0
        %v5250 = vadd.f32 0.0, %v5249
        %v5251 = vpop.f32.mrf.mxu0
        %v5252 = vadd.f32 0.0, %v5251
        %v5253 = vpop.f32.mrf.mxu0
        %v5254 = vpop.f32.mrf.mxu0
        %v5255 = vadd.f32 0.0, %v5254
        %5256 = vmatprep.mubr.bf16.mxu0 0
        %5257 = vmatmul.mubr.bf16.gmra.mxu0 %v5022
        %v5258 = vpop.f32.mrf.mxu0
        %v5259 = vadd.f32 0.0, %v5258
        %v5260 = vpop.f32.mrf.mxu0
        %v5261 = vadd.f32 0.0, %v5260
        %v5262 = vpop.f32.mrf.mxu0
        %v5263 = vadd.f32 0.0, %v5262
        %v5264 = vpop.f32.mrf.mxu0
        %v5265 = vadd.f32 0.0, %v5264
        %5266 = vmatprep.mubr.bf16.mxu0 0
        %5267 = vmatmul.mubr.bf16.gmra.mxu0 %v5023
        %v5268 = vpop.f32.mrf.mxu0
        %v5269 = vpop.f32.mrf.mxu0
        %v5270 = vadd.f32 0.0, %v5269
        %v5271 = vpop.f32.mrf.mxu0
        %v5272 = vadd.f32 0.0, %v5271
        %v5273 = vpop.f32.mrf.mxu0
        %v5274 = vadd.f32 0.0, %v5273
        %5275 = vmatprep.mubr.bf16.mxu0 0
        %5276 = vmatmul.mubr.bf16.gmra.mxu0 %v5024
        %v5277 = vpop.f32.mrf.mxu0
        %v5278 = vadd.f32 0.0, %v5277
        %v5279 = vpop.f32.mrf.mxu0
        %v5280 = vadd.f32 0.0, %v5279
        %v5281 = vpop.f32.mrf.mxu0
        %v5282 = vpop.f32.mrf.mxu0
        %v5283 = vadd.f32 0.0, %v5282
        %5284 = vmatprep.mubr.bf16.mxu0 0
        %5285 = vmatmul.mubr.bf16.gmra.mxu0 %v5025
        %v5286 = vpop.f32.mrf.mxu0
        %v5287 = vadd.f32 0.0, %v5286
        %v5288 = vpop.f32.mrf.mxu0
        %v5289 = vadd.f32 0.0, %v5288
        %v5290 = vpop.f32.mrf.mxu0
        %v5291 = vadd.f32 0.0, %v5290
        %v5292 = vpop.f32.mrf.mxu0
        %v5293 = vadd.f32 0.0, %v5292
        %5294 = vmatprep.mubr.bf16.mxu0 0
        %5295 = vmatmul.mubr.bf16.gmra.mxu0 %v5026
        %v5296 = vpop.f32.mrf.mxu0
        %v5297 = vpop.f32.mrf.mxu0
        %v5298 = vadd.f32 0.0, %v5297
        %v5299 = vpop.f32.mrf.mxu0
        %v5300 = vadd.f32 0.0, %v5299
        %v5301 = vpop.f32.mrf.mxu0
        %v5302 = vadd.f32 0.0, %v5301
        %5303 = vmatprep.mubr.bf16.mxu0 0
        %5304 = vmatmul.mubr.bf16.gmra.mxu0 %v5027
        %v5305 = vpop.f32.mrf.mxu0
        %v5306 = vadd.f32 0.0, %v5305
        %v5307 = vpop.f32.mrf.mxu0
        %v5308 = vadd.f32 0.0, %v5307
        %v5309 = vpop.f32.mrf.mxu0
        %v5310 = vpop.f32.mrf.mxu0
        %v5311 = vadd.f32 0.0, %v5310
        %5312 = vdwg.mxu0
        %5313 = vmatprep.subr.bf16.mxu0 0
        %5314 = vmatpush1.bf16.msra.mxu0 %v5143
        %5315 = vmatprep.subr.bf16.mxu0 0
        %5316 = vmatpush1.bf16.msra.mxu0 %v5140
        %5317 = vmatprep.subr.bf16.mxu0 0
        %5318 = vmatpush1.bf16.msra.mxu0 %v5137
        %5319 = vmatprep.subr.bf16.mxu0 0
        %5320 = vmatpush1.bf16.msra.mxu0 %v5134
        %5321 = vmatprep.subr.bf16.mxu0 0
        %5322 = vmatpush1.bf16.msra.mxu0 %v5131
        %5323 = vmatprep.subr.bf16.mxu0 0
        %5324 = vmatpush1.bf16.msra.mxu0 %v5128
        %5325 = vmatprep.subr.bf16.mxu0 0
        %5326 = vmatpush1.bf16.msra.mxu0 %v5125
        %5327 = vmatprep.subr.bf16.mxu0 0
        %5328 = vmatpush1.bf16.msra.mxu0 %v5122
        %5329 = vmatprep.subr.bf16.mxu0 0
        %5330 = vmatpush2.bf16.msra.mxu0 0
        %5331 = vmatprep.subr.bf16.mxu0 0
        %5332 = vmatpush2.bf16.msra.mxu0 0
        %5333 = vmatprep.subr.bf16.mxu0 0
        %5334 = vmatpush2.bf16.msra.mxu0 0
        %5335 = vmatprep.subr.bf16.mxu0 0
        %5336 = vmatpush2.bf16.msra.mxu0 0
        %5337 = vmatprep.subr.bf16.mxu0 0
        %5338 = vmatpush2.bf16.msra.mxu0 0
        %5339 = vmatprep.subr.bf16.mxu0 0
        %5340 = vmatpush2.bf16.msra.mxu0 0
        %5341 = vmatprep.subr.bf16.mxu0 0
        %5342 = vmatpush2.bf16.msra.mxu0 0
        %5343 = vmatprep.subr.bf16.mxu0 0
        %5344 = vmatpush2.bf16.msra.mxu0 0
        %5345 = vmatprep.mubr.bf16.mxu0 0
        %5346 = vmatmul.mubr.bf16.gmra.mxu0 %v5016
        %v5347 = vpop.f32.mrf.mxu0
        %v5348 = vadd.f32 0.0, %v5347
        %v5349 = vpop.f32.mrf.mxu0
        %v5350 = vpop.f32.mrf.mxu0
        %v5351 = vadd.f32 0.0, %v5350
        %v5352 = vpop.f32.mrf.mxu0
        %5353 = vmatprep.mubr.bf16.mxu0 0
        %5354 = vmatmul.mubr.bf16.gmra.mxu0 %v5017
        %v5355 = vpop.f32.mrf.mxu0
        %v5356 = vadd.f32 0.0, %v5355
        %v5357 = vpop.f32.mrf.mxu0
        %v5358 = vpop.f32.mrf.mxu0
        %v5359 = vadd.f32 0.0, %v5358
        %v5360 = vpop.f32.mrf.mxu0
        %5361 = vmatprep.mubr.bf16.mxu0 0
        %5362 = vmatmul.mubr.bf16.gmra.mxu0 %v5018
        %v5363 = vpop.f32.mrf.mxu0
        %v5364 = vadd.f32 0.0, %v5363
        %v5365 = vpop.f32.mrf.mxu0
        %v5366 = vpop.f32.mrf.mxu0
        %v5367 = vadd.f32 0.0, %v5366
        %v5368 = vpop.f32.mrf.mxu0
        %5369 = vmatprep.mubr.bf16.mxu0 0
        %5370 = vmatmul.mubr.bf16.gmra.mxu0 %v5019
        %v5371 = vpop.f32.mrf.mxu0
        %v5372 = vadd.f32 0.0, %v5371
        %v5373 = vpop.f32.mrf.mxu0
        %v5374 = vpop.f32.mrf.mxu0
        %v5375 = vadd.f32 0.0, %v5374
        %v5376 = vpop.f32.mrf.mxu0
        %5377 = vmatprep.mubr.bf16.mxu0 0
        %5378 = vmatmul.mubr.bf16.gmra.mxu0 %v5020
        %v5379 = vpop.f32.mrf.mxu0
        %v5380 = vadd.f32 0.0, %v5379
        %v5381 = vpop.f32.mrf.mxu0
        %v5382 = vpop.f32.mrf.mxu0
        %v5383 = vadd.f32 0.0, %v5382
        %v5384 = vpop.f32.mrf.mxu0
        %5385 = vmatprep.mubr.bf16.mxu0 0
        %5386 = vmatmul.mubr.bf16.gmra.mxu0 %v5021
        %v5387 = vpop.f32.mrf.mxu0
        %v5388 = vadd.f32 0.0, %v5387
        %v5389 = vpop.f32.mrf.mxu0
        %v5390 = vpop.f32.mrf.mxu0
        %v5391 = vadd.f32 0.0, %v5390
        %v5392 = vpop.f32.mrf.mxu0
        %5393 = vmatprep.mubr.bf16.mxu0 0
        %5394 = vmatmul.mubr.bf16.gmra.mxu0 %v5022
        %v5395 = vpop.f32.mrf.mxu0
        %v5396 = vadd.f32 0.0, %v5395
        %v5397 = vpop.f32.mrf.mxu0
        %v5398 = vpop.f32.mrf.mxu0
        %v5399 = vadd.f32 0.0, %v5398
        %v5400 = vpop.f32.mrf.mxu0
        %5401 = vmatprep.mubr.bf16.mxu0 0
        %5402 = vmatmul.mubr.bf16.gmra.mxu0 %v5023
        %v5403 = vpop.f32.mrf.mxu0
        %v5404 = vadd.f32 0.0, %v5403
        %v5405 = vpop.f32.mrf.mxu0
        %v5406 = vpop.f32.mrf.mxu0
        %v5407 = vadd.f32 0.0, %v5406
        %v5408 = vpop.f32.mrf.mxu0
        %5409 = vmatprep.mubr.bf16.mxu0 0
        %5410 = vmatmul.mubr.bf16.gmra.mxu0 %v5024
        %v5411 = vpop.f32.mrf.mxu0
        %v5412 = vadd.f32 0.0, %v5411
        %v5413 = vpop.f32.mrf.mxu0
        %v5414 = vpop.f32.mrf.mxu0
        %v5415 = vadd.f32 0.0, %v5414
        %v5416 = vpop.f32.mrf.mxu0
        %5417 = vmatprep.mubr.bf16.mxu0 0
        %5418 = vmatmul.mubr.bf16.gmra.mxu0 %v5025
        %v5419 = vpop.f32.mrf.mxu0
        %v5420 = vadd.f32 0.0, %v5419
        %v5421 = vpop.f32.mrf.mxu0
        %v5422 = vpop.f32.mrf.mxu0
        %v5423 = vadd.f32 0.0, %v5422
        %v5424 = vpop.f32.mrf.mxu0
        %5425 = vmatprep.mubr.bf16.mxu0 0
        %5426 = vmatmul.mubr.bf16.gmra.mxu0 %v5026
        %v5427 = vpop.f32.mrf.mxu0
        %v5428 = vadd.f32 0.0, %v5427
        %v5429 = vpop.f32.mrf.mxu0
        %v5430 = vpop.f32.mrf.mxu0
        %v5431 = vadd.f32 0.0, %v5430
        %v5432 = vpop.f32.mrf.mxu0
        %5433 = vmatprep.mubr.bf16.mxu0 0
        %5434 = vmatmul.mubr.bf16.gmra.mxu0 %v5027
        %v5435 = vpop.f32.mrf.mxu0
        %v5436 = vadd.f32 0.0, %v5435
        %v5437 = vpop.f32.mrf.mxu0
        %v5438 = vpop.f32.mrf.mxu0
        %v5439 = vadd.f32 0.0, %v5438
        %v5440 = vpop.f32.mrf.mxu0
        %5441 = vdwg.mxu0
        %v5442 = vld [vmem:[#allocation5] sm:$0xff]
        %v5443 = vld [vmem:[#allocation5 + $0x8] sm:$0xff]
        %v5444 = vld [vmem:[#allocation5 + $0x10] sm:$0xff]
        %v5445 = vld [vmem:[#allocation5 + $0x18] sm:$0xff]
        %v5446 = vld [vmem:[#allocation5 + $0x20] sm:$0xff]
        %v5447 = vld [vmem:[#allocation5 + $0x28] sm:$0xff]
        %v5448 = vld [vmem:[#allocation5 + $0x30] sm:$0xff]
        %v5449 = vld [vmem:[#allocation5 + $0x38] sm:$0xff]
        %v5450 = vld [vmem:[#allocation5 + $0x40] sm:$0xff]
        %v5451 = vld [vmem:[#allocation5 + $0x48] sm:$0xff]
        %v5452 = vld [vmem:[#allocation5 + $0x50] sm:$0xff]
        %v5453 = vld [vmem:[#allocation5 + $0x58] sm:$0xff]
        %v5454 = vld [vmem:[#allocation5 + $0x60] sm:$0xff]
        %v5455 = vld [vmem:[#allocation5 + $0x68] sm:$0xff]
        %v5456 = vld [vmem:[#allocation5 + $0x70] sm:$0xff]
        %v5457 = vld [vmem:[#allocation5 + $0x78] sm:$0xff]
        %v5458 = vadd.f32 %v5442, %v5203
        %v5459 = vadd.f32 %v5443, %v5207
        %v5460 = vadd.f32 %v5444, %v5216
        %v5461 = vadd.f32 %v5445, %v5222
        %v5462 = vadd.f32 %v5446, %v5231
        %v5463 = vadd.f32 %v5447, %v5235
        %v5464 = vadd.f32 %v5448, %v5244
        %v5465 = vadd.f32 %v5449, %v5250
        %v5466 = vadd.f32 %v5450, %v5259
        %v5467 = vadd.f32 %v5451, %v5263
        %v5468 = vadd.f32 %v5452, %v5272
        %v5469 = vadd.f32 %v5453, %v5278
        %v5470 = vadd.f32 %v5454, %v5287
        %v5471 = vadd.f32 %v5455, %v5291
        %v5472 = vadd.f32 %v5456, %v5300
        %v5473 = vadd.f32 %v5457, %v5306
        %5474 = vst [vmem:[#allocation5] sm:$0xff] %v5458
        %5475 = vst [vmem:[#allocation5 + $0x8] sm:$0xff] %v5459
        %5476 = vst [vmem:[#allocation5 + $0x10] sm:$0xff] %v5460
        %5477 = vst [vmem:[#allocation5 + $0x18] sm:$0xff] %v5461
        %5478 = vst [vmem:[#allocation5 + $0x20] sm:$0xff] %v5462
        %5479 = vst [vmem:[#allocation5 + $0x28] sm:$0xff] %v5463
        %5480 = vst [vmem:[#allocation5 + $0x30] sm:$0xff] %v5464
        %5481 = vst [vmem:[#allocation5 + $0x38] sm:$0xff] %v5465
        %5482 = vst [vmem:[#allocation5 + $0x40] sm:$0xff] %v5466
        %5483 = vst [vmem:[#allocation5 + $0x48] sm:$0xff] %v5467
        %5484 = vst [vmem:[#allocation5 + $0x50] sm:$0xff] %v5468
        %5485 = vst [vmem:[#allocation5 + $0x58] sm:$0xff] %v5469
        %5486 = vst [vmem:[#allocation5 + $0x60] sm:$0xff] %v5470
        %5487 = vst [vmem:[#allocation5 + $0x68] sm:$0xff] %v5471
        %5488 = vst [vmem:[#allocation5 + $0x70] sm:$0xff] %v5472
        %5489 = vst [vmem:[#allocation5 + $0x78] sm:$0xff] %v5473
        %v5490 = vld [vmem:[#allocation5] sm:$0xff]
        %v5491 = vld [vmem:[#allocation5 + $0x8] sm:$0xff]
        %v5492 = vld [vmem:[#allocation5 + $0x10] sm:$0xff]
        %v5493 = vld [vmem:[#allocation5 + $0x18] sm:$0xff]
        %v5494 = vld [vmem:[#allocation5 + $0x20] sm:$0xff]
        %v5495 = vld [vmem:[#allocation5 + $0x28] sm:$0xff]
        %v5496 = vld [vmem:[#allocation5 + $0x30] sm:$0xff]
        %v5497 = vld [vmem:[#allocation5 + $0x38] sm:$0xff]
        %v5498 = vld [vmem:[#allocation5 + $0x40] sm:$0xff]
        %v5499 = vld [vmem:[#allocation5 + $0x48] sm:$0xff]
        %v5500 = vld [vmem:[#allocation5 + $0x50] sm:$0xff]
        %v5501 = vld [vmem:[#allocation5 + $0x58] sm:$0xff]
        %v5502 = vld [vmem:[#allocation5 + $0x60] sm:$0xff]
        %v5503 = vld [vmem:[#allocation5 + $0x68] sm:$0xff]
        %v5504 = vld [vmem:[#allocation5 + $0x70] sm:$0xff]
        %v5505 = vld [vmem:[#allocation5 + $0x78] sm:$0xff]
        %v5530 = vrot.slane %v5205, 1
        %v5531 = vrot.slane %v5209, 1
        %v5532 = vsel %vm1093, %v5530, %v5531
        %v5533 = vrot.slane %v5214, 1
        %v5534 = vsel %vm1093, %v5531, %v5533
        %v5535 = vrot.slane %v5218, 1
        %v5536 = vrot.slane %v5224, 1
        %v5537 = vsel %vm1093, %v5535, %v5536
        %v5538 = vrot.slane %v5227, 1
        %v5539 = vsel %vm1093, %v5536, %v5538
        %v5540 = vrot.slane %v5233, 1
        %v5541 = vrot.slane %v5237, 1
        %v5542 = vsel %vm1093, %v5540, %v5541
        %v5543 = vrot.slane %v5242, 1
        %v5544 = vsel %vm1093, %v5541, %v5543
        %v5545 = vrot.slane %v5246, 1
        %v5546 = vrot.slane %v5252, 1
        %v5547 = vsel %vm1093, %v5545, %v5546
        %v5548 = vrot.slane %v5255, 1
        %v5549 = vsel %vm1093, %v5546, %v5548
        %v5550 = vrot.slane %v5261, 1
        %v5551 = vrot.slane %v5265, 1
        %v5552 = vsel %vm1093, %v5550, %v5551
        %v5553 = vrot.slane %v5270, 1
        %v5554 = vsel %vm1093, %v5551, %v5553
        %v5555 = vrot.slane %v5274, 1
        %v5556 = vrot.slane %v5280, 1
        %v5557 = vsel %vm1093, %v5555, %v5556
        %v5558 = vrot.slane %v5283, 1
        %v5559 = vsel %vm1093, %v5556, %v5558
        %v5560 = vrot.slane %v5289, 1
        %v5561 = vrot.slane %v5293, 1
        %v5562 = vsel %vm1093, %v5560, %v5561
        %v5563 = vrot.slane %v5298, 1
        %v5564 = vsel %vm1093, %v5561, %v5563
        %v5565 = vrot.slane %v5302, 1
        %v5566 = vrot.slane %v5308, 1
        %v5567 = vsel %vm1093, %v5565, %v5566
        %v5568 = vrot.slane %v5311, 1
        %v5569 = vsel %vm1093, %v5566, %v5568
        %v5586 = vadd.f32 %v5490, %v5532
        %v5587 = vadd.f32 %v5491, %v5534
        %v5588 = vadd.f32 %v5492, %v5537
        %v5589 = vadd.f32 %v5493, %v5539
        %v5590 = vadd.f32 %v5494, %v5542
        %v5591 = vadd.f32 %v5495, %v5544
        %v5592 = vadd.f32 %v5496, %v5547
        %v5593 = vadd.f32 %v5497, %v5549
        %v5594 = vadd.f32 %v5498, %v5552
        %v5595 = vadd.f32 %v5499, %v5554
        %v5596 = vadd.f32 %v5500, %v5557
        %v5597 = vadd.f32 %v5501, %v5559
        %v5598 = vadd.f32 %v5502, %v5562
        %v5599 = vadd.f32 %v5503, %v5564
        %v5600 = vadd.f32 %v5504, %v5567
        %v5601 = vadd.f32 %v5505, %v5569
        %5602 = vst [vmem:[#allocation5] sm:$0xff] %v5586
        %5603 = vst [vmem:[#allocation5 + $0x8] sm:$0xff] %v5587
        %5604 = vst [vmem:[#allocation5 + $0x10] sm:$0xff] %v5588
        %5605 = vst [vmem:[#allocation5 + $0x18] sm:$0xff] %v5589
        %5606 = vst [vmem:[#allocation5 + $0x20] sm:$0xff] %v5590
        %5607 = vst [vmem:[#allocation5 + $0x28] sm:$0xff] %v5591
        %5608 = vst [vmem:[#allocation5 + $0x30] sm:$0xff] %v5592
        %5609 = vst [vmem:[#allocation5 + $0x38] sm:$0xff] %v5593
        %5610 = vst [vmem:[#allocation5 + $0x40] sm:$0xff] %v5594
        %5611 = vst [vmem:[#allocation5 + $0x48] sm:$0xff] %v5595
        %5612 = vst [vmem:[#allocation5 + $0x50] sm:$0xff] %v5596
        %5613 = vst [vmem:[#allocation5 + $0x58] sm:$0xff] %v5597
        %5614 = vst [vmem:[#allocation5 + $0x60] sm:$0xff] %v5598
        %5615 = vst [vmem:[#allocation5 + $0x68] sm:$0xff] %v5599
        %5616 = vst [vmem:[#allocation5 + $0x70] sm:$0xff] %v5600
        %5617 = vst [vmem:[#allocation5 + $0x78] sm:$0xff] %v5601
        %v5618 = vld [vmem:[#allocation5] sm:$0xff]
        %v5619 = vld [vmem:[#allocation5 + $0x8] sm:$0xff]
        %v5620 = vld [vmem:[#allocation5 + $0x10] sm:$0xff]
        %v5621 = vld [vmem:[#allocation5 + $0x18] sm:$0xff]
        %v5622 = vld [vmem:[#allocation5 + $0x20] sm:$0xff]
        %v5623 = vld [vmem:[#allocation5 + $0x28] sm:$0xff]
        %v5624 = vld [vmem:[#allocation5 + $0x30] sm:$0xff]
        %v5625 = vld [vmem:[#allocation5 + $0x38] sm:$0xff]
        %v5626 = vld [vmem:[#allocation5 + $0x40] sm:$0xff]
        %v5627 = vld [vmem:[#allocation5 + $0x48] sm:$0xff]
        %v5628 = vld [vmem:[#allocation5 + $0x50] sm:$0xff]
        %v5629 = vld [vmem:[#allocation5 + $0x58] sm:$0xff]
        %v5630 = vld [vmem:[#allocation5 + $0x60] sm:$0xff]
        %v5631 = vld [vmem:[#allocation5 + $0x68] sm:$0xff]
        %v5632 = vld [vmem:[#allocation5 + $0x70] sm:$0xff]
        %v5633 = vld [vmem:[#allocation5 + $0x78] sm:$0xff]
        %v5658 = vrot.slane %v5348, 2
        %v5659 = vrot.slane %v5351, 2
        %v5660 = vsel %vm1294, %v5658, %v5659
        %v5661 = vrot.slane %v5356, 2
        %v5662 = vsel %vm1294, %v5659, %v5661
        %v5663 = vrot.slane %v5359, 2
        %v5664 = vrot.slane %v5364, 2
        %v5665 = vsel %vm1294, %v5663, %v5664
        %v5666 = vrot.slane %v5367, 2
        %v5667 = vsel %vm1294, %v5664, %v5666
        %v5668 = vrot.slane %v5372, 2
        %v5669 = vrot.slane %v5375, 2
        %v5670 = vsel %vm1294, %v5668, %v5669
        %v5671 = vrot.slane %v5380, 2
        %v5672 = vsel %vm1294, %v5669, %v5671
        %v5673 = vrot.slane %v5383, 2
        %v5674 = vrot.slane %v5388, 2
        %v5675 = vsel %vm1294, %v5673, %v5674
        %v5676 = vrot.slane %v5391, 2
        %v5677 = vsel %vm1294, %v5674, %v5676
        %v5678 = vrot.slane %v5396, 2
        %v5679 = vrot.slane %v5399, 2
        %v5680 = vsel %vm1294, %v5678, %v5679
        %v5681 = vrot.slane %v5404, 2
        %v5682 = vsel %vm1294, %v5679, %v5681
        %v5683 = vrot.slane %v5407, 2
        %v5684 = vrot.slane %v5412, 2
        %v5685 = vsel %vm1294, %v5683, %v5684
        %v5686 = vrot.slane %v5415, 2
        %v5687 = vsel %vm1294, %v5684, %v5686
        %v5688 = vrot.slane %v5420, 2
        %v5689 = vrot.slane %v5423, 2
        %v5690 = vsel %vm1294, %v5688, %v5689
        %v5691 = vrot.slane %v5428, 2
        %v5692 = vsel %vm1294, %v5689, %v5691
        %v5693 = vrot.slane %v5431, 2
        %v5694 = vrot.slane %v5436, 2
        %v5695 = vsel %vm1294, %v5693, %v5694
        %v5696 = vrot.slane %v5439, 2
        %v5697 = vsel %vm1294, %v5694, %v5696
        %v5714 = vadd.f32 %v5618, %v5660
        %v5715 = vadd.f32 %v5619, %v5662
        %v5716 = vadd.f32 %v5620, %v5665
        %v5717 = vadd.f32 %v5621, %v5667
        %v5718 = vadd.f32 %v5622, %v5670
        %v5719 = vadd.f32 %v5623, %v5672
        %v5720 = vadd.f32 %v5624, %v5675
        %v5721 = vadd.f32 %v5625, %v5677
        %v5722 = vadd.f32 %v5626, %v5680
        %v5723 = vadd.f32 %v5627, %v5682
        %v5724 = vadd.f32 %v5628, %v5685
        %v5725 = vadd.f32 %v5629, %v5687
        %v5726 = vadd.f32 %v5630, %v5690
        %v5727 = vadd.f32 %v5631, %v5692
        %v5728 = vadd.f32 %v5632, %v5695
        %v5729 = vadd.f32 %v5633, %v5697
        %5730 = vst [vmem:[#allocation5] sm:$0xff] %v5714
        %5731 = vst [vmem:[#allocation5 + $0x8] sm:$0xff] %v5715
        %5732 = vst [vmem:[#allocation5 + $0x10] sm:$0xff] %v5716
        %5733 = vst [vmem:[#allocation5 + $0x18] sm:$0xff] %v5717
        %5734 = vst [vmem:[#allocation5 + $0x20] sm:$0xff] %v5718
        %5735 = vst [vmem:[#allocation5 + $0x28] sm:$0xff] %v5719
        %5736 = vst [vmem:[#allocation5 + $0x30] sm:$0xff] %v5720
        %5737 = vst [vmem:[#allocation5 + $0x38] sm:$0xff] %v5721
        %5738 = vst [vmem:[#allocation5 + $0x40] sm:$0xff] %v5722
        %5739 = vst [vmem:[#allocation5 + $0x48] sm:$0xff] %v5723
        %5740 = vst [vmem:[#allocation5 + $0x50] sm:$0xff] %v5724
        %5741 = vst [vmem:[#allocation5 + $0x58] sm:$0xff] %v5725
        %5742 = vst [vmem:[#allocation5 + $0x60] sm:$0xff] %v5726
        %5743 = vst [vmem:[#allocation5 + $0x68] sm:$0xff] %v5727
        %5744 = vst [vmem:[#allocation5 + $0x70] sm:$0xff] %v5728
        %5745 = vst [vmem:[#allocation5 + $0x78] sm:$0xff] %v5729
        %s5746 = scalar_lea.vmem [#allocation3], 24
        %v5747 = vld [vmem:[%s5746] sm:$0xf]
        %v5748 = vld [vmem:[%s5746 + $0x4] sm:$0xf]
        %v5749 = vld [vmem:[%s5746 + $0x8] sm:$0xf]
        %v5750 = vld [vmem:[%s5746 + $0xc] sm:$0xf]
        %v5751 = vld [vmem:[%s5746 + $0x10] sm:$0xf]
        %v5752 = vld [vmem:[%s5746 + $0x14] sm:$0xf]
        %v5753 = vld [vmem:[%s5746 + $0x18] sm:$0xf]
        %v5754 = vld [vmem:[%s5746 + $0x1c] sm:$0xf]
        %v5755 = vld [vmem:[%s5746 + $0x20] sm:$0xf]
        %v5756 = vld [vmem:[%s5746 + $0x24] sm:$0xf]
        %v5757 = vld [vmem:[%s5746 + $0x28] sm:$0xf]
        %v5758 = vld [vmem:[%s5746 + $0x2c] sm:$0xf]
        %v5759 = vld [vmem:[%s5746 + $0x30] sm:$0xf]
        %v5760 = vld [vmem:[%s5746 + $0x34] sm:$0xf]
        %v5761 = vld [vmem:[%s5746 + $0x38] sm:$0xf]
        %v5762 = vld [vmem:[%s5746 + $0x3c] sm:$0xf]
        %v5763 = vld [vmem:[%s5746 + $0x40] sm:$0xf]
        %v5764 = vld [vmem:[%s5746 + $0x44] sm:$0xf]
        %v5765 = vld [vmem:[%s5746 + $0x48] sm:$0xf]
        %v5766 = vld [vmem:[%s5746 + $0x4c] sm:$0xf]
        %v5767 = vld [vmem:[%s5746 + $0x50] sm:$0xf]
        %v5768 = vld [vmem:[%s5746 + $0x54] sm:$0xf]
        %v5769 = vld [vmem:[%s5746 + $0x58] sm:$0xf]
        %v5770 = vld [vmem:[%s5746 + $0x5c] sm:$0xf]
        %s5771 = scalar_lea.vmem [#allocation10], 384
        %v5772 = vld [vmem:[%s5771] sm:$0xff]
        %v5773 = vld [vmem:[%s5771 + $0x8] sm:$0xf]
        %v5774 = vld [vmem:[%s5771 + $0xc] sm:$0xff]
        %v5775 = vld [vmem:[%s5771 + $0x14] sm:$0xf]
        %v5776 = vld [vmem:[%s5771 + $0x18] sm:$0xff]
        %v5777 = vld [vmem:[%s5771 + $0x20] sm:$0xf]
        %v5778 = vld [vmem:[%s5771 + $0x24] sm:$0xff]
        %v5779 = vld [vmem:[%s5771 + $0x2c] sm:$0xf]
        %v5780 = vld [vmem:[%s5771 + $0x30] sm:$0xff]
        %v5781 = vld [vmem:[%s5771 + $0x38] sm:$0xf]
        %v5782 = vld [vmem:[%s5771 + $0x3c] sm:$0xff]
        %v5783 = vld [vmem:[%s5771 + $0x44] sm:$0xf]
        %v5784 = vld [vmem:[%s5771 + $0x48] sm:$0xff]
        %v5785 = vld [vmem:[%s5771 + $0x50] sm:$0xf]
        %v5786 = vld [vmem:[%s5771 + $0x54] sm:$0xff]
        %v5787 = vld [vmem:[%s5771 + $0x5c] sm:$0xf]
        %v5788 = vld [vmem:[%s5771 + $0x60] sm:$0xff]
        %v5789 = vld [vmem:[%s5771 + $0x68] sm:$0xf]
        %v5790 = vld [vmem:[%s5771 + $0x6c] sm:$0xff]
        %v5791 = vld [vmem:[%s5771 + $0x74] sm:$0xf]
        %v5792 = vld [vmem:[%s5771 + $0x78] sm:$0xff]
        %v5793 = vld [vmem:[%s5771 + $0x80] sm:$0xf]
        %v5794 = vld [vmem:[%s5771 + $0x84] sm:$0xff]
        %v5795 = vld [vmem:[%s5771 + $0x8c] sm:$0xf]
        %v5796 = vld [vmem:[%s5771 + $0x90] sm:$0xff]
        %v5797 = vld [vmem:[%s5771 + $0x98] sm:$0xf]
        %v5798 = vld [vmem:[%s5771 + $0x9c] sm:$0xff]
        %v5799 = vld [vmem:[%s5771 + $0xa4] sm:$0xf]
        %v5800 = vld [vmem:[%s5771 + $0xa8] sm:$0xff]
        %v5801 = vld [vmem:[%s5771 + $0xb0] sm:$0xf]
        %v5802 = vld [vmem:[%s5771 + $0xb4] sm:$0xff]
        %v5803 = vld [vmem:[%s5771 + $0xbc] sm:$0xf]
        %v5828 = vunpack.c.l.b16 %v5747
        %v5829 = vunpack.c.l.b16 %v5748
        %v5830 = vunpack.c.l.b16 %v5749
        %v5831 = vunpack.c.l.b16 %v5750
        %v5832 = vunpack.c.l.b16 %v5751
        %v5833 = vunpack.c.l.b16 %v5752
        %v5834 = vunpack.c.l.b16 %v5753
        %v5835 = vunpack.c.l.b16 %v5754
        %v5836 = vunpack.c.l.b16 %v5755
        %v5837 = vunpack.c.l.b16 %v5756
        %v5838 = vunpack.c.l.b16 %v5757
        %v5839 = vunpack.c.l.b16 %v5758
        %v5840 = vunpack.c.l.b16 %v5759
        %v5841 = vunpack.c.l.b16 %v5760
        %v5842 = vunpack.c.l.b16 %v5761
        %v5843 = vunpack.c.l.b16 %v5762
        %v5844 = vunpack.c.l.b16 %v5763
        %v5845 = vunpack.c.l.b16 %v5764
        %v5846 = vunpack.c.l.b16 %v5765
        %v5847 = vunpack.c.l.b16 %v5766
        %v5848 = vunpack.c.l.b16 %v5767
        %v5849 = vunpack.c.l.b16 %v5768
        %v5850 = vunpack.c.l.b16 %v5769
        %v5851 = vunpack.c.l.b16 %v5770
        %v5852 = vpack.c.b16 %v5829, %v5828
        %v5853 = vpack.c.b16 %v5831, %v5830
        %v5854 = vpack.c.b16 %v5833, %v5832
        %v5855 = vpack.c.b16 %v5835, %v5834
        %v5856 = vpack.c.b16 %v5837, %v5836
        %v5857 = vpack.c.b16 %v5839, %v5838
        %v5858 = vpack.c.b16 %v5841, %v5840
        %v5859 = vpack.c.b16 %v5843, %v5842
        %v5860 = vpack.c.b16 %v5845, %v5844
        %v5861 = vpack.c.b16 %v5847, %v5846
        %v5862 = vpack.c.b16 %v5849, %v5848
        %v5863 = vpack.c.b16 %v5851, %v5850
        %v5908 = vunpack.c.l.b16 %v5772
        %v5909 = vunpack.c.h.b16 %v5772
        %v5910 = vunpack.c.l.b16 %v5773
        %v5911 = vunpack.c.l.b16 %v5774
        %v5912 = vunpack.c.h.b16 %v5774
        %v5913 = vunpack.c.l.b16 %v5775
        %v5914 = vunpack.c.l.b16 %v5776
        %v5915 = vunpack.c.h.b16 %v5776
        %v5916 = vunpack.c.l.b16 %v5777
        %v5917 = vunpack.c.l.b16 %v5778
        %v5918 = vunpack.c.h.b16 %v5778
        %v5919 = vunpack.c.l.b16 %v5779
        %v5920 = vunpack.c.l.b16 %v5780
        %v5921 = vunpack.c.h.b16 %v5780
        %v5922 = vunpack.c.l.b16 %v5781
        %v5923 = vunpack.c.l.b16 %v5782
        %v5924 = vunpack.c.h.b16 %v5782
        %v5925 = vunpack.c.l.b16 %v5783
        %v5926 = vunpack.c.l.b16 %v5784
        %v5927 = vunpack.c.h.b16 %v5784
        %v5928 = vunpack.c.l.b16 %v5785
        %v5929 = vunpack.c.l.b16 %v5786
        %v5930 = vunpack.c.h.b16 %v5786
        %v5931 = vunpack.c.l.b16 %v5787
        %v5932 = vunpack.c.l.b16 %v5788
        %v5933 = vunpack.c.h.b16 %v5788
        %v5934 = vunpack.c.l.b16 %v5789
        %v5935 = vunpack.c.l.b16 %v5790
        %v5936 = vunpack.c.h.b16 %v5790
        %v5937 = vunpack.c.l.b16 %v5791
        %v5938 = vunpack.c.l.b16 %v5792
        %v5939 = vunpack.c.h.b16 %v5792
        %v5940 = vunpack.c.l.b16 %v5793
        %v5941 = vunpack.c.l.b16 %v5794
        %v5942 = vunpack.c.h.b16 %v5794
        %v5943 = vunpack.c.l.b16 %v5795
        %v5944 = vunpack.c.l.b16 %v5796
        %v5945 = vunpack.c.h.b16 %v5796
        %v5946 = vunpack.c.l.b16 %v5797
        %v5947 = vunpack.c.l.b16 %v5798
        %v5948 = vunpack.c.h.b16 %v5798
        %v5949 = vunpack.c.l.b16 %v5799
        %v5950 = vunpack.c.l.b16 %v5800
        %v5951 = vunpack.c.h.b16 %v5800
        %v5952 = vunpack.c.l.b16 %v5801
        %v5953 = vunpack.c.l.b16 %v5802
        %v5954 = vunpack.c.h.b16 %v5802
        %v5955 = vunpack.c.l.b16 %v5803
        %v5956 = vpack.c.b16 %v5911, %v5908
        %v5957 = vpack.c.b16 %v5912, %v5909
        %v5958 = vpack.c.b16 %v5913, %v5910
        %v5959 = vpack.c.b16 %v5917, %v5914
        %v5960 = vpack.c.b16 %v5918, %v5915
        %v5961 = vpack.c.b16 %v5919, %v5916
        %v5962 = vpack.c.b16 %v5923, %v5920
        %v5963 = vpack.c.b16 %v5924, %v5921
        %v5964 = vpack.c.b16 %v5925, %v5922
        %v5965 = vpack.c.b16 %v5929, %v5926
        %v5966 = vpack.c.b16 %v5930, %v5927
        %v5967 = vpack.c.b16 %v5931, %v5928
        %v5968 = vpack.c.b16 %v5935, %v5932
        %v5969 = vpack.c.b16 %v5936, %v5933
        %v5970 = vpack.c.b16 %v5937, %v5934
        %v5971 = vpack.c.b16 %v5941, %v5938
        %v5972 = vpack.c.b16 %v5942, %v5939
        %v5973 = vpack.c.b16 %v5943, %v5940
        %v5974 = vpack.c.b16 %v5947, %v5944
        %v5975 = vpack.c.b16 %v5948, %v5945
        %v5976 = vpack.c.b16 %v5949, %v5946
        %v5977 = vpack.c.b16 %v5953, %v5950
        %v5978 = vpack.c.b16 %v5954, %v5951
        %v5979 = vpack.c.b16 %v5955, %v5952
        %6004 = vmatprep.subr.bf16.mxu0 %v5978
        %6005 = vmatpush1.bf16.msra.mxu0 %v5977
        %6006 = vmatprep.subr.bf16.mxu0 %v5975
        %6007 = vmatpush1.bf16.msra.mxu0 %v5974
        %6008 = vmatprep.subr.bf16.mxu0 %v5972
        %6009 = vmatpush1.bf16.msra.mxu0 %v5971
        %6010 = vmatprep.subr.bf16.mxu0 %v5969
        %6011 = vmatpush1.bf16.msra.mxu0 %v5968
        %6012 = vmatprep.subr.bf16.mxu0 %v5966
        %6013 = vmatpush1.bf16.msra.mxu0 %v5965
        %6014 = vmatprep.subr.bf16.mxu0 %v5963
        %6015 = vmatpush1.bf16.msra.mxu0 %v5962
        %6016 = vmatprep.subr.bf16.mxu0 %v5960
        %6017 = vmatpush1.bf16.msra.mxu0 %v5959
        %6018 = vmatprep.subr.bf16.mxu0 %v5957
        %6019 = vmatpush1.bf16.msra.mxu0 %v5956
        %6020 = vmatprep.subr.bf16.mxu0 0
        %6021 = vmatpush2.bf16.msra.mxu0 0
        %6022 = vmatprep.subr.bf16.mxu0 0
        %6023 = vmatpush2.bf16.msra.mxu0 0
        %6024 = vmatprep.subr.bf16.mxu0 0
        %6025 = vmatpush2.bf16.msra.mxu0 0
        %6026 = vmatprep.subr.bf16.mxu0 0
        %6027 = vmatpush2.bf16.msra.mxu0 0
        %6028 = vmatprep.subr.bf16.mxu0 0
        %6029 = vmatpush2.bf16.msra.mxu0 0
        %6030 = vmatprep.subr.bf16.mxu0 0
        %6031 = vmatpush2.bf16.msra.mxu0 0
        %6032 = vmatprep.subr.bf16.mxu0 0
        %6033 = vmatpush2.bf16.msra.mxu0 0
        %6034 = vmatprep.subr.bf16.mxu0 0
        %6035 = vmatpush2.bf16.msra.mxu0 0
        %6036 = vmatprep.mubr.bf16.mxu0 0
        %6037 = vmatmul.mubr.bf16.gmra.mxu0 %v5852
        %v6038 = vpop.f32.mrf.mxu0
        %v6039 = vadd.f32 0.0, %v6038
        %v6040 = vpop.f32.mrf.mxu0
        %v6041 = vadd.f32 0.0, %v6040
        %v6042 = vpop.f32.mrf.mxu0
        %v6043 = vadd.f32 0.0, %v6042
        %v6044 = vpop.f32.mrf.mxu0
        %v6045 = vadd.f32 0.0, %v6044
        %6046 = vmatprep.mubr.bf16.mxu0 0
        %6047 = vmatmul.mubr.bf16.gmra.mxu0 %v5853
        %v6048 = vpop.f32.mrf.mxu0
        %v6049 = vpop.f32.mrf.mxu0
        %v6050 = vadd.f32 0.0, %v6049
        %v6051 = vpop.f32.mrf.mxu0
        %v6052 = vadd.f32 0.0, %v6051
        %v6053 = vpop.f32.mrf.mxu0
        %v6054 = vadd.f32 0.0, %v6053
        %6055 = vmatprep.mubr.bf16.mxu0 0
        %6056 = vmatmul.mubr.bf16.gmra.mxu0 %v5854
        %v6057 = vpop.f32.mrf.mxu0
        %v6058 = vadd.f32 0.0, %v6057
        %v6059 = vpop.f32.mrf.mxu0
        %v6060 = vadd.f32 0.0, %v6059
        %v6061 = vpop.f32.mrf.mxu0
        %v6062 = vpop.f32.mrf.mxu0
        %v6063 = vadd.f32 0.0, %v6062
        %6064 = vmatprep.mubr.bf16.mxu0 0
        %6065 = vmatmul.mubr.bf16.gmra.mxu0 %v5855
        %v6066 = vpop.f32.mrf.mxu0
        %v6067 = vadd.f32 0.0, %v6066
        %v6068 = vpop.f32.mrf.mxu0
        %v6069 = vadd.f32 0.0, %v6068
        %v6070 = vpop.f32.mrf.mxu0
        %v6071 = vadd.f32 0.0, %v6070
        %v6072 = vpop.f32.mrf.mxu0
        %v6073 = vadd.f32 0.0, %v6072
        %6074 = vmatprep.mubr.bf16.mxu0 0
        %6075 = vmatmul.mubr.bf16.gmra.mxu0 %v5856
        %v6076 = vpop.f32.mrf.mxu0
        %v6077 = vpop.f32.mrf.mxu0
        %v6078 = vadd.f32 0.0, %v6077
        %v6079 = vpop.f32.mrf.mxu0
        %v6080 = vadd.f32 0.0, %v6079
        %v6081 = vpop.f32.mrf.mxu0
        %v6082 = vadd.f32 0.0, %v6081
        %6083 = vmatprep.mubr.bf16.mxu0 0
        %6084 = vmatmul.mubr.bf16.gmra.mxu0 %v5857
        %v6085 = vpop.f32.mrf.mxu0
        %v6086 = vadd.f32 0.0, %v6085
        %v6087 = vpop.f32.mrf.mxu0
        %v6088 = vadd.f32 0.0, %v6087
        %v6089 = vpop.f32.mrf.mxu0
        %v6090 = vpop.f32.mrf.mxu0
        %v6091 = vadd.f32 0.0, %v6090
        %6092 = vmatprep.mubr.bf16.mxu0 0
        %6093 = vmatmul.mubr.bf16.gmra.mxu0 %v5858
        %v6094 = vpop.f32.mrf.mxu0
        %v6095 = vadd.f32 0.0, %v6094
        %v6096 = vpop.f32.mrf.mxu0
        %v6097 = vadd.f32 0.0, %v6096
        %v6098 = vpop.f32.mrf.mxu0
        %v6099 = vadd.f32 0.0, %v6098
        %v6100 = vpop.f32.mrf.mxu0
        %v6101 = vadd.f32 0.0, %v6100
        %6102 = vmatprep.mubr.bf16.mxu0 0
        %6103 = vmatmul.mubr.bf16.gmra.mxu0 %v5859
        %v6104 = vpop.f32.mrf.mxu0
        %v6105 = vpop.f32.mrf.mxu0
        %v6106 = vadd.f32 0.0, %v6105
        %v6107 = vpop.f32.mrf.mxu0
        %v6108 = vadd.f32 0.0, %v6107
        %v6109 = vpop.f32.mrf.mxu0
        %v6110 = vadd.f32 0.0, %v6109
        %6111 = vmatprep.mubr.bf16.mxu0 0
        %6112 = vmatmul.mubr.bf16.gmra.mxu0 %v5860
        %v6113 = vpop.f32.mrf.mxu0
        %v6114 = vadd.f32 0.0, %v6113
        %v6115 = vpop.f32.mrf.mxu0
        %v6116 = vadd.f32 0.0, %v6115
        %v6117 = vpop.f32.mrf.mxu0
        %v6118 = vpop.f32.mrf.mxu0
        %v6119 = vadd.f32 0.0, %v6118
        %6120 = vmatprep.mubr.bf16.mxu0 0
        %6121 = vmatmul.mubr.bf16.gmra.mxu0 %v5861
        %v6122 = vpop.f32.mrf.mxu0
        %v6123 = vadd.f32 0.0, %v6122
        %v6124 = vpop.f32.mrf.mxu0
        %v6125 = vadd.f32 0.0, %v6124
        %v6126 = vpop.f32.mrf.mxu0
        %v6127 = vadd.f32 0.0, %v6126
        %v6128 = vpop.f32.mrf.mxu0
        %v6129 = vadd.f32 0.0, %v6128
        %6130 = vmatprep.mubr.bf16.mxu0 0
        %6131 = vmatmul.mubr.bf16.gmra.mxu0 %v5862
        %v6132 = vpop.f32.mrf.mxu0
        %v6133 = vpop.f32.mrf.mxu0
        %v6134 = vadd.f32 0.0, %v6133
        %v6135 = vpop.f32.mrf.mxu0
        %v6136 = vadd.f32 0.0, %v6135
        %v6137 = vpop.f32.mrf.mxu0
        %v6138 = vadd.f32 0.0, %v6137
        %6139 = vmatprep.mubr.bf16.mxu0 0
        %6140 = vmatmul.mubr.bf16.gmra.mxu0 %v5863
        %v6141 = vpop.f32.mrf.mxu0
        %v6142 = vadd.f32 0.0, %v6141
        %v6143 = vpop.f32.mrf.mxu0
        %v6144 = vadd.f32 0.0, %v6143
        %v6145 = vpop.f32.mrf.mxu0
        %v6146 = vpop.f32.mrf.mxu0
        %v6147 = vadd.f32 0.0, %v6146
        %6148 = vdwg.mxu0
        %6149 = vmatprep.subr.bf16.mxu0 0
        %6150 = vmatpush1.bf16.msra.mxu0 %v5979
        %6151 = vmatprep.subr.bf16.mxu0 0
        %6152 = vmatpush1.bf16.msra.mxu0 %v5976
        %6153 = vmatprep.subr.bf16.mxu0 0
        %6154 = vmatpush1.bf16.msra.mxu0 %v5973
        %6155 = vmatprep.subr.bf16.mxu0 0
        %6156 = vmatpush1.bf16.msra.mxu0 %v5970
        %6157 = vmatprep.subr.bf16.mxu0 0
        %6158 = vmatpush1.bf16.msra.mxu0 %v5967
        %6159 = vmatprep.subr.bf16.mxu0 0
        %6160 = vmatpush1.bf16.msra.mxu0 %v5964
        %6161 = vmatprep.subr.bf16.mxu0 0
        %6162 = vmatpush1.bf16.msra.mxu0 %v5961
        %6163 = vmatprep.subr.bf16.mxu0 0
        %6164 = vmatpush1.bf16.msra.mxu0 %v5958
        %6165 = vmatprep.subr.bf16.mxu0 0
        %6166 = vmatpush2.bf16.msra.mxu0 0
        %6167 = vmatprep.subr.bf16.mxu0 0
        %6168 = vmatpush2.bf16.msra.mxu0 0
        %6169 = vmatprep.subr.bf16.mxu0 0
        %6170 = vmatpush2.bf16.msra.mxu0 0
        %6171 = vmatprep.subr.bf16.mxu0 0
        %6172 = vmatpush2.bf16.msra.mxu0 0
        %6173 = vmatprep.subr.bf16.mxu0 0
        %6174 = vmatpush2.bf16.msra.mxu0 0
        %6175 = vmatprep.subr.bf16.mxu0 0
        %6176 = vmatpush2.bf16.msra.mxu0 0
        %6177 = vmatprep.subr.bf16.mxu0 0
        %6178 = vmatpush2.bf16.msra.mxu0 0
        %6179 = vmatprep.subr.bf16.mxu0 0
        %6180 = vmatpush2.bf16.msra.mxu0 0
        %6181 = vmatprep.mubr.bf16.mxu0 0
        %6182 = vmatmul.mubr.bf16.gmra.mxu0 %v5852
        %v6183 = vpop.f32.mrf.mxu0
        %v6184 = vadd.f32 0.0, %v6183
        %v6185 = vpop.f32.mrf.mxu0
        %v6186 = vpop.f32.mrf.mxu0
        %v6187 = vadd.f32 0.0, %v6186
        %v6188 = vpop.f32.mrf.mxu0
        %6189 = vmatprep.mubr.bf16.mxu0 0
        %6190 = vmatmul.mubr.bf16.gmra.mxu0 %v5853
        %v6191 = vpop.f32.mrf.mxu0
        %v6192 = vadd.f32 0.0, %v6191
        %v6193 = vpop.f32.mrf.mxu0
        %v6194 = vpop.f32.mrf.mxu0
        %v6195 = vadd.f32 0.0, %v6194
        %v6196 = vpop.f32.mrf.mxu0
        %6197 = vmatprep.mubr.bf16.mxu0 0
        %6198 = vmatmul.mubr.bf16.gmra.mxu0 %v5854
        %v6199 = vpop.f32.mrf.mxu0
        %v6200 = vadd.f32 0.0, %v6199
        %v6201 = vpop.f32.mrf.mxu0
        %v6202 = vpop.f32.mrf.mxu0
        %v6203 = vadd.f32 0.0, %v6202
        %v6204 = vpop.f32.mrf.mxu0
        %6205 = vmatprep.mubr.bf16.mxu0 0
        %6206 = vmatmul.mubr.bf16.gmra.mxu0 %v5855
        %v6207 = vpop.f32.mrf.mxu0
        %v6208 = vadd.f32 0.0, %v6207
        %v6209 = vpop.f32.mrf.mxu0
        %v6210 = vpop.f32.mrf.mxu0
        %v6211 = vadd.f32 0.0, %v6210
        %v6212 = vpop.f32.mrf.mxu0
        %6213 = vmatprep.mubr.bf16.mxu0 0
        %6214 = vmatmul.mubr.bf16.gmra.mxu0 %v5856
        %v6215 = vpop.f32.mrf.mxu0
        %v6216 = vadd.f32 0.0, %v6215
        %v6217 = vpop.f32.mrf.mxu0
        %v6218 = vpop.f32.mrf.mxu0
        %v6219 = vadd.f32 0.0, %v6218
        %v6220 = vpop.f32.mrf.mxu0
        %6221 = vmatprep.mubr.bf16.mxu0 0
        %6222 = vmatmul.mubr.bf16.gmra.mxu0 %v5857
        %v6223 = vpop.f32.mrf.mxu0
        %v6224 = vadd.f32 0.0, %v6223
        %v6225 = vpop.f32.mrf.mxu0
        %v6226 = vpop.f32.mrf.mxu0
        %v6227 = vadd.f32 0.0, %v6226
        %v6228 = vpop.f32.mrf.mxu0
        %6229 = vmatprep.mubr.bf16.mxu0 0
        %6230 = vmatmul.mubr.bf16.gmra.mxu0 %v5858
        %v6231 = vpop.f32.mrf.mxu0
        %v6232 = vadd.f32 0.0, %v6231
        %v6233 = vpop.f32.mrf.mxu0
        %v6234 = vpop.f32.mrf.mxu0
        %v6235 = vadd.f32 0.0, %v6234
        %v6236 = vpop.f32.mrf.mxu0
        %6237 = vmatprep.mubr.bf16.mxu0 0
        %6238 = vmatmul.mubr.bf16.gmra.mxu0 %v5859
        %v6239 = vpop.f32.mrf.mxu0
        %v6240 = vadd.f32 0.0, %v6239
        %v6241 = vpop.f32.mrf.mxu0
        %v6242 = vpop.f32.mrf.mxu0
        %v6243 = vadd.f32 0.0, %v6242
        %v6244 = vpop.f32.mrf.mxu0
        %6245 = vmatprep.mubr.bf16.mxu0 0
        %6246 = vmatmul.mubr.bf16.gmra.mxu0 %v5860
        %v6247 = vpop.f32.mrf.mxu0
        %v6248 = vadd.f32 0.0, %v6247
        %v6249 = vpop.f32.mrf.mxu0
        %v6250 = vpop.f32.mrf.mxu0
        %v6251 = vadd.f32 0.0, %v6250
        %v6252 = vpop.f32.mrf.mxu0
        %6253 = vmatprep.mubr.bf16.mxu0 0
        %6254 = vmatmul.mubr.bf16.gmra.mxu0 %v5861
        %v6255 = vpop.f32.mrf.mxu0
        %v6256 = vadd.f32 0.0, %v6255
        %v6257 = vpop.f32.mrf.mxu0
        %v6258 = vpop.f32.mrf.mxu0
        %v6259 = vadd.f32 0.0, %v6258
        %v6260 = vpop.f32.mrf.mxu0
        %6261 = vmatprep.mubr.bf16.mxu0 0
        %6262 = vmatmul.mubr.bf16.gmra.mxu0 %v5862
        %v6263 = vpop.f32.mrf.mxu0
        %v6264 = vadd.f32 0.0, %v6263
        %v6265 = vpop.f32.mrf.mxu0
        %v6266 = vpop.f32.mrf.mxu0
        %v6267 = vadd.f32 0.0, %v6266
        %v6268 = vpop.f32.mrf.mxu0
        %6269 = vmatprep.mubr.bf16.mxu0 0
        %6270 = vmatmul.mubr.bf16.gmra.mxu0 %v5863
        %v6271 = vpop.f32.mrf.mxu0
        %v6272 = vadd.f32 0.0, %v6271
        %v6273 = vpop.f32.mrf.mxu0
        %v6274 = vpop.f32.mrf.mxu0
        %v6275 = vadd.f32 0.0, %v6274
        %v6276 = vpop.f32.mrf.mxu0
        %6277 = vdwg.mxu0
        %v6278 = vld [vmem:[#allocation5] sm:$0xff]
        %v6279 = vld [vmem:[#allocation5 + $0x8] sm:$0xff]
        %v6280 = vld [vmem:[#allocation5 + $0x10] sm:$0xff]
        %v6281 = vld [vmem:[#allocation5 + $0x18] sm:$0xff]
        %v6282 = vld [vmem:[#allocation5 + $0x20] sm:$0xff]
        %v6283 = vld [vmem:[#allocation5 + $0x28] sm:$0xff]
        %v6284 = vld [vmem:[#allocation5 + $0x30] sm:$0xff]
        %v6285 = vld [vmem:[#allocation5 + $0x38] sm:$0xff]
        %v6286 = vld [vmem:[#allocation5 + $0x40] sm:$0xff]
        %v6287 = vld [vmem:[#allocation5 + $0x48] sm:$0xff]
        %v6288 = vld [vmem:[#allocation5 + $0x50] sm:$0xff]
        %v6289 = vld [vmem:[#allocation5 + $0x58] sm:$0xff]
        %v6290 = vld [vmem:[#allocation5 + $0x60] sm:$0xff]
        %v6291 = vld [vmem:[#allocation5 + $0x68] sm:$0xff]
        %v6292 = vld [vmem:[#allocation5 + $0x70] sm:$0xff]
        %v6293 = vld [vmem:[#allocation5 + $0x78] sm:$0xff]
        %v6294 = vadd.f32 %v6278, %v6039
        %v6295 = vadd.f32 %v6279, %v6043
        %v6296 = vadd.f32 %v6280, %v6052
        %v6297 = vadd.f32 %v6281, %v6058
        %v6298 = vadd.f32 %v6282, %v6067
        %v6299 = vadd.f32 %v6283, %v6071
        %v6300 = vadd.f32 %v6284, %v6080
        %v6301 = vadd.f32 %v6285, %v6086
        %v6302 = vadd.f32 %v6286, %v6095
        %v6303 = vadd.f32 %v6287, %v6099
        %v6304 = vadd.f32 %v6288, %v6108
        %v6305 = vadd.f32 %v6289, %v6114
        %v6306 = vadd.f32 %v6290, %v6123
        %v6307 = vadd.f32 %v6291, %v6127
        %v6308 = vadd.f32 %v6292, %v6136
        %v6309 = vadd.f32 %v6293, %v6142
        %6310 = vst [vmem:[#allocation5] sm:$0xff] %v6294
        %6311 = vst [vmem:[#allocation5 + $0x8] sm:$0xff] %v6295
        %6312 = vst [vmem:[#allocation5 + $0x10] sm:$0xff] %v6296
        %6313 = vst [vmem:[#allocation5 + $0x18] sm:$0xff] %v6297
        %6314 = vst [vmem:[#allocation5 + $0x20] sm:$0xff] %v6298
        %6315 = vst [vmem:[#allocation5 + $0x28] sm:$0xff] %v6299
        %6316 = vst [vmem:[#allocation5 + $0x30] sm:$0xff] %v6300
        %6317 = vst [vmem:[#allocation5 + $0x38] sm:$0xff] %v6301
        %6318 = vst [vmem:[#allocation5 + $0x40] sm:$0xff] %v6302
        %6319 = vst [vmem:[#allocation5 + $0x48] sm:$0xff] %v6303
        %6320 = vst [vmem:[#allocation5 + $0x50] sm:$0xff] %v6304
        %6321 = vst [vmem:[#allocation5 + $0x58] sm:$0xff] %v6305
        %6322 = vst [vmem:[#allocation5 + $0x60] sm:$0xff] %v6306
        %6323 = vst [vmem:[#allocation5 + $0x68] sm:$0xff] %v6307
        %6324 = vst [vmem:[#allocation5 + $0x70] sm:$0xff] %v6308
        %6325 = vst [vmem:[#allocation5 + $0x78] sm:$0xff] %v6309
        %v6326 = vld [vmem:[#allocation5] sm:$0xff]
        %v6327 = vld [vmem:[#allocation5 + $0x8] sm:$0xff]
        %v6328 = vld [vmem:[#allocation5 + $0x10] sm:$0xff]
        %v6329 = vld [vmem:[#allocation5 + $0x18] sm:$0xff]
        %v6330 = vld [vmem:[#allocation5 + $0x20] sm:$0xff]
        %v6331 = vld [vmem:[#allocation5 + $0x28] sm:$0xff]
        %v6332 = vld [vmem:[#allocation5 + $0x30] sm:$0xff]
        %v6333 = vld [vmem:[#allocation5 + $0x38] sm:$0xff]
        %v6334 = vld [vmem:[#allocation5 + $0x40] sm:$0xff]
        %v6335 = vld [vmem:[#allocation5 + $0x48] sm:$0xff]
        %v6336 = vld [vmem:[#allocation5 + $0x50] sm:$0xff]
        %v6337 = vld [vmem:[#allocation5 + $0x58] sm:$0xff]
        %v6338 = vld [vmem:[#allocation5 + $0x60] sm:$0xff]
        %v6339 = vld [vmem:[#allocation5 + $0x68] sm:$0xff]
        %v6340 = vld [vmem:[#allocation5 + $0x70] sm:$0xff]
        %v6341 = vld [vmem:[#allocation5 + $0x78] sm:$0xff]
        %v6366 = vrot.slane %v6041, 1
        %v6367 = vrot.slane %v6045, 1
        %v6368 = vsel %vm1093, %v6366, %v6367
        %v6369 = vrot.slane %v6050, 1
        %v6370 = vsel %vm1093, %v6367, %v6369
        %v6371 = vrot.slane %v6054, 1
        %v6372 = vrot.slane %v6060, 1
        %v6373 = vsel %vm1093, %v6371, %v6372
        %v6374 = vrot.slane %v6063, 1
        %v6375 = vsel %vm1093, %v6372, %v6374
        %v6376 = vrot.slane %v6069, 1
        %v6377 = vrot.slane %v6073, 1
        %v6378 = vsel %vm1093, %v6376, %v6377
        %v6379 = vrot.slane %v6078, 1
        %v6380 = vsel %vm1093, %v6377, %v6379
        %v6381 = vrot.slane %v6082, 1
        %v6382 = vrot.slane %v6088, 1
        %v6383 = vsel %vm1093, %v6381, %v6382
        %v6384 = vrot.slane %v6091, 1
        %v6385 = vsel %vm1093, %v6382, %v6384
        %v6386 = vrot.slane %v6097, 1
        %v6387 = vrot.slane %v6101, 1
        %v6388 = vsel %vm1093, %v6386, %v6387
        %v6389 = vrot.slane %v6106, 1
        %v6390 = vsel %vm1093, %v6387, %v6389
        %v6391 = vrot.slane %v6110, 1
        %v6392 = vrot.slane %v6116, 1
        %v6393 = vsel %vm1093, %v6391, %v6392
        %v6394 = vrot.slane %v6119, 1
        %v6395 = vsel %vm1093, %v6392, %v6394
        %v6396 = vrot.slane %v6125, 1
        %v6397 = vrot.slane %v6129, 1
        %v6398 = vsel %vm1093, %v6396, %v6397
        %v6399 = vrot.slane %v6134, 1
        %v6400 = vsel %vm1093, %v6397, %v6399
        %v6401 = vrot.slane %v6138, 1
        %v6402 = vrot.slane %v6144, 1
        %v6403 = vsel %vm1093, %v6401, %v6402
        %v6404 = vrot.slane %v6147, 1
        %v6405 = vsel %vm1093, %v6402, %v6404
        %v6422 = vadd.f32 %v6326, %v6368
        %v6423 = vadd.f32 %v6327, %v6370
        %v6424 = vadd.f32 %v6328, %v6373
        %v6425 = vadd.f32 %v6329, %v6375
        %v6426 = vadd.f32 %v6330, %v6378
        %v6427 = vadd.f32 %v6331, %v6380
        %v6428 = vadd.f32 %v6332, %v6383
        %v6429 = vadd.f32 %v6333, %v6385
        %v6430 = vadd.f32 %v6334, %v6388
        %v6431 = vadd.f32 %v6335, %v6390
        %v6432 = vadd.f32 %v6336, %v6393
        %v6433 = vadd.f32 %v6337, %v6395
        %v6434 = vadd.f32 %v6338, %v6398
        %v6435 = vadd.f32 %v6339, %v6400
        %v6436 = vadd.f32 %v6340, %v6403
        %v6437 = vadd.f32 %v6341, %v6405
        %6438 = vst [vmem:[#allocation5] sm:$0xff] %v6422
        %6439 = vst [vmem:[#allocation5 + $0x8] sm:$0xff] %v6423
        %6440 = vst [vmem:[#allocation5 + $0x10] sm:$0xff] %v6424
        %6441 = vst [vmem:[#allocation5 + $0x18] sm:$0xff] %v6425
        %6442 = vst [vmem:[#allocation5 + $0x20] sm:$0xff] %v6426
        %6443 = vst [vmem:[#allocation5 + $0x28] sm:$0xff] %v6427
        %6444 = vst [vmem:[#allocation5 + $0x30] sm:$0xff] %v6428
        %6445 = vst [vmem:[#allocation5 + $0x38] sm:$0xff] %v6429
        %6446 = vst [vmem:[#allocation5 + $0x40] sm:$0xff] %v6430
        %6447 = vst [vmem:[#allocation5 + $0x48] sm:$0xff] %v6431
        %6448 = vst [vmem:[#allocation5 + $0x50] sm:$0xff] %v6432
        %6449 = vst [vmem:[#allocation5 + $0x58] sm:$0xff] %v6433
        %6450 = vst [vmem:[#allocation5 + $0x60] sm:$0xff] %v6434
        %6451 = vst [vmem:[#allocation5 + $0x68] sm:$0xff] %v6435
        %6452 = vst [vmem:[#allocation5 + $0x70] sm:$0xff] %v6436
        %6453 = vst [vmem:[#allocation5 + $0x78] sm:$0xff] %v6437
        %v6454 = vld [vmem:[#allocation5] sm:$0xff]
        %v6455 = vld [vmem:[#allocation5 + $0x8] sm:$0xff]
        %v6456 = vld [vmem:[#allocation5 + $0x10] sm:$0xff]
        %v6457 = vld [vmem:[#allocation5 + $0x18] sm:$0xff]
        %v6458 = vld [vmem:[#allocation5 + $0x20] sm:$0xff]
        %v6459 = vld [vmem:[#allocation5 + $0x28] sm:$0xff]
        %v6460 = vld [vmem:[#allocation5 + $0x30] sm:$0xff]
        %v6461 = vld [vmem:[#allocation5 + $0x38] sm:$0xff]
        %v6462 = vld [vmem:[#allocation5 + $0x40] sm:$0xff]
        %v6463 = vld [vmem:[#allocation5 + $0x48] sm:$0xff]
        %v6464 = vld [vmem:[#allocation5 + $0x50] sm:$0xff]
        %v6465 = vld [vmem:[#allocation5 + $0x58] sm:$0xff]
        %v6466 = vld [vmem:[#allocation5 + $0x60] sm:$0xff]
        %v6467 = vld [vmem:[#allocation5 + $0x68] sm:$0xff]
        %v6468 = vld [vmem:[#allocation5 + $0x70] sm:$0xff]
        %v6469 = vld [vmem:[#allocation5 + $0x78] sm:$0xff]
        %v6494 = vrot.slane %v6184, 2
        %v6495 = vrot.slane %v6187, 2
        %v6496 = vsel %vm1294, %v6494, %v6495
        %v6497 = vrot.slane %v6192, 2
        %v6498 = vsel %vm1294, %v6495, %v6497
        %v6499 = vrot.slane %v6195, 2
        %v6500 = vrot.slane %v6200, 2
        %v6501 = vsel %vm1294, %v6499, %v6500
        %v6502 = vrot.slane %v6203, 2
        %v6503 = vsel %vm1294, %v6500, %v6502
        %v6504 = vrot.slane %v6208, 2
        %v6505 = vrot.slane %v6211, 2
        %v6506 = vsel %vm1294, %v6504, %v6505
        %v6507 = vrot.slane %v6216, 2
        %v6508 = vsel %vm1294, %v6505, %v6507
        %v6509 = vrot.slane %v6219, 2
        %v6510 = vrot.slane %v6224, 2
        %v6511 = vsel %vm1294, %v6509, %v6510
        %v6512 = vrot.slane %v6227, 2
        %v6513 = vsel %vm1294, %v6510, %v6512
        %v6514 = vrot.slane %v6232, 2
        %v6515 = vrot.slane %v6235, 2
        %v6516 = vsel %vm1294, %v6514, %v6515
        %v6517 = vrot.slane %v6240, 2
        %v6518 = vsel %vm1294, %v6515, %v6517
        %v6519 = vrot.slane %v6243, 2
        %v6520 = vrot.slane %v6248, 2
        %v6521 = vsel %vm1294, %v6519, %v6520
        %v6522 = vrot.slane %v6251, 2
        %v6523 = vsel %vm1294, %v6520, %v6522
        %v6524 = vrot.slane %v6256, 2
        %v6525 = vrot.slane %v6259, 2
        %v6526 = vsel %vm1294, %v6524, %v6525
        %v6527 = vrot.slane %v6264, 2
        %v6528 = vsel %vm1294, %v6525, %v6527
        %v6529 = vrot.slane %v6267, 2
        %v6530 = vrot.slane %v6272, 2
        %v6531 = vsel %vm1294, %v6529, %v6530
        %v6532 = vrot.slane %v6275, 2
        %v6533 = vsel %vm1294, %v6530, %v6532
        %v6550 = vadd.f32 %v6454, %v6496
        %v6551 = vadd.f32 %v6455, %v6498
        %v6552 = vadd.f32 %v6456, %v6501
        %v6553 = vadd.f32 %v6457, %v6503
        %v6554 = vadd.f32 %v6458, %v6506
        %v6555 = vadd.f32 %v6459, %v6508
        %v6556 = vadd.f32 %v6460, %v6511
        %v6557 = vadd.f32 %v6461, %v6513
        %v6558 = vadd.f32 %v6462, %v6516
        %v6559 = vadd.f32 %v6463, %v6518
        %v6560 = vadd.f32 %v6464, %v6521
        %v6561 = vadd.f32 %v6465, %v6523
        %v6562 = vadd.f32 %v6466, %v6526
        %v6563 = vadd.f32 %v6467, %v6528
        %v6564 = vadd.f32 %v6468, %v6531
        %v6565 = vadd.f32 %v6469, %v6533
        %6566 = vst [vmem:[#allocation5] sm:$0xff] %v6550
        %6567 = vst [vmem:[#allocation5 + $0x8] sm:$0xff] %v6551
        %6568 = vst [vmem:[#allocation5 + $0x10] sm:$0xff] %v6552
        %6569 = vst [vmem:[#allocation5 + $0x18] sm:$0xff] %v6553
        %6570 = vst [vmem:[#allocation5 + $0x20] sm:$0xff] %v6554
        %6571 = vst [vmem:[#allocation5 + $0x28] sm:$0xff] %v6555
        %6572 = vst [vmem:[#allocation5 + $0x30] sm:$0xff] %v6556
        %6573 = vst [vmem:[#allocation5 + $0x38] sm:$0xff] %v6557
        %6574 = vst [vmem:[#allocation5 + $0x40] sm:$0xff] %v6558
        %6575 = vst [vmem:[#allocation5 + $0x48] sm:$0xff] %v6559
        %6576 = vst [vmem:[#allocation5 + $0x50] sm:$0xff] %v6560
        %6577 = vst [vmem:[#allocation5 + $0x58] sm:$0xff] %v6561
        %6578 = vst [vmem:[#allocation5 + $0x60] sm:$0xff] %v6562
        %6579 = vst [vmem:[#allocation5 + $0x68] sm:$0xff] %v6563
        %6580 = vst [vmem:[#allocation5 + $0x70] sm:$0xff] %v6564
        %6581 = vst [vmem:[#allocation5 + $0x78] sm:$0xff] %v6565
        %v6582 = vld [vmem:[%s263 + $0x18] sm:$0xf]
        %v6583 = vld [vmem:[%s263 + $0x1c] sm:$0xf]
        %v6584 = vld [vmem:[%s263 + $0x20] sm:$0xf]
        %v6585 = vld [vmem:[%s263 + $0x24] sm:$0xf]
        %v6586 = vld [vmem:[%s263 + $0x28] sm:$0xf]
        %v6587 = vld [vmem:[%s263 + $0x2c] sm:$0xf]
        %v6588 = vld [vmem:[%s263 + $0x30] sm:$0xf]
        %v6589 = vld [vmem:[%s263 + $0x34] sm:$0xf]
        %v6590 = vld [vmem:[%s263 + $0x38] sm:$0xf]
        %v6591 = vld [vmem:[%s263 + $0x3c] sm:$0xf]
        %v6592 = vld [vmem:[%s263 + $0x40] sm:$0xf]
        %v6593 = vld [vmem:[%s263 + $0x44] sm:$0xf]
        %v6594 = vld [vmem:[%s263 + $0x48] sm:$0xf]
        %v6595 = vld [vmem:[%s263 + $0x4c] sm:$0xf]
        %v6596 = vld [vmem:[%s263 + $0x50] sm:$0xf]
        %v6597 = vld [vmem:[%s263 + $0x54] sm:$0xf]
        %v6598 = vld [vmem:[%s263 + $0x58] sm:$0xf]
        %v6599 = vld [vmem:[%s263 + $0x5c] sm:$0xf]
        %v6600 = vld [vmem:[%s263 + $0x60] sm:$0xf]
        %v6601 = vld [vmem:[%s263 + $0x64] sm:$0xf]
        %v6602 = vld [vmem:[%s263 + $0x68] sm:$0xf]
        %v6603 = vld [vmem:[%s263 + $0x6c] sm:$0xf]
        %v6604 = vld [vmem:[%s263 + $0x70] sm:$0xf]
        %v6605 = vld [vmem:[%s263 + $0x74] sm:$0xf]
        %v6606 = vunpack.c.l.bf16 %v6582
        %v6607 = vunpack.c.l.bf16 %v6583
        %v6608 = vunpack.c.l.bf16 %v6584
        %v6609 = vunpack.c.l.bf16 %v6585
        %v6610 = vunpack.c.l.bf16 %v6586
        %v6611 = vunpack.c.l.bf16 %v6587
        %v6612 = vunpack.c.l.bf16 %v6588
        %v6613 = vunpack.c.l.bf16 %v6589
        %v6614 = vunpack.c.l.bf16 %v6590
        %v6615 = vunpack.c.l.bf16 %v6591
        %v6616 = vunpack.c.l.bf16 %v6592
        %v6617 = vunpack.c.l.bf16 %v6593
        %v6618 = vunpack.c.l.bf16 %v6594
        %v6619 = vunpack.c.l.bf16 %v6595
        %v6620 = vunpack.c.l.bf16 %v6596
        %v6621 = vunpack.c.l.bf16 %v6597
        %v6622 = vunpack.c.l.bf16 %v6598
        %v6623 = vunpack.c.l.bf16 %v6599
        %v6624 = vunpack.c.l.bf16 %v6600
        %v6625 = vunpack.c.l.bf16 %v6601
        %v6626 = vunpack.c.l.bf16 %v6602
        %v6627 = vunpack.c.l.bf16 %v6603
        %v6628 = vunpack.c.l.bf16 %v6604
        %v6629 = vunpack.c.l.bf16 %v6605
        %v6630 = vld [vmem:[#allocation5] sm:$0xff]
        %v6631 = vld [vmem:[#allocation5 + $0x8] sm:$0xff]
        %v6632 = vld [vmem:[#allocation5 + $0x10] sm:$0xff]
        %v6633 = vld [vmem:[#allocation5 + $0x18] sm:$0xff]
        %v6634 = vld [vmem:[#allocation5 + $0x20] sm:$0xff]
        %v6635 = vld [vmem:[#allocation5 + $0x28] sm:$0xff]
        %v6636 = vld [vmem:[#allocation5 + $0x30] sm:$0xff]
        %v6637 = vld [vmem:[#allocation5 + $0x38] sm:$0xff]
        %v6638 = vld [vmem:[#allocation5 + $0x40] sm:$0xff]
        %v6639 = vld [vmem:[#allocation5 + $0x48] sm:$0xff]
        %v6640 = vld [vmem:[#allocation5 + $0x50] sm:$0xff]
        %v6641 = vld [vmem:[#allocation5 + $0x58] sm:$0xff]
        %v6642 = vld [vmem:[#allocation5 + $0x60] sm:$0xff]
        %v6643 = vld [vmem:[#allocation5 + $0x68] sm:$0xff]
        %v6644 = vld [vmem:[#allocation5 + $0x70] sm:$0xff]
        %v6645 = vld [vmem:[#allocation5 + $0x78] sm:$0xff]
        %v6646 = vld [vmem:[%s4] sm:$0x1]
        %v6648 = vlaneseq
        %v6649 = vshrl.u32 %v6648, 7
        %v6650 = vsub.s32 0, %v6649
        %v6651 = vrot.slane %v6646, %v6650
        %v6653 = vadd.f32 %v6630, %v6651
        %v6654 = vadd.f32 %v6631, %v6651
        %v6655 = vadd.f32 %v6632, %v6651
        %v6656 = vadd.f32 %v6633, %v6651
        %v6657 = vadd.f32 %v6634, %v6651
        %v6658 = vadd.f32 %v6635, %v6651
        %v6659 = vadd.f32 %v6636, %v6651
        %v6660 = vadd.f32 %v6637, %v6651
        %v6661 = vadd.f32 %v6638, %v6651
        %v6662 = vadd.f32 %v6639, %v6651
        %v6663 = vadd.f32 %v6640, %v6651
        %v6664 = vadd.f32 %v6641, %v6651
        %v6665 = vadd.f32 %v6642, %v6651
        %v6666 = vadd.f32 %v6643, %v6651
        %v6667 = vadd.f32 %v6644, %v6651
        %v6668 = vadd.f32 %v6645, %v6651
        %v6693 = vrot.slane %v6606, 2
        %v6694 = vrot.slane %v6607, 2
        %v6695 = vsel %vm1294, %v6693, %v6694
        %v6696 = vrot.slane %v6608, 2
        %v6697 = vsel %vm1294, %v6694, %v6696
        %v6698 = vrot.slane %v6609, 2
        %v6699 = vrot.slane %v6610, 2
        %v6700 = vsel %vm1294, %v6698, %v6699
        %v6701 = vrot.slane %v6611, 2
        %v6702 = vsel %vm1294, %v6699, %v6701
        %v6703 = vrot.slane %v6612, 2
        %v6704 = vrot.slane %v6613, 2
        %v6705 = vsel %vm1294, %v6703, %v6704
        %v6706 = vrot.slane %v6614, 2
        %v6707 = vsel %vm1294, %v6704, %v6706
        %v6708 = vrot.slane %v6615, 2
        %v6709 = vrot.slane %v6616, 2
        %v6710 = vsel %vm1294, %v6708, %v6709
        %v6711 = vrot.slane %v6617, 2
        %v6712 = vsel %vm1294, %v6709, %v6711
        %v6713 = vrot.slane %v6618, 2
        %v6714 = vrot.slane %v6619, 2
        %v6715 = vsel %vm1294, %v6713, %v6714
        %v6716 = vrot.slane %v6620, 2
        %v6717 = vsel %vm1294, %v6714, %v6716
        %v6718 = vrot.slane %v6621, 2
        %v6719 = vrot.slane %v6622, 2
        %v6720 = vsel %vm1294, %v6718, %v6719
        %v6721 = vrot.slane %v6623, 2
        %v6722 = vsel %vm1294, %v6719, %v6721
        %v6723 = vrot.slane %v6624, 2
        %v6724 = vrot.slane %v6625, 2
        %v6725 = vsel %vm1294, %v6723, %v6724
        %v6726 = vrot.slane %v6626, 2
        %v6727 = vsel %vm1294, %v6724, %v6726
        %v6728 = vrot.slane %v6627, 2
        %v6729 = vrot.slane %v6628, 2
        %v6730 = vsel %vm1294, %v6728, %v6729
        %v6731 = vrot.slane %v6629, 2
        %v6732 = vsel %vm1294, %v6729, %v6731
        %v6749 = vadd.f32 %v6653, %v6695
        %v6750 = vadd.f32 %v6654, %v6697
        %v6751 = vadd.f32 %v6655, %v6700
        %v6752 = vadd.f32 %v6656, %v6702
        %v6753 = vadd.f32 %v6657, %v6705
        %v6754 = vadd.f32 %v6658, %v6707
        %v6755 = vadd.f32 %v6659, %v6710
        %v6756 = vadd.f32 %v6660, %v6712
        %v6757 = vadd.f32 %v6661, %v6715
        %v6758 = vadd.f32 %v6662, %v6717
        %v6759 = vadd.f32 %v6663, %v6720
        %v6760 = vadd.f32 %v6664, %v6722
        %v6761 = vadd.f32 %v6665, %v6725
        %v6762 = vadd.f32 %v6666, %v6727
        %v6763 = vadd.f32 %v6667, %v6730
        %v6764 = vadd.f32 %v6668, %v6732
        %v6765 = vmax.f32 %v6749, 0.0
        %v6766 = vmax.f32 %v6750, 0.0
        %v6767 = vmax.f32 %v6751, 0.0
        %v6768 = vmax.f32 %v6752, 0.0
        %v6769 = vmax.f32 %v6753, 0.0
        %v6770 = vmax.f32 %v6754, 0.0
        %v6771 = vmax.f32 %v6755, 0.0
        %v6772 = vmax.f32 %v6756, 0.0
        %v6773 = vmax.f32 %v6757, 0.0
        %v6774 = vmax.f32 %v6758, 0.0
        %v6775 = vmax.f32 %v6759, 0.0
        %v6776 = vmax.f32 %v6760, 0.0
        %v6777 = vmax.f32 %v6761, 0.0
        %v6778 = vmax.f32 %v6762, 0.0
        %v6779 = vmax.f32 %v6763, 0.0
        %v6780 = vmax.f32 %v6764, 0.0
        %6781 = vst [vmem:[%s220] sm:$0xff] %v6765
        %6782 = vst [vmem:[%s220 + $0x8] sm:$0xff] %v6766
        %6783 = vst [vmem:[%s220 + $0x10] sm:$0xff] %v6767
        %6784 = vst [vmem:[%s220 + $0x18] sm:$0xff] %v6768
        %6785 = vst [vmem:[%s220 + $0x20] sm:$0xff] %v6769
        %6786 = vst [vmem:[%s220 + $0x28] sm:$0xff] %v6770
        %6787 = vst [vmem:[%s220 + $0x30] sm:$0xff] %v6771
        %6788 = vst [vmem:[%s220 + $0x38] sm:$0xff] %v6772
        %6789 = vst [vmem:[%s220 + $0x40] sm:$0xff] %v6773
        %6790 = vst [vmem:[%s220 + $0x48] sm:$0xff] %v6774
        %6791 = vst [vmem:[%s220 + $0x50] sm:$0xff] %v6775
        %6792 = vst [vmem:[%s220 + $0x58] sm:$0xff] %v6776
        %6793 = vst [vmem:[%s220 + $0x60] sm:$0xff] %v6777
        %6794 = vst [vmem:[%s220 + $0x68] sm:$0xff] %v6778
        %6795 = vst [vmem:[%s220 + $0x70] sm:$0xff] %v6779
        %6796 = vst [vmem:[%s220 + $0x78] sm:$0xff] %v6780
        %s6797 = sand.u32 %s127, 1
        %s6798 = scalar_lea.sflag [#allocation9], %s6797
        %s6799 = sand.u32 %s127, 1
        %s6800 = smul.addr %s6799, 128
        %s6801 = scalar_lea.vmem [#allocation12], %s6800
        // Predicated region
        $region61: #{tpu_custom_call.1} parent=35 // pred_check
          %p6802 = pneg %p137
        $region62: #{tpu_custom_call.1} parent=35 // pred_check_branch
          %6804 = sbr.rel (%p6802) target = $region64
        $region63: #{tpu_custom_call.1} parent=35 // pred_region
          %s6805 = smul.u32 8, %s26
          %s6807 = ssub.s32 2048, 2048
          %6808 = vsyncadd %s6798, %s6807
          %s6809 = smul.addr %s6805, 2
          %s6810 = smul.addr %s25, 32
          %s6811 = sadd.s32 %s6809, %s6810
          %s6812 = smul.addr %s6811, 128
          %s6813 = scalar_lea.hbm %s5, %s6812
          %s6814 = sshll.u32 %s6801, 4
          %s6815 = int_to_ptr.vmem [resolvable:$true] %s6814
          %6820 = dma.vmem_to_hbm [thread:$0]  %s6815, 2048, %s6813, %s6798, 128, 128, 8
        $region64: #{tpu_custom_call.1} parent=35 // pred_fallthru
          _
      $region36: #{tpu_custom_call.1} parent=5 // pred_fallthru
        _
      %p6821 = scmp.le.s32.totalorder 2, %s16
      // Predicated region
      $region65: #{tpu_custom_call.1} parent=5 // pred_check
        %p6822 = pneg %p6821
      $region66: #{tpu_custom_call.1} parent=5 // pred_check_branch
        %6824 = sbr.rel (%p6822) target = $region68
      $region67: #{tpu_custom_call.1} parent=5 // pred_region
        %s6825 = ssub.s32 %s16, 2
        // Predicated region
        $region69: #{tpu_custom_call.1} parent=67 // pred_check
          %p6826 = pneg %p143
        $region70: #{tpu_custom_call.1} parent=67 // pred_check_branch
          %6828 = sbr.rel (%p6826) target = $region72
        $region71: #{tpu_custom_call.1} parent=67 // pred_region
          %s6829 = sand.u32 %s128, 1
          %s6830 = scalar_lea.sflag [#allocation9], %s6829
          %s6831 = sand.u32 %s128, 1
          %s6832 = smul.addr %s6831, 128
          %s6833 = scalar_lea.vmem [#allocation12], %s6832
          %6834 = dma.done %s6830, 2048
        $region72: #{tpu_custom_call.1} parent=67 // pred_fallthru
          _
      $region68: #{tpu_custom_call.1} parent=5 // pred_fallthru
        _
    $region6: #{tpu_custom_call.1} parent=1 // loop_footer
      %s20 = sadd.s32 1, %s16
    $region7: #{tpu_custom_call.1} parent=1 // loop_footer_branch
      %15 = sbr.rel target = $region3
    $region8: #{tpu_custom_call.1} parent=1 // loop_exit
      _
    %6835 = vsyncpa [#allocation8], 1
    %s6836 = scalar_lea.sflag [#allocation8], 1
    %6837 = vsyncpa %s6836, 1
    %6838 = vsyncpa [#allocation11], 1
    %6839 = vsyncpa [#allocation9], 1
    %s6840 = scalar_lea.sflag [#allocation9], 1
    %6841 = vsyncpa %s6840, 1
  %6842 = vsyncmov [#allocation6]
  %s6843 = vpop.sfrf %6842
  %p6844 = scmp.eq.s32.totalorder %s6843, 0
  %p6845 = pneg %p6844
  %6847 = shalt.err (%p6845)
  %s6848 = scalar_lea.sflag [#allocation6], 1
  %6849 = vsyncmov %s6848
  %s6850 = vpop.sfrf %6849
  %p6851 = scmp.eq.s32.totalorder %s6850, 0
  %p6852 = pneg %p6851
  %6854 = shalt.err (%p6852)

</llo_original>
